<compile_context>
chip_gen: v7x
topology: tpu7x:2x2x1
jax: 0.10.0
libtpu: 0.0.40
codegen_flags: <defaults>
</compile_context>

<pallas_src>
import functools

import jax
import jax.numpy as jnp
from jax.experimental import pallas as pl
from jax.experimental.pallas import tpu as pltpu


VMEM_LIMIT = 32 * 1024 * 1024          # explicit scoped-VMEM cap, safe on v5e/v6e/v7x
_VMEM = pl.BlockSpec(memory_space=pltpu.MemorySpace.VMEM)

FEAT = 512                              # channels per encoder -> concat = 1024
HIDDEN = 128                            # conv1 width (full lane tile)
NUM_CLASSES = 309
NUM_CLASSES_PAD = 384                   # next multiple of 128 (lane-dense FC store)
K1_PAD = 32                             # conv1 im2col K (9*Cin <= 27) padded to 32


def _mxu_depth_256():
    """True on chips with a 256-deep MXU (v6e / v7x); False on v5e and older."""
    try:
        kind = jax.devices()[0].device_kind.lower()
    except Exception:
        return False
    return not any(tag in kind for tag in ("v2", "v3", "v4", "v5"))


# ---------------------------------------------------------------------------
# conv1: 3x3 conv (+bias, +ReLU), tiny Cin -> one MXU dot on a 32-wide im2col
# ---------------------------------------------------------------------------

def _conv1_kernel(col_ref, w_ref, b_ref, o_ref):
    # col_ref: (1, M, 32) bf16 im2col tile; w_ref: (32, tn) bf16; b_ref: (1, tn) f32
    acc = jnp.dot(col_ref[0], w_ref[...], preferred_element_type=jnp.float32)
    acc = acc + b_ref[...]
    o_ref[0] = jnp.maximum(acc, 0.0).astype(o_ref.dtype)


def conv1_3x3_relu(x_nhwc, w_hwio, b, *, out_dtype=jnp.bfloat16):
    """'same' 3x3 conv + bias + ReLU for tiny Cin (1 or 3).

    Output is at padded width: (n, h*(w+2), Cout); the 2 extra columns per image
    row contain finite garbage and are ignored (never sliced in HBM) by the
    downstream maxpool kernel.
    """
    n, h, w, cin = x_nhwc.shape
    assert cin <= 3 and 9 * cin <= K1_PAD
    cout = w_hwio.shape[-1]
    wp = w + 2
    m_out = h * wp
    tn = cout                                           # 128 -> one lane tile

    # pad + im2col + bf16 cast fuse into one XLA op producing a tiny buffer
    xp = jnp.pad(x_nhwc, ((0, 0), (1, 2), (1, 1), (0, 0)))
    xf = xp.reshape(n, (h + 3) * wp, cin)
    cols = [xf[:, dh * wp + dw: dh * wp + dw + m_out, :]
            for dh in range(3) for dw in range(3)]
    col = jnp.concatenate(cols, axis=-1)                # (n, m_out, 9*cin)
    col = jnp.pad(col, ((0, 0), (0, 0), (0, K1_PAD - 9 * cin))).astype(jnp.bfloat16)

    w2d = w_hwio.reshape(9 * cin, cout)                 # tap-major, matches im2col
    w2d = jnp.pad(w2d, ((0, K1_PAD - 9 * cin), (0, 0))).astype(jnp.bfloat16)
    b2 = b.reshape(1, cout).astype(jnp.float32)

    return pl.pallas_call(
        _conv1_kernel,
        out_shape=jax.ShapeDtypeStruct((n, m_out, cout), out_dtype),
        grid=(cout // tn, n),
        in_specs=[
            pl.BlockSpec((1, m_out, K1_PAD), lambda j, i: (i, 0, 0)),
            pl.BlockSpec((K1_PAD, tn), lambda j, i: (0, j)),
            pl.BlockSpec((1, tn), lambda j, i: (0, j)),
        ],
        out_specs=pl.BlockSpec((1, m_out, tn), lambda j, i: (i, 0, j)),
        compiler_params=pltpu.CompilerParams(
            dimension_semantics=("parallel", "parallel"),
            vmem_limit_bytes=VMEM_LIMIT),
    )(col, w2d, b2)


# ---------------------------------------------------------------------------
# 2x2 max pool (stride 2): reads padded-width conv1 output, writes the
# zero-bordered layout conv2 consumes (no wrapper slice, no wrapper pad)
# ---------------------------------------------------------------------------

def _maxpool_pad_kernel(x_ref, o_ref):
    # x_ref: (h2, 2, (w+2)//2, 2C)  row pairs on axis 1, column pairs in lanes
    # o_ref: (1, h2+3, w2+2, C)     zero borders + pooled interior
    c = o_ref.shape[-1]
    h2 = x_ref.shape[0]
    w2 = o_ref.shape[2] - 2
    o_ref[...] = jnp.zeros_like(o_ref)
    m = jnp.maximum(x_ref[:, 0, :w2, :], x_ref[:, 1, :w2, :])   # max over row pair
    pooled = jnp.maximum(m[:, :, :c], m[:, :, c:])              # max over col pair
    o_ref[0, 1:1 + h2, 1:1 + w2, :] = pooled


def maxpool2x2_pad(conv1_out_padw, *, h, w):
    """Pool the padded-width conv1 output and emit the next conv's padded layout,
    flattened to (n, (h/2+3)*(w/2+2), C)."""
    assert h % 2 == 0 and w % 2 == 0
    n, m_out, c = conv1_out_padw.shape
    wp = w + 2
    assert m_out == h * wp
    h2, w2 = h // 2, w // 2
    xr = conv1_out_padw.reshape(n * h2, 2, wp // 2, 2 * c)       # free regroup
    out = pl.pallas_call(
        _maxpool_pad_kernel,
        out_shape=jax.ShapeDtypeStruct((n, h2 + 3, w2 + 2, c), conv1_out_padw.dtype),
        grid=(n,),
        in_specs=[pl.BlockSpec((h2, 2, wp // 2, 2 * c), lambda i: (i, 0, 0, 0))],
        out_specs=pl.BlockSpec((1, h2 + 3, w2 + 2, c), lambda i: (i, 0, 0, 0)),
        compiler_params=pltpu.CompilerParams(
            dimension_semantics=("parallel",),
            vmem_limit_bytes=VMEM_LIMIT),
    )(xr)
    return out.reshape(n, (h2 + 3) * (w2 + 2), c)


# ---------------------------------------------------------------------------
# conv2: 3x3 conv (+bias, +ReLU) fused with the global spatial SUM
# ---------------------------------------------------------------------------

def _conv2_sumpool_kernel(x_ref, w_ref, b_ref, mask_ref, o_ref, *scratch,
                          wp, m_out, cin, paired):
    # x_ref: (1, m_in, cin) bf16 zero-padded flattened input
    # w_ref: (9, cin, tn) or (5, 2*cin, tn) bf16
    # b_ref: (1, tn) f32; mask_ref: (m_out, 1) f32 (0 on garbage columns)
    # o_ref: (1, 1, tn) f32 spatial sums
    tn = o_ref.shape[-1]
    offs = [dh * wp + dw for dh in range(3) for dw in range(3)]
    acc = jnp.zeros((m_out, tn), jnp.float32)
    if paired:
        # v6e/v7x: pack adjacent taps into a K=2*cin operand (lane-aligned stores)
        pair_ref, = scratch
        for p in range(5):
            pair_ref[:, 0:cin] = x_ref[0, pl.ds(offs[2 * p], m_out), :]
            if 2 * p + 1 < 9:
                pair_ref[:, cin:2 * cin] = x_ref[0, pl.ds(offs[2 * p + 1], m_out), :]
            else:
                pair_ref[:, cin:2 * cin] = jnp.zeros((m_out, cin), pair_ref.dtype)
            acc = acc + jnp.dot(pair_ref[...], w_ref[p],
                                preferred_element_type=jnp.float32)
    else:
        for t in range(9):
            acc = acc + jnp.dot(x_ref[0, pl.ds(offs[t], m_out), :], w_ref[t],
                                preferred_element_type=jnp.float32)
    acc = jnp.maximum(acc + b_ref[...], 0.0)
    acc = acc * mask_ref[...]                       # zero the padded-width columns
    o_ref[0] = jnp.sum(acc, axis=0, keepdims=True)


def conv2_3x3_relu_sumpool(x_flat_pad, w_hwio, b, *, h2, w2, pair_taps):
    """Fused 3x3 conv + bias + ReLU + global spatial SUM.  Returns (n, Cout) f32
    sums (divide by the pool area in the caller); the conv2 activation never
    touches HBM."""
    n, m_in, cin = x_flat_pad.shape
    cout = w_hwio.shape[-1]
    wp = w2 + 2
    m_out = h2 * wp
    assert m_in == (h2 + 3) * wp
    tn = 256 if cout % 256 == 0 else 128

    w9 = w_hwio.reshape(9, cin, cout).astype(jnp.bfloat16)
    if pair_taps:
        w_pairs = jnp.concatenate([w9[0:8:2], w9[1:9:2]], axis=1)     # (4, 2cin, cout)
        w_last = jnp.concatenate(
            [w9[8:9], jnp.zeros((1, cin, cout), jnp.bfloat16)], axis=1)
        wk = jnp.concatenate([w_pairs, w_last], axis=0)               # (5, 2cin, cout)
        w_spec = pl.BlockSpec((5, 2 * cin, tn), lambda j, i: (0, 0, j))
        scratch = [pltpu.VMEM((m_out, 2 * cin), jnp.bfloat16)]
    else:
        wk = w9
        w_spec = pl.BlockSpec((9, cin, tn), lambda j, i: (0, 0, j))
        scratch = []
    b2 = b.reshape(1, cout).astype(jnp.float32)
    mask = (jnp.arange(m_out) % wp < w2).astype(jnp.float32).reshape(m_out, 1)

    kernel = functools.partial(_conv2_sumpool_kernel, wp=wp, m_out=m_out,
                               cin=cin, paired=pair_taps)
    out = pl.pallas_call(
        kernel,
        out_shape=jax.ShapeDtypeStruct((n, 1, cout), jnp.float32),
        grid=(cout // tn, n),
        in_specs=[
            pl.BlockSpec((1, m_in, cin), lambda j, i: (i, 0, 0)),
            w_spec,
            pl.BlockSpec((1, tn), lambda j, i: (0, j)),
            pl.BlockSpec((m_out, 1), lambda j, i: (0, 0)),
        ],
        out_specs=pl.BlockSpec((1, 1, tn), lambda j, i: (i, 0, j)),
        scratch_shapes=scratch,
        compiler_params=pltpu.CompilerParams(
            dimension_semantics=("parallel", "parallel"),
            vmem_limit_bytes=VMEM_LIMIT),
    )(x_flat_pad, wk, b2, mask)
    return out[:, 0, :]


# ---------------------------------------------------------------------------
# fused concat + Linear(1024, 309 padded to 384), bf16 MXU operands
# ---------------------------------------------------------------------------

def _concat_fc_kernel(x_ref, y_ref, w_ref, b_ref, o_ref, *, feat):
    acc = jnp.dot(x_ref[...], w_ref[0:feat, :], preferred_element_type=jnp.float32)
    acc = acc + jnp.dot(y_ref[...], w_ref[feat:2 * feat, :],
                        preferred_element_type=jnp.float32)
    o_ref[...] = acc + b_ref[...]


def concat_fc(x_pool, y_pool, w, b):
    bsz, feat = x_pool.shape
    n_pad = w.shape[1]
    kernel = functools.partial(_concat_fc_kernel, feat=feat)
    return pl.pallas_call(
        kernel,
        out_shape=jax.ShapeDtypeStruct((bsz, n_pad), jnp.float32),
        in_specs=[_VMEM, _VMEM, _VMEM, _VMEM],
        out_specs=_VMEM,
        compiler_params=pltpu.CompilerParams(vmem_limit_bytes=VMEM_LIMIT),
    )(x_pool, y_pool, w, b)


# ---------------------------------------------------------------------------
# Model
# ---------------------------------------------------------------------------

def init_params(key):
    ks = jax.random.split(key, 5)
    s = 0.05
    fc_w = jax.random.normal(ks[4], (2 * FEAT, NUM_CLASSES), jnp.float32) * s
    fc_w = jnp.pad(fc_w, ((0, 0), (0, NUM_CLASSES_PAD - NUM_CLASSES)))
    return {
        # Aencoder (audio, 1 input channel)
        "a_w1": jax.random.normal(ks[0], (3, 3, 1, HIDDEN), jnp.float32) * s,
        "a_b1": jnp.zeros((HIDDEN,), jnp.float32),
        "a_w2": jax.random.normal(ks[1], (3, 3, HIDDEN, FEAT), jnp.float32) * s,
        "a_b2": jnp.zeros((FEAT,), jnp.float32),
        # Vencoder (visual, 3 input channels)
        "v_w1": jax.random.normal(ks[2], (3, 3, 3, HIDDEN), jnp.float32) * s,
        "v_b1": jnp.zeros((HIDDEN,), jnp.float32),
        "v_w2": jax.random.normal(ks[3], (3, 3, HIDDEN, FEAT), jnp.float32) * s,
        "v_b2": jnp.zeros((FEAT,), jnp.float32),
        # fc_ : Linear(1024, 309), N padded to 384 for lane-dense stores
        "fc_w": fc_w,
        "fc_b": jnp.zeros((NUM_CLASSES_PAD,), jnp.float32),
    }


def _encoder(x_nchw, w1, b1, w2, b2, *, pair_taps):
    n, cin, h, w = x_nchw.shape
    x = jnp.transpose(x_nchw, (0, 2, 3, 1))                      # NCHW -> NHWC
    x = conv1_3x3_relu(x, w1, b1)                                # (n, h*(w+2), 128)
    x = maxpool2x2_pad(x, h=h, w=w)                              # padded for conv2
    sums = conv2_3x3_relu_sumpool(x, w2, b2, h2=h // 2, w2=w // 2,
                                  pair_taps=pair_taps)           # (n, 512) f32 sums
    return sums, (h // 2) * (w // 2)


def avmodel_forward(audio_nchw, visual_nchw, params, *, pair_taps):
    a_sums, a_area = _encoder(audio_nchw, params["a_w1"], params["a_b1"],
                              params["a_w2"], params["a_b2"], pair_taps=pair_taps)
    v_sums, v_area = _encoder(visual_nchw, params["v_w1"], params["v_b1"],
                              params["v_w2"], params["v_b2"], pair_taps=pair_taps)

    b = audio_nchw.shape[0]
    t = visual_nchw.shape[0] // b
    c = v_sums.shape[-1]

    # adaptive_avg_pool2d(1) (audio) / adaptive_avg_pool3d(1) over (T,H,W) (visual)
    y_pool = a_sums / float(a_area)                              # (B, 512)
    x_pool = v_sums.reshape(b, t, c).sum(axis=1) / float(t * v_area)   # (B, 512)

    # cat((x, y), 1) followed by fc_ -- fused into one kernel (two K=512 bf16 dots)
    out = concat_fc(x_pool.astype(jnp.bfloat16), y_pool.astype(jnp.bfloat16),
                    params["fc_w"].astype(jnp.bfloat16),
                    params["fc_b"].reshape(1, -1))
    return out[:, :NUM_CLASSES]                                  # (B, 309) f32


# ---------------------------------------------------------------------------
# Pure-JAX reference (same placeholder encoders) for a numerical sanity check
# ---------------------------------------------------------------------------

def reference_forward(audio, visual, p):
    hi = jax.lax.Precision.HIGHEST

    def conv_ref(x, w, b, relu=True):
        out = jax.lax.conv_general_dilated(
            x, w, window_strides=(1, 1), padding="SAME",
            dimension_numbers=("NHWC", "HWIO", "NHWC"), precision=hi)
        out = out + b.reshape(1, 1, 1, -1)
        return jnp.maximum(out, 0.0) if relu else out

    def pool_ref(x):
        return jax.lax.reduce_window(x, -jnp.inf, jax.lax.max,
                                     (1, 2, 2, 1), (1, 2, 2, 1), "VALID")

    a = jnp.transpose(audio, (0, 2, 3, 1))
    a = conv_ref(a, p["a_w1"], p["a_b1"])
    a = pool_ref(a)
    a = conv_ref(a, p["a_w2"], p["a_b2"])

    v = jnp.transpose(visual, (0, 2, 3, 1))
    v = conv_ref(v, p["v_w1"], p["v_b1"])
    v = pool_ref(v)
    v = conv_ref(v, p["v_w2"], p["v_b2"])

    b = audio.shape[0]
    c = v.shape[-1]
    x_pool = jnp.mean(v.reshape(b, -1, c), axis=1)
    y_pool = jnp.mean(a.reshape(b, -1, c), axis=1)
    cat = jnp.concatenate([x_pool, y_pool], axis=1)
    return jnp.dot(cat, p["fc_w"][:, :NUM_CLASSES], precision=hi) \
        + p["fc_b"][:NUM_CLASSES]


# ---------------------------------------------------------------------------
# Main
# ---------------------------------------------------------------------------

if __name__ == "__main__":
    key = jax.random.PRNGKey(0)
    k_a, k_v, k_p = jax.random.split(key, 3)

    B, T, H, W = 2, 4, 16, 16
    audio = jax.random.normal(k_a, (B, 1, H, W), jnp.float32)        # NCHW
    visual = jax.random.normal(k_v, (B * T, 3, H, W), jnp.float32)   # NCHW
    params = init_params(k_p)

    PAIR_TAPS = _mxu_depth_256()       # K=256 tap pairing only on v6e / v7x
    fwd = jax.jit(functools.partial(avmodel_forward, pair_taps=PAIR_TAPS))
    out = jax.block_until_ready(fwd(audio, visual, params))

    assert out.shape == (B, NUM_CLASSES), out.shape
    assert out.dtype == jnp.float32
    assert bool(jnp.all(jnp.isfinite(out)))

    ref = reference_forward(audio, visual, params)
    max_err = float(jnp.max(jnp.abs(out - ref)))
    assert max_err < 5e-2, f"mismatch vs reference: {max_err}"

    print("KERNEL_OK")
</pallas_src>

<mosaic_0001>
module attributes {stable_mosaic.version = 11 : i64} {
  func.func @_conv1_kernel(%arg0: i32, %arg1: i32, %arg2: memref<1x288x32xbf16, #tpu.memory_space<vmem>>, %arg3: memref<32x128xbf16, #tpu.memory_space<vmem>>, %arg4: memref<1x128xf32, #tpu.memory_space<vmem>>, %arg5: memref<1x288x128xbf16, #tpu.memory_space<vmem>>) attributes {dimension_semantics = [#tpu.dimension_semantics<parallel>, #tpu.dimension_semantics<parallel>], iteration_bounds = array<i64: 1, 8>, scalar_prefetch = 0 : i64, scratch_operands = 0 : i64, tpu.core_type = #tpu.core_type<tc>, window_params = [{transform_indices = @transform_0, window_bounds = array<i64: 1, 288, 32>}, {transform_indices = @transform_1, window_bounds = array<i64: 32, 128>}, {transform_indices = @transform_2, window_bounds = array<i64: 1, 128>}, {transform_indices = @transform_3, window_bounds = array<i64: 1, 288, 128>}]} {
    %c0 = arith.constant 0 : index
    %c0_0 = arith.constant 0 : index
    %c0_1 = arith.constant 0 : index
    %0 = vector.load %arg2[%c0, %c0_0, %c0_1] : memref<1x288x32xbf16, #tpu.memory_space<vmem>>, vector<1x288x32xbf16>
    %1 = vector.shape_cast %0 : vector<1x288x32xbf16> to vector<288x32xbf16>
    %c0_2 = arith.constant 0 : index
    %c0_3 = arith.constant 0 : index
    %2 = vector.load %arg3[%c0_2, %c0_3] : memref<32x128xbf16, #tpu.memory_space<vmem>>, vector<32x128xbf16>
    %cst = arith.constant dense<0.000000e+00> : vector<288x128xf32>
    %3 = tpu.matmul %1, %2, %cst {dimension_numbers = #tpu.dot_dimension_numbers<[1], [0], [0], [1], [0, 0, 1, 1], [], []>} : vector<288x32xbf16>, vector<32x128xbf16>, vector<288x128xf32> -> vector<288x128xf32>
    %c0_4 = arith.constant 0 : index
    %c0_5 = arith.constant 0 : index
    %4 = vector.load %arg4[%c0_4, %c0_5] : memref<1x128xf32, #tpu.memory_space<vmem>>, vector<1x128xf32>
    %5 = vector.broadcast %4 : vector<1x128xf32> to vector<288x128xf32>
    %6 = arith.addf %3, %5 : vector<288x128xf32>
    %cst_6 = arith.constant 0.000000e+00 : f32
    %7 = vector.broadcast %cst_6 : f32 to vector<288x128xf32>
    %8 = arith.maximumf %6, %7 : vector<288x128xf32>
    %9 = arith.truncf %8 : vector<288x128xf32> to vector<288x128xbf16>
    %c0_7 = arith.constant 0 : index
    %c0_8 = arith.constant 0 : index
    %c0_9 = arith.constant 0 : index
    %10 = vector.load %arg5[%c0_7, %c0_8, %c0_9] : memref<1x288x128xbf16, #tpu.memory_space<vmem>>, vector<1x288x128xbf16>
    %11 = vector.shape_cast %10 : vector<1x288x128xbf16> to vector<288x128xbf16>
    %12 = vector.shape_cast %9 : vector<288x128xbf16> to vector<1x288x128xbf16>
    tpu.vector_store %arg5[%c0_7, %c0_8, %c0_9], %12 {strides = array<i32>} : memref<1x288x128xbf16, #tpu.memory_space<vmem>>, vector<1x288x128xbf16>,
    return
  }
  func.func @transform_0(%arg0: i32, %arg1: i32) -> (i32, i32, i32) {
    %c0_i32 = arith.constant 0 : i32
    %c0_i32_0 = arith.constant 0 : i32
    %c0_i32_1 = arith.constant 0 : i32
    return %arg1, %c0_i32, %c0_i32_0 : i32, i32, i32
  }
  func.func @transform_1(%arg0: i32, %arg1: i32) -> (i32, i32) {
    %c0_i32 = arith.constant 0 : i32
    %c0_i32_0 = arith.constant 0 : i32
    return %c0_i32, %arg0 : i32, i32
  }
  func.func @transform_2(%arg0: i32, %arg1: i32) -> (i32, i32) {
    %c0_i32 = arith.constant 0 : i32
    %c0_i32_0 = arith.constant 0 : i32
    return %c0_i32, %arg0 : i32, i32
  }
  func.func @transform_3(%arg0: i32, %arg1: i32) -> (i32, i32, i32) {
    %c0_i32 = arith.constant 0 : i32
    %c0_i32_0 = arith.constant 0 : i32
    return %arg1, %c0_i32, %arg0 : i32, i32, i32
  }
}

module attributes {stable_mosaic.version = 11 : i64} {
  func.func @_maxpool_pad_kernel(%arg0: i32, %arg1: memref<8x2x9x256xbf16, #tpu.memory_space<vmem>>, %arg2: memref<1x11x10x128xbf16, #tpu.memory_space<vmem>>) attributes {dimension_semantics = [#tpu.dimension_semantics<parallel>], iteration_bounds = array<i64: 8>, scalar_prefetch = 0 : i64, scratch_operands = 0 : i64, tpu.core_type = #tpu.core_type<tc>, window_params = [{transform_indices = @transform_0, window_bounds = array<i64: 8, 2, 9, 256>}, {transform_indices = @transform_1, window_bounds = array<i64: 1, 11, 10, 128>}]} {
    %cst = arith.constant 0.000000e+00 : bf16
    %0 = vector.broadcast %cst : bf16 to vector<1x11x10x128xbf16>
    %c0 = arith.constant 0 : index
    %c0_0 = arith.constant 0 : index
    %c0_1 = arith.constant 0 : index
    %c0_2 = arith.constant 0 : index
    %1 = vector.load %arg2[%c0, %c0_0, %c0_1, %c0_2] : memref<1x11x10x128xbf16, #tpu.memory_space<vmem>>, vector<1x11x10x128xbf16>
    tpu.vector_store %arg2[%c0, %c0_0, %c0_1, %c0_2], %0 {strides = array<i32>} : memref<1x11x10x128xbf16, #tpu.memory_space<vmem>>, vector<1x11x10x128xbf16>,
    %c0_3 = arith.constant 0 : index
    %c0_4 = arith.constant 0 : index
    %c0_5 = arith.constant 0 : index
    %c0_6 = arith.constant 0 : index
    %2 = vector.load %arg1[%c0_3, %c0_4, %c0_5, %c0_6] : memref<8x2x9x256xbf16, #tpu.memory_space<vmem>>, vector<8x1x8x256xbf16>
    %3 = vector.shape_cast %2 : vector<8x1x8x256xbf16> to vector<8x8x256xbf16>
    %c0_7 = arith.constant 0 : index
    %c1 = arith.constant 1 : index
    %c0_8 = arith.constant 0 : index
    %c0_9 = arith.constant 0 : index
    %4 = vector.load %arg1[%c0_7, %c1, %c0_8, %c0_9] : memref<8x2x9x256xbf16, #tpu.memory_space<vmem>>, vector<8x1x8x256xbf16>
    %5 = vector.shape_cast %4 : vector<8x1x8x256xbf16> to vector<8x8x256xbf16>
    %6 = arith.maximumf %3, %5 : vector<8x8x256xbf16>
    %7 = vector.extract_strided_slice %6 {offsets = [0, 0, 0], sizes = [8, 8, 128], strides = [1, 1, 1]} : vector<8x8x256xbf16> to vector<8x8x128xbf16>
    %8 = vector.extract_strided_slice %6 {offsets = [0, 0, 128], sizes = [8, 8, 128], strides = [1, 1, 1]} : vector<8x8x256xbf16> to vector<8x8x128xbf16>
    %9 = arith.maximumf %7, %8 : vector<8x8x128xbf16>
    %c0_10 = arith.constant 0 : index
    %c1_11 = arith.constant 1 : index
    %c1_12 = arith.constant 1 : index
    %c0_13 = arith.constant 0 : index
    %10 = vector.load %arg2[%c0_10, %c1_11, %c1_12, %c0_13] : memref<1x11x10x128xbf16, #tpu.memory_space<vmem>>, vector<1x8x8x128xbf16>
    %11 = vector.shape_cast %10 : vector<1x8x8x128xbf16> to vector<8x8x128xbf16>
    %12 = vector.shape_cast %9 : vector<8x8x128xbf16> to vector<1x8x8x128xbf16>
    tpu.vector_store %arg2[%c0_10, %c1_11, %c1_12, %c0_13], %12 {strides = array<i32>} : memref<1x11x10x128xbf16, #tpu.memory_space<vmem>>, vector<1x8x8x128xbf16>,
    return
  }
  func.func @transform_0(%arg0: i32) -> (i32, i32, i32, i32) {
    %c0_i32 = arith.constant 0 : i32
    %c0_i32_0 = arith.constant 0 : i32
    %c0_i32_1 = arith.constant 0 : i32
    %c0_i32_2 = arith.constant 0 : i32
    return %arg0, %c0_i32, %c0_i32_0, %c0_i32_1 : i32, i32, i32, i32
  }
  func.func @transform_1(%arg0: i32) -> (i32, i32, i32, i32) {
    %c0_i32 = arith.constant 0 : i32
    %c0_i32_0 = arith.constant 0 : i32
    %c0_i32_1 = arith.constant 0 : i32
    %c0_i32_2 = arith.constant 0 : i32
    return %arg0, %c0_i32, %c0_i32_0, %c0_i32_1 : i32, i32, i32, i32
  }
}

module attributes {stable_mosaic.version = 11 : i64} {
  func.func @_conv2_sumpool_kernel(%arg0: i32, %arg1: i32, %arg2: memref<1x110x128xbf16, #tpu.memory_space<vmem>>, %arg3: memref<5x256x256xbf16, #tpu.memory_space<vmem>>, %arg4: memref<1x256xf32, #tpu.memory_space<vmem>>, %arg5: memref<80x1xf32, #tpu.memory_space<vmem>>, %arg6: memref<1x1x256xf32, #tpu.memory_space<vmem>>, %arg7: memref<80x256xbf16, #tpu.memory_space<vmem>>) attributes {dimension_semantics = [#tpu.dimension_semantics<parallel>, #tpu.dimension_semantics<parallel>], iteration_bounds = array<i64: 2, 8>, scalar_prefetch = 0 : i64, scratch_operands = 1 : i64, tpu.core_type = #tpu.core_type<tc>, window_params = [{transform_indices = @transform_0, window_bounds = array<i64: 1, 110, 128>}, {transform_indices = @transform_1, window_bounds = array<i64: 5, 256, 256>}, {transform_indices = @transform_2, window_bounds = array<i64: 1, 256>}, {pipeline_mode = #tpu.pipeline_mode<synchronous>, transform_indices = @transform_3, window_bounds = array<i64: 80, 1>}, {transform_indices = @transform_4, window_bounds = array<i64: 1, 1, 256>}]} {
    %cst = arith.constant 0.000000e+00 : f32
    %0 = vector.broadcast %cst : f32 to vector<80x256xf32>
    %c0 = arith.constant 0 : index
    %c0_0 = arith.constant 0 : index
    %c0_1 = arith.constant 0 : index
    %1 = vector.load %arg2[%c0, %c0_0, %c0_1] : memref<1x110x128xbf16, #tpu.memory_space<vmem>>, vector<1x80x128xbf16>
    %2 = vector.shape_cast %1 : vector<1x80x128xbf16> to vector<80x128xbf16>
    %c0_2 = arith.constant 0 : index
    %c0_3 = arith.constant 0 : index
    %3 = vector.load %arg7[%c0_2, %c0_3] : memref<80x256xbf16, #tpu.memory_space<vmem>>, vector<80x128xbf16>
    tpu.vector_store %arg7[%c0_2, %c0_3], %2 {strides = array<i32>} : memref<80x256xbf16, #tpu.memory_space<vmem>>, vector<80x128xbf16>,
    %c0_4 = arith.constant 0 : index
    %c1 = arith.constant 1 : index
    %c0_5 = arith.constant 0 : index
    %4 = vector.load %arg2[%c0_4, %c1, %c0_5] : memref<1x110x128xbf16, #tpu.memory_space<vmem>>, vector<1x80x128xbf16>
    %5 = vector.shape_cast %4 : vector<1x80x128xbf16> to vector<80x128xbf16>
    %c0_6 = arith.constant 0 : index
    %c128 = arith.constant 128 : index
    %6 = vector.load %arg7[%c0_6, %c128] : memref<80x256xbf16, #tpu.memory_space<vmem>>, vector<80x128xbf16>
    tpu.vector_store %arg7[%c0_6, %c128], %5 {strides = array<i32>} : memref<80x256xbf16, #tpu.memory_space<vmem>>, vector<80x128xbf16>,
    %c0_7 = arith.constant 0 : index
    %c0_8 = arith.constant 0 : index
    %7 = vector.load %arg7[%c0_7, %c0_8] : memref<80x256xbf16, #tpu.memory_space<vmem>>, vector<80x256xbf16>
    %c0_9 = arith.constant 0 : index
    %c0_10 = arith.constant 0 : index
    %c0_11 = arith.constant 0 : index
    %8 = vector.load %arg3[%c0_9, %c0_10, %c0_11] : memref<5x256x256xbf16, #tpu.memory_space<vmem>>, vector<1x256x256xbf16>
    %9 = vector.shape_cast %8 : vector<1x256x256xbf16> to vector<256x256xbf16>
    %cst_12 = arith.constant dense<0.000000e+00> : vector<80x256xf32>
    %10 = tpu.matmul %7, %9, %cst_12 {dimension_numbers = #tpu.dot_dimension_numbers<[1], [0], [0], [1], [0, 0, 1, 1], [], []>} : vector<80x256xbf16>, vector<256x256xbf16>, vector<80x256xf32> -> vector<80x256xf32>
    %11 = arith.addf %0, %10 : vector<80x256xf32>
    %c0_13 = arith.constant 0 : index
    %c2 = arith.constant 2 : index
    %c0_14 = arith.constant 0 : index
    %12 = vector.load %arg2[%c0_13, %c2, %c0_14] : memref<1x110x128xbf16, #tpu.memory_space<vmem>>, vector<1x80x128xbf16>
    %13 = vector.shape_cast %12 : vector<1x80x128xbf16> to vector<80x128xbf16>
    %c0_15 = arith.constant 0 : index
    %c0_16 = arith.constant 0 : index
    %14 = vector.load %arg7[%c0_15, %c0_16] : memref<80x256xbf16, #tpu.memory_space<vmem>>, vector<80x128xbf16>
    tpu.vector_store %arg7[%c0_15, %c0_16], %13 {strides = array<i32>} : memref<80x256xbf16, #tpu.memory_space<vmem>>, vector<80x128xbf16>,
    %c0_17 = arith.constant 0 : index
    %c10 = arith.constant 10 : index
    %c0_18 = arith.constant 0 : index
    %15 = vector.load %arg2[%c0_17, %c10, %c0_18] : memref<1x110x128xbf16, #tpu.memory_space<vmem>>, vector<1x80x128xbf16>
    %16 = vector.shape_cast %15 : vector<1x80x128xbf16> to vector<80x128xbf16>
    %c0_19 = arith.constant 0 : index
    %c128_20 = arith.constant 128 : index
    %17 = vector.load %arg7[%c0_19, %c128_20] : memref<80x256xbf16, #tpu.memory_space<vmem>>, vector<80x128xbf16>
    tpu.vector_store %arg7[%c0_19, %c128_20], %16 {strides = array<i32>} : memref<80x256xbf16, #tpu.memory_space<vmem>>, vector<80x128xbf16>,
    %c0_21 = arith.constant 0 : index
    %c0_22 = arith.constant 0 : index
    %18 = vector.load %arg7[%c0_21, %c0_22] : memref<80x256xbf16, #tpu.memory_space<vmem>>, vector<80x256xbf16>
    %c1_23 = arith.constant 1 : index
    %c0_24 = arith.constant 0 : index
    %c0_25 = arith.constant 0 : index
    %19 = vector.load %arg3[%c1_23, %c0_24, %c0_25] : memref<5x256x256xbf16, #tpu.memory_space<vmem>>, vector<1x256x256xbf16>
    %20 = vector.shape_cast %19 : vector<1x256x256xbf16> to vector<256x256xbf16>
    %cst_26 = arith.constant dense<0.000000e+00> : vector<80x256xf32>
    %21 = tpu.matmul %18, %20, %cst_26 {dimension_numbers = #tpu.dot_dimension_numbers<[1], [0], [0], [1], [0, 0, 1, 1], [], []>} : vector<80x256xbf16>, vector<256x256xbf16>, vector<80x256xf32> -> vector<80x256xf32>
    %22 = arith.addf %11, %21 : vector<80x256xf32>
    %c0_27 = arith.constant 0 : index
    %c11 = arith.constant 11 : index
    %c0_28 = arith.constant 0 : index
    %23 = vector.load %arg2[%c0_27, %c11, %c0_28] : memref<1x110x128xbf16, #tpu.memory_space<vmem>>, vector<1x80x128xbf16>
    %24 = vector.shape_cast %23 : vector<1x80x128xbf16> to vector<80x128xbf16>
    %c0_29 = arith.constant 0 : index
    %c0_30 = arith.constant 0 : index
    %25 = vector.load %arg7[%c0_29, %c0_30] : memref<80x256xbf16, #tpu.memory_space<vmem>>, vector<80x128xbf16>
    tpu.vector_store %arg7[%c0_29, %c0_30], %24 {strides = array<i32>} : memref<80x256xbf16, #tpu.memory_space<vmem>>, vector<80x128xbf16>,
    %c0_31 = arith.constant 0 : index
    %c12 = arith.constant 12 : index
    %c0_32 = arith.constant 0 : index
    %26 = vector.load %arg2[%c0_31, %c12, %c0_32] : memref<1x110x128xbf16, #tpu.memory_space<vmem>>, vector<1x80x128xbf16>
    %27 = vector.shape_cast %26 : vector<1x80x128xbf16> to vector<80x128xbf16>
    %c0_33 = arith.constant 0 : index
    %c128_34 = arith.constant 128 : index
    %28 = vector.load %arg7[%c0_33, %c128_34] : memref<80x256xbf16, #tpu.memory_space<vmem>>, vector<80x128xbf16>
    tpu.vector_store %arg7[%c0_33, %c128_34], %27 {strides = array<i32>} : memref<80x256xbf16, #tpu.memory_space<vmem>>, vector<80x128xbf16>,
    %c0_35 = arith.constant 0 : index
    %c0_36 = arith.constant 0 : index
    %29 = vector.load %arg7[%c0_35, %c0_36] : memref<80x256xbf16, #tpu.memory_space<vmem>>, vector<80x256xbf16>
    %c2_37 = arith.constant 2 : index
    %c0_38 = arith.constant 0 : index
    %c0_39 = arith.constant 0 : index
    %30 = vector.load %arg3[%c2_37, %c0_38, %c0_39] : memref<5x256x256xbf16, #tpu.memory_space<vmem>>, vector<1x256x256xbf16>
    %31 = vector.shape_cast %30 : vector<1x256x256xbf16> to vector<256x256xbf16>
    %cst_40 = arith.constant dense<0.000000e+00> : vector<80x256xf32>
    %32 = tpu.matmul %29, %31, %cst_40 {dimension_numbers = #tpu.dot_dimension_numbers<[1], [0], [0], [1], [0, 0, 1, 1], [], []>} : vector<80x256xbf16>, vector<256x256xbf16>, vector<80x256xf32> -> vector<80x256xf32>
    %33 = arith.addf %22, %32 : vector<80x256xf32>
    %c0_41 = arith.constant 0 : index
    %c20 = arith.constant 20 : index
    %c0_42 = arith.constant 0 : index
    %34 = vector.load %arg2[%c0_41, %c20, %c0_42] : memref<1x110x128xbf16, #tpu.memory_space<vmem>>, vector<1x80x128xbf16>
    %35 = vector.shape_cast %34 : vector<1x80x128xbf16> to vector<80x128xbf16>
    %c0_43 = arith.constant 0 : index
    %c0_44 = arith.constant 0 : index
    %36 = vector.load %arg7[%c0_43, %c0_44] : memref<80x256xbf16, #tpu.memory_space<vmem>>, vector<80x128xbf16>
    tpu.vector_store %arg7[%c0_43, %c0_44], %35 {strides = array<i32>} : memref<80x256xbf16, #tpu.memory_space<vmem>>, vector<80x128xbf16>,
    %c0_45 = arith.constant 0 : index
    %c21 = arith.constant 21 : index
    %c0_46 = arith.constant 0 : index
    %37 = vector.load %arg2[%c0_45, %c21, %c0_46] : memref<1x110x128xbf16, #tpu.memory_space<vmem>>, vector<1x80x128xbf16>
    %38 = vector.shape_cast %37 : vector<1x80x128xbf16> to vector<80x128xbf16>
    %c0_47 = arith.constant 0 : index
    %c128_48 = arith.constant 128 : index
    %39 = vector.load %arg7[%c0_47, %c128_48] : memref<80x256xbf16, #tpu.memory_space<vmem>>, vector<80x128xbf16>
    tpu.vector_store %arg7[%c0_47, %c128_48], %38 {strides = array<i32>} : memref<80x256xbf16, #tpu.memory_space<vmem>>, vector<80x128xbf16>,
    %c0_49 = arith.constant 0 : index
    %c0_50 = arith.constant 0 : index
    %40 = vector.load %arg7[%c0_49, %c0_50] : memref<80x256xbf16, #tpu.memory_space<vmem>>, vector<80x256xbf16>
    %c3 = arith.constant 3 : index
    %c0_51 = arith.constant 0 : index
    %c0_52 = arith.constant 0 : index
    %41 = vector.load %arg3[%c3, %c0_51, %c0_52] : memref<5x256x256xbf16, #tpu.memory_space<vmem>>, vector<1x256x256xbf16>
    %42 = vector.shape_cast %41 : vector<1x256x256xbf16> to vector<256x256xbf16>
    %cst_53 = arith.constant dense<0.000000e+00> : vector<80x256xf32>
    %43 = tpu.matmul %40, %42, %cst_53 {dimension_numbers = #tpu.dot_dimension_numbers<[1], [0], [0], [1], [0, 0, 1, 1], [], []>} : vector<80x256xbf16>, vector<256x256xbf16>, vector<80x256xf32> -> vector<80x256xf32>
    %44 = arith.addf %33, %43 : vector<80x256xf32>
    %c0_54 = arith.constant 0 : index
    %c22 = arith.constant 22 : index
    %c0_55 = arith.constant 0 : index
    %45 = vector.load %arg2[%c0_54, %c22, %c0_55] : memref<1x110x128xbf16, #tpu.memory_space<vmem>>, vector<1x80x128xbf16>
    %46 = vector.shape_cast %45 : vector<1x80x128xbf16> to vector<80x128xbf16>
    %c0_56 = arith.constant 0 : index
    %c0_57 = arith.constant 0 : index
    %47 = vector.load %arg7[%c0_56, %c0_57] : memref<80x256xbf16, #tpu.memory_space<vmem>>, vector<80x128xbf16>
    tpu.vector_store %arg7[%c0_56, %c0_57], %46 {strides = array<i32>} : memref<80x256xbf16, #tpu.memory_space<vmem>>, vector<80x128xbf16>,
    %cst_58 = arith.constant 0.000000e+00 : bf16
    %48 = vector.broadcast %cst_58 : bf16 to vector<80x128xbf16>
    %c0_59 = arith.constant 0 : index
    %c128_60 = arith.constant 128 : index
    %49 = vector.load %arg7[%c0_59, %c128_60] : memref<80x256xbf16, #tpu.memory_space<vmem>>, vector<80x128xbf16>
    tpu.vector_store %arg7[%c0_59, %c128_60], %48 {strides = array<i32>} : memref<80x256xbf16, #tpu.memory_space<vmem>>, vector<80x128xbf16>,
    %c0_61 = arith.constant 0 : index
    %c0_62 = arith.constant 0 : index
    %50 = vector.load %arg7[%c0_61, %c0_62] : memref<80x256xbf16, #tpu.memory_space<vmem>>, vector<80x256xbf16>
    %c4 = arith.constant 4 : index
    %c0_63 = arith.constant 0 : index
    %c0_64 = arith.constant 0 : index
    %51 = vector.load %arg3[%c4, %c0_63, %c0_64] : memref<5x256x256xbf16, #tpu.memory_space<vmem>>, vector<1x256x256xbf16>
    %52 = vector.shape_cast %51 : vector<1x256x256xbf16> to vector<256x256xbf16>
    %cst_65 = arith.constant dense<0.000000e+00> : vector<80x256xf32>
    %53 = tpu.matmul %50, %52, %cst_65 {dimension_numbers = #tpu.dot_dimension_numbers<[1], [0], [0], [1], [0, 0, 1, 1], [], []>} : vector<80x256xbf16>, vector<256x256xbf16>, vector<80x256xf32> -> vector<80x256xf32>
    %54 = arith.addf %44, %53 : vector<80x256xf32>
    %c0_66 = arith.constant 0 : index
    %c0_67 = arith.constant 0 : index
    %55 = vector.load %arg4[%c0_66, %c0_67] : memref<1x256xf32, #tpu.memory_space<vmem>>, vector<1x256xf32>
    %56 = vector.broadcast %55 : vector<1x256xf32> to vector<80x256xf32>
    %57 = arith.addf %54, %56 : vector<80x256xf32>
    %cst_68 = arith.constant 0.000000e+00 : f32
    %58 = vector.broadcast %cst_68 : f32 to vector<80x256xf32>
    %59 = arith.maximumf %57, %58 : vector<80x256xf32>
    %c0_69 = arith.constant 0 : index
    %c0_70 = arith.constant 0 : index
    %60 = vector.load %arg5[%c0_69, %c0_70] : memref<80x1xf32, #tpu.memory_space<vmem>>, vector<80x1xf32>
    %61 = vector.broadcast %60 : vector<80x1xf32> to vector<80x256xf32>
    %62 = arith.mulf %59, %61 : vector<80x256xf32>
    %cst_71 = arith.constant dense<0.000000e+00> : vector<256xf32>
    %63 = vector.multi_reduction <add>, %62, %cst_71 [0] : vector<80x256xf32> to vector<256xf32>
    %64 = vector.shape_cast %63 : vector<256xf32> to vector<1x256xf32>
    %c0_72 = arith.constant 0 : index
    %c0_73 = arith.constant 0 : index
    %c0_74 = arith.constant 0 : index
    %65 = vector.load %arg6[%c0_72, %c0_73, %c0_74] : memref<1x1x256xf32, #tpu.memory_space<vmem>>, vector<1x1x256xf32>
    %66 = vector.shape_cast %65 : vector<1x1x256xf32> to vector<1x256xf32>
    %67 = vector.shape_cast %64 : vector<1x256xf32> to vector<1x1x256xf32>
    tpu.vector_store %arg6[%c0_72, %c0_73, %c0_74], %67 {strides = array<i32>} : memref<1x1x256xf32, #tpu.memory_space<vmem>>, vector<1x1x256xf32>,
    return
  }
  func.func @transform_0(%arg0: i32, %arg1: i32) -> (i32, i32, i32) {
    %c0_i32 = arith.constant 0 : i32
    %c0_i32_0 = arith.constant 0 : i32
    %c0_i32_1 = arith.constant 0 : i32
    return %arg1, %c0_i32, %c0_i32_0 : i32, i32, i32
  }
  func.func @transform_1(%arg0: i32, %arg1: i32) -> (i32, i32, i32) {
    %c0_i32 = arith.constant 0 : i32
    %c0_i32_0 = arith.constant 0 : i32
    %c0_i32_1 = arith.constant 0 : i32
    return %c0_i32, %c0_i32_0, %arg0 : i32, i32, i32
  }
  func.func @transform_2(%arg0: i32, %arg1: i32) -> (i32, i32) {
    %c0_i32 = arith.constant 0 : i32
    %c0_i32_0 = arith.constant 0 : i32
    return %c0_i32, %arg0 : i32, i32
  }
  func.func @transform_3(%arg0: i32, %arg1: i32) -> (i32, i32) {
    %c0_i32 = arith.constant 0 : i32
    %c0_i32_0 = arith.constant 0 : i32
    %c0_i32_1 = arith.constant 0 : i32
    return %c0_i32, %c0_i32_0 : i32, i32
  }
  func.func @transform_4(%arg0: i32, %arg1: i32) -> (i32, i32, i32) {
    %c0_i32 = arith.constant 0 : i32
    %c0_i32_0 = arith.constant 0 : i32
    return %arg1, %c0_i32, %arg0 : i32, i32, i32
  }
}

module attributes {stable_mosaic.version = 11 : i64} {
  func.func @_conv1_kernel(%arg0: i32, %arg1: i32, %arg2: memref<1x288x32xbf16, #tpu.memory_space<vmem>>, %arg3: memref<32x128xbf16, #tpu.memory_space<vmem>>, %arg4: memref<1x128xf32, #tpu.memory_space<vmem>>, %arg5: memref<1x288x128xbf16, #tpu.memory_space<vmem>>) attributes {dimension_semantics = [#tpu.dimension_semantics<parallel>, #tpu.dimension_semantics<parallel>], iteration_bounds = array<i64: 1, 2>, scalar_prefetch = 0 : i64, scratch_operands = 0 : i64, tpu.core_type = #tpu.core_type<tc>, window_params = [{transform_indices = @transform_0, window_bounds = array<i64: 1, 288, 32>}, {transform_indices = @transform_1, window_bounds = array<i64: 32, 128>}, {transform_indices = @transform_2, window_bounds = array<i64: 1, 128>}, {transform_indices = @transform_3, window_bounds = array<i64: 1, 288, 128>}]} {
    %c0 = arith.constant 0 : index
    %c0_0 = arith.constant 0 : index
    %c0_1 = arith.constant 0 : index
    %0 = vector.load %arg2[%c0, %c0_0, %c0_1] : memref<1x288x32xbf16, #tpu.memory_space<vmem>>, vector<1x288x32xbf16>
    %1 = vector.shape_cast %0 : vector<1x288x32xbf16> to vector<288x32xbf16>
    %c0_2 = arith.constant 0 : index
    %c0_3 = arith.constant 0 : index
    %2 = vector.load %arg3[%c0_2, %c0_3] : memref<32x128xbf16, #tpu.memory_space<vmem>>, vector<32x128xbf16>
    %cst = arith.constant dense<0.000000e+00> : vector<288x128xf32>
    %3 = tpu.matmul %1, %2, %cst {dimension_numbers = #tpu.dot_dimension_numbers<[1], [0], [0], [1], [0, 0, 1, 1], [], []>} : vector<288x32xbf16>, vector<32x128xbf16>, vector<288x128xf32> -> vector<288x128xf32>
    %c0_4 = arith.constant 0 : index
    %c0_5 = arith.constant 0 : index
    %4 = vector.load %arg4[%c0_4, %c0_5] : memref<1x128xf32, #tpu.memory_space<vmem>>, vector<1x128xf32>
    %5 = vector.broadcast %4 : vector<1x128xf32> to vector<288x128xf32>
    %6 = arith.addf %3, %5 : vector<288x128xf32>
    %cst_6 = arith.constant 0.000000e+00 : f32
    %7 = vector.broadcast %cst_6 : f32 to vector<288x128xf32>
    %8 = arith.maximumf %6, %7 : vector<288x128xf32>
    %9 = arith.truncf %8 : vector<288x128xf32> to vector<288x128xbf16>
    %c0_7 = arith.constant 0 : index
    %c0_8 = arith.constant 0 : index
    %c0_9 = arith.constant 0 : index
    %10 = vector.load %arg5[%c0_7, %c0_8, %c0_9] : memref<1x288x128xbf16, #tpu.memory_space<vmem>>, vector<1x288x128xbf16>
    %11 = vector.shape_cast %10 : vector<1x288x128xbf16> to vector<288x128xbf16>
    %12 = vector.shape_cast %9 : vector<288x128xbf16> to vector<1x288x128xbf16>
    tpu.vector_store %arg5[%c0_7, %c0_8, %c0_9], %12 {strides = array<i32>} : memref<1x288x128xbf16, #tpu.memory_space<vmem>>, vector<1x288x128xbf16>,
    return
  }
  func.func @transform_0(%arg0: i32, %arg1: i32) -> (i32, i32, i32) {
    %c0_i32 = arith.constant 0 : i32
    %c0_i32_0 = arith.constant 0 : i32
    %c0_i32_1 = arith.constant 0 : i32
    return %arg1, %c0_i32, %c0_i32_0 : i32, i32, i32
  }
  func.func @transform_1(%arg0: i32, %arg1: i32) -> (i32, i32) {
    %c0_i32 = arith.constant 0 : i32
    %c0_i32_0 = arith.constant 0 : i32
    return %c0_i32, %arg0 : i32, i32
  }
  func.func @transform_2(%arg0: i32, %arg1: i32) -> (i32, i32) {
    %c0_i32 = arith.constant 0 : i32
    %c0_i32_0 = arith.constant 0 : i32
    return %c0_i32, %arg0 : i32, i32
  }
  func.func @transform_3(%arg0: i32, %arg1: i32) -> (i32, i32, i32) {
    %c0_i32 = arith.constant 0 : i32
    %c0_i32_0 = arith.constant 0 : i32
    return %arg1, %c0_i32, %arg0 : i32, i32, i32
  }
}

module attributes {stable_mosaic.version = 11 : i64} {
  func.func @_maxpool_pad_kernel(%arg0: i32, %arg1: memref<8x2x9x256xbf16, #tpu.memory_space<vmem>>, %arg2: memref<1x11x10x128xbf16, #tpu.memory_space<vmem>>) attributes {dimension_semantics = [#tpu.dimension_semantics<parallel>], iteration_bounds = array<i64: 2>, scalar_prefetch = 0 : i64, scratch_operands = 0 : i64, tpu.core_type = #tpu.core_type<tc>, window_params = [{transform_indices = @transform_0, window_bounds = array<i64: 8, 2, 9, 256>}, {transform_indices = @transform_1, window_bounds = array<i64: 1, 11, 10, 128>}]} {
    %cst = arith.constant 0.000000e+00 : bf16
    %0 = vector.broadcast %cst : bf16 to vector<1x11x10x128xbf16>
    %c0 = arith.constant 0 : index
    %c0_0 = arith.constant 0 : index
    %c0_1 = arith.constant 0 : index
    %c0_2 = arith.constant 0 : index
    %1 = vector.load %arg2[%c0, %c0_0, %c0_1, %c0_2] : memref<1x11x10x128xbf16, #tpu.memory_space<vmem>>, vector<1x11x10x128xbf16>
    tpu.vector_store %arg2[%c0, %c0_0, %c0_1, %c0_2], %0 {strides = array<i32>} : memref<1x11x10x128xbf16, #tpu.memory_space<vmem>>, vector<1x11x10x128xbf16>,
    %c0_3 = arith.constant 0 : index
    %c0_4 = arith.constant 0 : index
    %c0_5 = arith.constant 0 : index
    %c0_6 = arith.constant 0 : index
    %2 = vector.load %arg1[%c0_3, %c0_4, %c0_5, %c0_6] : memref<8x2x9x256xbf16, #tpu.memory_space<vmem>>, vector<8x1x8x256xbf16>
    %3 = vector.shape_cast %2 : vector<8x1x8x256xbf16> to vector<8x8x256xbf16>
    %c0_7 = arith.constant 0 : index
    %c1 = arith.constant 1 : index
    %c0_8 = arith.constant 0 : index
    %c0_9 = arith.constant 0 : index
    %4 = vector.load %arg1[%c0_7, %c1, %c0_8, %c0_9] : memref<8x2x9x256xbf16, #tpu.memory_space<vmem>>, vector<8x1x8x256xbf16>
    %5 = vector.shape_cast %4 : vector<8x1x8x256xbf16> to vector<8x8x256xbf16>
    %6 = arith.maximumf %3, %5 : vector<8x8x256xbf16>
    %7 = vector.extract_strided_slice %6 {offsets = [0, 0, 0], sizes = [8, 8, 128], strides = [1, 1, 1]} : vector<8x8x256xbf16> to vector<8x8x128xbf16>
    %8 = vector.extract_strided_slice %6 {offsets = [0, 0, 128], sizes = [8, 8, 128], strides = [1, 1, 1]} : vector<8x8x256xbf16> to vector<8x8x128xbf16>
    %9 = arith.maximumf %7, %8 : vector<8x8x128xbf16>
    %c0_10 = arith.constant 0 : index
    %c1_11 = arith.constant 1 : index
    %c1_12 = arith.constant 1 : index
    %c0_13 = arith.constant 0 : index
    %10 = vector.load %arg2[%c0_10, %c1_11, %c1_12, %c0_13] : memref<1x11x10x128xbf16, #tpu.memory_space<vmem>>, vector<1x8x8x128xbf16>
    %11 = vector.shape_cast %10 : vector<1x8x8x128xbf16> to vector<8x8x128xbf16>
    %12 = vector.shape_cast %9 : vector<8x8x128xbf16> to vector<1x8x8x128xbf16>
    tpu.vector_store %arg2[%c0_10, %c1_11, %c1_12, %c0_13], %12 {strides = array<i32>} : memref<1x11x10x128xbf16, #tpu.memory_space<vmem>>, vector<1x8x8x128xbf16>,
    return
  }
  func.func @transform_0(%arg0: i32) -> (i32, i32, i32, i32) {
    %c0_i32 = arith.constant 0 : i32
    %c0_i32_0 = arith.constant 0 : i32
    %c0_i32_1 = arith.constant 0 : i32
    %c0_i32_2 = arith.constant 0 : i32
    return %arg0, %c0_i32, %c0_i32_0, %c0_i32_1 : i32, i32, i32, i32
  }
  func.func @transform_1(%arg0: i32) -> (i32, i32, i32, i32) {
    %c0_i32 = arith.constant 0 : i32
    %c0_i32_0 = arith.constant 0 : i32
    %c0_i32_1 = arith.constant 0 : i32
    %c0_i32_2 = arith.constant 0 : i32
    return %arg0, %c0_i32, %c0_i32_0, %c0_i32_1 : i32, i32, i32, i32
  }
}

module attributes {stable_mosaic.version = 11 : i64} {
  func.func @_conv2_sumpool_kernel(%arg0: i32, %arg1: i32, %arg2: memref<1x110x128xbf16, #tpu.memory_space<vmem>>, %arg3: memref<5x256x256xbf16, #tpu.memory_space<vmem>>, %arg4: memref<1x256xf32, #tpu.memory_space<vmem>>, %arg5: memref<80x1xf32, #tpu.memory_space<vmem>>, %arg6: memref<1x1x256xf32, #tpu.memory_space<vmem>>, %arg7: memref<80x256xbf16, #tpu.memory_space<vmem>>) attributes {dimension_semantics = [#tpu.dimension_semantics<parallel>, #tpu.dimension_semantics<parallel>], iteration_bounds = array<i64: 2, 2>, scalar_prefetch = 0 : i64, scratch_operands = 1 : i64, tpu.core_type = #tpu.core_type<tc>, window_params = [{transform_indices = @transform_0, window_bounds = array<i64: 1, 110, 128>}, {transform_indices = @transform_1, window_bounds = array<i64: 5, 256, 256>}, {transform_indices = @transform_2, window_bounds = array<i64: 1, 256>}, {pipeline_mode = #tpu.pipeline_mode<synchronous>, transform_indices = @transform_3, window_bounds = array<i64: 80, 1>}, {transform_indices = @transform_4, window_bounds = array<i64: 1, 1, 256>}]} {
    %cst = arith.constant 0.000000e+00 : f32
    %0 = vector.broadcast %cst : f32 to vector<80x256xf32>
    %c0 = arith.constant 0 : index
    %c0_0 = arith.constant 0 : index
    %c0_1 = arith.constant 0 : index
    %1 = vector.load %arg2[%c0, %c0_0, %c0_1] : memref<1x110x128xbf16, #tpu.memory_space<vmem>>, vector<1x80x128xbf16>
    %2 = vector.shape_cast %1 : vector<1x80x128xbf16> to vector<80x128xbf16>
    %c0_2 = arith.constant 0 : index
    %c0_3 = arith.constant 0 : index
    %3 = vector.load %arg7[%c0_2, %c0_3] : memref<80x256xbf16, #tpu.memory_space<vmem>>, vector<80x128xbf16>
    tpu.vector_store %arg7[%c0_2, %c0_3], %2 {strides = array<i32>} : memref<80x256xbf16, #tpu.memory_space<vmem>>, vector<80x128xbf16>,
    %c0_4 = arith.constant 0 : index
    %c1 = arith.constant 1 : index
    %c0_5 = arith.constant 0 : index
    %4 = vector.load %arg2[%c0_4, %c1, %c0_5] : memref<1x110x128xbf16, #tpu.memory_space<vmem>>, vector<1x80x128xbf16>
    %5 = vector.shape_cast %4 : vector<1x80x128xbf16> to vector<80x128xbf16>
    %c0_6 = arith.constant 0 : index
    %c128 = arith.constant 128 : index
    %6 = vector.load %arg7[%c0_6, %c128] : memref<80x256xbf16, #tpu.memory_space<vmem>>, vector<80x128xbf16>
    tpu.vector_store %arg7[%c0_6, %c128], %5 {strides = array<i32>} : memref<80x256xbf16, #tpu.memory_space<vmem>>, vector<80x128xbf16>,
    %c0_7 = arith.constant 0 : index
    %c0_8 = arith.constant 0 : index
    %7 = vector.load %arg7[%c0_7, %c0_8] : memref<80x256xbf16, #tpu.memory_space<vmem>>, vector<80x256xbf16>
    %c0_9 = arith.constant 0 : index
    %c0_10 = arith.constant 0 : index
    %c0_11 = arith.constant 0 : index
    %8 = vector.load %arg3[%c0_9, %c0_10, %c0_11] : memref<5x256x256xbf16, #tpu.memory_space<vmem>>, vector<1x256x256xbf16>
    %9 = vector.shape_cast %8 : vector<1x256x256xbf16> to vector<256x256xbf16>
    %cst_12 = arith.constant dense<0.000000e+00> : vector<80x256xf32>
    %10 = tpu.matmul %7, %9, %cst_12 {dimension_numbers = #tpu.dot_dimension_numbers<[1], [0], [0], [1], [0, 0, 1, 1], [], []>} : vector<80x256xbf16>, vector<256x256xbf16>, vector<80x256xf32> -> vector<80x256xf32>
    %11 = arith.addf %0, %10 : vector<80x256xf32>
    %c0_13 = arith.constant 0 : index
    %c2 = arith.constant 2 : index
    %c0_14 = arith.constant 0 : index
    %12 = vector.load %arg2[%c0_13, %c2, %c0_14] : memref<1x110x128xbf16, #tpu.memory_space<vmem>>, vector<1x80x128xbf16>
    %13 = vector.shape_cast %12 : vector<1x80x128xbf16> to vector<80x128xbf16>
    %c0_15 = arith.constant 0 : index
    %c0_16 = arith.constant 0 : index
    %14 = vector.load %arg7[%c0_15, %c0_16] : memref<80x256xbf16, #tpu.memory_space<vmem>>, vector<80x128xbf16>
    tpu.vector_store %arg7[%c0_15, %c0_16], %13 {strides = array<i32>} : memref<80x256xbf16, #tpu.memory_space<vmem>>, vector<80x128xbf16>,
    %c0_17 = arith.constant 0 : index
    %c10 = arith.constant 10 : index
    %c0_18 = arith.constant 0 : index
    %15 = vector.load %arg2[%c0_17, %c10, %c0_18] : memref<1x110x128xbf16, #tpu.memory_space<vmem>>, vector<1x80x128xbf16>
    %16 = vector.shape_cast %15 : vector<1x80x128xbf16> to vector<80x128xbf16>
    %c0_19 = arith.constant 0 : index
    %c128_20 = arith.constant 128 : index
    %17 = vector.load %arg7[%c0_19, %c128_20] : memref<80x256xbf16, #tpu.memory_space<vmem>>, vector<80x128xbf16>
    tpu.vector_store %arg7[%c0_19, %c128_20], %16 {strides = array<i32>} : memref<80x256xbf16, #tpu.memory_space<vmem>>, vector<80x128xbf16>,
    %c0_21 = arith.constant 0 : index
    %c0_22 = arith.constant 0 : index
    %18 = vector.load %arg7[%c0_21, %c0_22] : memref<80x256xbf16, #tpu.memory_space<vmem>>, vector<80x256xbf16>
    %c1_23 = arith.constant 1 : index
    %c0_24 = arith.constant 0 : index
    %c0_25 = arith.constant 0 : index
    %19 = vector.load %arg3[%c1_23, %c0_24, %c0_25] : memref<5x256x256xbf16, #tpu.memory_space<vmem>>, vector<1x256x256xbf16>
    %20 = vector.shape_cast %19 : vector<1x256x256xbf16> to vector<256x256xbf16>
    %cst_26 = arith.constant dense<0.000000e+00> : vector<80x256xf32>
    %21 = tpu.matmul %18, %20, %cst_26 {dimension_numbers = #tpu.dot_dimension_numbers<[1], [0], [0], [1], [0, 0, 1, 1], [], []>} : vector<80x256xbf16>, vector<256x256xbf16>, vector<80x256xf32> -> vector<80x256xf32>
    %22 = arith.addf %11, %21 : vector<80x256xf32>
    %c0_27 = arith.constant 0 : index
    %c11 = arith.constant 11 : index
    %c0_28 = arith.constant 0 : index
    %23 = vector.load %arg2[%c0_27, %c11, %c0_28] : memref<1x110x128xbf16, #tpu.memory_space<vmem>>, vector<1x80x128xbf16>
    %24 = vector.shape_cast %23 : vector<1x80x128xbf16> to vector<80x128xbf16>
    %c0_29 = arith.constant 0 : index
    %c0_30 = arith.constant 0 : index
    %25 = vector.load %arg7[%c0_29, %c0_30] : memref<80x256xbf16, #tpu.memory_space<vmem>>, vector<80x128xbf16>
    tpu.vector_store %arg7[%c0_29, %c0_30], %24 {strides = array<i32>} : memref<80x256xbf16, #tpu.memory_space<vmem>>, vector<80x128xbf16>,
    %c0_31 = arith.constant 0 : index
    %c12 = arith.constant 12 : index
    %c0_32 = arith.constant 0 : index
    %26 = vector.load %arg2[%c0_31, %c12, %c0_32] : memref<1x110x128xbf16, #tpu.memory_space<vmem>>, vector<1x80x128xbf16>
    %27 = vector.shape_cast %26 : vector<1x80x128xbf16> to vector<80x128xbf16>
    %c0_33 = arith.constant 0 : index
    %c128_34 = arith.constant 128 : index
    %28 = vector.load %arg7[%c0_33, %c128_34] : memref<80x256xbf16, #tpu.memory_space<vmem>>, vector<80x128xbf16>
    tpu.vector_store %arg7[%c0_33, %c128_34], %27 {strides = array<i32>} : memref<80x256xbf16, #tpu.memory_space<vmem>>, vector<80x128xbf16>,
    %c0_35 = arith.constant 0 : index
    %c0_36 = arith.constant 0 : index
    %29 = vector.load %arg7[%c0_35, %c0_36] : memref<80x256xbf16, #tpu.memory_space<vmem>>, vector<80x256xbf16>
    %c2_37 = arith.constant 2 : index
    %c0_38 = arith.constant 0 : index
    %c0_39 = arith.constant 0 : index
    %30 = vector.load %arg3[%c2_37, %c0_38, %c0_39] : memref<5x256x256xbf16, #tpu.memory_space<vmem>>, vector<1x256x256xbf16>
    %31 = vector.shape_cast %30 : vector<1x256x256xbf16> to vector<256x256xbf16>
    %cst_40 = arith.constant dense<0.000000e+00> : vector<80x256xf32>
    %32 = tpu.matmul %29, %31, %cst_40 {dimension_numbers = #tpu.dot_dimension_numbers<[1], [0], [0], [1], [0, 0, 1, 1], [], []>} : vector<80x256xbf16>, vector<256x256xbf16>, vector<80x256xf32> -> vector<80x256xf32>
    %33 = arith.addf %22, %32 : vector<80x256xf32>
    %c0_41 = arith.constant 0 : index
    %c20 = arith.constant 20 : index
    %c0_42 = arith.constant 0 : index
    %34 = vector.load %arg2[%c0_41, %c20, %c0_42] : memref<1x110x128xbf16, #tpu.memory_space<vmem>>, vector<1x80x128xbf16>
    %35 = vector.shape_cast %34 : vector<1x80x128xbf16> to vector<80x128xbf16>
    %c0_43 = arith.constant 0 : index
    %c0_44 = arith.constant 0 : index
    %36 = vector.load %arg7[%c0_43, %c0_44] : memref<80x256xbf16, #tpu.memory_space<vmem>>, vector<80x128xbf16>
    tpu.vector_store %arg7[%c0_43, %c0_44], %35 {strides = array<i32>} : memref<80x256xbf16, #tpu.memory_space<vmem>>, vector<80x128xbf16>,
    %c0_45 = arith.constant 0 : index
    %c21 = arith.constant 21 : index
    %c0_46 = arith.constant 0 : index
    %37 = vector.load %arg2[%c0_45, %c21, %c0_46] : memref<1x110x128xbf16, #tpu.memory_space<vmem>>, vector<1x80x128xbf16>
    %38 = vector.shape_cast %37 : vector<1x80x128xbf16> to vector<80x128xbf16>
    %c0_47 = arith.constant 0 : index
    %c128_48 = arith.constant 128 : index
    %39 = vector.load %arg7[%c0_47, %c128_48] : memref<80x256xbf16, #tpu.memory_space<vmem>>, vector<80x128xbf16>
    tpu.vector_store %arg7[%c0_47, %c128_48], %38 {strides = array<i32>} : memref<80x256xbf16, #tpu.memory_space<vmem>>, vector<80x128xbf16>,
    %c0_49 = arith.constant 0 : index
    %c0_50 = arith.constant 0 : index
    %40 = vector.load %arg7[%c0_49, %c0_50] : memref<80x256xbf16, #tpu.memory_space<vmem>>, vector<80x256xbf16>
    %c3 = arith.constant 3 : index
    %c0_51 = arith.constant 0 : index
    %c0_52 = arith.constant 0 : index
    %41 = vector.load %arg3[%c3, %c0_51, %c0_52] : memref<5x256x256xbf16, #tpu.memory_space<vmem>>, vector<1x256x256xbf16>
    %42 = vector.shape_cast %41 : vector<1x256x256xbf16> to vector<256x256xbf16>
    %cst_53 = arith.constant dense<0.000000e+00> : vector<80x256xf32>
    %43 = tpu.matmul %40, %42, %cst_53 {dimension_numbers = #tpu.dot_dimension_numbers<[1], [0], [0], [1], [0, 0, 1, 1], [], []>} : vector<80x256xbf16>, vector<256x256xbf16>, vector<80x256xf32> -> vector<80x256xf32>
    %44 = arith.addf %33, %43 : vector<80x256xf32>
    %c0_54 = arith.constant 0 : index
    %c22 = arith.constant 22 : index
    %c0_55 = arith.constant 0 : index
    %45 = vector.load %arg2[%c0_54, %c22, %c0_55] : memref<1x110x128xbf16, #tpu.memory_space<vmem>>, vector<1x80x128xbf16>
    %46 = vector.shape_cast %45 : vector<1x80x128xbf16> to vector<80x128xbf16>
    %c0_56 = arith.constant 0 : index
    %c0_57 = arith.constant 0 : index
    %47 = vector.load %arg7[%c0_56, %c0_57] : memref<80x256xbf16, #tpu.memory_space<vmem>>, vector<80x128xbf16>
    tpu.vector_store %arg7[%c0_56, %c0_57], %46 {strides = array<i32>} : memref<80x256xbf16, #tpu.memory_space<vmem>>, vector<80x128xbf16>,
    %cst_58 = arith.constant 0.000000e+00 : bf16
    %48 = vector.broadcast %cst_58 : bf16 to vector<80x128xbf16>
    %c0_59 = arith.constant 0 : index
    %c128_60 = arith.constant 128 : index
    %49 = vector.load %arg7[%c0_59, %c128_60] : memref<80x256xbf16, #tpu.memory_space<vmem>>, vector<80x128xbf16>
    tpu.vector_store %arg7[%c0_59, %c128_60], %48 {strides = array<i32>} : memref<80x256xbf16, #tpu.memory_space<vmem>>, vector<80x128xbf16>,
    %c0_61 = arith.constant 0 : index
    %c0_62 = arith.constant 0 : index
    %50 = vector.load %arg7[%c0_61, %c0_62] : memref<80x256xbf16, #tpu.memory_space<vmem>>, vector<80x256xbf16>
    %c4 = arith.constant 4 : index
    %c0_63 = arith.constant 0 : index
    %c0_64 = arith.constant 0 : index
    %51 = vector.load %arg3[%c4, %c0_63, %c0_64] : memref<5x256x256xbf16, #tpu.memory_space<vmem>>, vector<1x256x256xbf16>
    %52 = vector.shape_cast %51 : vector<1x256x256xbf16> to vector<256x256xbf16>
    %cst_65 = arith.constant dense<0.000000e+00> : vector<80x256xf32>
    %53 = tpu.matmul %50, %52, %cst_65 {dimension_numbers = #tpu.dot_dimension_numbers<[1], [0], [0], [1], [0, 0, 1, 1], [], []>} : vector<80x256xbf16>, vector<256x256xbf16>, vector<80x256xf32> -> vector<80x256xf32>
    %54 = arith.addf %44, %53 : vector<80x256xf32>
    %c0_66 = arith.constant 0 : index
    %c0_67 = arith.constant 0 : index
    %55 = vector.load %arg4[%c0_66, %c0_67] : memref<1x256xf32, #tpu.memory_space<vmem>>, vector<1x256xf32>
    %56 = vector.broadcast %55 : vector<1x256xf32> to vector<80x256xf32>
    %57 = arith.addf %54, %56 : vector<80x256xf32>
    %cst_68 = arith.constant 0.000000e+00 : f32
    %58 = vector.broadcast %cst_68 : f32 to vector<80x256xf32>
    %59 = arith.maximumf %57, %58 : vector<80x256xf32>
    %c0_69 = arith.constant 0 : index
    %c0_70 = arith.constant 0 : index
    %60 = vector.load %arg5[%c0_69, %c0_70] : memref<80x1xf32, #tpu.memory_space<vmem>>, vector<80x1xf32>
    %61 = vector.broadcast %60 : vector<80x1xf32> to vector<80x256xf32>
    %62 = arith.mulf %59, %61 : vector<80x256xf32>
    %cst_71 = arith.constant dense<0.000000e+00> : vector<256xf32>
    %63 = vector.multi_reduction <add>, %62, %cst_71 [0] : vector<80x256xf32> to vector<256xf32>
    %64 = vector.shape_cast %63 : vector<256xf32> to vector<1x256xf32>
    %c0_72 = arith.constant 0 : index
    %c0_73 = arith.constant 0 : index
    %c0_74 = arith.constant 0 : index
    %65 = vector.load %arg6[%c0_72, %c0_73, %c0_74] : memref<1x1x256xf32, #tpu.memory_space<vmem>>, vector<1x1x256xf32>
    %66 = vector.shape_cast %65 : vector<1x1x256xf32> to vector<1x256xf32>
    %67 = vector.shape_cast %64 : vector<1x256xf32> to vector<1x1x256xf32>
    tpu.vector_store %arg6[%c0_72, %c0_73, %c0_74], %67 {strides = array<i32>} : memref<1x1x256xf32, #tpu.memory_space<vmem>>, vector<1x1x256xf32>,
    return
  }
  func.func @transform_0(%arg0: i32, %arg1: i32) -> (i32, i32, i32) {
    %c0_i32 = arith.constant 0 : i32
    %c0_i32_0 = arith.constant 0 : i32
    %c0_i32_1 = arith.constant 0 : i32
    return %arg1, %c0_i32, %c0_i32_0 : i32, i32, i32
  }
  func.func @transform_1(%arg0: i32, %arg1: i32) -> (i32, i32, i32) {
    %c0_i32 = arith.constant 0 : i32
    %c0_i32_0 = arith.constant 0 : i32
    %c0_i32_1 = arith.constant 0 : i32
    return %c0_i32, %c0_i32_0, %arg0 : i32, i32, i32
  }
  func.func @transform_2(%arg0: i32, %arg1: i32) -> (i32, i32) {
    %c0_i32 = arith.constant 0 : i32
    %c0_i32_0 = arith.constant 0 : i32
    return %c0_i32, %arg0 : i32, i32
  }
  func.func @transform_3(%arg0: i32, %arg1: i32) -> (i32, i32) {
    %c0_i32 = arith.constant 0 : i32
    %c0_i32_0 = arith.constant 0 : i32
    %c0_i32_1 = arith.constant 0 : i32
    return %c0_i32, %c0_i32_0 : i32, i32
  }
  func.func @transform_4(%arg0: i32, %arg1: i32) -> (i32, i32, i32) {
    %c0_i32 = arith.constant 0 : i32
    %c0_i32_0 = arith.constant 0 : i32
    return %arg1, %c0_i32, %arg0 : i32, i32, i32
  }
}

module attributes {stable_mosaic.version = 11 : i64} {
  func.func @_concat_fc_kernel(%arg0: memref<2x512xbf16, #tpu.memory_space<vmem>>, %arg1: memref<2x512xbf16, #tpu.memory_space<vmem>>, %arg2: memref<1024x384xbf16, #tpu.memory_space<vmem>>, %arg3: memref<1x384xf32, #tpu.memory_space<vmem>>, %arg4: memref<2x384xf32, #tpu.memory_space<vmem>>) attributes {dimension_semantics = [], scalar_prefetch = 0 : i64, scratch_operands = 0 : i64, tpu.core_type = #tpu.core_type<tc>} {
    %c0 = arith.constant 0 : index
    %c0_0 = arith.constant 0 : index
    %0 = vector.load %arg0[%c0, %c0_0] : memref<2x512xbf16, #tpu.memory_space<vmem>>, vector<2x512xbf16>
    %c0_1 = arith.constant 0 : index
    %c0_2 = arith.constant 0 : index
    %1 = vector.load %arg2[%c0_1, %c0_2] : memref<1024x384xbf16, #tpu.memory_space<vmem>>, vector<512x384xbf16>
    %cst = arith.constant dense<0.000000e+00> : vector<2x384xf32>
    %2 = tpu.matmul %0, %1, %cst {dimension_numbers = #tpu.dot_dimension_numbers<[1], [0], [0], [1], [0, 0, 1, 1], [], []>} : vector<2x512xbf16>, vector<512x384xbf16>, vector<2x384xf32> -> vector<2x384xf32>
    %c0_3 = arith.constant 0 : index
    %c0_4 = arith.constant 0 : index
    %3 = vector.load %arg1[%c0_3, %c0_4] : memref<2x512xbf16, #tpu.memory_space<vmem>>, vector<2x512xbf16>
    %c512 = arith.constant 512 : index
    %c0_5 = arith.constant 0 : index
    %4 = vector.load %arg2[%c512, %c0_5] : memref<1024x384xbf16, #tpu.memory_space<vmem>>, vector<512x384xbf16>
    %cst_6 = arith.constant dense<0.000000e+00> : vector<2x384xf32>
    %5 = tpu.matmul %3, %4, %cst_6 {dimension_numbers = #tpu.dot_dimension_numbers<[1], [0], [0], [1], [0, 0, 1, 1], [], []>} : vector<2x512xbf16>, vector<512x384xbf16>, vector<2x384xf32> -> vector<2x384xf32>
    %6 = arith.addf %2, %5 : vector<2x384xf32>
    %c0_7 = arith.constant 0 : index
    %c0_8 = arith.constant 0 : index
    %7 = vector.load %arg3[%c0_7, %c0_8] : memref<1x384xf32, #tpu.memory_space<vmem>>, vector<1x384xf32>
    %8 = vector.broadcast %7 : vector<1x384xf32> to vector<2x384xf32>
    %9 = arith.addf %6, %8 : vector<2x384xf32>
    %c0_9 = arith.constant 0 : index
    %c0_10 = arith.constant 0 : index
    %10 = vector.load %arg4[%c0_9, %c0_10] : memref<2x384xf32, #tpu.memory_space<vmem>>, vector<2x384xf32>
    tpu.vector_store %arg4[%c0_9, %c0_10], %9 {strides = array<i32>} : memref<2x384xf32, #tpu.memory_space<vmem>>, vector<2x384xf32>,
    return
  }
}

</mosaic_0001>

<llo_original>
// kernel: avmodel_forward.10
$region0: #{avmodel_forward.10}
  #allocation0 [shape = 'u32[]', space=smem, size = 0x4, offset = 0x4, fixed_abs, tag = 'smem constant byte address 0x4 - core index']
  #allocation1 [shape = 'u32[144,128]{1,0:T(1,128)}', space=vmem, size = 0x12000, scoped, tag = 'internal scratch']
  %s0 = inlined_call_operand.vmem [shape: bf16[8,288,32], index: 0, kind: input, shape index: {}]
  %s1 = inlined_call_operand.vmem [shape: bf16[32,128], index: 1, kind: input, shape index: {}]
  %s2 = inlined_call_operand.vmem [shape: f32[1,128], index: 2, kind: input, shape index: {}]
  %s3 = inlined_call_operand.vmem [shape: bf16[8,288,128], index: 3, kind: output, shape index: {}]
  %s4 = sld [smem:[#allocation0]]
  $region45: #{avmodel_forward.10} parent=0
    _
  %s6 = ssub.s32 1, %s4
  %s7 = scalar_select 0, %s6, %s4
  loop: start=0, step=1, limit=10
  $region2: #{avmodel_forward.10} parent=0 // loop_pre_header
    _
  $region3: #{avmodel_forward.10} parent=0 // loop_header
    %s9 = sphi 0, %s13
    %p10 = scmp.ge.s32.totalorder %s9, 10
    %s16 = sphi 0, %s28
    %s17 = sphi 0, %s24
    %s18 = sphi 0, %s16
    %s19 = sphi 0, %s17
    %s20 = sphi 0, %s18
    %s21 = sphi 0, %s19
    %s31 = sphi 0, %s33
    %s34 = sphi 0, %s31
    %s35 = sphi 0, %s34
    %s51 = sphi 0, %s35
    %s57 = sphi 0, %s59
    %s60 = sphi 0, %s57
    %s61 = sphi 0, %s60
    %s77 = sphi 0, %s61
    %s83 = sphi 0, %s85
    %s86 = sphi 0, %s83
    %s87 = sphi 0, %s86
    %s103 = sphi 0, %s87
    %s111 = sphi 0, %s113
    %s114 = sphi 0, %s111
    %s115 = sphi 0, %s114
    %s131 = sphi 0, %s115
  $region4: #{avmodel_forward.10} parent=0 // loop_header_branch
    %12 = sbr.rel (%p10) target = $region8
  $region5: #{avmodel_forward.10} parent=0 // loop_body
    %s14 = ssub.s32 %s9, 1
    %s15 = ssub.s32 %s9, 2
    %s22 = sadd.s32 1, %s17
    %p23 = scmp.ge.s32.totalorder %s22, 8
    %s24 = scalar_select %p23, 0, %s22
    %s25 = sadd.s32 1, %s16
    %s26 = scalar_select %p23, %s25, %s16
    %p27 = scmp.ge.s32.totalorder %s26, 1
    %s28 = scalar_select %p27, 0, %s26
    %s29 = ssub.s32 %s17, %s24
    %p30 = scmp.eq.s32.totalorder %s29, 0
    %s32 = sadd.s32 %s31, 1
    %s33 = scalar_select %p30, %s31, %s32
    %p36 = pneg %p30
    %p37 = scmp.eq.s32.totalorder %s9, 7
    %p38 = por %p36, %p37
    %p39 = scmp.ne.s32.totalorder %s31, %s34
    %p40 = scmp.eq.s32.totalorder %s9, 0
    %p41 = por %p39, %p40
    %p42 = scmp.ne.s32.totalorder %s31, %s34
    %p43 = scmp.eq.s32.totalorder %s14, 7
    %p44 = por %p42, %p43
    %p45 = scmp.ne.s32.totalorder %s34, %s35
    %p46 = scmp.eq.s32.totalorder %s14, 0
    %p47 = por %p45, %p46
    %p48 = scmp.ne.s32.totalorder %s34, %s35
    %p49 = scmp.eq.s32.totalorder %s15, 7
    %p50 = por %p48, %p49
    %p52 = scmp.ne.s32.totalorder %s35, %s51
    %p53 = scmp.eq.s32.totalorder %s15, 0
    %p54 = por %p52, %p53
    %s55 = ssub.s32 %s16, %s28
    %p56 = scmp.eq.s32.totalorder %s55, 0
    %s58 = sadd.s32 %s57, 1
    %s59 = scalar_select %p56, %s57, %s58
    %p62 = pneg %p56
    %p63 = scmp.eq.s32.totalorder %s9, 7
    %p64 = por %p62, %p63
    %p65 = scmp.ne.s32.totalorder %s57, %s60
    %p66 = scmp.eq.s32.totalorder %s9, 0
    %p67 = por %p65, %p66
    %p68 = scmp.ne.s32.totalorder %s57, %s60
    %p69 = scmp.eq.s32.totalorder %s14, 7
    %p70 = por %p68, %p69
    %p71 = scmp.ne.s32.totalorder %s60, %s61
    %p72 = scmp.eq.s32.totalorder %s14, 0
    %p73 = por %p71, %p72
    %p74 = scmp.ne.s32.totalorder %s60, %s61
    %p75 = scmp.eq.s32.totalorder %s15, 7
    %p76 = por %p74, %p75
    %p78 = scmp.ne.s32.totalorder %s61, %s77
    %p79 = scmp.eq.s32.totalorder %s15, 0
    %p80 = por %p78, %p79
    %s81 = ssub.s32 %s16, %s28
    %p82 = scmp.eq.s32.totalorder %s81, 0
    %s84 = sadd.s32 %s83, 1
    %s85 = scalar_select %p82, %s83, %s84
    %p88 = pneg %p82
    %p89 = scmp.eq.s32.totalorder %s9, 7
    %p90 = por %p88, %p89
    %p91 = scmp.ne.s32.totalorder %s83, %s86
    %p92 = scmp.eq.s32.totalorder %s9, 0
    %p93 = por %p91, %p92
    %p94 = scmp.ne.s32.totalorder %s83, %s86
    %p95 = scmp.eq.s32.totalorder %s14, 7
    %p96 = por %p94, %p95
    %p97 = scmp.ne.s32.totalorder %s86, %s87
    %p98 = scmp.eq.s32.totalorder %s14, 0
    %p99 = por %p97, %p98
    %p100 = scmp.ne.s32.totalorder %s86, %s87
    %p101 = scmp.eq.s32.totalorder %s15, 7
    %p102 = por %p100, %p101
    %p104 = scmp.ne.s32.totalorder %s87, %s103
    %p105 = scmp.eq.s32.totalorder %s15, 0
    %p106 = por %p104, %p105
    %s107 = ssub.s32 %s17, %s24
    %s108 = ssub.s32 %s16, %s28
    %s109 = sor.u32 %s107, %s108
    %p110 = scmp.eq.s32.totalorder %s109, 0
    %s112 = sadd.s32 %s111, 1
    %s113 = scalar_select %p110, %s111, %s112
    %p116 = pneg %p110
    %p117 = scmp.eq.s32.totalorder %s9, 7
    %p118 = por %p116, %p117
    %p119 = scmp.ne.s32.totalorder %s111, %s114
    %p120 = scmp.eq.s32.totalorder %s9, 0
    %p121 = por %p119, %p120
    %p122 = scmp.ne.s32.totalorder %s111, %s114
    %p123 = scmp.eq.s32.totalorder %s14, 7
    %p124 = por %p122, %p123
    %p125 = scmp.ne.s32.totalorder %s114, %s115
    %p126 = scmp.eq.s32.totalorder %s14, 0
    %p127 = por %p125, %p126
    %p128 = scmp.ne.s32.totalorder %s114, %s115
    %p129 = scmp.eq.s32.totalorder %s15, 7
    %p130 = por %p128, %p129
    %p132 = scmp.ne.s32.totalorder %s115, %s131
    %p133 = scmp.eq.s32.totalorder %s15, 0
    %p134 = por %p132, %p133
    %p135 = scmp.le.s32.totalorder 1, %s9
    %p136 = scmp.lt.s32.totalorder %s9, 9
    %p137 = pnand %p135, %p136
    %p138 = pneg %p137
    // Predicated region
    $region9: #{avmodel_forward.10} parent=5 // pred_check
      _
    $region10: #{avmodel_forward.10} parent=5 // pred_check_branch
      %140 = sbr.rel (%p137) target = $region12
    $region11: #{avmodel_forward.10} parent=5 // pred_region
      %s141 = ssub.s32 %s9, 1
      // Predicated region
      $region13: #{avmodel_forward.10} parent=11 // pred_check
        %p142 = pneg %p73
      $region14: #{avmodel_forward.10} parent=11 // pred_check_branch
        %144 = sbr.rel (%p142) target = $region16
      $region15: #{avmodel_forward.10} parent=11 // pred_region
        %p145 = scmp.lt.s32.totalorder %s18, 0
        %s146 = scalar_select %p145, %s18, 0
        %s147 = smul.addr %s146, 4
        %s148 = scalar_lea.vmem %s1, %s147
      $region16: #{avmodel_forward.10} parent=11 // pred_fallthru
        _
      // Predicated region
      $region17: #{avmodel_forward.10} parent=11 // pred_check
        %p149 = pneg %p99
      $region18: #{avmodel_forward.10} parent=11 // pred_check_branch
        %151 = sbr.rel (%p149) target = $region20
      $region19: #{avmodel_forward.10} parent=11 // pred_region
        %p152 = scmp.lt.s32.totalorder %s18, 0
        %s153 = scalar_select %p152, %s18, 0
        %s154 = scalar_lea.vmem %s2, %s153
      $region20: #{avmodel_forward.10} parent=11 // pred_fallthru
        _
    $region12: #{avmodel_forward.10} parent=5 // pred_fallthru
      _
    %p155 = scmp.lt.s32.totalorder %s9, 8
    // Predicated region
    $region21: #{avmodel_forward.10} parent=5 // pred_check
      %p156 = pneg %p155
    $region22: #{avmodel_forward.10} parent=5 // pred_check_branch
      %158 = sbr.rel (%p156) target = $region24
    $region23: #{avmodel_forward.10} parent=5 // pred_region
      // Predicated region
      $region25: #{avmodel_forward.10} parent=23 // pred_check
        %p159 = pneg %p41
      $region26: #{avmodel_forward.10} parent=23 // pred_check_branch
        %161 = sbr.rel (%p159) target = $region28
      $region27: #{avmodel_forward.10} parent=23 // pred_region
        %p162 = scmp.lt.s32.totalorder %s17, 7
        %s163 = scalar_select %p162, %s17, 7
        %s164 = smul.addr %s163, 36
        %s165 = smul.addr %s164, 4
        %s166 = scalar_lea.vmem %s0, %s165
      $region28: #{avmodel_forward.10} parent=23 // pred_fallthru
        _
    $region24: #{avmodel_forward.10} parent=5 // pred_fallthru
      _
    %p167 = scmp.le.s32.totalorder 1, %s9
    %p168 = scmp.lt.s32.totalorder %s9, 9
    %p169 = pnand %p167, %p168
    %p170 = pneg %p169
    // Predicated region
    $region29: #{avmodel_forward.10} parent=5 // pred_check
      _
    $region30: #{avmodel_forward.10} parent=5 // pred_check_branch
      %172 = sbr.rel (%p169) target = $region32
    $region31: #{avmodel_forward.10} parent=5 // pred_region
      %s173 = ssub.s32 %s9, 1
      %p174 = scmp.lt.s32.totalorder %s19, 7
      %s175 = scalar_select %p174, %s19, 7
      %s176 = smul.addr %s175, 36
      %s177 = smul.addr %s176, 4
      %s178 = scalar_lea.vmem %s0, %s177
      %p179 = pneg %p47
      %p180 = pneg %p44
      %p181 = scmp.lt.s32.totalorder %s18, 0
      %s182 = scalar_select %p181, %s18, 0
      %s183 = smul.addr %s182, 4
      %s184 = scalar_lea.vmem %s1, %s183
      %p185 = pneg %p73
      %p186 = pneg %p70
      %p187 = scmp.lt.s32.totalorder %s18, 0
      %s188 = scalar_select %p187, %s18, 0
      %s189 = scalar_lea.vmem %s2, %s188
      %p190 = pneg %p99
      %p191 = pneg %p96
      %p192 = pneg %p127
      %p193 = pneg %p124
      %p194 = scmp.lt.s32.totalorder %s19, 7
      %s195 = scalar_select %p194, %s19, 7
      %p196 = scmp.lt.s32.totalorder %s18, 0
      %s197 = scalar_select %p196, %s18, 0
      %s198 = smul.addr %s195, 36
      %s199 = sadd.s32 %s197, %s198
      %s200 = smul.addr %s199, 4
      %s201 = scalar_lea.vmem %s3, %s200
      %p202 = scmp.lt.s32.totalorder %s19, 7
      %s203 = scalar_select %p202, %s19, 7
      %s204 = smul.addr %s203, 36
      %s205 = smul.addr %s204, 4
      %s206 = scalar_lea.vmem %s0, %s205
      %p207 = scmp.lt.s32.totalorder %s18, 0
      %s208 = scalar_select %p207, %s18, 0
      %s209 = smul.addr %s208, 4
      %s210 = scalar_lea.vmem %s1, %s209
      %p211 = scmp.lt.s32.totalorder %s18, 0
      %s212 = scalar_select %p211, %s18, 0
      %s213 = scalar_lea.vmem %s2, %s212
      %p214 = scmp.lt.s32.totalorder %s19, 7
      %s215 = scalar_select %p214, %s19, 7
      %p216 = scmp.lt.s32.totalorder %s18, 0
      %s217 = scalar_select %p216, %s18, 0
      %s218 = smul.addr %s215, 36
      %s219 = sadd.s32 %s217, %s218
      %s220 = smul.addr %s219, 4
      %s221 = scalar_lea.vmem %s3, %s220
      %v223 = vld [vmem:[%s206] sm:$0xf]
      %v224 = vld [vmem:[%s206 + $0x4] sm:$0xf]
      %v225 = vld [vmem:[%s206 + $0x8] sm:$0xf]
      %v226 = vld [vmem:[%s206 + $0xc] sm:$0xf]
      %v227 = vld [vmem:[%s206 + $0x10] sm:$0xf]
      %v228 = vld [vmem:[%s206 + $0x14] sm:$0xf]
      %v229 = vld [vmem:[%s206 + $0x18] sm:$0xf]
      %v230 = vld [vmem:[%s206 + $0x1c] sm:$0xf]
      %v231 = vld [vmem:[%s206 + $0x20] sm:$0xf]
      %v232 = vld [vmem:[%s206 + $0x24] sm:$0xf]
      %v233 = vld [vmem:[%s206 + $0x28] sm:$0xf]
      %v234 = vld [vmem:[%s206 + $0x2c] sm:$0xf]
      %v235 = vld [vmem:[%s206 + $0x30] sm:$0xf]
      %v236 = vld [vmem:[%s206 + $0x34] sm:$0xf]
      %v237 = vld [vmem:[%s206 + $0x38] sm:$0xf]
      %v238 = vld [vmem:[%s206 + $0x3c] sm:$0xf]
      %v239 = vld [vmem:[%s206 + $0x40] sm:$0xf]
      %v240 = vld [vmem:[%s206 + $0x44] sm:$0xf]
      %v241 = vld [vmem:[%s206 + $0x48] sm:$0xf]
      %v242 = vld [vmem:[%s206 + $0x4c] sm:$0xf]
      %v243 = vld [vmem:[%s206 + $0x50] sm:$0xf]
      %v244 = vld [vmem:[%s206 + $0x54] sm:$0xf]
      %v245 = vld [vmem:[%s206 + $0x58] sm:$0xf]
      %v246 = vld [vmem:[%s206 + $0x5c] sm:$0xf]
      %v247 = vld [vmem:[%s206 + $0x60] sm:$0xf]
      %v248 = vld [vmem:[%s206 + $0x64] sm:$0xf]
      %v249 = vld [vmem:[%s206 + $0x68] sm:$0xf]
      %v250 = vld [vmem:[%s206 + $0x6c] sm:$0xf]
      %v251 = vld [vmem:[%s206 + $0x70] sm:$0xf]
      %v252 = vld [vmem:[%s206 + $0x74] sm:$0xf]
      %v253 = vld [vmem:[%s206 + $0x78] sm:$0xf]
      %v254 = vld [vmem:[%s206 + $0x7c] sm:$0xf]
      %v255 = vld [vmem:[%s206 + $0x80] sm:$0xf]
      %v256 = vld [vmem:[%s206 + $0x84] sm:$0xf]
      %v257 = vld [vmem:[%s206 + $0x88] sm:$0xf]
      %v258 = vld [vmem:[%s206 + $0x8c] sm:$0xf]
      %v259 = vld [vmem:[%s210] sm:$0xf]
      %v260 = vld [vmem:[%s210 + $0x4] sm:$0xf]
      %v261 = vld [vmem:[%s210 + $0x8] sm:$0xf]
      %v262 = vld [vmem:[%s210 + $0xc] sm:$0xf]
      %v263 = vld [vmem:[%s213] sm:$0x1]
      %v265 = vlaneseq
      %v266 = vshrl.u32 %v265, 7
      %v267 = vsub.s32 0, %v266
      %v268 = vrot.slane %v263, %v267
      %v306 = vunpack.c.l.b16 %v223
      %v307 = vunpack.c.l.b16 %v224
      %v308 = vunpack.c.l.b16 %v225
      %v309 = vunpack.c.l.b16 %v226
      %v310 = vunpack.c.l.b16 %v227
      %v311 = vunpack.c.l.b16 %v228
      %v312 = vunpack.c.l.b16 %v229
      %v313 = vunpack.c.l.b16 %v230
      %v314 = vunpack.c.l.b16 %v231
      %v315 = vunpack.c.l.b16 %v232
      %v316 = vunpack.c.l.b16 %v233
      %v317 = vunpack.c.l.b16 %v234
      %v318 = vunpack.c.l.b16 %v235
      %v319 = vunpack.c.l.b16 %v236
      %v320 = vunpack.c.l.b16 %v237
      %v321 = vunpack.c.l.b16 %v238
      %v322 = vunpack.c.l.b16 %v239
      %v323 = vunpack.c.l.b16 %v240
      %v324 = vunpack.c.l.b16 %v241
      %v325 = vunpack.c.l.b16 %v242
      %v326 = vunpack.c.l.b16 %v243
      %v327 = vunpack.c.l.b16 %v244
      %v328 = vunpack.c.l.b16 %v245
      %v329 = vunpack.c.l.b16 %v246
      %v330 = vunpack.c.l.b16 %v247
      %v331 = vunpack.c.l.b16 %v248
      %v332 = vunpack.c.l.b16 %v249
      %v333 = vunpack.c.l.b16 %v250
      %v334 = vunpack.c.l.b16 %v251
      %v335 = vunpack.c.l.b16 %v252
      %v336 = vunpack.c.l.b16 %v253
      %v337 = vunpack.c.l.b16 %v254
      %v338 = vunpack.c.l.b16 %v255
      %v339 = vunpack.c.l.b16 %v256
      %v340 = vunpack.c.l.b16 %v257
      %v341 = vunpack.c.l.b16 %v258
      %v342 = vpack.c.b16 %v307, %v306
      %v343 = vpack.c.b16 %v309, %v308
      %v344 = vpack.c.b16 %v311, %v310
      %v345 = vpack.c.b16 %v313, %v312
      %v346 = vpack.c.b16 %v315, %v314
      %v347 = vpack.c.b16 %v317, %v316
      %v348 = vpack.c.b16 %v319, %v318
      %v349 = vpack.c.b16 %v321, %v320
      %v350 = vpack.c.b16 %v323, %v322
      %v351 = vpack.c.b16 %v325, %v324
      %v352 = vpack.c.b16 %v327, %v326
      %v353 = vpack.c.b16 %v329, %v328
      %v354 = vpack.c.b16 %v331, %v330
      %v355 = vpack.c.b16 %v333, %v332
      %v356 = vpack.c.b16 %v335, %v334
      %v357 = vpack.c.b16 %v337, %v336
      %v358 = vpack.c.b16 %v339, %v338
      %v359 = vpack.c.b16 %v341, %v340
      %v364 = vunpack.c.l.b16 %v259
      %v365 = vunpack.c.l.b16 %v260
      %v366 = vunpack.c.l.b16 %v261
      %v367 = vunpack.c.l.b16 %v262
      %v368 = vpack.c.b16 %v365, %v364
      %v369 = vpack.c.b16 %v367, %v366
      %vm372 = vcmask 261120
      %v374 = vsel %vm372, %v342, 0
      %v377 = vsel %vm372, %v343, 0
      %v380 = vsel %vm372, %v344, 0
      %v383 = vsel %vm372, %v345, 0
      %v386 = vsel %vm372, %v346, 0
      %v389 = vsel %vm372, %v347, 0
      %v392 = vsel %vm372, %v348, 0
      %v395 = vsel %vm372, %v349, 0
      %v398 = vsel %vm372, %v350, 0
      %v401 = vsel %vm372, %v351, 0
      %v404 = vsel %vm372, %v352, 0
      %v407 = vsel %vm372, %v353, 0
      %v410 = vsel %vm372, %v354, 0
      %v413 = vsel %vm372, %v355, 0
      %v416 = vsel %vm372, %v356, 0
      %v419 = vsel %vm372, %v357, 0
      %v422 = vsel %vm372, %v358, 0
      %v425 = vsel %vm372, %v359, 0
      %427 = vmatprep.subr.bf16.mxu0 0
      %428 = vmatpush1.bf16.msra.mxu0 %v368
      %429 = vmatprep.subr.bf16.mxu0 0
      %430 = vmatpush1.bf16.msra.mxu0 %v369
      %431 = vmatprep.subr.bf16.mxu0 0
      %432 = vmatpush1.bf16.msra.mxu0 0
      %433 = vmatprep.subr.bf16.mxu0 0
      %434 = vmatpush1.bf16.msra.mxu0 0
      %435 = vmatprep.subr.bf16.mxu0 0
      %436 = vmatpush1.bf16.msra.mxu0 0
      %437 = vmatprep.subr.bf16.mxu0 0
      %438 = vmatpush1.bf16.msra.mxu0 0
      %439 = vmatprep.subr.bf16.mxu0 0
      %440 = vmatpush1.bf16.msra.mxu0 0
      %441 = vmatprep.subr.bf16.mxu0 0
      %442 = vmatpush1.bf16.msra.mxu0 0
      %443 = vmatprep.subr.bf16.mxu0 0
      %444 = vmatpush1.bf16.msra.mxu0 0
      %445 = vmatprep.subr.bf16.mxu0 0
      %446 = vmatpush1.bf16.msra.mxu0 0
      %447 = vmatprep.subr.bf16.mxu0 0
      %448 = vmatpush1.bf16.msra.mxu0 0
      %449 = vmatprep.subr.bf16.mxu0 0
      %450 = vmatpush1.bf16.msra.mxu0 0
      %451 = vmatprep.subr.bf16.mxu0 0
      %452 = vmatpush1.bf16.msra.mxu0 0
      %453 = vmatprep.subr.bf16.mxu0 0
      %454 = vmatpush1.bf16.msra.mxu0 0
      %455 = vmatprep.subr.bf16.mxu0 0
      %456 = vmatpush1.bf16.msra.mxu0 0
      %457 = vmatprep.subr.bf16.mxu0 0
      %458 = vmatpush1.bf16.msra.mxu0 0
      %459 = vmatprep.mubr.bf16.mxu0 0
      %460 = vmatmul.mubr.bf16.gmra.mrb[0].mxu0 %v374
      %v461 = vpop.f32.mrb[0].mxu0
      %v462 = vadd.f32 %v268, %v461
      %v463 = vpop.f32.mrb[0].mxu0
      %v464 = vpop.f32.mrb[0].mxu0
      %v465 = vadd.f32 %v268, %v464
      %v466 = vpop.f32.mrb[0].mxu0
      %467 = vmatprep.mubr.bf16.mxu0 0
      %468 = vmatmul.mubr.bf16.gmra.mrb[0].mxu0 %v377
      %v469 = vpop.f32.mrb[0].mxu0
      %v470 = vadd.f32 %v268, %v469
      %v471 = vpop.f32.mrb[0].mxu0
      %v472 = vpop.f32.mrb[0].mxu0
      %v473 = vadd.f32 %v268, %v472
      %v474 = vpop.f32.mrb[0].mxu0
      %475 = vmatprep.mubr.bf16.mxu0 0
      %476 = vmatmul.mubr.bf16.gmra.mrb[0].mxu0 %v380
      %v477 = vpop.f32.mrb[0].mxu0
      %v478 = vadd.f32 %v268, %v477
      %v479 = vpop.f32.mrb[0].mxu0
      %v480 = vpop.f32.mrb[0].mxu0
      %v481 = vadd.f32 %v268, %v480
      %v482 = vpop.f32.mrb[0].mxu0
      %483 = vmatprep.mubr.bf16.mxu0 0
      %484 = vmatmul.mubr.bf16.gmra.mrb[0].mxu0 %v383
      %v485 = vpop.f32.mrb[0].mxu0
      %v486 = vadd.f32 %v268, %v485
      %v487 = vpop.f32.mrb[0].mxu0
      %v488 = vpop.f32.mrb[0].mxu0
      %v489 = vadd.f32 %v268, %v488
      %v490 = vpop.f32.mrb[0].mxu0
      %491 = vmatprep.mubr.bf16.mxu0 0
      %492 = vmatmul.mubr.bf16.gmra.mrb[0].mxu0 %v386
      %v493 = vpop.f32.mrb[0].mxu0
      %v494 = vadd.f32 %v268, %v493
      %v495 = vpop.f32.mrb[0].mxu0
      %v496 = vpop.f32.mrb[0].mxu0
      %v497 = vadd.f32 %v268, %v496
      %v498 = vpop.f32.mrb[0].mxu0
      %499 = vmatprep.mubr.bf16.mxu0 0
      %500 = vmatmul.mubr.bf16.gmra.mrb[0].mxu0 %v389
      %v501 = vpop.f32.mrb[0].mxu0
      %v502 = vadd.f32 %v268, %v501
      %v503 = vpop.f32.mrb[0].mxu0
      %v504 = vpop.f32.mrb[0].mxu0
      %v505 = vadd.f32 %v268, %v504
      %v506 = vpop.f32.mrb[0].mxu0
      %507 = vmatprep.mubr.bf16.mxu0 0
      %508 = vmatmul.mubr.bf16.gmra.mrb[0].mxu0 %v392
      %v509 = vpop.f32.mrb[0].mxu0
      %v510 = vadd.f32 %v268, %v509
      %v511 = vpop.f32.mrb[0].mxu0
      %v512 = vpop.f32.mrb[0].mxu0
      %v513 = vadd.f32 %v268, %v512
      %v514 = vpop.f32.mrb[0].mxu0
      %515 = vmatprep.mubr.bf16.mxu0 0
      %516 = vmatmul.mubr.bf16.gmra.mrb[0].mxu0 %v395
      %v517 = vpop.f32.mrb[0].mxu0
      %v518 = vadd.f32 %v268, %v517
      %v519 = vpop.f32.mrb[0].mxu0
      %v520 = vpop.f32.mrb[0].mxu0
      %v521 = vadd.f32 %v268, %v520
      %v522 = vpop.f32.mrb[0].mxu0
      %523 = vmatprep.mubr.bf16.mxu0 0
      %524 = vmatmul.mubr.bf16.gmra.mrb[0].mxu0 %v398
      %v525 = vpop.f32.mrb[0].mxu0
      %v526 = vadd.f32 %v268, %v525
      %v527 = vpop.f32.mrb[0].mxu0
      %v528 = vpop.f32.mrb[0].mxu0
      %v529 = vadd.f32 %v268, %v528
      %v530 = vpop.f32.mrb[0].mxu0
      %531 = vmatprep.mubr.bf16.mxu0 0
      %532 = vmatmul.mubr.bf16.gmra.mrb[0].mxu0 %v401
      %v533 = vpop.f32.mrb[0].mxu0
      %v534 = vadd.f32 %v268, %v533
      %v535 = vpop.f32.mrb[0].mxu0
      %v536 = vpop.f32.mrb[0].mxu0
      %v537 = vadd.f32 %v268, %v536
      %v538 = vpop.f32.mrb[0].mxu0
      %539 = vmatprep.mubr.bf16.mxu0 0
      %540 = vmatmul.mubr.bf16.gmra.mrb[0].mxu0 %v404
      %v541 = vpop.f32.mrb[0].mxu0
      %v542 = vadd.f32 %v268, %v541
      %v543 = vpop.f32.mrb[0].mxu0
      %v544 = vpop.f32.mrb[0].mxu0
      %v545 = vadd.f32 %v268, %v544
      %v546 = vpop.f32.mrb[0].mxu0
      %547 = vmatprep.mubr.bf16.mxu0 0
      %548 = vmatmul.mubr.bf16.gmra.mrb[0].mxu0 %v407
      %v549 = vpop.f32.mrb[0].mxu0
      %v550 = vadd.f32 %v268, %v549
      %v551 = vpop.f32.mrb[0].mxu0
      %v552 = vpop.f32.mrb[0].mxu0
      %v553 = vadd.f32 %v268, %v552
      %v554 = vpop.f32.mrb[0].mxu0
      %555 = vmatprep.mubr.bf16.mxu0 0
      %556 = vmatmul.mubr.bf16.gmra.mrb[0].mxu0 %v410
      %v557 = vpop.f32.mrb[0].mxu0
      %v558 = vadd.f32 %v268, %v557
      %v559 = vpop.f32.mrb[0].mxu0
      %v560 = vpop.f32.mrb[0].mxu0
      %v561 = vadd.f32 %v268, %v560
      %v562 = vpop.f32.mrb[0].mxu0
      %563 = vmatprep.mubr.bf16.mxu0 0
      %564 = vmatmul.mubr.bf16.gmra.mrb[0].mxu0 %v413
      %v565 = vpop.f32.mrb[0].mxu0
      %v566 = vadd.f32 %v268, %v565
      %v567 = vpop.f32.mrb[0].mxu0
      %v568 = vpop.f32.mrb[0].mxu0
      %v569 = vadd.f32 %v268, %v568
      %v570 = vpop.f32.mrb[0].mxu0
      %571 = vmatprep.mubr.bf16.mxu0 0
      %572 = vmatmul.mubr.bf16.gmra.mrb[0].mxu0 %v416
      %v573 = vpop.f32.mrb[0].mxu0
      %v574 = vadd.f32 %v268, %v573
      %v575 = vpop.f32.mrb[0].mxu0
      %v576 = vpop.f32.mrb[0].mxu0
      %v577 = vadd.f32 %v268, %v576
      %v578 = vpop.f32.mrb[0].mxu0
      %579 = vmatprep.mubr.bf16.mxu0 0
      %580 = vmatmul.mubr.bf16.gmra.mrb[0].mxu0 %v419
      %v581 = vpop.f32.mrb[0].mxu0
      %v582 = vadd.f32 %v268, %v581
      %v583 = vpop.f32.mrb[0].mxu0
      %v584 = vpop.f32.mrb[0].mxu0
      %v585 = vadd.f32 %v268, %v584
      %v586 = vpop.f32.mrb[0].mxu0
      %587 = vmatprep.mubr.bf16.mxu0 0
      %588 = vmatmul.mubr.bf16.gmra.mrb[0].mxu0 %v422
      %v589 = vpop.f32.mrb[0].mxu0
      %v590 = vadd.f32 %v268, %v589
      %v591 = vpop.f32.mrb[0].mxu0
      %v592 = vpop.f32.mrb[0].mxu0
      %v593 = vadd.f32 %v268, %v592
      %v594 = vpop.f32.mrb[0].mxu0
      %595 = vmatprep.mubr.bf16.mxu0 0
      %596 = vmatmul.mubr.bf16.gmra.mrb[0].mxu0 %v425
      %v597 = vpop.f32.mrb[0].mxu0
      %v598 = vadd.f32 %v268, %v597
      %v599 = vpop.f32.mrb[0].mxu0
      %v600 = vpop.f32.mrb[0].mxu0
      %v601 = vadd.f32 %v268, %v600
      %v602 = vpop.f32.mrb[0].mxu0
      %603 = vdwg.mxu0
      %v604 = vmax.f32 %v462, 0.0
      %v605 = vmax.f32 %v465, 0.0
      %v606 = vmax.f32 %v470, 0.0
      %v607 = vmax.f32 %v473, 0.0
      %v608 = vmax.f32 %v478, 0.0
      %v609 = vmax.f32 %v481, 0.0
      %v610 = vmax.f32 %v486, 0.0
      %v611 = vmax.f32 %v489, 0.0
      %v612 = vmax.f32 %v494, 0.0
      %v613 = vmax.f32 %v497, 0.0
      %v614 = vmax.f32 %v502, 0.0
      %v615 = vmax.f32 %v505, 0.0
      %v616 = vmax.f32 %v510, 0.0
      %v617 = vmax.f32 %v513, 0.0
      %v618 = vmax.f32 %v518, 0.0
      %v619 = vmax.f32 %v521, 0.0
      %v620 = vmax.f32 %v526, 0.0
      %v621 = vmax.f32 %v529, 0.0
      %v622 = vmax.f32 %v534, 0.0
      %v623 = vmax.f32 %v537, 0.0
      %v624 = vmax.f32 %v542, 0.0
      %v625 = vmax.f32 %v545, 0.0
      %v626 = vmax.f32 %v550, 0.0
      %v627 = vmax.f32 %v553, 0.0
      %v628 = vmax.f32 %v558, 0.0
      %v629 = vmax.f32 %v561, 0.0
      %v630 = vmax.f32 %v566, 0.0
      %v631 = vmax.f32 %v569, 0.0
      %v632 = vmax.f32 %v574, 0.0
      %v633 = vmax.f32 %v577, 0.0
      %v634 = vmax.f32 %v582, 0.0
      %v635 = vmax.f32 %v585, 0.0
      %v636 = vmax.f32 %v590, 0.0
      %v637 = vmax.f32 %v593, 0.0
      %v638 = vmax.f32 %v598, 0.0
      %v639 = vmax.f32 %v601, 0.0
      %v640 = vpack.c.bf16 %v605, %v604
      %v641 = vpack.c.bf16 %v607, %v606
      %v642 = vpack.c.bf16 %v609, %v608
      %v643 = vpack.c.bf16 %v611, %v610
      %v644 = vpack.c.bf16 %v613, %v612
      %v645 = vpack.c.bf16 %v615, %v614
      %v646 = vpack.c.bf16 %v617, %v616
      %v647 = vpack.c.bf16 %v619, %v618
      %v648 = vpack.c.bf16 %v621, %v620
      %v649 = vpack.c.bf16 %v623, %v622
      %v650 = vpack.c.bf16 %v625, %v624
      %v651 = vpack.c.bf16 %v627, %v626
      %v652 = vpack.c.bf16 %v629, %v628
      %v653 = vpack.c.bf16 %v631, %v630
      %v654 = vpack.c.bf16 %v633, %v632
      %v655 = vpack.c.bf16 %v635, %v634
      %v656 = vpack.c.bf16 %v637, %v636
      %v657 = vpack.c.bf16 %v639, %v638
      %v676 = vunpack.c.l.b16 %v640
      %v677 = vunpack.c.h.b16 %v640
      %v678 = vunpack.c.l.b16 %v641
      %v679 = vunpack.c.h.b16 %v641
      %v680 = vunpack.c.l.b16 %v642
      %v681 = vunpack.c.h.b16 %v642
      %v682 = vunpack.c.l.b16 %v643
      %v683 = vunpack.c.h.b16 %v643
      %v684 = vunpack.c.l.b16 %v644
      %v685 = vunpack.c.h.b16 %v644
      %v686 = vunpack.c.l.b16 %v645
      %v687 = vunpack.c.h.b16 %v645
      %v688 = vunpack.c.l.b16 %v646
      %v689 = vunpack.c.h.b16 %v646
      %v690 = vunpack.c.l.b16 %v647
      %v691 = vunpack.c.h.b16 %v647
      %v692 = vunpack.c.l.b16 %v648
      %v693 = vunpack.c.h.b16 %v648
      %v694 = vunpack.c.l.b16 %v649
      %v695 = vunpack.c.h.b16 %v649
      %v696 = vunpack.c.l.b16 %v650
      %v697 = vunpack.c.h.b16 %v650
      %v698 = vunpack.c.l.b16 %v651
      %v699 = vunpack.c.h.b16 %v651
      %v700 = vunpack.c.l.b16 %v652
      %v701 = vunpack.c.h.b16 %v652
      %v702 = vunpack.c.l.b16 %v653
      %v703 = vunpack.c.h.b16 %v653
      %v704 = vunpack.c.l.b16 %v654
      %v705 = vunpack.c.h.b16 %v654
      %v706 = vunpack.c.l.b16 %v655
      %v707 = vunpack.c.h.b16 %v655
      %v708 = vunpack.c.l.b16 %v656
      %v709 = vunpack.c.h.b16 %v656
      %v710 = vunpack.c.l.b16 %v657
      %v711 = vunpack.c.h.b16 %v657
      %v712 = vpack.c.b16 %v676, %v676
      %v713 = vpack.c.b16 %v677, %v677
      %v714 = vpack.c.b16 %v678, %v678
      %v715 = vpack.c.b16 %v679, %v679
      %v716 = vpack.c.b16 %v680, %v680
      %v717 = vpack.c.b16 %v681, %v681
      %v718 = vpack.c.b16 %v682, %v682
      %v719 = vpack.c.b16 %v683, %v683
      %v720 = vpack.c.b16 %v684, %v684
      %v721 = vpack.c.b16 %v685, %v685
      %v722 = vpack.c.b16 %v686, %v686
      %v723 = vpack.c.b16 %v687, %v687
      %v724 = vpack.c.b16 %v688, %v688
      %v725 = vpack.c.b16 %v689, %v689
      %v726 = vpack.c.b16 %v690, %v690
      %v727 = vpack.c.b16 %v691, %v691
      %v728 = vpack.c.b16 %v692, %v692
      %v729 = vpack.c.b16 %v693, %v693
      %v730 = vpack.c.b16 %v694, %v694
      %v731 = vpack.c.b16 %v695, %v695
      %v732 = vpack.c.b16 %v696, %v696
      %v733 = vpack.c.b16 %v697, %v697
      %v734 = vpack.c.b16 %v698, %v698
      %v735 = vpack.c.b16 %v699, %v699
      %v736 = vpack.c.b16 %v700, %v700
      %v737 = vpack.c.b16 %v701, %v701
      %v738 = vpack.c.b16 %v702, %v702
      %v739 = vpack.c.b16 %v703, %v703
      %v740 = vpack.c.b16 %v704, %v704
      %v741 = vpack.c.b16 %v705, %v705
      %v742 = vpack.c.b16 %v706, %v706
      %v743 = vpack.c.b16 %v707, %v707
      %v744 = vpack.c.b16 %v708, %v708
      %v745 = vpack.c.b16 %v709, %v709
      %v746 = vpack.c.b16 %v710, %v710
      %v747 = vpack.c.b16 %v711, %v711
      %784 = vst [vmem:[%s221] sm:$0xf] %v712
      %785 = vst [vmem:[%s221 + $0x4] sm:$0xf] %v713
      %786 = vst [vmem:[%s221 + $0x8] sm:$0xf] %v714
      %787 = vst [vmem:[%s221 + $0xc] sm:$0xf] %v715
      %788 = vst [vmem:[%s221 + $0x10] sm:$0xf] %v716
      %789 = vst [vmem:[%s221 + $0x14] sm:$0xf] %v717
      %790 = vst [vmem:[%s221 + $0x18] sm:$0xf] %v718
      %791 = vst [vmem:[%s221 + $0x1c] sm:$0xf] %v719
      %792 = vst [vmem:[%s221 + $0x20] sm:$0xf] %v720
      %793 = vst [vmem:[%s221 + $0x24] sm:$0xf] %v721
      %794 = vst [vmem:[%s221 + $0x28] sm:$0xf] %v722
      %795 = vst [vmem:[%s221 + $0x2c] sm:$0xf] %v723
      %796 = vst [vmem:[%s221 + $0x30] sm:$0xf] %v724
      %797 = vst [vmem:[%s221 + $0x34] sm:$0xf] %v725
      %798 = vst [vmem:[%s221 + $0x38] sm:$0xf] %v726
      %799 = vst [vmem:[%s221 + $0x3c] sm:$0xf] %v727
      %800 = vst [vmem:[%s221 + $0x40] sm:$0xf] %v728
      %801 = vst [vmem:[%s221 + $0x44] sm:$0xf] %v729
      %802 = vst [vmem:[%s221 + $0x48] sm:$0xf] %v730
      %803 = vst [vmem:[%s221 + $0x4c] sm:$0xf] %v731
      %804 = vst [vmem:[%s221 + $0x50] sm:$0xf] %v732
      %805 = vst [vmem:[%s221 + $0x54] sm:$0xf] %v733
      %806 = vst [vmem:[%s221 + $0x58] sm:$0xf] %v734
      %807 = vst [vmem:[%s221 + $0x5c] sm:$0xf] %v735
      %808 = vst [vmem:[%s221 + $0x60] sm:$0xf] %v736
      %809 = vst [vmem:[%s221 + $0x64] sm:$0xf] %v737
      %810 = vst [vmem:[%s221 + $0x68] sm:$0xf] %v738
      %811 = vst [vmem:[%s221 + $0x6c] sm:$0xf] %v739
      %812 = vst [vmem:[%s221 + $0x70] sm:$0xf] %v740
      %813 = vst [vmem:[%s221 + $0x74] sm:$0xf] %v741
      %814 = vst [vmem:[%s221 + $0x78] sm:$0xf] %v742
      %815 = vst [vmem:[%s221 + $0x7c] sm:$0xf] %v743
      %816 = vst [vmem:[%s221 + $0x80] sm:$0xf] %v744
      %817 = vst [vmem:[%s221 + $0x84] sm:$0xf] %v745
      %818 = vst [vmem:[%s221 + $0x88] sm:$0xf] %v746
      %819 = vst [vmem:[%s221 + $0x8c] sm:$0xf] %v747
      %p820 = scmp.lt.s32.totalorder %s19, 7
      %s821 = scalar_select %p820, %s19, 7
      %p822 = scmp.lt.s32.totalorder %s18, 0
      %s823 = scalar_select %p822, %s18, 0
      %s824 = smul.addr %s821, 36
      %s825 = sadd.s32 %s823, %s824
      %s826 = smul.addr %s825, 4
      %s827 = scalar_lea.vmem %s3, %s826
      // Predicated region
      $region33: #{avmodel_forward.10} parent=31 // pred_check
        %p828 = pneg %p124
      $region34: #{avmodel_forward.10} parent=31 // pred_check_branch
        %830 = sbr.rel (%p828) target = $region36
      $region35: #{avmodel_forward.10} parent=31 // pred_region
        _
      $region36: #{avmodel_forward.10} parent=31 // pred_fallthru
        _
    $region32: #{avmodel_forward.10} parent=5 // pred_fallthru
      _
    %p831 = scmp.le.s32.totalorder 2, %s9
    // Predicated region
    $region37: #{avmodel_forward.10} parent=5 // pred_check
      %p832 = pneg %p831
    $region38: #{avmodel_forward.10} parent=5 // pred_check_branch
      %834 = sbr.rel (%p832) target = $region40
    $region39: #{avmodel_forward.10} parent=5 // pred_region
      %s835 = ssub.s32 %s9, 2
      // Predicated region
      $region41: #{avmodel_forward.10} parent=39 // pred_check
        %p836 = pneg %p130
      $region42: #{avmodel_forward.10} parent=39 // pred_check_branch
        %838 = sbr.rel (%p836) target = $region44
      $region43: #{avmodel_forward.10} parent=39 // pred_region
        %p839 = scmp.lt.s32.totalorder %s21, 7
        %s840 = scalar_select %p839, %s21, 7
        %p841 = scmp.lt.s32.totalorder %s20, 0
        %s842 = scalar_select %p841, %s20, 0
        %s843 = smul.addr %s840, 36
        %s844 = sadd.s32 %s842, %s843
        %s845 = smul.addr %s844, 4
        %s846 = scalar_lea.vmem %s3, %s845
      $region44: #{avmodel_forward.10} parent=39 // pred_fallthru
        _
    $region40: #{avmodel_forward.10} parent=5 // pred_fallthru
      _
  $region6: #{avmodel_forward.10} parent=0 // loop_footer
    %s13 = sadd.s32 1, %s9
  $region7: #{avmodel_forward.10} parent=0 // loop_footer_branch
    %8 = sbr.rel target = $region3
  $region8: #{avmodel_forward.10} parent=0 // loop_exit
    _

// kernel: avmodel_forward.11
$region0: #{avmodel_forward.11}
  #allocation0 [shape = 'u32[]', space=smem, size = 0x4, offset = 0x4, fixed_abs, tag = 'smem constant byte address 0x4 - core index']
  #allocation1 [shape = 'u32[144,128]{1,0:T(1,128)}', space=vmem, size = 0x12000, scoped, tag = 'internal scratch']
  %s0 = inlined_call_operand.vmem [shape: bf16[64,2,9,256], index: 0, kind: input, shape index: {}]
  %s1 = inlined_call_operand.vmem [shape: bf16[8,11,10,128], index: 1, kind: output, shape index: {}]
  %s2 = sld [smem:[#allocation0]]
  $region37: #{avmodel_forward.11} parent=0
    _
  %s4 = ssub.s32 1, %s2
  %s5 = scalar_select 0, %s4, %s2
  loop: start=0, step=1, limit=10
  $region2: #{avmodel_forward.11} parent=0 // loop_pre_header
    _
  $region3: #{avmodel_forward.11} parent=0 // loop_header
    %s7 = sphi 0, %s11
    %p8 = scmp.ge.s32.totalorder %s7, 10
    %s17 = sphi 0, %s19
    %s20 = sphi 0, %s17
    %s21 = sphi 0, %s20
    %s37 = sphi 0, %s21
    %s43 = sphi 0, %s45
    %s46 = sphi 0, %s43
    %s47 = sphi 0, %s46
    %s63 = sphi 0, %s47
  $region4: #{avmodel_forward.11} parent=0 // loop_header_branch
    %10 = sbr.rel (%p8) target = $region8
  $region5: #{avmodel_forward.11} parent=0 // loop_body
    %s12 = ssub.s32 %s7, 1
    %s13 = ssub.s32 %s7, 2
    %s14 = sadd.s32 %s7, 1
    %s15 = ssub.s32 %s7, %s14
    %p16 = scmp.eq.s32.totalorder %s15, 0
    %s18 = sadd.s32 %s17, 1
    %s19 = scalar_select %p16, %s17, %s18
    %p22 = pneg %p16
    %p23 = scmp.eq.s32.totalorder %s7, 7
    %p24 = por %p22, %p23
    %p25 = scmp.ne.s32.totalorder %s17, %s20
    %p26 = scmp.eq.s32.totalorder %s7, 0
    %p27 = por %p25, %p26
    %p28 = scmp.ne.s32.totalorder %s17, %s20
    %p29 = scmp.eq.s32.totalorder %s12, 7
    %p30 = por %p28, %p29
    %p31 = scmp.ne.s32.totalorder %s20, %s21
    %p32 = scmp.eq.s32.totalorder %s12, 0
    %p33 = por %p31, %p32
    %p34 = scmp.ne.s32.totalorder %s20, %s21
    %p35 = scmp.eq.s32.totalorder %s13, 7
    %p36 = por %p34, %p35
    %p38 = scmp.ne.s32.totalorder %s21, %s37
    %p39 = scmp.eq.s32.totalorder %s13, 0
    %p40 = por %p38, %p39
    %s41 = ssub.s32 %s7, %s14
    %p42 = scmp.eq.s32.totalorder %s41, 0
    %s44 = sadd.s32 %s43, 1
    %s45 = scalar_select %p42, %s43, %s44
    %p48 = pneg %p42
    %p49 = scmp.eq.s32.totalorder %s7, 7
    %p50 = por %p48, %p49
    %p51 = scmp.ne.s32.totalorder %s43, %s46
    %p52 = scmp.eq.s32.totalorder %s7, 0
    %p53 = por %p51, %p52
    %p54 = scmp.ne.s32.totalorder %s43, %s46
    %p55 = scmp.eq.s32.totalorder %s12, 7
    %p56 = por %p54, %p55
    %p57 = scmp.ne.s32.totalorder %s46, %s47
    %p58 = scmp.eq.s32.totalorder %s12, 0
    %p59 = por %p57, %p58
    %p60 = scmp.ne.s32.totalorder %s46, %s47
    %p61 = scmp.eq.s32.totalorder %s13, 7
    %p62 = por %p60, %p61
    %p64 = scmp.ne.s32.totalorder %s47, %s63
    %p65 = scmp.eq.s32.totalorder %s13, 0
    %p66 = por %p64, %p65
    %p67 = scmp.le.s32.totalorder 1, %s7
    %p68 = scmp.lt.s32.totalorder %s7, 9
    %p69 = pnand %p67, %p68
    %p70 = pneg %p69
    // Predicated region
    $region9: #{avmodel_forward.11} parent=5 // pred_check
      _
    $region10: #{avmodel_forward.11} parent=5 // pred_check_branch
      %72 = sbr.rel (%p69) target = $region12
    $region11: #{avmodel_forward.11} parent=5 // pred_region
      %s73 = ssub.s32 %s7, 1
    $region12: #{avmodel_forward.11} parent=5 // pred_fallthru
      _
    %p74 = scmp.lt.s32.totalorder %s7, 8
    // Predicated region
    $region13: #{avmodel_forward.11} parent=5 // pred_check
      %p75 = pneg %p74
    $region14: #{avmodel_forward.11} parent=5 // pred_check_branch
      %77 = sbr.rel (%p75) target = $region16
    $region15: #{avmodel_forward.11} parent=5 // pred_region
      // Predicated region
      $region17: #{avmodel_forward.11} parent=15 // pred_check
        %p78 = pneg %p27
      $region18: #{avmodel_forward.11} parent=15 // pred_check_branch
        %80 = sbr.rel (%p78) target = $region20
      $region19: #{avmodel_forward.11} parent=15 // pred_region
        %s81 = smul.u32 8, %s7
        %p82 = scmp.lt.s32.totalorder %s81, 63
        %s83 = scalar_select %p82, %s81, 63
        %s84 = smul.addr %s83, 8
        %s85 = smul.addr %s84, 4
        %s86 = scalar_lea.vmem %s0, %s85
        %s87 = smul.u32 8, %s7
      $region20: #{avmodel_forward.11} parent=15 // pred_fallthru
        _
    $region16: #{avmodel_forward.11} parent=5 // pred_fallthru
      _
    %p88 = scmp.le.s32.totalorder 1, %s7
    %p89 = scmp.lt.s32.totalorder %s7, 9
    %p90 = pnand %p88, %p89
    %p91 = pneg %p90
    // Predicated region
    $region21: #{avmodel_forward.11} parent=5 // pred_check
      _
    $region22: #{avmodel_forward.11} parent=5 // pred_check_branch
      %93 = sbr.rel (%p90) target = $region24
    $region23: #{avmodel_forward.11} parent=5 // pred_region
      %s94 = ssub.s32 %s7, 1
      %s95 = smul.u32 8, %s12
      %p96 = scmp.lt.s32.totalorder %s95, 63
      %s97 = scalar_select %p96, %s95, 63
      %s98 = smul.addr %s97, 8
      %s99 = smul.addr %s98, 4
      %s100 = scalar_lea.vmem %s0, %s99
      %p101 = pneg %p33
      %p102 = pneg %p30
      %p103 = pneg %p59
      %p104 = pneg %p56
      %p105 = scmp.lt.s32.totalorder %s12, 7
      %s106 = scalar_select %p105, %s12, 7
      %s107 = smul.addr %s106, 22
      %s108 = smul.addr %s107, 4
      %s109 = scalar_lea.vmem %s1, %s108
      %s110 = smul.u32 8, %s12
      %p111 = scmp.lt.s32.totalorder %s110, 63
      %s112 = scalar_select %p111, %s110, 63
      %s113 = smul.addr %s112, 8
      %s114 = smul.addr %s113, 4
      %s115 = scalar_lea.vmem %s0, %s114
      %s116 = smul.u32 8, %s12
      %p117 = scmp.lt.s32.totalorder %s12, 7
      %s118 = scalar_select %p117, %s12, 7
      %s119 = smul.addr %s118, 22
      %s120 = smul.addr %s119, 4
      %s121 = scalar_lea.vmem %s1, %s120
      %123 = vst [vmem:[%s121] sm:$0xf] 0
      %124 = vst [vmem:[%s121 + $0x4] sm:$0x1] 0
      %125 = vst [vmem:[%s121 + $0x8] sm:$0xf] 0
      %126 = vst [vmem:[%s121 + $0xc] sm:$0x1] 0
      %127 = vst [vmem:[%s121 + $0x10] sm:$0xf] 0
      %128 = vst [vmem:[%s121 + $0x14] sm:$0x1] 0
      %129 = vst [vmem:[%s121 + $0x18] sm:$0xf] 0
      %130 = vst [vmem:[%s121 + $0x1c] sm:$0x1] 0
      %131 = vst [vmem:[%s121 + $0x20] sm:$0xf] 0
      %132 = vst [vmem:[%s121 + $0x24] sm:$0x1] 0
      %133 = vst [vmem:[%s121 + $0x28] sm:$0xf] 0
      %134 = vst [vmem:[%s121 + $0x2c] sm:$0x1] 0
      %135 = vst [vmem:[%s121 + $0x30] sm:$0xf] 0
      %136 = vst [vmem:[%s121 + $0x34] sm:$0x1] 0
      %137 = vst [vmem:[%s121 + $0x38] sm:$0xf] 0
      %138 = vst [vmem:[%s121 + $0x3c] sm:$0x1] 0
      %139 = vst [vmem:[%s121 + $0x40] sm:$0xf] 0
      %140 = vst [vmem:[%s121 + $0x44] sm:$0x1] 0
      %141 = vst [vmem:[%s121 + $0x48] sm:$0xf] 0
      %142 = vst [vmem:[%s121 + $0x4c] sm:$0x1] 0
      %143 = vst [vmem:[%s121 + $0x50] sm:$0xf] 0
      %144 = vst [vmem:[%s121 + $0x54] sm:$0x1] 0
      %v145 = vld [vmem:[%s115] sm:$0xff]
      %v146 = vld [vmem:[%s115 + $0x20] sm:$0xff]
      %v147 = vld [vmem:[%s115 + $0x40] sm:$0xff]
      %v148 = vld [vmem:[%s115 + $0x60] sm:$0xff]
      %v149 = vld [vmem:[%s115 + $0x80] sm:$0xff]
      %v150 = vld [vmem:[%s115 + $0xa0] sm:$0xff]
      %v151 = vld [vmem:[%s115 + $0xc0] sm:$0xff]
      %v152 = vld [vmem:[%s115 + $0xe0] sm:$0xff]
      %s153 = scalar_lea.vmem %s115, 16
      %v154 = vld [vmem:[%s153] sm:$0xff]
      %v155 = vld [vmem:[%s153 + $0x20] sm:$0xff]
      %v156 = vld [vmem:[%s153 + $0x40] sm:$0xff]
      %v157 = vld [vmem:[%s153 + $0x60] sm:$0xff]
      %v158 = vld [vmem:[%s153 + $0x80] sm:$0xff]
      %v159 = vld [vmem:[%s153 + $0xa0] sm:$0xff]
      %v160 = vld [vmem:[%s153 + $0xc0] sm:$0xff]
      %v161 = vld [vmem:[%s153 + $0xe0] sm:$0xff]
      %v162 = vmax.bf16 %v145, %v154
      %v163 = vmax.bf16 %v146, %v155
      %v164 = vmax.bf16 %v147, %v156
      %v165 = vmax.bf16 %v148, %v157
      %v166 = vmax.bf16 %v149, %v158
      %v167 = vmax.bf16 %v150, %v159
      %v168 = vmax.bf16 %v151, %v160
      %v169 = vmax.bf16 %v152, %v161
      %v178 = vrot.slane %v162, 4
      %v179 = vrot.slane %v163, 4
      %v180 = vrot.slane %v164, 4
      %v181 = vrot.slane %v165, 4
      %v182 = vrot.slane %v166, 4
      %v183 = vrot.slane %v167, 4
      %v184 = vrot.slane %v168, 4
      %v185 = vrot.slane %v169, 4
      %v194 = vmax.bf16 %v162, %v178
      %v195 = vmax.bf16 %v163, %v179
      %v196 = vmax.bf16 %v164, %v180
      %v197 = vmax.bf16 %v165, %v181
      %v198 = vmax.bf16 %v166, %v182
      %v199 = vmax.bf16 %v167, %v183
      %v200 = vmax.bf16 %v168, %v184
      %v201 = vmax.bf16 %v169, %v185
      %v203 = vshrl.u32 %v194, 16
      %v205 = vrot.slane %v203, 7
      %v206 = vshll.u32 %v194, 16
      %v208 = vor.u32 %v205, %v206
      %v209 = vrot.slane %v205, 4
      %v211 = vshrl.u32 %v195, 16
      %v213 = vrot.slane %v211, 7
      %v214 = vshll.u32 %v195, 16
      %v216 = vor.u32 %v213, %v214
      %v217 = vrot.slane %v213, 4
      %v219 = vshrl.u32 %v196, 16
      %v221 = vrot.slane %v219, 7
      %v222 = vshll.u32 %v196, 16
      %v224 = vor.u32 %v221, %v222
      %v225 = vrot.slane %v221, 4
      %v227 = vshrl.u32 %v197, 16
      %v229 = vrot.slane %v227, 7
      %v230 = vshll.u32 %v197, 16
      %v232 = vor.u32 %v229, %v230
      %v233 = vrot.slane %v229, 4
      %v235 = vshrl.u32 %v198, 16
      %v237 = vrot.slane %v235, 7
      %v238 = vshll.u32 %v198, 16
      %v240 = vor.u32 %v237, %v238
      %v241 = vrot.slane %v237, 4
      %v243 = vshrl.u32 %v199, 16
      %v245 = vrot.slane %v243, 7
      %v246 = vshll.u32 %v199, 16
      %v248 = vor.u32 %v245, %v246
      %v249 = vrot.slane %v245, 4
      %v251 = vshrl.u32 %v200, 16
      %v253 = vrot.slane %v251, 7
      %v254 = vshll.u32 %v200, 16
      %v256 = vor.u32 %v253, %v254
      %v257 = vrot.slane %v253, 4
      %v259 = vshrl.u32 %v201, 16
      %v261 = vrot.slane %v259, 7
      %v262 = vshll.u32 %v201, 16
      %v264 = vor.u32 %v261, %v262
      %v265 = vrot.slane %v261, 4
      %s282 = scalar_lea.vmem %s121, 8
      %vm283 = vcmask 1043456
      %vm284 = vsmask.f32 7938
      %vm285 = vmand %vm283, %vm284
      %v286 = vld [vmem:[%s282] sm:$0xf]
      %v287 = vsel %vm285, %v208, %v286
      %288 = vst [vmem:[%s282] sm:$0xf] %v287
      %vm289 = vcmask 1040384
      %vm290 = vsmask.f32 256
      %vm291 = vmand %vm289, %vm290
      %v292 = vld [vmem:[%s282 + $0x4] sm:$0x1]
      %v293 = vsel %vm291, %v209, %v292
      %294 = vst [vmem:[%s282 + $0x4] sm:$0x1] %v293
      %v295 = vld [vmem:[%s282 + $0x8] sm:$0xf]
      %v296 = vsel %vm285, %v216, %v295
      %297 = vst [vmem:[%s282 + $0x8] sm:$0xf] %v296
      %v298 = vld [vmem:[%s282 + $0xc] sm:$0x1]
      %v299 = vsel %vm291, %v217, %v298
      %300 = vst [vmem:[%s282 + $0xc] sm:$0x1] %v299
      %v301 = vld [vmem:[%s282 + $0x10] sm:$0xf]
      %v302 = vsel %vm285, %v224, %v301
      %303 = vst [vmem:[%s282 + $0x10] sm:$0xf] %v302
      %v304 = vld [vmem:[%s282 + $0x14] sm:$0x1]
      %v305 = vsel %vm291, %v225, %v304
      %306 = vst [vmem:[%s282 + $0x14] sm:$0x1] %v305
      %v307 = vld [vmem:[%s282 + $0x18] sm:$0xf]
      %v308 = vsel %vm285, %v232, %v307
      %309 = vst [vmem:[%s282 + $0x18] sm:$0xf] %v308
      %v310 = vld [vmem:[%s282 + $0x1c] sm:$0x1]
      %v311 = vsel %vm291, %v233, %v310
      %312 = vst [vmem:[%s282 + $0x1c] sm:$0x1] %v311
      %v313 = vld [vmem:[%s282 + $0x20] sm:$0xf]
      %v314 = vsel %vm285, %v240, %v313
      %315 = vst [vmem:[%s282 + $0x20] sm:$0xf] %v314
      %v316 = vld [vmem:[%s282 + $0x24] sm:$0x1]
      %v317 = vsel %vm291, %v241, %v316
      %318 = vst [vmem:[%s282 + $0x24] sm:$0x1] %v317
      %v319 = vld [vmem:[%s282 + $0x28] sm:$0xf]
      %v320 = vsel %vm285, %v248, %v319
      %321 = vst [vmem:[%s282 + $0x28] sm:$0xf] %v320
      %v322 = vld [vmem:[%s282 + $0x2c] sm:$0x1]
      %v323 = vsel %vm291, %v249, %v322
      %324 = vst [vmem:[%s282 + $0x2c] sm:$0x1] %v323
      %v325 = vld [vmem:[%s282 + $0x30] sm:$0xf]
      %v326 = vsel %vm285, %v256, %v325
      %327 = vst [vmem:[%s282 + $0x30] sm:$0xf] %v326
      %v328 = vld [vmem:[%s282 + $0x34] sm:$0x1]
      %v329 = vsel %vm291, %v257, %v328
      %330 = vst [vmem:[%s282 + $0x34] sm:$0x1] %v329
      %v331 = vld [vmem:[%s282 + $0x38] sm:$0xf]
      %v332 = vsel %vm285, %v264, %v331
      %333 = vst [vmem:[%s282 + $0x38] sm:$0xf] %v332
      %v334 = vld [vmem:[%s282 + $0x3c] sm:$0x1]
      %v335 = vsel %vm291, %v265, %v334
      %336 = vst [vmem:[%s282 + $0x3c] sm:$0x1] %v335
      %p337 = scmp.lt.s32.totalorder %s12, 7
      %s338 = scalar_select %p337, %s12, 7
      %s339 = smul.addr %s338, 22
      %s340 = smul.addr %s339, 4
      %s341 = scalar_lea.vmem %s1, %s340
      // Predicated region
      $region25: #{avmodel_forward.11} parent=23 // pred_check
        %p342 = pneg %p56
      $region26: #{avmodel_forward.11} parent=23 // pred_check_branch
        %344 = sbr.rel (%p342) target = $region28
      $region27: #{avmodel_forward.11} parent=23 // pred_region
        _
      $region28: #{avmodel_forward.11} parent=23 // pred_fallthru
        _
    $region24: #{avmodel_forward.11} parent=5 // pred_fallthru
      _
    %p345 = scmp.le.s32.totalorder 2, %s7
    // Predicated region
    $region29: #{avmodel_forward.11} parent=5 // pred_check
      %p346 = pneg %p345
    $region30: #{avmodel_forward.11} parent=5 // pred_check_branch
      %348 = sbr.rel (%p346) target = $region32
    $region31: #{avmodel_forward.11} parent=5 // pred_region
      %s349 = ssub.s32 %s7, 2
      // Predicated region
      $region33: #{avmodel_forward.11} parent=31 // pred_check
        %p350 = pneg %p62
      $region34: #{avmodel_forward.11} parent=31 // pred_check_branch
        %352 = sbr.rel (%p350) target = $region36
      $region35: #{avmodel_forward.11} parent=31 // pred_region
        %p353 = scmp.lt.s32.totalorder %s13, 7
        %s354 = scalar_select %p353, %s13, 7
        %s355 = smul.addr %s354, 22
        %s356 = smul.addr %s355, 4
        %s357 = scalar_lea.vmem %s1, %s356
      $region36: #{avmodel_forward.11} parent=31 // pred_fallthru
        _
    $region32: #{avmodel_forward.11} parent=5 // pred_fallthru
      _
  $region6: #{avmodel_forward.11} parent=0 // loop_footer
    %s11 = sadd.s32 1, %s7
  $region7: #{avmodel_forward.11} parent=0 // loop_footer_branch
    %6 = sbr.rel target = $region3
  $region8: #{avmodel_forward.11} parent=0 // loop_exit
    _

// kernel: squeeze.3
$region0: #{squeeze.3}
  %s0 = inlined_call_operand.vmem [shape: f32[8,512], index: 0, kind: input, shape index: {}]
  %s1 = inlined_call_operand.vmem [shape: f32[2,4,512], index: 1, kind: output, shape index: {}]
  $region1: #{squeeze.3} parent=0
    #allocation0 [shape = 'u8[32768]{0}', space=vmem, size = 0x8000, scoped, tag = 'scoped mem for output reshape']
    %v2 = vld [vmem:[%s0] sm:$0xff]
    %3 = vst [vmem:[#allocation0] sm:$0xf] %v2
    %s4 = scalar_lea.vmem [#allocation0], 28
    %5 = vst [vmem:[%s4] sm:$0xf0] %v2
    %s6 = scalar_lea.vmem %s0, 8
    %v7 = vld [vmem:[%s6] sm:$0xff]
    %s8 = scalar_lea.vmem [#allocation0], 8
    %9 = vst [vmem:[%s8] sm:$0xf] %v7
    %s10 = scalar_lea.vmem [#allocation0], 36
    %11 = vst [vmem:[%s10] sm:$0xf0] %v7
    %s12 = scalar_lea.vmem %s0, 16
    %v13 = vld [vmem:[%s12] sm:$0xff]
    %s14 = scalar_lea.vmem [#allocation0], 16
    %15 = vst [vmem:[%s14] sm:$0xf] %v13
    %s16 = scalar_lea.vmem [#allocation0], 44
    %17 = vst [vmem:[%s16] sm:$0xf0] %v13
    %s18 = scalar_lea.vmem %s0, 24
    %v19 = vld [vmem:[%s18] sm:$0xff]
    %s20 = scalar_lea.vmem [#allocation0], 24
    %21 = vst [vmem:[%s20] sm:$0xf] %v19
    %s22 = scalar_lea.vmem [#allocation0], 52
    %23 = vst [vmem:[%s22] sm:$0xf0] %v19
    %s25 = sshllo.u32 0, 4
    %v27 = vld [vmem:[#allocation0] sm:%s25]
    %s28 = sshllo.u32 0, 4
    %29 = vst [vmem:[%s1] sm:%s28] %v27
    %s30 = scalar_lea.vmem [#allocation0], 8
    %v31 = vld [vmem:[%s30] sm:%s25]
    %s32 = sshllo.u32 0, 4
    %s33 = scalar_lea.vmem %s1, 4
    %34 = vst [vmem:[%s33] sm:%s32] %v31
    %s35 = scalar_lea.vmem [#allocation0], 16
    %v36 = vld [vmem:[%s35] sm:%s25]
    %s37 = sshllo.u32 0, 4
    %s38 = smul.addr 4, 2
    %s39 = scalar_lea.vmem %s1, %s38
    %40 = vst [vmem:[%s39] sm:%s37] %v36
    %s41 = scalar_lea.vmem [#allocation0], 24
    %v42 = vld [vmem:[%s41] sm:%s25]
    %s43 = sshllo.u32 0, 4
    %s44 = smul.addr 4, 3
    %s45 = scalar_lea.vmem %s1, %s44
    %46 = vst [vmem:[%s45] sm:%s43] %v42
    %s47 = scalar_lea.vmem [#allocation0], 32
    %v48 = vld [vmem:[%s47] sm:%s25]
    %s49 = sshllo.u32 0, 4
    %s50 = smul.addr 4, 4
    %s51 = scalar_lea.vmem %s1, %s50
    %52 = vst [vmem:[%s51] sm:%s49] %v48
    %s53 = scalar_lea.vmem [#allocation0], 40
    %v54 = vld [vmem:[%s53] sm:%s25]
    %s55 = sshllo.u32 0, 4
    %s56 = smul.addr 4, 5
    %s57 = scalar_lea.vmem %s1, %s56
    %58 = vst [vmem:[%s57] sm:%s55] %v54
    %s59 = scalar_lea.vmem [#allocation0], 48
    %v60 = vld [vmem:[%s59] sm:%s25]
    %s61 = sshllo.u32 0, 4
    %s62 = smul.addr 4, 6
    %s63 = scalar_lea.vmem %s1, %s62
    %64 = vst [vmem:[%s63] sm:%s61] %v60
    %s65 = scalar_lea.vmem [#allocation0], 56
    %v66 = vld [vmem:[%s65] sm:%s25]
    %s67 = sshllo.u32 0, 4
    %s68 = smul.addr 4, 7
    %s69 = scalar_lea.vmem %s1, %s68
    %70 = vst [vmem:[%s69] sm:%s67] %v66

// kernel: avmodel_forward.12
$region0: #{avmodel_forward.12}
  #allocation0 [shape = 'u32[]', space=smem, size = 0x4, offset = 0x4, fixed_abs, tag = 'smem constant byte address 0x4 - core index']
  #allocation1 [shape = 'u32[144,128]{1,0:T(1,128)}', space=vmem, size = 0x12000, scoped, tag = 'internal scratch']
  #allocation2 [shape = 'bf16[80,256]{1,0:T(16,128)(2,1)}', space=vmem, size = 0xa000, scoped, tag = 'scratch operand']
  %s0 = inlined_call_operand.vmem [shape: bf16[8,110,128], index: 0, kind: input, shape index: {}]
  %s1 = inlined_call_operand.vmem [shape: bf16[5,256,512], index: 1, kind: input, shape index: {}]
  %s2 = inlined_call_operand.vmem [shape: f32[1,512], index: 2, kind: input, shape index: {}]
  %s3 = inlined_call_operand.vmem [shape: f32[80,1], index: 3, kind: input, shape index: {}]
  %s4 = inlined_call_operand.vmem [shape: f32[8,1,512], index: 4, kind: output, shape index: {}]
  %s5 = sld [smem:[#allocation0]]
  $region87: #{avmodel_forward.12} parent=0
    _
  %s7 = ssub.s32 1, %s5
  %s8 = scalar_select 0, %s7, %s5
  $region1: #{avmodel_forward.12} parent=0
    #allocation3 [shape = 'u8[1310720]{0}', space=vmem, size = 0x140000, scoped, tag = 'input window, operand 1']
    loop: start=0, step=1, limit=18
    $region2: #{avmodel_forward.12} parent=1 // loop_pre_header
      _
    $region3: #{avmodel_forward.12} parent=1 // loop_header
      %s10 = sphi 0, %s14
      %p11 = scmp.ge.s32.totalorder %s10, 18
      %s17 = sphi 0, %s29
      %s18 = sphi 0, %s25
      %s19 = sphi 0, %s17
      %s20 = sphi 0, %s18
      %s21 = sphi 0, %s19
      %s22 = sphi 0, %s20
      %s32 = sphi 0, %s34
      %s35 = sphi 0, %s32
      %s36 = sphi 0, %s35
      %s52 = sphi 0, %s36
      %s58 = sphi 0, %s60
      %s61 = sphi 0, %s58
      %s62 = sphi 0, %s61
      %s78 = sphi 0, %s62
      %s84 = sphi 0, %s86
      %s87 = sphi 0, %s84
      %s88 = sphi 0, %s87
      %s104 = sphi 0, %s88
      %s108 = sphi 0, %s108
      %s110 = sphi 0, %s108
      %s111 = sphi 0, %s110
      %s125 = sphi 0, %s111
      %s133 = sphi 0, %s135
      %s136 = sphi 0, %s133
      %s137 = sphi 0, %s136
      %s153 = sphi 0, %s137
    $region4: #{avmodel_forward.12} parent=1 // loop_header_branch
      %13 = sbr.rel (%p11) target = $region8
    $region5: #{avmodel_forward.12} parent=1 // loop_body
      %s15 = ssub.s32 %s10, 1
      %s16 = ssub.s32 %s10, 2
      %s23 = sadd.s32 1, %s18
      %p24 = scmp.ge.s32.totalorder %s23, 8
      %s25 = scalar_select %p24, 0, %s23
      %s26 = sadd.s32 1, %s17
      %s27 = scalar_select %p24, %s26, %s17
      %p28 = scmp.ge.s32.totalorder %s27, 2
      %s29 = scalar_select %p28, 0, %s27
      %s30 = ssub.s32 %s18, %s25
      %p31 = scmp.eq.s32.totalorder %s30, 0
      %s33 = sadd.s32 %s32, 1
      %s34 = scalar_select %p31, %s32, %s33
      %p37 = pneg %p31
      %p38 = scmp.eq.s32.totalorder %s10, 15
      %p39 = por %p37, %p38
      %p40 = scmp.ne.s32.totalorder %s32, %s35
      %p41 = scmp.eq.s32.totalorder %s10, 0
      %p42 = por %p40, %p41
      %p43 = scmp.ne.s32.totalorder %s32, %s35
      %p44 = scmp.eq.s32.totalorder %s15, 15
      %p45 = por %p43, %p44
      %p46 = scmp.ne.s32.totalorder %s35, %s36
      %p47 = scmp.eq.s32.totalorder %s15, 0
      %p48 = por %p46, %p47
      %p49 = scmp.ne.s32.totalorder %s35, %s36
      %p50 = scmp.eq.s32.totalorder %s16, 15
      %p51 = por %p49, %p50
      %p53 = scmp.ne.s32.totalorder %s36, %s52
      %p54 = scmp.eq.s32.totalorder %s16, 0
      %p55 = por %p53, %p54
      %s56 = ssub.s32 %s17, %s29
      %p57 = scmp.eq.s32.totalorder %s56, 0
      %s59 = sadd.s32 %s58, 1
      %s60 = scalar_select %p57, %s58, %s59
      %p63 = pneg %p57
      %p64 = scmp.eq.s32.totalorder %s10, 15
      %p65 = por %p63, %p64
      %p66 = scmp.ne.s32.totalorder %s58, %s61
      %p67 = scmp.eq.s32.totalorder %s10, 0
      %p68 = por %p66, %p67
      %p69 = scmp.ne.s32.totalorder %s58, %s61
      %p70 = scmp.eq.s32.totalorder %s15, 15
      %p71 = por %p69, %p70
      %p72 = scmp.ne.s32.totalorder %s61, %s62
      %p73 = scmp.eq.s32.totalorder %s15, 0
      %p74 = por %p72, %p73
      %p75 = scmp.ne.s32.totalorder %s61, %s62
      %p76 = scmp.eq.s32.totalorder %s16, 15
      %p77 = por %p75, %p76
      %p79 = scmp.ne.s32.totalorder %s62, %s78
      %p80 = scmp.eq.s32.totalorder %s16, 0
      %p81 = por %p79, %p80
      %s82 = ssub.s32 %s17, %s29
      %p83 = scmp.eq.s32.totalorder %s82, 0
      %s85 = sadd.s32 %s84, 1
      %s86 = scalar_select %p83, %s84, %s85
      %p89 = pneg %p83
      %p90 = scmp.eq.s32.totalorder %s10, 15
      %p91 = por %p89, %p90
      %p92 = scmp.ne.s32.totalorder %s84, %s87
      %p93 = scmp.eq.s32.totalorder %s10, 0
      %p94 = por %p92, %p93
      %p95 = scmp.ne.s32.totalorder %s84, %s87
      %p96 = scmp.eq.s32.totalorder %s15, 15
      %p97 = por %p95, %p96
      %p98 = scmp.ne.s32.totalorder %s87, %s88
      %p99 = scmp.eq.s32.totalorder %s15, 0
      %p100 = por %p98, %p99
      %p101 = scmp.ne.s32.totalorder %s87, %s88
      %p102 = scmp.eq.s32.totalorder %s16, 15
      %p103 = por %p101, %p102
      %p105 = scmp.ne.s32.totalorder %s88, %s104
      %p106 = scmp.eq.s32.totalorder %s16, 0
      %p107 = por %p105, %p106
      %s109 = sadd.s32 %s108, 1
      %p112 = scmp.eq.s32.totalorder %s10, 15
      %p113 = scmp.ne.s32.totalorder %s108, %s110
      %p114 = scmp.eq.s32.totalorder %s10, 0
      %p115 = por %p113, %p114
      %p116 = scmp.ne.s32.totalorder %s108, %s110
      %p117 = scmp.eq.s32.totalorder %s15, 15
      %p118 = por %p116, %p117
      %p119 = scmp.ne.s32.totalorder %s110, %s111
      %p120 = scmp.eq.s32.totalorder %s15, 0
      %p121 = por %p119, %p120
      %p122 = scmp.ne.s32.totalorder %s110, %s111
      %p123 = scmp.eq.s32.totalorder %s16, 15
      %p124 = por %p122, %p123
      %p126 = scmp.ne.s32.totalorder %s111, %s125
      %p127 = scmp.eq.s32.totalorder %s16, 0
      %p128 = por %p126, %p127
      %s129 = ssub.s32 %s18, %s25
      %s130 = ssub.s32 %s17, %s29
      %s131 = sor.u32 %s129, %s130
      %p132 = scmp.eq.s32.totalorder %s131, 0
      %s134 = sadd.s32 %s133, 1
      %s135 = scalar_select %p132, %s133, %s134
      %p138 = pneg %p132
      %p139 = scmp.eq.s32.totalorder %s10, 15
      %p140 = por %p138, %p139
      %p141 = scmp.ne.s32.totalorder %s133, %s136
      %p142 = scmp.eq.s32.totalorder %s10, 0
      %p143 = por %p141, %p142
      %p144 = scmp.ne.s32.totalorder %s133, %s136
      %p145 = scmp.eq.s32.totalorder %s15, 15
      %p146 = por %p144, %p145
      %p147 = scmp.ne.s32.totalorder %s136, %s137
      %p148 = scmp.eq.s32.totalorder %s15, 0
      %p149 = por %p147, %p148
      %p150 = scmp.ne.s32.totalorder %s136, %s137
      %p151 = scmp.eq.s32.totalorder %s16, 15
      %p152 = por %p150, %p151
      %p154 = scmp.ne.s32.totalorder %s137, %s153
      %p155 = scmp.eq.s32.totalorder %s16, 0
      %p156 = por %p154, %p155
      %p157 = scmp.le.s32.totalorder 1, %s10
      %p158 = scmp.lt.s32.totalorder %s10, 17
      %p159 = pnand %p157, %p158
      %p160 = pneg %p159
      // Predicated region
      $region9: #{avmodel_forward.12} parent=5 // pred_check
        _
      $region10: #{avmodel_forward.12} parent=5 // pred_check_branch
        %162 = sbr.rel (%p159) target = $region12
      $region11: #{avmodel_forward.12} parent=5 // pred_region
        %s163 = ssub.s32 %s10, 1
        // Predicated region
        $region13: #{avmodel_forward.12} parent=11 // pred_check
          %p164 = pneg %p121
        $region14: #{avmodel_forward.12} parent=11 // pred_check_branch
          %166 = sbr.rel (%p164) target = $region16
        $region15: #{avmodel_forward.12} parent=11 // pred_region
          _
        $region16: #{avmodel_forward.12} parent=11 // pred_fallthru
          _
      $region12: #{avmodel_forward.12} parent=5 // pred_fallthru
        _
      %p167 = scmp.lt.s32.totalorder %s10, 16
      // Predicated region
      $region17: #{avmodel_forward.12} parent=5 // pred_check
        %p168 = pneg %p167
      $region18: #{avmodel_forward.12} parent=5 // pred_check_branch
        %170 = sbr.rel (%p168) target = $region20
      $region19: #{avmodel_forward.12} parent=5 // pred_region
        // Predicated region
        $region21: #{avmodel_forward.12} parent=19 // pred_check
          %p171 = pneg %p42
        $region22: #{avmodel_forward.12} parent=19 // pred_check_branch
          %173 = sbr.rel (%p171) target = $region24
        $region23: #{avmodel_forward.12} parent=19 // pred_region
          %p174 = scmp.lt.s32.totalorder %s18, 7
          %s175 = scalar_select %p174, %s18, 7
          %s176 = smul.addr %s175, 14
          %s177 = smul.addr %s176, 4
          %s178 = scalar_lea.vmem %s0, %s177
        $region24: #{avmodel_forward.12} parent=19 // pred_fallthru
          _
        // Predicated region
        $region25: #{avmodel_forward.12} parent=19 // pred_check
          %p179 = pneg %p68
        $region26: #{avmodel_forward.12} parent=19 // pred_check_branch
          %181 = sbr.rel (%p179) target = $region28
        $region27: #{avmodel_forward.12} parent=19 // pred_region
          %s182 = sand.u32 %s58, 1
          %s183 = sand.u32 %s58, 1
          %s184 = smul.addr %s183, 1280
          %s185 = scalar_lea.vmem [#allocation3], %s184
          %s186 = smul.u32 2, %s17
          %s187 = smul.addr %s186, 4
          %s188 = scalar_lea.vmem %s1, %s187
          // Predicated region
          $region29: #{avmodel_forward.12} parent=27 // pred_check
            _
          $region30: #{avmodel_forward.12} parent=27 // pred_check_branch
            %190 = sbr.rel (0) target = $region32
          $region31: #{avmodel_forward.12} parent=27 // pred_region
            // Predicated region
            $region33: #{avmodel_forward.12} parent=31 // pred_check
              _
            $region34: #{avmodel_forward.12} parent=31 // pred_check_branch
              %192 = sbr.rel (0) target = $region36
            $region35: #{avmodel_forward.12} parent=31 // pred_region
              // Predicated region
              $region48: #{avmodel_forward.12} parent=35 // pred_check
                _
              $region49: #{avmodel_forward.12} parent=35 // pred_check_branch
                %525 = sbr.rel (0) target = $region51
              $region50: #{avmodel_forward.12} parent=35 // pred_region
                loop: start=0, step=1, limit=1
                $region52: #{avmodel_forward.12} parent=50 // loop_pre_header
                  _
                $region53: #{avmodel_forward.12} parent=50 // loop_header
                  %s527 = sphi 0, %s531
                  %p528 = scmp.ge.s32.totalorder %s527, 1
                  %s532 = sphi %s188, %s188
                  %s533 = sphi %s185, %s185
                $region54: #{avmodel_forward.12} parent=50 // loop_header_branch
                  %530 = sbr.rel (%p528) target = $region58
                $region55: #{avmodel_forward.12} parent=50 // loop_body
                  %v534 = vld [vmem:[%s532] sm:$0xff]
                  %535 = vst [vmem:[%s533] sm:$0xff] %v534
                  %v536 = vld [vmem:[%s532 + $0x10] sm:$0xff]
                  %537 = vst [vmem:[%s533 + $0x8] sm:$0xff] %v536
                  %v538 = vld [vmem:[%s532 + $0x20] sm:$0xff]
                  %539 = vst [vmem:[%s533 + $0x10] sm:$0xff] %v538
                  %v540 = vld [vmem:[%s532 + $0x30] sm:$0xff]
                  %541 = vst [vmem:[%s533 + $0x18] sm:$0xff] %v540
                  %v542 = vld [vmem:[%s532 + $0x40] sm:$0xff]
                  %543 = vst [vmem:[%s533 + $0x20] sm:$0xff] %v542
                  %v544 = vld [vmem:[%s532 + $0x50] sm:$0xff]
                  %545 = vst [vmem:[%s533 + $0x28] sm:$0xff] %v544
                  %v546 = vld [vmem:[%s532 + $0x60] sm:$0xff]
                  %547 = vst [vmem:[%s533 + $0x30] sm:$0xff] %v546
                  %v548 = vld [vmem:[%s532 + $0x70] sm:$0xff]
                  %549 = vst [vmem:[%s533 + $0x38] sm:$0xff] %v548
                  %v550 = vld [vmem:[%s532 + $0x80] sm:$0xff]
                  %551 = vst [vmem:[%s533 + $0x40] sm:$0xff] %v550
                  %v552 = vld [vmem:[%s532 + $0x90] sm:$0xff]
                  %553 = vst [vmem:[%s533 + $0x48] sm:$0xff] %v552
                  %v554 = vld [vmem:[%s532 + $0xa0] sm:$0xff]
                  %555 = vst [vmem:[%s533 + $0x50] sm:$0xff] %v554
                  %v556 = vld [vmem:[%s532 + $0xb0] sm:$0xff]
                  %557 = vst [vmem:[%s533 + $0x58] sm:$0xff] %v556
                  %v558 = vld [vmem:[%s532 + $0xc0] sm:$0xff]
                  %559 = vst [vmem:[%s533 + $0x60] sm:$0xff] %v558
                  %v560 = vld [vmem:[%s532 + $0xd0] sm:$0xff]
                  %561 = vst [vmem:[%s533 + $0x68] sm:$0xff] %v560
                  %v562 = vld [vmem:[%s532 + $0xe0] sm:$0xff]
                  %563 = vst [vmem:[%s533 + $0x70] sm:$0xff] %v562
                  %v564 = vld [vmem:[%s532 + $0xf0] sm:$0xff]
                  %565 = vst [vmem:[%s533 + $0x78] sm:$0xff] %v564
                  %v566 = vld [vmem:[%s532 + $0x100] sm:$0xff]
                  %567 = vst [vmem:[%s533 + $0x80] sm:$0xff] %v566
                  %v568 = vld [vmem:[%s532 + $0x110] sm:$0xff]
                  %569 = vst [vmem:[%s533 + $0x88] sm:$0xff] %v568
                  %v570 = vld [vmem:[%s532 + $0x120] sm:$0xff]
                  %571 = vst [vmem:[%s533 + $0x90] sm:$0xff] %v570
                  %v572 = vld [vmem:[%s532 + $0x130] sm:$0xff]
                  %573 = vst [vmem:[%s533 + $0x98] sm:$0xff] %v572
                  %v574 = vld [vmem:[%s532 + $0x140] sm:$0xff]
                  %575 = vst [vmem:[%s533 + $0xa0] sm:$0xff] %v574
                  %v576 = vld [vmem:[%s532 + $0x150] sm:$0xff]
                  %577 = vst [vmem:[%s533 + $0xa8] sm:$0xff] %v576
                  %v578 = vld [vmem:[%s532 + $0x160] sm:$0xff]
                  %579 = vst [vmem:[%s533 + $0xb0] sm:$0xff] %v578
                  %v580 = vld [vmem:[%s532 + $0x170] sm:$0xff]
                  %581 = vst [vmem:[%s533 + $0xb8] sm:$0xff] %v580
                  %v582 = vld [vmem:[%s532 + $0x180] sm:$0xff]
                  %583 = vst [vmem:[%s533 + $0xc0] sm:$0xff] %v582
                  %v584 = vld [vmem:[%s532 + $0x190] sm:$0xff]
                  %585 = vst [vmem:[%s533 + $0xc8] sm:$0xff] %v584
                  %v586 = vld [vmem:[%s532 + $0x1a0] sm:$0xff]
                  %587 = vst [vmem:[%s533 + $0xd0] sm:$0xff] %v586
                  %v588 = vld [vmem:[%s532 + $0x1b0] sm:$0xff]
                  %589 = vst [vmem:[%s533 + $0xd8] sm:$0xff] %v588
                  %v590 = vld [vmem:[%s532 + $0x1c0] sm:$0xff]
                  %591 = vst [vmem:[%s533 + $0xe0] sm:$0xff] %v590
                  %v592 = vld [vmem:[%s532 + $0x1d0] sm:$0xff]
                  %593 = vst [vmem:[%s533 + $0xe8] sm:$0xff] %v592
                  %v594 = vld [vmem:[%s532 + $0x1e0] sm:$0xff]
                  %595 = vst [vmem:[%s533 + $0xf0] sm:$0xff] %v594
                  %v596 = vld [vmem:[%s532 + $0x1f0] sm:$0xff]
                  %597 = vst [vmem:[%s533 + $0xf8] sm:$0xff] %v596
                  %v598 = vld [vmem:[%s532 + $0x200] sm:$0xff]
                  %599 = vst [vmem:[%s533 + $0x100] sm:$0xff] %v598
                  %v600 = vld [vmem:[%s532 + $0x210] sm:$0xff]
                  %601 = vst [vmem:[%s533 + $0x108] sm:$0xff] %v600
                  %v602 = vld [vmem:[%s532 + $0x220] sm:$0xff]
                  %603 = vst [vmem:[%s533 + $0x110] sm:$0xff] %v602
                  %v604 = vld [vmem:[%s532 + $0x230] sm:$0xff]
                  %605 = vst [vmem:[%s533 + $0x118] sm:$0xff] %v604
                  %v606 = vld [vmem:[%s532 + $0x240] sm:$0xff]
                  %607 = vst [vmem:[%s533 + $0x120] sm:$0xff] %v606
                  %v608 = vld [vmem:[%s532 + $0x250] sm:$0xff]
                  %609 = vst [vmem:[%s533 + $0x128] sm:$0xff] %v608
                  %v610 = vld [vmem:[%s532 + $0x260] sm:$0xff]
                  %611 = vst [vmem:[%s533 + $0x130] sm:$0xff] %v610
                  %v612 = vld [vmem:[%s532 + $0x270] sm:$0xff]
                  %613 = vst [vmem:[%s533 + $0x138] sm:$0xff] %v612
                  %v614 = vld [vmem:[%s532 + $0x280] sm:$0xff]
                  %615 = vst [vmem:[%s533 + $0x140] sm:$0xff] %v614
                  %v616 = vld [vmem:[%s532 + $0x290] sm:$0xff]
                  %617 = vst [vmem:[%s533 + $0x148] sm:$0xff] %v616
                  %v618 = vld [vmem:[%s532 + $0x2a0] sm:$0xff]
                  %619 = vst [vmem:[%s533 + $0x150] sm:$0xff] %v618
                  %v620 = vld [vmem:[%s532 + $0x2b0] sm:$0xff]
                  %621 = vst [vmem:[%s533 + $0x158] sm:$0xff] %v620
                  %v622 = vld [vmem:[%s532 + $0x2c0] sm:$0xff]
                  %623 = vst [vmem:[%s533 + $0x160] sm:$0xff] %v622
                  %v624 = vld [vmem:[%s532 + $0x2d0] sm:$0xff]
                  %625 = vst [vmem:[%s533 + $0x168] sm:$0xff] %v624
                  %v626 = vld [vmem:[%s532 + $0x2e0] sm:$0xff]
                  %627 = vst [vmem:[%s533 + $0x170] sm:$0xff] %v626
                  %v628 = vld [vmem:[%s532 + $0x2f0] sm:$0xff]
                  %629 = vst [vmem:[%s533 + $0x178] sm:$0xff] %v628
                  %v630 = vld [vmem:[%s532 + $0x300] sm:$0xff]
                  %631 = vst [vmem:[%s533 + $0x180] sm:$0xff] %v630
                  %v632 = vld [vmem:[%s532 + $0x310] sm:$0xff]
                  %633 = vst [vmem:[%s533 + $0x188] sm:$0xff] %v632
                  %v634 = vld [vmem:[%s532 + $0x320] sm:$0xff]
                  %635 = vst [vmem:[%s533 + $0x190] sm:$0xff] %v634
                  %v636 = vld [vmem:[%s532 + $0x330] sm:$0xff]
                  %637 = vst [vmem:[%s533 + $0x198] sm:$0xff] %v636
                  %v638 = vld [vmem:[%s532 + $0x340] sm:$0xff]
                  %639 = vst [vmem:[%s533 + $0x1a0] sm:$0xff] %v638
                  %v640 = vld [vmem:[%s532 + $0x350] sm:$0xff]
                  %641 = vst [vmem:[%s533 + $0x1a8] sm:$0xff] %v640
                  %v642 = vld [vmem:[%s532 + $0x360] sm:$0xff]
                  %643 = vst [vmem:[%s533 + $0x1b0] sm:$0xff] %v642
                  %v644 = vld [vmem:[%s532 + $0x370] sm:$0xff]
                  %645 = vst [vmem:[%s533 + $0x1b8] sm:$0xff] %v644
                  %v646 = vld [vmem:[%s532 + $0x380] sm:$0xff]
                  %647 = vst [vmem:[%s533 + $0x1c0] sm:$0xff] %v646
                  %v648 = vld [vmem:[%s532 + $0x390] sm:$0xff]
                  %649 = vst [vmem:[%s533 + $0x1c8] sm:$0xff] %v648
                  %v650 = vld [vmem:[%s532 + $0x3a0] sm:$0xff]
                  %651 = vst [vmem:[%s533 + $0x1d0] sm:$0xff] %v650
                  %v652 = vld [vmem:[%s532 + $0x3b0] sm:$0xff]
                  %653 = vst [vmem:[%s533 + $0x1d8] sm:$0xff] %v652
                  %v654 = vld [vmem:[%s532 + $0x3c0] sm:$0xff]
                  %655 = vst [vmem:[%s533 + $0x1e0] sm:$0xff] %v654
                  %v656 = vld [vmem:[%s532 + $0x3d0] sm:$0xff]
                  %657 = vst [vmem:[%s533 + $0x1e8] sm:$0xff] %v656
                  %v658 = vld [vmem:[%s532 + $0x3e0] sm:$0xff]
                  %659 = vst [vmem:[%s533 + $0x1f0] sm:$0xff] %v658
                  %v660 = vld [vmem:[%s532 + $0x3f0] sm:$0xff]
                  %661 = vst [vmem:[%s533 + $0x1f8] sm:$0xff] %v660
                  %v662 = vld [vmem:[%s532 + $0x400] sm:$0xff]
                  %663 = vst [vmem:[%s533 + $0x200] sm:$0xff] %v662
                  %v664 = vld [vmem:[%s532 + $0x410] sm:$0xff]
                  %665 = vst [vmem:[%s533 + $0x208] sm:$0xff] %v664
                  %v666 = vld [vmem:[%s532 + $0x420] sm:$0xff]
                  %667 = vst [vmem:[%s533 + $0x210] sm:$0xff] %v666
                  %v668 = vld [vmem:[%s532 + $0x430] sm:$0xff]
                  %669 = vst [vmem:[%s533 + $0x218] sm:$0xff] %v668
                  %v670 = vld [vmem:[%s532 + $0x440] sm:$0xff]
                  %671 = vst [vmem:[%s533 + $0x220] sm:$0xff] %v670
                  %v672 = vld [vmem:[%s532 + $0x450] sm:$0xff]
                  %673 = vst [vmem:[%s533 + $0x228] sm:$0xff] %v672
                  %v674 = vld [vmem:[%s532 + $0x460] sm:$0xff]
                  %675 = vst [vmem:[%s533 + $0x230] sm:$0xff] %v674
                  %v676 = vld [vmem:[%s532 + $0x470] sm:$0xff]
                  %677 = vst [vmem:[%s533 + $0x238] sm:$0xff] %v676
                  %v678 = vld [vmem:[%s532 + $0x480] sm:$0xff]
                  %679 = vst [vmem:[%s533 + $0x240] sm:$0xff] %v678
                  %v680 = vld [vmem:[%s532 + $0x490] sm:$0xff]
                  %681 = vst [vmem:[%s533 + $0x248] sm:$0xff] %v680
                  %v682 = vld [vmem:[%s532 + $0x4a0] sm:$0xff]
                  %683 = vst [vmem:[%s533 + $0x250] sm:$0xff] %v682
                  %v684 = vld [vmem:[%s532 + $0x4b0] sm:$0xff]
                  %685 = vst [vmem:[%s533 + $0x258] sm:$0xff] %v684
                  %v686 = vld [vmem:[%s532 + $0x4c0] sm:$0xff]
                  %687 = vst [vmem:[%s533 + $0x260] sm:$0xff] %v686
                  %v688 = vld [vmem:[%s532 + $0x4d0] sm:$0xff]
                  %689 = vst [vmem:[%s533 + $0x268] sm:$0xff] %v688
                  %v690 = vld [vmem:[%s532 + $0x4e0] sm:$0xff]
                  %691 = vst [vmem:[%s533 + $0x270] sm:$0xff] %v690
                  %v692 = vld [vmem:[%s532 + $0x4f0] sm:$0xff]
                  %693 = vst [vmem:[%s533 + $0x278] sm:$0xff] %v692
                  %v694 = vld [vmem:[%s532 + $0x500] sm:$0xff]
                  %695 = vst [vmem:[%s533 + $0x280] sm:$0xff] %v694
                  %v696 = vld [vmem:[%s532 + $0x510] sm:$0xff]
                  %697 = vst [vmem:[%s533 + $0x288] sm:$0xff] %v696
                  %v698 = vld [vmem:[%s532 + $0x520] sm:$0xff]
                  %699 = vst [vmem:[%s533 + $0x290] sm:$0xff] %v698
                  %v700 = vld [vmem:[%s532 + $0x530] sm:$0xff]
                  %701 = vst [vmem:[%s533 + $0x298] sm:$0xff] %v700
                  %v702 = vld [vmem:[%s532 + $0x540] sm:$0xff]
                  %703 = vst [vmem:[%s533 + $0x2a0] sm:$0xff] %v702
                  %v704 = vld [vmem:[%s532 + $0x550] sm:$0xff]
                  %705 = vst [vmem:[%s533 + $0x2a8] sm:$0xff] %v704
                  %v706 = vld [vmem:[%s532 + $0x560] sm:$0xff]
                  %707 = vst [vmem:[%s533 + $0x2b0] sm:$0xff] %v706
                  %v708 = vld [vmem:[%s532 + $0x570] sm:$0xff]
                  %709 = vst [vmem:[%s533 + $0x2b8] sm:$0xff] %v708
                  %v710 = vld [vmem:[%s532 + $0x580] sm:$0xff]
                  %711 = vst [vmem:[%s533 + $0x2c0] sm:$0xff] %v710
                  %v712 = vld [vmem:[%s532 + $0x590] sm:$0xff]
                  %713 = vst [vmem:[%s533 + $0x2c8] sm:$0xff] %v712
                  %v714 = vld [vmem:[%s532 + $0x5a0] sm:$0xff]
                  %715 = vst [vmem:[%s533 + $0x2d0] sm:$0xff] %v714
                  %v716 = vld [vmem:[%s532 + $0x5b0] sm:$0xff]
                  %717 = vst [vmem:[%s533 + $0x2d8] sm:$0xff] %v716
                  %v718 = vld [vmem:[%s532 + $0x5c0] sm:$0xff]
                  %719 = vst [vmem:[%s533 + $0x2e0] sm:$0xff] %v718
                  %v720 = vld [vmem:[%s532 + $0x5d0] sm:$0xff]
                  %721 = vst [vmem:[%s533 + $0x2e8] sm:$0xff] %v720
                  %v722 = vld [vmem:[%s532 + $0x5e0] sm:$0xff]
                  %723 = vst [vmem:[%s533 + $0x2f0] sm:$0xff] %v722
                  %v724 = vld [vmem:[%s532 + $0x5f0] sm:$0xff]
                  %725 = vst [vmem:[%s533 + $0x2f8] sm:$0xff] %v724
                  %v726 = vld [vmem:[%s532 + $0x600] sm:$0xff]
                  %727 = vst [vmem:[%s533 + $0x300] sm:$0xff] %v726
                  %v728 = vld [vmem:[%s532 + $0x610] sm:$0xff]
                  %729 = vst [vmem:[%s533 + $0x308] sm:$0xff] %v728
                  %v730 = vld [vmem:[%s532 + $0x620] sm:$0xff]
                  %731 = vst [vmem:[%s533 + $0x310] sm:$0xff] %v730
                  %v732 = vld [vmem:[%s532 + $0x630] sm:$0xff]
                  %733 = vst [vmem:[%s533 + $0x318] sm:$0xff] %v732
                  %v734 = vld [vmem:[%s532 + $0x640] sm:$0xff]
                  %735 = vst [vmem:[%s533 + $0x320] sm:$0xff] %v734
                  %v736 = vld [vmem:[%s532 + $0x650] sm:$0xff]
                  %737 = vst [vmem:[%s533 + $0x328] sm:$0xff] %v736
                  %v738 = vld [vmem:[%s532 + $0x660] sm:$0xff]
                  %739 = vst [vmem:[%s533 + $0x330] sm:$0xff] %v738
                  %v740 = vld [vmem:[%s532 + $0x670] sm:$0xff]
                  %741 = vst [vmem:[%s533 + $0x338] sm:$0xff] %v740
                  %v742 = vld [vmem:[%s532 + $0x680] sm:$0xff]
                  %743 = vst [vmem:[%s533 + $0x340] sm:$0xff] %v742
                  %v744 = vld [vmem:[%s532 + $0x690] sm:$0xff]
                  %745 = vst [vmem:[%s533 + $0x348] sm:$0xff] %v744
                  %v746 = vld [vmem:[%s532 + $0x6a0] sm:$0xff]
                  %747 = vst [vmem:[%s533 + $0x350] sm:$0xff] %v746
                  %v748 = vld [vmem:[%s532 + $0x6b0] sm:$0xff]
                  %749 = vst [vmem:[%s533 + $0x358] sm:$0xff] %v748
                  %v750 = vld [vmem:[%s532 + $0x6c0] sm:$0xff]
                  %751 = vst [vmem:[%s533 + $0x360] sm:$0xff] %v750
                  %v752 = vld [vmem:[%s532 + $0x6d0] sm:$0xff]
                  %753 = vst [vmem:[%s533 + $0x368] sm:$0xff] %v752
                  %v754 = vld [vmem:[%s532 + $0x6e0] sm:$0xff]
                  %755 = vst [vmem:[%s533 + $0x370] sm:$0xff] %v754
                  %v756 = vld [vmem:[%s532 + $0x6f0] sm:$0xff]
                  %757 = vst [vmem:[%s533 + $0x378] sm:$0xff] %v756
                  %v758 = vld [vmem:[%s532 + $0x700] sm:$0xff]
                  %759 = vst [vmem:[%s533 + $0x380] sm:$0xff] %v758
                  %v760 = vld [vmem:[%s532 + $0x710] sm:$0xff]
                  %761 = vst [vmem:[%s533 + $0x388] sm:$0xff] %v760
                  %v762 = vld [vmem:[%s532 + $0x720] sm:$0xff]
                  %763 = vst [vmem:[%s533 + $0x390] sm:$0xff] %v762
                  %v764 = vld [vmem:[%s532 + $0x730] sm:$0xff]
                  %765 = vst [vmem:[%s533 + $0x398] sm:$0xff] %v764
                  %v766 = vld [vmem:[%s532 + $0x740] sm:$0xff]
                  %767 = vst [vmem:[%s533 + $0x3a0] sm:$0xff] %v766
                  %v768 = vld [vmem:[%s532 + $0x750] sm:$0xff]
                  %769 = vst [vmem:[%s533 + $0x3a8] sm:$0xff] %v768
                  %v770 = vld [vmem:[%s532 + $0x760] sm:$0xff]
                  %771 = vst [vmem:[%s533 + $0x3b0] sm:$0xff] %v770
                  %v772 = vld [vmem:[%s532 + $0x770] sm:$0xff]
                  %773 = vst [vmem:[%s533 + $0x3b8] sm:$0xff] %v772
                  %v774 = vld [vmem:[%s532 + $0x780] sm:$0xff]
                  %775 = vst [vmem:[%s533 + $0x3c0] sm:$0xff] %v774
                  %v776 = vld [vmem:[%s532 + $0x790] sm:$0xff]
                  %777 = vst [vmem:[%s533 + $0x3c8] sm:$0xff] %v776
                  %v778 = vld [vmem:[%s532 + $0x7a0] sm:$0xff]
                  %779 = vst [vmem:[%s533 + $0x3d0] sm:$0xff] %v778
                  %v780 = vld [vmem:[%s532 + $0x7b0] sm:$0xff]
                  %781 = vst [vmem:[%s533 + $0x3d8] sm:$0xff] %v780
                  %v782 = vld [vmem:[%s532 + $0x7c0] sm:$0xff]
                  %783 = vst [vmem:[%s533 + $0x3e0] sm:$0xff] %v782
                  %v784 = vld [vmem:[%s532 + $0x7d0] sm:$0xff]
                  %785 = vst [vmem:[%s533 + $0x3e8] sm:$0xff] %v784
                  %v786 = vld [vmem:[%s532 + $0x7e0] sm:$0xff]
                  %787 = vst [vmem:[%s533 + $0x3f0] sm:$0xff] %v786
                  %v788 = vld [vmem:[%s532 + $0x7f0] sm:$0xff]
                  %789 = vst [vmem:[%s533 + $0x3f8] sm:$0xff] %v788
                  %v790 = vld [vmem:[%s532 + $0x800] sm:$0xff]
                  %791 = vst [vmem:[%s533 + $0x400] sm:$0xff] %v790
                  %v792 = vld [vmem:[%s532 + $0x810] sm:$0xff]
                  %793 = vst [vmem:[%s533 + $0x408] sm:$0xff] %v792
                  %v794 = vld [vmem:[%s532 + $0x820] sm:$0xff]
                  %795 = vst [vmem:[%s533 + $0x410] sm:$0xff] %v794
                  %v796 = vld [vmem:[%s532 + $0x830] sm:$0xff]
                  %797 = vst [vmem:[%s533 + $0x418] sm:$0xff] %v796
                  %v798 = vld [vmem:[%s532 + $0x840] sm:$0xff]
                  %799 = vst [vmem:[%s533 + $0x420] sm:$0xff] %v798
                  %v800 = vld [vmem:[%s532 + $0x850] sm:$0xff]
                  %801 = vst [vmem:[%s533 + $0x428] sm:$0xff] %v800
                  %v802 = vld [vmem:[%s532 + $0x860] sm:$0xff]
                  %803 = vst [vmem:[%s533 + $0x430] sm:$0xff] %v802
                  %v804 = vld [vmem:[%s532 + $0x870] sm:$0xff]
                  %805 = vst [vmem:[%s533 + $0x438] sm:$0xff] %v804
                  %v806 = vld [vmem:[%s532 + $0x880] sm:$0xff]
                  %807 = vst [vmem:[%s533 + $0x440] sm:$0xff] %v806
                  %v808 = vld [vmem:[%s532 + $0x890] sm:$0xff]
                  %809 = vst [vmem:[%s533 + $0x448] sm:$0xff] %v808
                  %v810 = vld [vmem:[%s532 + $0x8a0] sm:$0xff]
                  %811 = vst [vmem:[%s533 + $0x450] sm:$0xff] %v810
                  %v812 = vld [vmem:[%s532 + $0x8b0] sm:$0xff]
                  %813 = vst [vmem:[%s533 + $0x458] sm:$0xff] %v812
                  %v814 = vld [vmem:[%s532 + $0x8c0] sm:$0xff]
                  %815 = vst [vmem:[%s533 + $0x460] sm:$0xff] %v814
                  %v816 = vld [vmem:[%s532 + $0x8d0] sm:$0xff]
                  %817 = vst [vmem:[%s533 + $0x468] sm:$0xff] %v816
                  %v818 = vld [vmem:[%s532 + $0x8e0] sm:$0xff]
                  %819 = vst [vmem:[%s533 + $0x470] sm:$0xff] %v818
                  %v820 = vld [vmem:[%s532 + $0x8f0] sm:$0xff]
                  %821 = vst [vmem:[%s533 + $0x478] sm:$0xff] %v820
                  %v822 = vld [vmem:[%s532 + $0x900] sm:$0xff]
                  %823 = vst [vmem:[%s533 + $0x480] sm:$0xff] %v822
                  %v824 = vld [vmem:[%s532 + $0x910] sm:$0xff]
                  %825 = vst [vmem:[%s533 + $0x488] sm:$0xff] %v824
                  %v826 = vld [vmem:[%s532 + $0x920] sm:$0xff]
                  %827 = vst [vmem:[%s533 + $0x490] sm:$0xff] %v826
                  %v828 = vld [vmem:[%s532 + $0x930] sm:$0xff]
                  %829 = vst [vmem:[%s533 + $0x498] sm:$0xff] %v828
                  %v830 = vld [vmem:[%s532 + $0x940] sm:$0xff]
                  %831 = vst [vmem:[%s533 + $0x4a0] sm:$0xff] %v830
                  %v832 = vld [vmem:[%s532 + $0x950] sm:$0xff]
                  %833 = vst [vmem:[%s533 + $0x4a8] sm:$0xff] %v832
                  %v834 = vld [vmem:[%s532 + $0x960] sm:$0xff]
                  %835 = vst [vmem:[%s533 + $0x4b0] sm:$0xff] %v834
                  %v836 = vld [vmem:[%s532 + $0x970] sm:$0xff]
                  %837 = vst [vmem:[%s533 + $0x4b8] sm:$0xff] %v836
                  %v838 = vld [vmem:[%s532 + $0x980] sm:$0xff]
                  %839 = vst [vmem:[%s533 + $0x4c0] sm:$0xff] %v838
                  %v840 = vld [vmem:[%s532 + $0x990] sm:$0xff]
                  %841 = vst [vmem:[%s533 + $0x4c8] sm:$0xff] %v840
                  %v842 = vld [vmem:[%s532 + $0x9a0] sm:$0xff]
                  %843 = vst [vmem:[%s533 + $0x4d0] sm:$0xff] %v842
                  %v844 = vld [vmem:[%s532 + $0x9b0] sm:$0xff]
                  %845 = vst [vmem:[%s533 + $0x4d8] sm:$0xff] %v844
                  %v846 = vld [vmem:[%s532 + $0x9c0] sm:$0xff]
                  %847 = vst [vmem:[%s533 + $0x4e0] sm:$0xff] %v846
                  %v848 = vld [vmem:[%s532 + $0x9d0] sm:$0xff]
                  %849 = vst [vmem:[%s533 + $0x4e8] sm:$0xff] %v848
                  %v850 = vld [vmem:[%s532 + $0x9e0] sm:$0xff]
                  %851 = vst [vmem:[%s533 + $0x4f0] sm:$0xff] %v850
                  %v852 = vld [vmem:[%s532 + $0x9f0] sm:$0xff]
                  %853 = vst [vmem:[%s533 + $0x4f8] sm:$0xff] %v852
                $region56: #{avmodel_forward.12} parent=50 // loop_footer
                  %s531 = sadd.s32 1, %s527
                $region57: #{avmodel_forward.12} parent=50 // loop_footer_branch
                  %526 = sbr.rel target = $region53
                $region58: #{avmodel_forward.12} parent=50 // loop_exit
                  _
              $region51: #{avmodel_forward.12} parent=35 // pred_fallthru
                _
              // Predicated region
              $region59: #{avmodel_forward.12} parent=35 // pred_check
                _
              $region60: #{avmodel_forward.12} parent=35 // pred_check_branch
                %855 = sbr.rel target = $region62
              $region61: #{avmodel_forward.12} parent=35 // pred_region
                _
              $region62: #{avmodel_forward.12} parent=35 // pred_fallthru
                _
            $region36: #{avmodel_forward.12} parent=31 // pred_fallthru
              _
            // Predicated region
            $region37: #{avmodel_forward.12} parent=31 // pred_check
              _
            $region38: #{avmodel_forward.12} parent=31 // pred_check_branch
              %194 = sbr.rel target = $region40
            $region39: #{avmodel_forward.12} parent=31 // pred_region
              loop: start=0, step=1, limit=1
              $region41: #{avmodel_forward.12} parent=39 // loop_pre_header
                _
              $region42: #{avmodel_forward.12} parent=39 // loop_header
                %s197 = sphi 0, %s201
                %p198 = scmp.ge.s32.totalorder %s197, 1
                %s202 = sphi %s188, %s188
                %s203 = sphi %s185, %s185
              $region43: #{avmodel_forward.12} parent=39 // loop_header_branch
                %200 = sbr.rel (%p198) target = $region47
              $region44: #{avmodel_forward.12} parent=39 // loop_body
                %v204 = vld [vmem:[%s202] sm:$0xff]
                %205 = vst [vmem:[%s203] sm:$0xff] %v204
                %v206 = vld [vmem:[%s202 + $0x10] sm:$0xff]
                %207 = vst [vmem:[%s203 + $0x8] sm:$0xff] %v206
                %v208 = vld [vmem:[%s202 + $0x20] sm:$0xff]
                %209 = vst [vmem:[%s203 + $0x10] sm:$0xff] %v208
                %v210 = vld [vmem:[%s202 + $0x30] sm:$0xff]
                %211 = vst [vmem:[%s203 + $0x18] sm:$0xff] %v210
                %v212 = vld [vmem:[%s202 + $0x40] sm:$0xff]
                %213 = vst [vmem:[%s203 + $0x20] sm:$0xff] %v212
                %v214 = vld [vmem:[%s202 + $0x50] sm:$0xff]
                %215 = vst [vmem:[%s203 + $0x28] sm:$0xff] %v214
                %v216 = vld [vmem:[%s202 + $0x60] sm:$0xff]
                %217 = vst [vmem:[%s203 + $0x30] sm:$0xff] %v216
                %v218 = vld [vmem:[%s202 + $0x70] sm:$0xff]
                %219 = vst [vmem:[%s203 + $0x38] sm:$0xff] %v218
                %v220 = vld [vmem:[%s202 + $0x80] sm:$0xff]
                %221 = vst [vmem:[%s203 + $0x40] sm:$0xff] %v220
                %v222 = vld [vmem:[%s202 + $0x90] sm:$0xff]
                %223 = vst [vmem:[%s203 + $0x48] sm:$0xff] %v222
                %v224 = vld [vmem:[%s202 + $0xa0] sm:$0xff]
                %225 = vst [vmem:[%s203 + $0x50] sm:$0xff] %v224
                %v226 = vld [vmem:[%s202 + $0xb0] sm:$0xff]
                %227 = vst [vmem:[%s203 + $0x58] sm:$0xff] %v226
                %v228 = vld [vmem:[%s202 + $0xc0] sm:$0xff]
                %229 = vst [vmem:[%s203 + $0x60] sm:$0xff] %v228
                %v230 = vld [vmem:[%s202 + $0xd0] sm:$0xff]
                %231 = vst [vmem:[%s203 + $0x68] sm:$0xff] %v230
                %v232 = vld [vmem:[%s202 + $0xe0] sm:$0xff]
                %233 = vst [vmem:[%s203 + $0x70] sm:$0xff] %v232
                %v234 = vld [vmem:[%s202 + $0xf0] sm:$0xff]
                %235 = vst [vmem:[%s203 + $0x78] sm:$0xff] %v234
                %v236 = vld [vmem:[%s202 + $0x100] sm:$0xff]
                %237 = vst [vmem:[%s203 + $0x80] sm:$0xff] %v236
                %v238 = vld [vmem:[%s202 + $0x110] sm:$0xff]
                %239 = vst [vmem:[%s203 + $0x88] sm:$0xff] %v238
                %v240 = vld [vmem:[%s202 + $0x120] sm:$0xff]
                %241 = vst [vmem:[%s203 + $0x90] sm:$0xff] %v240
                %v242 = vld [vmem:[%s202 + $0x130] sm:$0xff]
                %243 = vst [vmem:[%s203 + $0x98] sm:$0xff] %v242
                %v244 = vld [vmem:[%s202 + $0x140] sm:$0xff]
                %245 = vst [vmem:[%s203 + $0xa0] sm:$0xff] %v244
                %v246 = vld [vmem:[%s202 + $0x150] sm:$0xff]
                %247 = vst [vmem:[%s203 + $0xa8] sm:$0xff] %v246
                %v248 = vld [vmem:[%s202 + $0x160] sm:$0xff]
                %249 = vst [vmem:[%s203 + $0xb0] sm:$0xff] %v248
                %v250 = vld [vmem:[%s202 + $0x170] sm:$0xff]
                %251 = vst [vmem:[%s203 + $0xb8] sm:$0xff] %v250
                %v252 = vld [vmem:[%s202 + $0x180] sm:$0xff]
                %253 = vst [vmem:[%s203 + $0xc0] sm:$0xff] %v252
                %v254 = vld [vmem:[%s202 + $0x190] sm:$0xff]
                %255 = vst [vmem:[%s203 + $0xc8] sm:$0xff] %v254
                %v256 = vld [vmem:[%s202 + $0x1a0] sm:$0xff]
                %257 = vst [vmem:[%s203 + $0xd0] sm:$0xff] %v256
                %v258 = vld [vmem:[%s202 + $0x1b0] sm:$0xff]
                %259 = vst [vmem:[%s203 + $0xd8] sm:$0xff] %v258
                %v260 = vld [vmem:[%s202 + $0x1c0] sm:$0xff]
                %261 = vst [vmem:[%s203 + $0xe0] sm:$0xff] %v260
                %v262 = vld [vmem:[%s202 + $0x1d0] sm:$0xff]
                %263 = vst [vmem:[%s203 + $0xe8] sm:$0xff] %v262
                %v264 = vld [vmem:[%s202 + $0x1e0] sm:$0xff]
                %265 = vst [vmem:[%s203 + $0xf0] sm:$0xff] %v264
                %v266 = vld [vmem:[%s202 + $0x1f0] sm:$0xff]
                %267 = vst [vmem:[%s203 + $0xf8] sm:$0xff] %v266
                %v268 = vld [vmem:[%s202 + $0x200] sm:$0xff]
                %269 = vst [vmem:[%s203 + $0x100] sm:$0xff] %v268
                %v270 = vld [vmem:[%s202 + $0x210] sm:$0xff]
                %271 = vst [vmem:[%s203 + $0x108] sm:$0xff] %v270
                %v272 = vld [vmem:[%s202 + $0x220] sm:$0xff]
                %273 = vst [vmem:[%s203 + $0x110] sm:$0xff] %v272
                %v274 = vld [vmem:[%s202 + $0x230] sm:$0xff]
                %275 = vst [vmem:[%s203 + $0x118] sm:$0xff] %v274
                %v276 = vld [vmem:[%s202 + $0x240] sm:$0xff]
                %277 = vst [vmem:[%s203 + $0x120] sm:$0xff] %v276
                %v278 = vld [vmem:[%s202 + $0x250] sm:$0xff]
                %279 = vst [vmem:[%s203 + $0x128] sm:$0xff] %v278
                %v280 = vld [vmem:[%s202 + $0x260] sm:$0xff]
                %281 = vst [vmem:[%s203 + $0x130] sm:$0xff] %v280
                %v282 = vld [vmem:[%s202 + $0x270] sm:$0xff]
                %283 = vst [vmem:[%s203 + $0x138] sm:$0xff] %v282
                %v284 = vld [vmem:[%s202 + $0x280] sm:$0xff]
                %285 = vst [vmem:[%s203 + $0x140] sm:$0xff] %v284
                %v286 = vld [vmem:[%s202 + $0x290] sm:$0xff]
                %287 = vst [vmem:[%s203 + $0x148] sm:$0xff] %v286
                %v288 = vld [vmem:[%s202 + $0x2a0] sm:$0xff]
                %289 = vst [vmem:[%s203 + $0x150] sm:$0xff] %v288
                %v290 = vld [vmem:[%s202 + $0x2b0] sm:$0xff]
                %291 = vst [vmem:[%s203 + $0x158] sm:$0xff] %v290
                %v292 = vld [vmem:[%s202 + $0x2c0] sm:$0xff]
                %293 = vst [vmem:[%s203 + $0x160] sm:$0xff] %v292
                %v294 = vld [vmem:[%s202 + $0x2d0] sm:$0xff]
                %295 = vst [vmem:[%s203 + $0x168] sm:$0xff] %v294
                %v296 = vld [vmem:[%s202 + $0x2e0] sm:$0xff]
                %297 = vst [vmem:[%s203 + $0x170] sm:$0xff] %v296
                %v298 = vld [vmem:[%s202 + $0x2f0] sm:$0xff]
                %299 = vst [vmem:[%s203 + $0x178] sm:$0xff] %v298
                %v300 = vld [vmem:[%s202 + $0x300] sm:$0xff]
                %301 = vst [vmem:[%s203 + $0x180] sm:$0xff] %v300
                %v302 = vld [vmem:[%s202 + $0x310] sm:$0xff]
                %303 = vst [vmem:[%s203 + $0x188] sm:$0xff] %v302
                %v304 = vld [vmem:[%s202 + $0x320] sm:$0xff]
                %305 = vst [vmem:[%s203 + $0x190] sm:$0xff] %v304
                %v306 = vld [vmem:[%s202 + $0x330] sm:$0xff]
                %307 = vst [vmem:[%s203 + $0x198] sm:$0xff] %v306
                %v308 = vld [vmem:[%s202 + $0x340] sm:$0xff]
                %309 = vst [vmem:[%s203 + $0x1a0] sm:$0xff] %v308
                %v310 = vld [vmem:[%s202 + $0x350] sm:$0xff]
                %311 = vst [vmem:[%s203 + $0x1a8] sm:$0xff] %v310
                %v312 = vld [vmem:[%s202 + $0x360] sm:$0xff]
                %313 = vst [vmem:[%s203 + $0x1b0] sm:$0xff] %v312
                %v314 = vld [vmem:[%s202 + $0x370] sm:$0xff]
                %315 = vst [vmem:[%s203 + $0x1b8] sm:$0xff] %v314
                %v316 = vld [vmem:[%s202 + $0x380] sm:$0xff]
                %317 = vst [vmem:[%s203 + $0x1c0] sm:$0xff] %v316
                %v318 = vld [vmem:[%s202 + $0x390] sm:$0xff]
                %319 = vst [vmem:[%s203 + $0x1c8] sm:$0xff] %v318
                %v320 = vld [vmem:[%s202 + $0x3a0] sm:$0xff]
                %321 = vst [vmem:[%s203 + $0x1d0] sm:$0xff] %v320
                %v322 = vld [vmem:[%s202 + $0x3b0] sm:$0xff]
                %323 = vst [vmem:[%s203 + $0x1d8] sm:$0xff] %v322
                %v324 = vld [vmem:[%s202 + $0x3c0] sm:$0xff]
                %325 = vst [vmem:[%s203 + $0x1e0] sm:$0xff] %v324
                %v326 = vld [vmem:[%s202 + $0x3d0] sm:$0xff]
                %327 = vst [vmem:[%s203 + $0x1e8] sm:$0xff] %v326
                %v328 = vld [vmem:[%s202 + $0x3e0] sm:$0xff]
                %329 = vst [vmem:[%s203 + $0x1f0] sm:$0xff] %v328
                %v330 = vld [vmem:[%s202 + $0x3f0] sm:$0xff]
                %331 = vst [vmem:[%s203 + $0x1f8] sm:$0xff] %v330
                %v332 = vld [vmem:[%s202 + $0x400] sm:$0xff]
                %333 = vst [vmem:[%s203 + $0x200] sm:$0xff] %v332
                %v334 = vld [vmem:[%s202 + $0x410] sm:$0xff]
                %335 = vst [vmem:[%s203 + $0x208] sm:$0xff] %v334
                %v336 = vld [vmem:[%s202 + $0x420] sm:$0xff]
                %337 = vst [vmem:[%s203 + $0x210] sm:$0xff] %v336
                %v338 = vld [vmem:[%s202 + $0x430] sm:$0xff]
                %339 = vst [vmem:[%s203 + $0x218] sm:$0xff] %v338
                %v340 = vld [vmem:[%s202 + $0x440] sm:$0xff]
                %341 = vst [vmem:[%s203 + $0x220] sm:$0xff] %v340
                %v342 = vld [vmem:[%s202 + $0x450] sm:$0xff]
                %343 = vst [vmem:[%s203 + $0x228] sm:$0xff] %v342
                %v344 = vld [vmem:[%s202 + $0x460] sm:$0xff]
                %345 = vst [vmem:[%s203 + $0x230] sm:$0xff] %v344
                %v346 = vld [vmem:[%s202 + $0x470] sm:$0xff]
                %347 = vst [vmem:[%s203 + $0x238] sm:$0xff] %v346
                %v348 = vld [vmem:[%s202 + $0x480] sm:$0xff]
                %349 = vst [vmem:[%s203 + $0x240] sm:$0xff] %v348
                %v350 = vld [vmem:[%s202 + $0x490] sm:$0xff]
                %351 = vst [vmem:[%s203 + $0x248] sm:$0xff] %v350
                %v352 = vld [vmem:[%s202 + $0x4a0] sm:$0xff]
                %353 = vst [vmem:[%s203 + $0x250] sm:$0xff] %v352
                %v354 = vld [vmem:[%s202 + $0x4b0] sm:$0xff]
                %355 = vst [vmem:[%s203 + $0x258] sm:$0xff] %v354
                %v356 = vld [vmem:[%s202 + $0x4c0] sm:$0xff]
                %357 = vst [vmem:[%s203 + $0x260] sm:$0xff] %v356
                %v358 = vld [vmem:[%s202 + $0x4d0] sm:$0xff]
                %359 = vst [vmem:[%s203 + $0x268] sm:$0xff] %v358
                %v360 = vld [vmem:[%s202 + $0x4e0] sm:$0xff]
                %361 = vst [vmem:[%s203 + $0x270] sm:$0xff] %v360
                %v362 = vld [vmem:[%s202 + $0x4f0] sm:$0xff]
                %363 = vst [vmem:[%s203 + $0x278] sm:$0xff] %v362
                %v364 = vld [vmem:[%s202 + $0x500] sm:$0xff]
                %365 = vst [vmem:[%s203 + $0x280] sm:$0xff] %v364
                %v366 = vld [vmem:[%s202 + $0x510] sm:$0xff]
                %367 = vst [vmem:[%s203 + $0x288] sm:$0xff] %v366
                %v368 = vld [vmem:[%s202 + $0x520] sm:$0xff]
                %369 = vst [vmem:[%s203 + $0x290] sm:$0xff] %v368
                %v370 = vld [vmem:[%s202 + $0x530] sm:$0xff]
                %371 = vst [vmem:[%s203 + $0x298] sm:$0xff] %v370
                %v372 = vld [vmem:[%s202 + $0x540] sm:$0xff]
                %373 = vst [vmem:[%s203 + $0x2a0] sm:$0xff] %v372
                %v374 = vld [vmem:[%s202 + $0x550] sm:$0xff]
                %375 = vst [vmem:[%s203 + $0x2a8] sm:$0xff] %v374
                %v376 = vld [vmem:[%s202 + $0x560] sm:$0xff]
                %377 = vst [vmem:[%s203 + $0x2b0] sm:$0xff] %v376
                %v378 = vld [vmem:[%s202 + $0x570] sm:$0xff]
                %379 = vst [vmem:[%s203 + $0x2b8] sm:$0xff] %v378
                %v380 = vld [vmem:[%s202 + $0x580] sm:$0xff]
                %381 = vst [vmem:[%s203 + $0x2c0] sm:$0xff] %v380
                %v382 = vld [vmem:[%s202 + $0x590] sm:$0xff]
                %383 = vst [vmem:[%s203 + $0x2c8] sm:$0xff] %v382
                %v384 = vld [vmem:[%s202 + $0x5a0] sm:$0xff]
                %385 = vst [vmem:[%s203 + $0x2d0] sm:$0xff] %v384
                %v386 = vld [vmem:[%s202 + $0x5b0] sm:$0xff]
                %387 = vst [vmem:[%s203 + $0x2d8] sm:$0xff] %v386
                %v388 = vld [vmem:[%s202 + $0x5c0] sm:$0xff]
                %389 = vst [vmem:[%s203 + $0x2e0] sm:$0xff] %v388
                %v390 = vld [vmem:[%s202 + $0x5d0] sm:$0xff]
                %391 = vst [vmem:[%s203 + $0x2e8] sm:$0xff] %v390
                %v392 = vld [vmem:[%s202 + $0x5e0] sm:$0xff]
                %393 = vst [vmem:[%s203 + $0x2f0] sm:$0xff] %v392
                %v394 = vld [vmem:[%s202 + $0x5f0] sm:$0xff]
                %395 = vst [vmem:[%s203 + $0x2f8] sm:$0xff] %v394
                %v396 = vld [vmem:[%s202 + $0x600] sm:$0xff]
                %397 = vst [vmem:[%s203 + $0x300] sm:$0xff] %v396
                %v398 = vld [vmem:[%s202 + $0x610] sm:$0xff]
                %399 = vst [vmem:[%s203 + $0x308] sm:$0xff] %v398
                %v400 = vld [vmem:[%s202 + $0x620] sm:$0xff]
                %401 = vst [vmem:[%s203 + $0x310] sm:$0xff] %v400
                %v402 = vld [vmem:[%s202 + $0x630] sm:$0xff]
                %403 = vst [vmem:[%s203 + $0x318] sm:$0xff] %v402
                %v404 = vld [vmem:[%s202 + $0x640] sm:$0xff]
                %405 = vst [vmem:[%s203 + $0x320] sm:$0xff] %v404
                %v406 = vld [vmem:[%s202 + $0x650] sm:$0xff]
                %407 = vst [vmem:[%s203 + $0x328] sm:$0xff] %v406
                %v408 = vld [vmem:[%s202 + $0x660] sm:$0xff]
                %409 = vst [vmem:[%s203 + $0x330] sm:$0xff] %v408
                %v410 = vld [vmem:[%s202 + $0x670] sm:$0xff]
                %411 = vst [vmem:[%s203 + $0x338] sm:$0xff] %v410
                %v412 = vld [vmem:[%s202 + $0x680] sm:$0xff]
                %413 = vst [vmem:[%s203 + $0x340] sm:$0xff] %v412
                %v414 = vld [vmem:[%s202 + $0x690] sm:$0xff]
                %415 = vst [vmem:[%s203 + $0x348] sm:$0xff] %v414
                %v416 = vld [vmem:[%s202 + $0x6a0] sm:$0xff]
                %417 = vst [vmem:[%s203 + $0x350] sm:$0xff] %v416
                %v418 = vld [vmem:[%s202 + $0x6b0] sm:$0xff]
                %419 = vst [vmem:[%s203 + $0x358] sm:$0xff] %v418
                %v420 = vld [vmem:[%s202 + $0x6c0] sm:$0xff]
                %421 = vst [vmem:[%s203 + $0x360] sm:$0xff] %v420
                %v422 = vld [vmem:[%s202 + $0x6d0] sm:$0xff]
                %423 = vst [vmem:[%s203 + $0x368] sm:$0xff] %v422
                %v424 = vld [vmem:[%s202 + $0x6e0] sm:$0xff]
                %425 = vst [vmem:[%s203 + $0x370] sm:$0xff] %v424
                %v426 = vld [vmem:[%s202 + $0x6f0] sm:$0xff]
                %427 = vst [vmem:[%s203 + $0x378] sm:$0xff] %v426
                %v428 = vld [vmem:[%s202 + $0x700] sm:$0xff]
                %429 = vst [vmem:[%s203 + $0x380] sm:$0xff] %v428
                %v430 = vld [vmem:[%s202 + $0x710] sm:$0xff]
                %431 = vst [vmem:[%s203 + $0x388] sm:$0xff] %v430
                %v432 = vld [vmem:[%s202 + $0x720] sm:$0xff]
                %433 = vst [vmem:[%s203 + $0x390] sm:$0xff] %v432
                %v434 = vld [vmem:[%s202 + $0x730] sm:$0xff]
                %435 = vst [vmem:[%s203 + $0x398] sm:$0xff] %v434
                %v436 = vld [vmem:[%s202 + $0x740] sm:$0xff]
                %437 = vst [vmem:[%s203 + $0x3a0] sm:$0xff] %v436
                %v438 = vld [vmem:[%s202 + $0x750] sm:$0xff]
                %439 = vst [vmem:[%s203 + $0x3a8] sm:$0xff] %v438
                %v440 = vld [vmem:[%s202 + $0x760] sm:$0xff]
                %441 = vst [vmem:[%s203 + $0x3b0] sm:$0xff] %v440
                %v442 = vld [vmem:[%s202 + $0x770] sm:$0xff]
                %443 = vst [vmem:[%s203 + $0x3b8] sm:$0xff] %v442
                %v444 = vld [vmem:[%s202 + $0x780] sm:$0xff]
                %445 = vst [vmem:[%s203 + $0x3c0] sm:$0xff] %v444
                %v446 = vld [vmem:[%s202 + $0x790] sm:$0xff]
                %447 = vst [vmem:[%s203 + $0x3c8] sm:$0xff] %v446
                %v448 = vld [vmem:[%s202 + $0x7a0] sm:$0xff]
                %449 = vst [vmem:[%s203 + $0x3d0] sm:$0xff] %v448
                %v450 = vld [vmem:[%s202 + $0x7b0] sm:$0xff]
                %451 = vst [vmem:[%s203 + $0x3d8] sm:$0xff] %v450
                %v452 = vld [vmem:[%s202 + $0x7c0] sm:$0xff]
                %453 = vst [vmem:[%s203 + $0x3e0] sm:$0xff] %v452
                %v454 = vld [vmem:[%s202 + $0x7d0] sm:$0xff]
                %455 = vst [vmem:[%s203 + $0x3e8] sm:$0xff] %v454
                %v456 = vld [vmem:[%s202 + $0x7e0] sm:$0xff]
                %457 = vst [vmem:[%s203 + $0x3f0] sm:$0xff] %v456
                %v458 = vld [vmem:[%s202 + $0x7f0] sm:$0xff]
                %459 = vst [vmem:[%s203 + $0x3f8] sm:$0xff] %v458
                %v460 = vld [vmem:[%s202 + $0x800] sm:$0xff]
                %461 = vst [vmem:[%s203 + $0x400] sm:$0xff] %v460
                %v462 = vld [vmem:[%s202 + $0x810] sm:$0xff]
                %463 = vst [vmem:[%s203 + $0x408] sm:$0xff] %v462
                %v464 = vld [vmem:[%s202 + $0x820] sm:$0xff]
                %465 = vst [vmem:[%s203 + $0x410] sm:$0xff] %v464
                %v466 = vld [vmem:[%s202 + $0x830] sm:$0xff]
                %467 = vst [vmem:[%s203 + $0x418] sm:$0xff] %v466
                %v468 = vld [vmem:[%s202 + $0x840] sm:$0xff]
                %469 = vst [vmem:[%s203 + $0x420] sm:$0xff] %v468
                %v470 = vld [vmem:[%s202 + $0x850] sm:$0xff]
                %471 = vst [vmem:[%s203 + $0x428] sm:$0xff] %v470
                %v472 = vld [vmem:[%s202 + $0x860] sm:$0xff]
                %473 = vst [vmem:[%s203 + $0x430] sm:$0xff] %v472
                %v474 = vld [vmem:[%s202 + $0x870] sm:$0xff]
                %475 = vst [vmem:[%s203 + $0x438] sm:$0xff] %v474
                %v476 = vld [vmem:[%s202 + $0x880] sm:$0xff]
                %477 = vst [vmem:[%s203 + $0x440] sm:$0xff] %v476
                %v478 = vld [vmem:[%s202 + $0x890] sm:$0xff]
                %479 = vst [vmem:[%s203 + $0x448] sm:$0xff] %v478
                %v480 = vld [vmem:[%s202 + $0x8a0] sm:$0xff]
                %481 = vst [vmem:[%s203 + $0x450] sm:$0xff] %v480
                %v482 = vld [vmem:[%s202 + $0x8b0] sm:$0xff]
                %483 = vst [vmem:[%s203 + $0x458] sm:$0xff] %v482
                %v484 = vld [vmem:[%s202 + $0x8c0] sm:$0xff]
                %485 = vst [vmem:[%s203 + $0x460] sm:$0xff] %v484
                %v486 = vld [vmem:[%s202 + $0x8d0] sm:$0xff]
                %487 = vst [vmem:[%s203 + $0x468] sm:$0xff] %v486
                %v488 = vld [vmem:[%s202 + $0x8e0] sm:$0xff]
                %489 = vst [vmem:[%s203 + $0x470] sm:$0xff] %v488
                %v490 = vld [vmem:[%s202 + $0x8f0] sm:$0xff]
                %491 = vst [vmem:[%s203 + $0x478] sm:$0xff] %v490
                %v492 = vld [vmem:[%s202 + $0x900] sm:$0xff]
                %493 = vst [vmem:[%s203 + $0x480] sm:$0xff] %v492
                %v494 = vld [vmem:[%s202 + $0x910] sm:$0xff]
                %495 = vst [vmem:[%s203 + $0x488] sm:$0xff] %v494
                %v496 = vld [vmem:[%s202 + $0x920] sm:$0xff]
                %497 = vst [vmem:[%s203 + $0x490] sm:$0xff] %v496
                %v498 = vld [vmem:[%s202 + $0x930] sm:$0xff]
                %499 = vst [vmem:[%s203 + $0x498] sm:$0xff] %v498
                %v500 = vld [vmem:[%s202 + $0x940] sm:$0xff]
                %501 = vst [vmem:[%s203 + $0x4a0] sm:$0xff] %v500
                %v502 = vld [vmem:[%s202 + $0x950] sm:$0xff]
                %503 = vst [vmem:[%s203 + $0x4a8] sm:$0xff] %v502
                %v504 = vld [vmem:[%s202 + $0x960] sm:$0xff]
                %505 = vst [vmem:[%s203 + $0x4b0] sm:$0xff] %v504
                %v506 = vld [vmem:[%s202 + $0x970] sm:$0xff]
                %507 = vst [vmem:[%s203 + $0x4b8] sm:$0xff] %v506
                %v508 = vld [vmem:[%s202 + $0x980] sm:$0xff]
                %509 = vst [vmem:[%s203 + $0x4c0] sm:$0xff] %v508
                %v510 = vld [vmem:[%s202 + $0x990] sm:$0xff]
                %511 = vst [vmem:[%s203 + $0x4c8] sm:$0xff] %v510
                %v512 = vld [vmem:[%s202 + $0x9a0] sm:$0xff]
                %513 = vst [vmem:[%s203 + $0x4d0] sm:$0xff] %v512
                %v514 = vld [vmem:[%s202 + $0x9b0] sm:$0xff]
                %515 = vst [vmem:[%s203 + $0x4d8] sm:$0xff] %v514
                %v516 = vld [vmem:[%s202 + $0x9c0] sm:$0xff]
                %517 = vst [vmem:[%s203 + $0x4e0] sm:$0xff] %v516
                %v518 = vld [vmem:[%s202 + $0x9d0] sm:$0xff]
                %519 = vst [vmem:[%s203 + $0x4e8] sm:$0xff] %v518
                %v520 = vld [vmem:[%s202 + $0x9e0] sm:$0xff]
                %521 = vst [vmem:[%s203 + $0x4f0] sm:$0xff] %v520
                %v522 = vld [vmem:[%s202 + $0x9f0] sm:$0xff]
                %523 = vst [vmem:[%s203 + $0x4f8] sm:$0xff] %v522
              $region45: #{avmodel_forward.12} parent=39 // loop_footer
                %s201 = sadd.s32 1, %s197
              $region46: #{avmodel_forward.12} parent=39 // loop_footer_branch
                %196 = sbr.rel target = $region42
              $region47: #{avmodel_forward.12} parent=39 // loop_exit
                _
            $region40: #{avmodel_forward.12} parent=31 // pred_fallthru
              _
          $region32: #{avmodel_forward.12} parent=27 // pred_fallthru
            _
          %856 = vnop
        $region28: #{avmodel_forward.12} parent=19 // pred_fallthru
          _
        // Predicated region
        $region63: #{avmodel_forward.12} parent=19 // pred_check
          %p857 = pneg %p94
        $region64: #{avmodel_forward.12} parent=19 // pred_check_branch
          %859 = sbr.rel (%p857) target = $region66
        $region65: #{avmodel_forward.12} parent=19 // pred_region
          %s860 = smul.u32 2, %s17
          %p861 = scmp.lt.s32.totalorder %s860, 3
          %s862 = scalar_select %p861, %s860, 3
          %s863 = scalar_lea.vmem %s2, %s862
          %s864 = smul.u32 2, %s17
        $region66: #{avmodel_forward.12} parent=19 // pred_fallthru
          _
      $region20: #{avmodel_forward.12} parent=5 // pred_fallthru
        _
      %p865 = scmp.le.s32.totalorder 1, %s10
      %p866 = scmp.lt.s32.totalorder %s10, 17
      %p867 = pnand %p865, %p866
      %p868 = pneg %p867
      // Predicated region
      $region67: #{avmodel_forward.12} parent=5 // pred_check
        _
      $region68: #{avmodel_forward.12} parent=5 // pred_check_branch
        %870 = sbr.rel (%p867) target = $region70
      $region69: #{avmodel_forward.12} parent=5 // pred_region
        %s871 = ssub.s32 %s10, 1
        %s872 = sand.u32 %s61, 1
        %s873 = sand.u32 %s61, 1
        %s874 = smul.addr %s873, 1280
        %s875 = scalar_lea.vmem [#allocation3], %s874
        // Predicated region
        $region71: #{avmodel_forward.12} parent=69 // pred_check
          %p876 = pneg %p74
        $region72: #{avmodel_forward.12} parent=69 // pred_check_branch
          %878 = sbr.rel (%p876) target = $region74
        $region73: #{avmodel_forward.12} parent=69 // pred_region
          _
        $region74: #{avmodel_forward.12} parent=69 // pred_fallthru
          _
        %p879 = scmp.lt.s32.totalorder %s20, 7
        %s880 = scalar_select %p879, %s20, 7
        %s881 = smul.addr %s880, 14
        %s882 = smul.addr %s881, 4
        %s883 = scalar_lea.vmem %s0, %s882
        %p884 = pneg %p48
        %p885 = pneg %p45
        %s886 = sand.u32 %s61, 1
        %s887 = sand.u32 %s61, 1
        %s888 = smul.addr %s887, 1280
        %s889 = scalar_lea.vmem [#allocation3], %s888
        %p890 = pneg %p74
        %p891 = pneg %p71
        %s892 = smul.u32 2, %s19
        %p893 = scmp.lt.s32.totalorder %s892, 3
        %s894 = scalar_select %p893, %s892, 3
        %s895 = scalar_lea.vmem %s2, %s894
        %p896 = pneg %p100
        %p897 = pneg %p97
        %p898 = pneg %p121
        %p899 = pneg %p118
        %p900 = pneg %p149
        %p901 = pneg %p146
        %s902 = smul.u32 2, %s19
        %p903 = scmp.lt.s32.totalorder %s20, 7
        %s904 = scalar_select %p903, %s20, 7
        %p905 = scmp.lt.s32.totalorder %s902, 3
        %s906 = scalar_select %p905, %s902, 3
        %s907 = smul.addr %s904, 4
        %s908 = sadd.s32 %s906, %s907
        %s909 = scalar_lea.vmem %s4, %s908
        %p910 = scmp.lt.s32.totalorder %s20, 7
        %s911 = scalar_select %p910, %s20, 7
        %s912 = smul.addr %s911, 14
        %s913 = smul.addr %s912, 4
        %s914 = scalar_lea.vmem %s0, %s913
        %s915 = smul.u32 2, %s19
        %s916 = smul.u32 2, %s19
        %p917 = scmp.lt.s32.totalorder %s916, 3
        %s918 = scalar_select %p917, %s916, 3
        %s919 = scalar_lea.vmem %s2, %s918
        %s920 = smul.u32 2, %s19
        %s921 = smul.u32 2, %s19
        %p922 = scmp.lt.s32.totalorder %s20, 7
        %s923 = scalar_select %p922, %s20, 7
        %p924 = scmp.lt.s32.totalorder %s921, 3
        %s925 = scalar_select %p924, %s921, 3
        %s926 = smul.addr %s923, 4
        %s927 = sadd.s32 %s925, %s926
        %s928 = scalar_lea.vmem %s4, %s927
        %s929 = smul.u32 2, %s19
        %v931 = vld [vmem:[%s914] sm:$0xf]
        %v932 = vld [vmem:[%s914 + $0x4] sm:$0xf]
        %v933 = vld [vmem:[%s914 + $0x8] sm:$0xf]
        %v934 = vld [vmem:[%s914 + $0xc] sm:$0xf]
        %v935 = vld [vmem:[%s914 + $0x10] sm:$0xf]
        %v936 = vld [vmem:[%s914 + $0x14] sm:$0xf]
        %v937 = vld [vmem:[%s914 + $0x18] sm:$0xf]
        %v938 = vld [vmem:[%s914 + $0x1c] sm:$0xf]
        %v939 = vld [vmem:[%s914 + $0x20] sm:$0xf]
        %v940 = vld [vmem:[%s914 + $0x24] sm:$0xf]
        %v951 = vunpack.c.l.b16 %v931
        %v952 = vunpack.c.l.b16 %v932
        %v953 = vunpack.c.l.b16 %v933
        %v954 = vunpack.c.l.b16 %v934
        %v955 = vunpack.c.l.b16 %v935
        %v956 = vunpack.c.l.b16 %v936
        %v957 = vunpack.c.l.b16 %v937
        %v958 = vunpack.c.l.b16 %v938
        %v959 = vunpack.c.l.b16 %v939
        %v960 = vunpack.c.l.b16 %v940
        %v961 = vpack.c.b16 %v952, %v951
        %v962 = vpack.c.b16 %v954, %v953
        %v963 = vpack.c.b16 %v956, %v955
        %v964 = vpack.c.b16 %v958, %v957
        %v965 = vpack.c.b16 %v960, %v959
        %971 = vst [vmem:[#allocation2] sm:$0xff] %v961
        %972 = vst [vmem:[#allocation2 + $0x10] sm:$0xff] %v962
        %973 = vst [vmem:[#allocation2 + $0x20] sm:$0xff] %v963
        %974 = vst [vmem:[#allocation2 + $0x30] sm:$0xff] %v964
        %975 = vst [vmem:[#allocation2 + $0x40] sm:$0xff] %v965
        %v976 = vld [vmem:[%s914] sm:$0xf]
        %v977 = vld [vmem:[%s914 + $0x4] sm:$0xf]
        %v978 = vld [vmem:[%s914 + $0x8] sm:$0xf]
        %v979 = vld [vmem:[%s914 + $0xc] sm:$0xf]
        %v980 = vld [vmem:[%s914 + $0x10] sm:$0xf]
        %v981 = vld [vmem:[%s914 + $0x14] sm:$0xf]
        %v982 = vld [vmem:[%s914 + $0x18] sm:$0xf]
        %v983 = vld [vmem:[%s914 + $0x1c] sm:$0xf]
        %v984 = vld [vmem:[%s914 + $0x20] sm:$0xf]
        %v985 = vld [vmem:[%s914 + $0x24] sm:$0xf]
        %v986 = vld [vmem:[%s914 + $0x28] sm:$0x1]
        %v998 = vunpack.c.l.b16 %v976
        %v999 = vunpack.c.l.b16 %v977
        %v1000 = vunpack.c.l.b16 %v978
        %v1001 = vunpack.c.l.b16 %v979
        %v1002 = vunpack.c.l.b16 %v980
        %v1003 = vunpack.c.l.b16 %v981
        %v1004 = vunpack.c.l.b16 %v982
        %v1005 = vunpack.c.l.b16 %v983
        %v1006 = vunpack.c.l.b16 %v984
        %v1007 = vunpack.c.l.b16 %v985
        %v1008 = vunpack.c.l.b16 %v986
        %v1009 = vpack.c.b16 %v999, %v998
        %v1010 = vpack.c.b16 %v1001, %v1000
        %v1011 = vpack.c.b16 %v1003, %v1002
        %v1012 = vpack.c.b16 %v1005, %v1004
        %v1013 = vpack.c.b16 %v1007, %v1006
        %v1014 = vpack.c.b16 %v1008, %v1008
        %vm1015 = vsmask.f32 7424
        %v1017 = vshrl.u32 %v1009, 16
        %v1019 = vshll.u32 %v1009, 16
        %v1021 = vrot.slane %v1019, 1
        %v1022 = vor.u32 %v1017, %v1021
        %v1024 = vshll.u32 %v1010, 16
        %v1026 = vrot.slane %v1024, 1
        %v1027 = vsel %vm1015, %v1022, %v1026
        %v1028 = vshrl.u32 %v1010, 16
        %v1030 = vor.u32 %v1028, %v1026
        %v1032 = vshll.u32 %v1011, 16
        %v1034 = vrot.slane %v1032, 1
        %v1035 = vsel %vm1015, %v1030, %v1034
        %v1036 = vshrl.u32 %v1011, 16
        %v1038 = vor.u32 %v1036, %v1034
        %v1040 = vshll.u32 %v1012, 16
        %v1042 = vrot.slane %v1040, 1
        %v1043 = vsel %vm1015, %v1038, %v1042
        %v1044 = vshrl.u32 %v1012, 16
        %v1046 = vor.u32 %v1044, %v1042
        %v1048 = vshll.u32 %v1013, 16
        %v1050 = vrot.slane %v1048, 1
        %v1051 = vsel %vm1015, %v1046, %v1050
        %v1052 = vshrl.u32 %v1013, 16
        %v1054 = vor.u32 %v1052, %v1050
        %v1056 = vshll.u32 %v1014, 16
        %v1058 = vrot.slane %v1056, 1
        %v1059 = vsel %vm1015, %v1054, %v1058
        %1065 = vst [vmem:[#allocation2 + $0x8] sm:$0xff] %v1027
        %1066 = vst [vmem:[#allocation2 + $0x18] sm:$0xff] %v1035
        %1067 = vst [vmem:[#allocation2 + $0x28] sm:$0xff] %v1043
        %1068 = vst [vmem:[#allocation2 + $0x38] sm:$0xff] %v1051
        %1069 = vst [vmem:[#allocation2 + $0x48] sm:$0xff] %v1059
        %v1070 = vld [vmem:[#allocation2] sm:$0xff]
        %v1071 = vld [vmem:[#allocation2 + $0x8] sm:$0xff]
        %v1072 = vld [vmem:[#allocation2 + $0x10] sm:$0xff]
        %v1073 = vld [vmem:[#allocation2 + $0x18] sm:$0xff]
        %v1074 = vld [vmem:[#allocation2 + $0x20] sm:$0xff]
        %v1075 = vld [vmem:[#allocation2 + $0x28] sm:$0xff]
        %v1076 = vld [vmem:[#allocation2 + $0x30] sm:$0xff]
        %v1077 = vld [vmem:[#allocation2 + $0x38] sm:$0xff]
        %v1078 = vld [vmem:[#allocation2 + $0x40] sm:$0xff]
        %v1079 = vld [vmem:[#allocation2 + $0x48] sm:$0xff]
        %v1080 = vld [vmem:[%s875] sm:$0xff]
        %v1081 = vld [vmem:[%s875 + $0x8] sm:$0xff]
        %v1082 = vld [vmem:[%s875 + $0x10] sm:$0xff]
        %v1083 = vld [vmem:[%s875 + $0x18] sm:$0xff]
        %v1084 = vld [vmem:[%s875 + $0x20] sm:$0xff]
        %v1085 = vld [vmem:[%s875 + $0x28] sm:$0xff]
        %v1086 = vld [vmem:[%s875 + $0x30] sm:$0xff]
        %v1087 = vld [vmem:[%s875 + $0x38] sm:$0xff]
        %v1088 = vld [vmem:[%s875 + $0x40] sm:$0xff]
        %v1089 = vld [vmem:[%s875 + $0x48] sm:$0xff]
        %v1090 = vld [vmem:[%s875 + $0x50] sm:$0xff]
        %v1091 = vld [vmem:[%s875 + $0x58] sm:$0xff]
        %v1092 = vld [vmem:[%s875 + $0x60] sm:$0xff]
        %v1093 = vld [vmem:[%s875 + $0x68] sm:$0xff]
        %v1094 = vld [vmem:[%s875 + $0x70] sm:$0xff]
        %v1095 = vld [vmem:[%s875 + $0x78] sm:$0xff]
        %v1096 = vld [vmem:[%s875 + $0x80] sm:$0xff]
        %v1097 = vld [vmem:[%s875 + $0x88] sm:$0xff]
        %v1098 = vld [vmem:[%s875 + $0x90] sm:$0xff]
        %v1099 = vld [vmem:[%s875 + $0x98] sm:$0xff]
        %v1100 = vld [vmem:[%s875 + $0xa0] sm:$0xff]
        %v1101 = vld [vmem:[%s875 + $0xa8] sm:$0xff]
        %v1102 = vld [vmem:[%s875 + $0xb0] sm:$0xff]
        %v1103 = vld [vmem:[%s875 + $0xb8] sm:$0xff]
        %v1104 = vld [vmem:[%s875 + $0xc0] sm:$0xff]
        %v1105 = vld [vmem:[%s875 + $0xc8] sm:$0xff]
        %v1106 = vld [vmem:[%s875 + $0xd0] sm:$0xff]
        %v1107 = vld [vmem:[%s875 + $0xd8] sm:$0xff]
        %v1108 = vld [vmem:[%s875 + $0xe0] sm:$0xff]
        %v1109 = vld [vmem:[%s875 + $0xe8] sm:$0xff]
        %v1110 = vld [vmem:[%s875 + $0xf0] sm:$0xff]
        %v1111 = vld [vmem:[%s875 + $0xf8] sm:$0xff]
        %v1112 = vld [vmem:[%s914] sm:$0xe]
        %v1113 = vld [vmem:[%s914 + $0x4] sm:$0xf]
        %v1114 = vld [vmem:[%s914 + $0x8] sm:$0xf]
        %v1115 = vld [vmem:[%s914 + $0xc] sm:$0xf]
        %v1116 = vld [vmem:[%s914 + $0x10] sm:$0xf]
        %v1117 = vld [vmem:[%s914 + $0x14] sm:$0xf]
        %v1118 = vld [vmem:[%s914 + $0x18] sm:$0xf]
        %v1119 = vld [vmem:[%s914 + $0x1c] sm:$0xf]
        %v1120 = vld [vmem:[%s914 + $0x20] sm:$0xf]
        %v1121 = vld [vmem:[%s914 + $0x24] sm:$0xf]
        %v1122 = vld [vmem:[%s914 + $0x28] sm:$0x1]
        %v1134 = vunpack.c.l.b16 %v1112
        %v1135 = vunpack.c.l.b16 %v1113
        %v1136 = vunpack.c.l.b16 %v1114
        %v1137 = vunpack.c.l.b16 %v1115
        %v1138 = vunpack.c.l.b16 %v1116
        %v1139 = vunpack.c.l.b16 %v1117
        %v1140 = vunpack.c.l.b16 %v1118
        %v1141 = vunpack.c.l.b16 %v1119
        %v1142 = vunpack.c.l.b16 %v1120
        %v1143 = vunpack.c.l.b16 %v1121
        %v1144 = vunpack.c.l.b16 %v1122
        %v1145 = vpack.c.b16 %v1135, %v1134
        %v1146 = vpack.c.b16 %v1137, %v1136
        %v1147 = vpack.c.b16 %v1139, %v1138
        %v1148 = vpack.c.b16 %v1141, %v1140
        %v1149 = vpack.c.b16 %v1143, %v1142
        %v1150 = vpack.c.b16 %v1144, %v1144
        %vm1151 = vcmask 1046528
        %v1152 = vrot.slane %v1145, 1
        %v1153 = vrot.slane %v1146, 1
        %v1154 = vsel %vm1151, %v1152, %v1153
        %v1155 = vrot.slane %v1147, 1
        %v1156 = vsel %vm1151, %v1153, %v1155
        %v1157 = vrot.slane %v1148, 1
        %v1158 = vsel %vm1151, %v1155, %v1157
        %v1159 = vrot.slane %v1149, 1
        %v1160 = vsel %vm1151, %v1157, %v1159
        %v1161 = vrot.slane %v1150, 1
        %v1162 = vsel %vm1151, %v1159, %v1161
        %1168 = vst [vmem:[#allocation2] sm:$0xff] %v1154
        %1169 = vst [vmem:[#allocation2 + $0x10] sm:$0xff] %v1156
        %1170 = vst [vmem:[#allocation2 + $0x20] sm:$0xff] %v1158
        %1171 = vst [vmem:[#allocation2 + $0x30] sm:$0xff] %v1160
        %1172 = vst [vmem:[#allocation2 + $0x40] sm:$0xff] %v1162
        %v1173 = vld [vmem:[%s914 + $0x4] sm:$0xe]
        %v1174 = vld [vmem:[%s914 + $0x8] sm:$0xf]
        %v1175 = vld [vmem:[%s914 + $0xc] sm:$0xf]
        %v1176 = vld [vmem:[%s914 + $0x10] sm:$0xf]
        %v1177 = vld [vmem:[%s914 + $0x14] sm:$0xf]
        %v1178 = vld [vmem:[%s914 + $0x18] sm:$0xf]
        %v1179 = vld [vmem:[%s914 + $0x1c] sm:$0xf]
        %v1180 = vld [vmem:[%s914 + $0x20] sm:$0xf]
        %v1181 = vld [vmem:[%s914 + $0x24] sm:$0xf]
        %v1182 = vld [vmem:[%s914 + $0x28] sm:$0xf]
        %v1183 = vld [vmem:[%s914 + $0x2c] sm:$0x1]
        %v1195 = vunpack.c.l.b16 %v1173
        %v1196 = vunpack.c.l.b16 %v1174
        %v1197 = vunpack.c.l.b16 %v1175
        %v1198 = vunpack.c.l.b16 %v1176
        %v1199 = vunpack.c.l.b16 %v1177
        %v1200 = vunpack.c.l.b16 %v1178
        %v1201 = vunpack.c.l.b16 %v1179
        %v1202 = vunpack.c.l.b16 %v1180
        %v1203 = vunpack.c.l.b16 %v1181
        %v1204 = vunpack.c.l.b16 %v1182
        %v1205 = vunpack.c.l.b16 %v1183
        %v1206 = vpack.c.b16 %v1196, %v1195
        %v1207 = vpack.c.b16 %v1198, %v1197
        %v1208 = vpack.c.b16 %v1200, %v1199
        %v1209 = vpack.c.b16 %v1202, %v1201
        %v1210 = vpack.c.b16 %v1204, %v1203
        %v1211 = vpack.c.b16 %v1205, %v1205
        %v1212 = vrot.slane %v1206, 1
        %v1213 = vrot.slane %v1207, 1
        %v1214 = vsel %vm1151, %v1212, %v1213
        %v1215 = vrot.slane %v1208, 1
        %v1216 = vsel %vm1151, %v1213, %v1215
        %v1217 = vrot.slane %v1209, 1
        %v1218 = vsel %vm1151, %v1215, %v1217
        %v1219 = vrot.slane %v1210, 1
        %v1220 = vsel %vm1151, %v1217, %v1219
        %v1221 = vrot.slane %v1211, 1
        %v1222 = vsel %vm1151, %v1219, %v1221
        %1228 = vst [vmem:[#allocation2 + $0x8] sm:$0xff] %v1214
        %1229 = vst [vmem:[#allocation2 + $0x18] sm:$0xff] %v1216
        %1230 = vst [vmem:[#allocation2 + $0x28] sm:$0xff] %v1218
        %1231 = vst [vmem:[#allocation2 + $0x38] sm:$0xff] %v1220
        %1232 = vst [vmem:[#allocation2 + $0x48] sm:$0xff] %v1222
        %v1233 = vld [vmem:[#allocation2] sm:$0xff]
        %v1234 = vld [vmem:[#allocation2 + $0x8] sm:$0xff]
        %v1235 = vld [vmem:[#allocation2 + $0x10] sm:$0xff]
        %v1236 = vld [vmem:[#allocation2 + $0x18] sm:$0xff]
        %v1237 = vld [vmem:[#allocation2 + $0x20] sm:$0xff]
        %v1238 = vld [vmem:[#allocation2 + $0x28] sm:$0xff]
        %v1239 = vld [vmem:[#allocation2 + $0x30] sm:$0xff]
        %v1240 = vld [vmem:[#allocation2 + $0x38] sm:$0xff]
        %v1241 = vld [vmem:[#allocation2 + $0x40] sm:$0xff]
        %v1242 = vld [vmem:[#allocation2 + $0x48] sm:$0xff]
        %s1243 = scalar_lea.vmem %s875, 256 [#allocation3]
        %v1244 = vld [vmem:[%s1243] sm:$0xff]
        %v1245 = vld [vmem:[%s1243 + $0x8] sm:$0xff]
        %v1246 = vld [vmem:[%s1243 + $0x10] sm:$0xff]
        %v1247 = vld [vmem:[%s1243 + $0x18] sm:$0xff]
        %v1248 = vld [vmem:[%s1243 + $0x20] sm:$0xff]
        %v1249 = vld [vmem:[%s1243 + $0x28] sm:$0xff]
        %v1250 = vld [vmem:[%s1243 + $0x30] sm:$0xff]
        %v1251 = vld [vmem:[%s1243 + $0x38] sm:$0xff]
        %v1252 = vld [vmem:[%s1243 + $0x40] sm:$0xff]
        %v1253 = vld [vmem:[%s1243 + $0x48] sm:$0xff]
        %v1254 = vld [vmem:[%s1243 + $0x50] sm:$0xff]
        %v1255 = vld [vmem:[%s1243 + $0x58] sm:$0xff]
        %v1256 = vld [vmem:[%s1243 + $0x60] sm:$0xff]
        %v1257 = vld [vmem:[%s1243 + $0x68] sm:$0xff]
        %v1258 = vld [vmem:[%s1243 + $0x70] sm:$0xff]
        %v1259 = vld [vmem:[%s1243 + $0x78] sm:$0xff]
        %v1260 = vld [vmem:[%s1243 + $0x80] sm:$0xff]
        %v1261 = vld [vmem:[%s1243 + $0x88] sm:$0xff]
        %v1262 = vld [vmem:[%s1243 + $0x90] sm:$0xff]
        %v1263 = vld [vmem:[%s1243 + $0x98] sm:$0xff]
        %v1264 = vld [vmem:[%s1243 + $0xa0] sm:$0xff]
        %v1265 = vld [vmem:[%s1243 + $0xa8] sm:$0xff]
        %v1266 = vld [vmem:[%s1243 + $0xb0] sm:$0xff]
        %v1267 = vld [vmem:[%s1243 + $0xb8] sm:$0xff]
        %v1268 = vld [vmem:[%s1243 + $0xc0] sm:$0xff]
        %v1269 = vld [vmem:[%s1243 + $0xc8] sm:$0xff]
        %v1270 = vld [vmem:[%s1243 + $0xd0] sm:$0xff]
        %v1271 = vld [vmem:[%s1243 + $0xd8] sm:$0xff]
        %v1272 = vld [vmem:[%s1243 + $0xe0] sm:$0xff]
        %v1273 = vld [vmem:[%s1243 + $0xe8] sm:$0xff]
        %v1274 = vld [vmem:[%s1243 + $0xf0] sm:$0xff]
        %v1275 = vld [vmem:[%s1243 + $0xf8] sm:$0xff]
        %v1308 = vunpack.c.l.b16 %v1244
        %v1309 = vunpack.c.h.b16 %v1244
        %v1310 = vunpack.c.l.b16 %v1245
        %v1311 = vunpack.c.h.b16 %v1245
        %v1312 = vunpack.c.l.b16 %v1246
        %v1313 = vunpack.c.h.b16 %v1246
        %v1314 = vunpack.c.l.b16 %v1247
        %v1315 = vunpack.c.h.b16 %v1247
        %v1316 = vunpack.c.l.b16 %v1248
        %v1317 = vunpack.c.h.b16 %v1248
        %v1318 = vunpack.c.l.b16 %v1249
        %v1319 = vunpack.c.h.b16 %v1249
        %v1320 = vunpack.c.l.b16 %v1250
        %v1321 = vunpack.c.h.b16 %v1250
        %v1322 = vunpack.c.l.b16 %v1251
        %v1323 = vunpack.c.h.b16 %v1251
        %v1324 = vunpack.c.l.b16 %v1252
        %v1325 = vunpack.c.h.b16 %v1252
        %v1326 = vunpack.c.l.b16 %v1253
        %v1327 = vunpack.c.h.b16 %v1253
        %v1328 = vunpack.c.l.b16 %v1254
        %v1329 = vunpack.c.h.b16 %v1254
        %v1330 = vunpack.c.l.b16 %v1255
        %v1331 = vunpack.c.h.b16 %v1255
        %v1332 = vunpack.c.l.b16 %v1256
        %v1333 = vunpack.c.h.b16 %v1256
        %v1334 = vunpack.c.l.b16 %v1257
        %v1335 = vunpack.c.h.b16 %v1257
        %v1336 = vunpack.c.l.b16 %v1258
        %v1337 = vunpack.c.h.b16 %v1258
        %v1338 = vunpack.c.l.b16 %v1259
        %v1339 = vunpack.c.h.b16 %v1259
        %v1340 = vunpack.c.l.b16 %v1260
        %v1341 = vunpack.c.h.b16 %v1260
        %v1342 = vunpack.c.l.b16 %v1261
        %v1343 = vunpack.c.h.b16 %v1261
        %v1344 = vunpack.c.l.b16 %v1262
        %v1345 = vunpack.c.h.b16 %v1262
        %v1346 = vunpack.c.l.b16 %v1263
        %v1347 = vunpack.c.h.b16 %v1263
        %v1348 = vunpack.c.l.b16 %v1264
        %v1349 = vunpack.c.h.b16 %v1264
        %v1350 = vunpack.c.l.b16 %v1265
        %v1351 = vunpack.c.h.b16 %v1265
        %v1352 = vunpack.c.l.b16 %v1266
        %v1353 = vunpack.c.h.b16 %v1266
        %v1354 = vunpack.c.l.b16 %v1267
        %v1355 = vunpack.c.h.b16 %v1267
        %v1356 = vunpack.c.l.b16 %v1268
        %v1357 = vunpack.c.h.b16 %v1268
        %v1358 = vunpack.c.l.b16 %v1269
        %v1359 = vunpack.c.h.b16 %v1269
        %v1360 = vunpack.c.l.b16 %v1270
        %v1361 = vunpack.c.h.b16 %v1270
        %v1362 = vunpack.c.l.b16 %v1271
        %v1363 = vunpack.c.h.b16 %v1271
        %v1364 = vunpack.c.l.b16 %v1272
        %v1365 = vunpack.c.h.b16 %v1272
        %v1366 = vunpack.c.l.b16 %v1273
        %v1367 = vunpack.c.h.b16 %v1273
        %v1368 = vunpack.c.l.b16 %v1274
        %v1369 = vunpack.c.h.b16 %v1274
        %v1370 = vunpack.c.l.b16 %v1275
        %v1371 = vunpack.c.h.b16 %v1275
        %v1372 = vpack.c.b16 %v1310, %v1308
        %v1373 = vpack.c.b16 %v1311, %v1309
        %v1374 = vpack.c.b16 %v1314, %v1312
        %v1375 = vpack.c.b16 %v1315, %v1313
        %v1376 = vpack.c.b16 %v1318, %v1316
        %v1377 = vpack.c.b16 %v1319, %v1317
        %v1378 = vpack.c.b16 %v1322, %v1320
        %v1379 = vpack.c.b16 %v1323, %v1321
        %v1380 = vpack.c.b16 %v1326, %v1324
        %v1381 = vpack.c.b16 %v1327, %v1325
        %v1382 = vpack.c.b16 %v1330, %v1328
        %v1383 = vpack.c.b16 %v1331, %v1329
        %v1384 = vpack.c.b16 %v1334, %v1332
        %v1385 = vpack.c.b16 %v1335, %v1333
        %v1386 = vpack.c.b16 %v1338, %v1336
        %v1387 = vpack.c.b16 %v1339, %v1337
        %v1388 = vpack.c.b16 %v1342, %v1340
        %v1389 = vpack.c.b16 %v1343, %v1341
        %v1390 = vpack.c.b16 %v1346, %v1344
        %v1391 = vpack.c.b16 %v1347, %v1345
        %v1392 = vpack.c.b16 %v1350, %v1348
        %v1393 = vpack.c.b16 %v1351, %v1349
        %v1394 = vpack.c.b16 %v1354, %v1352
        %v1395 = vpack.c.b16 %v1355, %v1353
        %v1396 = vpack.c.b16 %v1358, %v1356
        %v1397 = vpack.c.b16 %v1359, %v1357
        %v1398 = vpack.c.b16 %v1362, %v1360
        %v1399 = vpack.c.b16 %v1363, %v1361
        %v1400 = vpack.c.b16 %v1366, %v1364
        %v1401 = vpack.c.b16 %v1367, %v1365
        %v1402 = vpack.c.b16 %v1370, %v1368
        %v1403 = vpack.c.b16 %v1371, %v1369
        %1436 = vmatprep.subr.bf16.mxu0 %v1373
        %1437 = vmatpush1.bf16.msra.mxu0 %v1372
        %1438 = vmatprep.subr.bf16.mxu0 %v1375
        %1439 = vmatpush1.bf16.msra.mxu0 %v1374
        %1440 = vmatprep.subr.bf16.mxu0 %v1377
        %1441 = vmatpush1.bf16.msra.mxu0 %v1376
        %1442 = vmatprep.subr.bf16.mxu0 %v1379
        %1443 = vmatpush1.bf16.msra.mxu0 %v1378
        %1444 = vmatprep.subr.bf16.mxu0 %v1381
        %1445 = vmatpush1.bf16.msra.mxu0 %v1380
        %1446 = vmatprep.subr.bf16.mxu0 %v1383
        %1447 = vmatpush1.bf16.msra.mxu0 %v1382
        %1448 = vmatprep.subr.bf16.mxu0 %v1385
        %1449 = vmatpush1.bf16.msra.mxu0 %v1384
        %1450 = vmatprep.subr.bf16.mxu0 %v1387
        %1451 = vmatpush1.bf16.msra.mxu0 %v1386
        %1452 = vmatprep.subr.bf16.mxu0 %v1389
        %1453 = vmatpush1.bf16.msra.mxu0 %v1388
        %1454 = vmatprep.subr.bf16.mxu0 %v1391
        %1455 = vmatpush1.bf16.msra.mxu0 %v1390
        %1456 = vmatprep.subr.bf16.mxu0 %v1393
        %1457 = vmatpush1.bf16.msra.mxu0 %v1392
        %1458 = vmatprep.subr.bf16.mxu0 %v1395
        %1459 = vmatpush1.bf16.msra.mxu0 %v1394
        %1460 = vmatprep.subr.bf16.mxu0 %v1397
        %1461 = vmatpush1.bf16.msra.mxu0 %v1396
        %1462 = vmatprep.subr.bf16.mxu0 %v1399
        %1463 = vmatpush1.bf16.msra.mxu0 %v1398
        %1464 = vmatprep.subr.bf16.mxu0 %v1401
        %1465 = vmatpush1.bf16.msra.mxu0 %v1400
        %1466 = vmatprep.subr.bf16.mxu0 %v1403
        %1467 = vmatpush1.bf16.msra.mxu0 %v1402
        %1468 = vmatprep.mubr.bf16.mxu0 %v1234
        %1469 = vmatmul.mubr.bf16.gmra.mrb[0].mxu0 %v1233
        %v1470 = vpop.f32.mrb[0].mxu0
        %v1471 = vadd.f32 0.0, %v1470
        %v1472 = vpop.f32.mrb[0].mxu0
        %v1473 = vadd.f32 0.0, %v1472
        %v1474 = vpop.f32.mrb[0].mxu0
        %v1475 = vadd.f32 0.0, %v1474
        %v1476 = vpop.f32.mrb[0].mxu0
        %v1477 = vadd.f32 0.0, %v1476
        %1478 = vmatprep.mubr.bf16.mxu0 %v1236
        %1479 = vmatmul.mubr.bf16.gmra.mrb[0].mxu0 %v1235
        %v1480 = vpop.f32.mrb[0].mxu0
        %v1481 = vadd.f32 0.0, %v1480
        %v1482 = vpop.f32.mrb[0].mxu0
        %v1483 = vadd.f32 0.0, %v1482
        %v1484 = vpop.f32.mrb[0].mxu0
        %v1485 = vadd.f32 0.0, %v1484
        %v1486 = vpop.f32.mrb[0].mxu0
        %v1487 = vadd.f32 0.0, %v1486
        %1488 = vmatprep.mubr.bf16.mxu0 %v1238
        %1489 = vmatmul.mubr.bf16.gmra.mrb[0].mxu0 %v1237
        %v1490 = vpop.f32.mrb[0].mxu0
        %v1491 = vadd.f32 0.0, %v1490
        %v1492 = vpop.f32.mrb[0].mxu0
        %v1493 = vadd.f32 0.0, %v1492
        %v1494 = vpop.f32.mrb[0].mxu0
        %v1495 = vadd.f32 0.0, %v1494
        %v1496 = vpop.f32.mrb[0].mxu0
        %v1497 = vadd.f32 0.0, %v1496
        %1498 = vmatprep.mubr.bf16.mxu0 %v1240
        %1499 = vmatmul.mubr.bf16.gmra.mrb[0].mxu0 %v1239
        %v1500 = vpop.f32.mrb[0].mxu0
        %v1501 = vadd.f32 0.0, %v1500
        %v1502 = vpop.f32.mrb[0].mxu0
        %v1503 = vadd.f32 0.0, %v1502
        %v1504 = vpop.f32.mrb[0].mxu0
        %v1505 = vadd.f32 0.0, %v1504
        %v1506 = vpop.f32.mrb[0].mxu0
        %v1507 = vadd.f32 0.0, %v1506
        %1508 = vmatprep.mubr.bf16.mxu0 %v1242
        %1509 = vmatmul.mubr.bf16.gmra.mrb[0].mxu0 %v1241
        %v1510 = vpop.f32.mrb[0].mxu0
        %v1511 = vadd.f32 0.0, %v1510
        %v1512 = vpop.f32.mrb[0].mxu0
        %v1513 = vadd.f32 0.0, %v1512
        %v1514 = vpop.f32.mrb[0].mxu0
        %v1515 = vadd.f32 0.0, %v1514
        %v1516 = vpop.f32.mrb[0].mxu0
        %v1517 = vadd.f32 0.0, %v1516
        %1518 = vdwg.mxu0
        %v1551 = vunpack.c.l.b16 %v1080
        %v1552 = vunpack.c.h.b16 %v1080
        %v1553 = vunpack.c.l.b16 %v1081
        %v1554 = vunpack.c.h.b16 %v1081
        %v1555 = vunpack.c.l.b16 %v1082
        %v1556 = vunpack.c.h.b16 %v1082
        %v1557 = vunpack.c.l.b16 %v1083
        %v1558 = vunpack.c.h.b16 %v1083
        %v1559 = vunpack.c.l.b16 %v1084
        %v1560 = vunpack.c.h.b16 %v1084
        %v1561 = vunpack.c.l.b16 %v1085
        %v1562 = vunpack.c.h.b16 %v1085
        %v1563 = vunpack.c.l.b16 %v1086
        %v1564 = vunpack.c.h.b16 %v1086
        %v1565 = vunpack.c.l.b16 %v1087
        %v1566 = vunpack.c.h.b16 %v1087
        %v1567 = vunpack.c.l.b16 %v1088
        %v1568 = vunpack.c.h.b16 %v1088
        %v1569 = vunpack.c.l.b16 %v1089
        %v1570 = vunpack.c.h.b16 %v1089
        %v1571 = vunpack.c.l.b16 %v1090
        %v1572 = vunpack.c.h.b16 %v1090
        %v1573 = vunpack.c.l.b16 %v1091
        %v1574 = vunpack.c.h.b16 %v1091
        %v1575 = vunpack.c.l.b16 %v1092
        %v1576 = vunpack.c.h.b16 %v1092
        %v1577 = vunpack.c.l.b16 %v1093
        %v1578 = vunpack.c.h.b16 %v1093
        %v1579 = vunpack.c.l.b16 %v1094
        %v1580 = vunpack.c.h.b16 %v1094
        %v1581 = vunpack.c.l.b16 %v1095
        %v1582 = vunpack.c.h.b16 %v1095
        %v1583 = vunpack.c.l.b16 %v1096
        %v1584 = vunpack.c.h.b16 %v1096
        %v1585 = vunpack.c.l.b16 %v1097
        %v1586 = vunpack.c.h.b16 %v1097
        %v1587 = vunpack.c.l.b16 %v1098
        %v1588 = vunpack.c.h.b16 %v1098
        %v1589 = vunpack.c.l.b16 %v1099
        %v1590 = vunpack.c.h.b16 %v1099
        %v1591 = vunpack.c.l.b16 %v1100
        %v1592 = vunpack.c.h.b16 %v1100
        %v1593 = vunpack.c.l.b16 %v1101
        %v1594 = vunpack.c.h.b16 %v1101
        %v1595 = vunpack.c.l.b16 %v1102
        %v1596 = vunpack.c.h.b16 %v1102
        %v1597 = vunpack.c.l.b16 %v1103
        %v1598 = vunpack.c.h.b16 %v1103
        %v1599 = vunpack.c.l.b16 %v1104
        %v1600 = vunpack.c.h.b16 %v1104
        %v1601 = vunpack.c.l.b16 %v1105
        %v1602 = vunpack.c.h.b16 %v1105
        %v1603 = vunpack.c.l.b16 %v1106
        %v1604 = vunpack.c.h.b16 %v1106
        %v1605 = vunpack.c.l.b16 %v1107
        %v1606 = vunpack.c.h.b16 %v1107
        %v1607 = vunpack.c.l.b16 %v1108
        %v1608 = vunpack.c.h.b16 %v1108
        %v1609 = vunpack.c.l.b16 %v1109
        %v1610 = vunpack.c.h.b16 %v1109
        %v1611 = vunpack.c.l.b16 %v1110
        %v1612 = vunpack.c.h.b16 %v1110
        %v1613 = vunpack.c.l.b16 %v1111
        %v1614 = vunpack.c.h.b16 %v1111
        %v1615 = vpack.c.b16 %v1553, %v1551
        %v1616 = vpack.c.b16 %v1554, %v1552
        %v1617 = vpack.c.b16 %v1557, %v1555
        %v1618 = vpack.c.b16 %v1558, %v1556
        %v1619 = vpack.c.b16 %v1561, %v1559
        %v1620 = vpack.c.b16 %v1562, %v1560
        %v1621 = vpack.c.b16 %v1565, %v1563
        %v1622 = vpack.c.b16 %v1566, %v1564
        %v1623 = vpack.c.b16 %v1569, %v1567
        %v1624 = vpack.c.b16 %v1570, %v1568
        %v1625 = vpack.c.b16 %v1573, %v1571
        %v1626 = vpack.c.b16 %v1574, %v1572
        %v1627 = vpack.c.b16 %v1577, %v1575
        %v1628 = vpack.c.b16 %v1578, %v1576
        %v1629 = vpack.c.b16 %v1581, %v1579
        %v1630 = vpack.c.b16 %v1582, %v1580
        %v1631 = vpack.c.b16 %v1585, %v1583
        %v1632 = vpack.c.b16 %v1586, %v1584
        %v1633 = vpack.c.b16 %v1589, %v1587
        %v1634 = vpack.c.b16 %v1590, %v1588
        %v1635 = vpack.c.b16 %v1593, %v1591
        %v1636 = vpack.c.b16 %v1594, %v1592
        %v1637 = vpack.c.b16 %v1597, %v1595
        %v1638 = vpack.c.b16 %v1598, %v1596
        %v1639 = vpack.c.b16 %v1601, %v1599
        %v1640 = vpack.c.b16 %v1602, %v1600
        %v1641 = vpack.c.b16 %v1605, %v1603
        %v1642 = vpack.c.b16 %v1606, %v1604
        %v1643 = vpack.c.b16 %v1609, %v1607
        %v1644 = vpack.c.b16 %v1610, %v1608
        %v1645 = vpack.c.b16 %v1613, %v1611
        %v1646 = vpack.c.b16 %v1614, %v1612
        %1679 = vmatprep.subr.bf16.mxu0 %v1616
        %1680 = vmatpush1.bf16.msra.mxu0 %v1615
        %1681 = vmatprep.subr.bf16.mxu0 %v1618
        %1682 = vmatpush1.bf16.msra.mxu0 %v1617
        %1683 = vmatprep.subr.bf16.mxu0 %v1620
        %1684 = vmatpush1.bf16.msra.mxu0 %v1619
        %1685 = vmatprep.subr.bf16.mxu0 %v1622
        %1686 = vmatpush1.bf16.msra.mxu0 %v1621
        %1687 = vmatprep.subr.bf16.mxu0 %v1624
        %1688 = vmatpush1.bf16.msra.mxu0 %v1623
        %1689 = vmatprep.subr.bf16.mxu0 %v1626
        %1690 = vmatpush1.bf16.msra.mxu0 %v1625
        %1691 = vmatprep.subr.bf16.mxu0 %v1628
        %1692 = vmatpush1.bf16.msra.mxu0 %v1627
        %1693 = vmatprep.subr.bf16.mxu0 %v1630
        %1694 = vmatpush1.bf16.msra.mxu0 %v1629
        %1695 = vmatprep.subr.bf16.mxu0 %v1632
        %1696 = vmatpush1.bf16.msra.mxu0 %v1631
        %1697 = vmatprep.subr.bf16.mxu0 %v1634
        %1698 = vmatpush1.bf16.msra.mxu0 %v1633
        %1699 = vmatprep.subr.bf16.mxu0 %v1636
        %1700 = vmatpush1.bf16.msra.mxu0 %v1635
        %1701 = vmatprep.subr.bf16.mxu0 %v1638
        %1702 = vmatpush1.bf16.msra.mxu0 %v1637
        %1703 = vmatprep.subr.bf16.mxu0 %v1640
        %1704 = vmatpush1.bf16.msra.mxu0 %v1639
        %1705 = vmatprep.subr.bf16.mxu0 %v1642
        %1706 = vmatpush1.bf16.msra.mxu0 %v1641
        %1707 = vmatprep.subr.bf16.mxu0 %v1644
        %1708 = vmatpush1.bf16.msra.mxu0 %v1643
        %1709 = vmatprep.subr.bf16.mxu0 %v1646
        %1710 = vmatpush1.bf16.msra.mxu0 %v1645
        %1711 = vmatprep.mubr.bf16.mxu0 %v1071
        %1712 = vmatmul.mubr.bf16.gmra.mrb[0].mxu0 %v1070
        %v1713 = vpop.f32.mrb[0].mxu0
        %v1714 = vadd.f32 %v1471, %v1713
        %v1715 = vpop.f32.mrb[0].mxu0
        %v1716 = vadd.f32 %v1473, %v1715
        %v1717 = vpop.f32.mrb[0].mxu0
        %v1718 = vadd.f32 %v1475, %v1717
        %v1719 = vpop.f32.mrb[0].mxu0
        %v1720 = vadd.f32 %v1477, %v1719
        %1721 = vmatprep.mubr.bf16.mxu0 %v1073
        %1722 = vmatmul.mubr.bf16.gmra.mrb[0].mxu0 %v1072
        %v1723 = vpop.f32.mrb[0].mxu0
        %v1724 = vadd.f32 %v1481, %v1723
        %v1725 = vpop.f32.mrb[0].mxu0
        %v1726 = vadd.f32 %v1483, %v1725
        %v1727 = vpop.f32.mrb[0].mxu0
        %v1728 = vadd.f32 %v1485, %v1727
        %v1729 = vpop.f32.mrb[0].mxu0
        %v1730 = vadd.f32 %v1487, %v1729
        %1731 = vmatprep.mubr.bf16.mxu0 %v1075
        %1732 = vmatmul.mubr.bf16.gmra.mrb[0].mxu0 %v1074
        %v1733 = vpop.f32.mrb[0].mxu0
        %v1734 = vadd.f32 %v1491, %v1733
        %v1735 = vpop.f32.mrb[0].mxu0
        %v1736 = vadd.f32 %v1493, %v1735
        %v1737 = vpop.f32.mrb[0].mxu0
        %v1738 = vadd.f32 %v1495, %v1737
        %v1739 = vpop.f32.mrb[0].mxu0
        %v1740 = vadd.f32 %v1497, %v1739
        %1741 = vmatprep.mubr.bf16.mxu0 %v1077
        %1742 = vmatmul.mubr.bf16.gmra.mrb[0].mxu0 %v1076
        %v1743 = vpop.f32.mrb[0].mxu0
        %v1744 = vadd.f32 %v1501, %v1743
        %v1745 = vpop.f32.mrb[0].mxu0
        %v1746 = vadd.f32 %v1503, %v1745
        %v1747 = vpop.f32.mrb[0].mxu0
        %v1748 = vadd.f32 %v1505, %v1747
        %v1749 = vpop.f32.mrb[0].mxu0
        %v1750 = vadd.f32 %v1507, %v1749
        %1751 = vmatprep.mubr.bf16.mxu0 %v1079
        %1752 = vmatmul.mubr.bf16.gmra.mrb[0].mxu0 %v1078
        %v1753 = vpop.f32.mrb[0].mxu0
        %v1754 = vadd.f32 %v1511, %v1753
        %v1755 = vpop.f32.mrb[0].mxu0
        %v1756 = vadd.f32 %v1513, %v1755
        %v1757 = vpop.f32.mrb[0].mxu0
        %v1758 = vadd.f32 %v1515, %v1757
        %v1759 = vpop.f32.mrb[0].mxu0
        %v1760 = vadd.f32 %v1517, %v1759
        %1761 = vdwg.mxu0
        %v1762 = vld [vmem:[%s914 + $0x4] sm:$0xe]
        %v1763 = vld [vmem:[%s914 + $0x8] sm:$0xf]
        %v1764 = vld [vmem:[%s914 + $0xc] sm:$0xf]
        %v1765 = vld [vmem:[%s914 + $0x10] sm:$0xf]
        %v1766 = vld [vmem:[%s914 + $0x14] sm:$0xf]
        %v1767 = vld [vmem:[%s914 + $0x18] sm:$0xf]
        %v1768 = vld [vmem:[%s914 + $0x1c] sm:$0xf]
        %v1769 = vld [vmem:[%s914 + $0x20] sm:$0xf]
        %v1770 = vld [vmem:[%s914 + $0x24] sm:$0xf]
        %v1771 = vld [vmem:[%s914 + $0x28] sm:$0xf]
        %v1772 = vld [vmem:[%s914 + $0x2c] sm:$0x3]
        %v1784 = vunpack.c.l.b16 %v1762
        %v1785 = vunpack.c.l.b16 %v1763
        %v1786 = vunpack.c.l.b16 %v1764
        %v1787 = vunpack.c.l.b16 %v1765
        %v1788 = vunpack.c.l.b16 %v1766
        %v1789 = vunpack.c.l.b16 %v1767
        %v1790 = vunpack.c.l.b16 %v1768
        %v1791 = vunpack.c.l.b16 %v1769
        %v1792 = vunpack.c.l.b16 %v1770
        %v1793 = vunpack.c.l.b16 %v1771
        %v1794 = vunpack.c.l.b16 %v1772
        %v1795 = vpack.c.b16 %v1785, %v1784
        %v1796 = vpack.c.b16 %v1787, %v1786
        %v1797 = vpack.c.b16 %v1789, %v1788
        %v1798 = vpack.c.b16 %v1791, %v1790
        %v1799 = vpack.c.b16 %v1793, %v1792
        %v1800 = vpack.c.b16 %v1794, %v1794
        %vm1801 = vsmask.f32 6400
        %v1803 = vshrl.u32 %v1795, 16
        %v1805 = vrot.slane %v1803, 1
        %v1806 = vshll.u32 %v1795, 16
        %v1808 = vrot.slane %v1806, 2
        %v1809 = vor.u32 %v1805, %v1808
        %v1811 = vshrl.u32 %v1796, 16
        %v1813 = vrot.slane %v1811, 1
        %v1814 = vshll.u32 %v1796, 16
        %v1816 = vrot.slane %v1814, 2
        %v1817 = vor.u32 %v1813, %v1816
        %v1818 = vsel %vm1801, %v1809, %v1817
        %v1820 = vshrl.u32 %v1797, 16
        %v1822 = vrot.slane %v1820, 1
        %v1823 = vshll.u32 %v1797, 16
        %v1825 = vrot.slane %v1823, 2
        %v1826 = vor.u32 %v1822, %v1825
        %v1827 = vsel %vm1801, %v1817, %v1826
        %v1829 = vshrl.u32 %v1798, 16
        %v1831 = vrot.slane %v1829, 1
        %v1832 = vshll.u32 %v1798, 16
        %v1834 = vrot.slane %v1832, 2
        %v1835 = vor.u32 %v1831, %v1834
        %v1836 = vsel %vm1801, %v1826, %v1835
        %v1838 = vshrl.u32 %v1799, 16
        %v1840 = vrot.slane %v1838, 1
        %v1841 = vshll.u32 %v1799, 16
        %v1843 = vrot.slane %v1841, 2
        %v1844 = vor.u32 %v1840, %v1843
        %v1845 = vsel %vm1801, %v1835, %v1844
        %v1847 = vshrl.u32 %v1800, 16
        %v1849 = vrot.slane %v1847, 1
        %v1850 = vshll.u32 %v1800, 16
        %v1852 = vrot.slane %v1850, 2
        %v1853 = vor.u32 %v1849, %v1852
        %v1854 = vsel %vm1801, %v1844, %v1853
        %1860 = vst [vmem:[#allocation2] sm:$0xff] %v1818
        %1861 = vst [vmem:[#allocation2 + $0x10] sm:$0xff] %v1827
        %1862 = vst [vmem:[#allocation2 + $0x20] sm:$0xff] %v1836
        %1863 = vst [vmem:[#allocation2 + $0x30] sm:$0xff] %v1845
        %1864 = vst [vmem:[#allocation2 + $0x40] sm:$0xff] %v1854
        %v1865 = vld [vmem:[%s914 + $0x4] sm:$0xc]
        %v1866 = vld [vmem:[%s914 + $0x8] sm:$0xf]
        %v1867 = vld [vmem:[%s914 + $0xc] sm:$0xf]
        %v1868 = vld [vmem:[%s914 + $0x10] sm:$0xf]
        %v1869 = vld [vmem:[%s914 + $0x14] sm:$0xf]
        %v1870 = vld [vmem:[%s914 + $0x18] sm:$0xf]
        %v1871 = vld [vmem:[%s914 + $0x1c] sm:$0xf]
        %v1872 = vld [vmem:[%s914 + $0x20] sm:$0xf]
        %v1873 = vld [vmem:[%s914 + $0x24] sm:$0xf]
        %v1874 = vld [vmem:[%s914 + $0x28] sm:$0xf]
        %v1875 = vld [vmem:[%s914 + $0x2c] sm:$0x3]
        %v1887 = vunpack.c.l.b16 %v1865
        %v1888 = vunpack.c.l.b16 %v1866
        %v1889 = vunpack.c.l.b16 %v1867
        %v1890 = vunpack.c.l.b16 %v1868
        %v1891 = vunpack.c.l.b16 %v1869
        %v1892 = vunpack.c.l.b16 %v1870
        %v1893 = vunpack.c.l.b16 %v1871
        %v1894 = vunpack.c.l.b16 %v1872
        %v1895 = vunpack.c.l.b16 %v1873
        %v1896 = vunpack.c.l.b16 %v1874
        %v1897 = vunpack.c.l.b16 %v1875
        %v1898 = vpack.c.b16 %v1888, %v1887
        %v1899 = vpack.c.b16 %v1890, %v1889
        %v1900 = vpack.c.b16 %v1892, %v1891
        %v1901 = vpack.c.b16 %v1894, %v1893
        %v1902 = vpack.c.b16 %v1896, %v1895
        %v1903 = vpack.c.b16 %v1897, %v1897
        %vm1904 = vcmask 1045504
        %v1905 = vrot.slane %v1898, 2
        %v1906 = vrot.slane %v1899, 2
        %v1907 = vsel %vm1904, %v1905, %v1906
        %v1908 = vrot.slane %v1900, 2
        %v1909 = vsel %vm1904, %v1906, %v1908
        %v1910 = vrot.slane %v1901, 2
        %v1911 = vsel %vm1904, %v1908, %v1910
        %v1912 = vrot.slane %v1902, 2
        %v1913 = vsel %vm1904, %v1910, %v1912
        %v1914 = vrot.slane %v1903, 2
        %v1915 = vsel %vm1904, %v1912, %v1914
        %1921 = vst [vmem:[#allocation2 + $0x8] sm:$0xff] %v1907
        %1922 = vst [vmem:[#allocation2 + $0x18] sm:$0xff] %v1909
        %1923 = vst [vmem:[#allocation2 + $0x28] sm:$0xff] %v1911
        %1924 = vst [vmem:[#allocation2 + $0x38] sm:$0xff] %v1913
        %1925 = vst [vmem:[#allocation2 + $0x48] sm:$0xff] %v1915
        %v1926 = vld [vmem:[#allocation2] sm:$0xff]
        %v1927 = vld [vmem:[#allocation2 + $0x8] sm:$0xff]
        %v1928 = vld [vmem:[#allocation2 + $0x10] sm:$0xff]
        %v1929 = vld [vmem:[#allocation2 + $0x18] sm:$0xff]
        %v1930 = vld [vmem:[#allocation2 + $0x20] sm:$0xff]
        %v1931 = vld [vmem:[#allocation2 + $0x28] sm:$0xff]
        %v1932 = vld [vmem:[#allocation2 + $0x30] sm:$0xff]
        %v1933 = vld [vmem:[#allocation2 + $0x38] sm:$0xff]
        %v1934 = vld [vmem:[#allocation2 + $0x40] sm:$0xff]
        %v1935 = vld [vmem:[#allocation2 + $0x48] sm:$0xff]
        %s1936 = scalar_lea.vmem %s875, 512 [#allocation3]
        %v1937 = vld [vmem:[%s1936] sm:$0xff]
        %v1938 = vld [vmem:[%s1936 + $0x8] sm:$0xff]
        %v1939 = vld [vmem:[%s1936 + $0x10] sm:$0xff]
        %v1940 = vld [vmem:[%s1936 + $0x18] sm:$0xff]
        %v1941 = vld [vmem:[%s1936 + $0x20] sm:$0xff]
        %v1942 = vld [vmem:[%s1936 + $0x28] sm:$0xff]
        %v1943 = vld [vmem:[%s1936 + $0x30] sm:$0xff]
        %v1944 = vld [vmem:[%s1936 + $0x38] sm:$0xff]
        %v1945 = vld [vmem:[%s1936 + $0x40] sm:$0xff]
        %v1946 = vld [vmem:[%s1936 + $0x48] sm:$0xff]
        %v1947 = vld [vmem:[%s1936 + $0x50] sm:$0xff]
        %v1948 = vld [vmem:[%s1936 + $0x58] sm:$0xff]
        %v1949 = vld [vmem:[%s1936 + $0x60] sm:$0xff]
        %v1950 = vld [vmem:[%s1936 + $0x68] sm:$0xff]
        %v1951 = vld [vmem:[%s1936 + $0x70] sm:$0xff]
        %v1952 = vld [vmem:[%s1936 + $0x78] sm:$0xff]
        %v1953 = vld [vmem:[%s1936 + $0x80] sm:$0xff]
        %v1954 = vld [vmem:[%s1936 + $0x88] sm:$0xff]
        %v1955 = vld [vmem:[%s1936 + $0x90] sm:$0xff]
        %v1956 = vld [vmem:[%s1936 + $0x98] sm:$0xff]
        %v1957 = vld [vmem:[%s1936 + $0xa0] sm:$0xff]
        %v1958 = vld [vmem:[%s1936 + $0xa8] sm:$0xff]
        %v1959 = vld [vmem:[%s1936 + $0xb0] sm:$0xff]
        %v1960 = vld [vmem:[%s1936 + $0xb8] sm:$0xff]
        %v1961 = vld [vmem:[%s1936 + $0xc0] sm:$0xff]
        %v1962 = vld [vmem:[%s1936 + $0xc8] sm:$0xff]
        %v1963 = vld [vmem:[%s1936 + $0xd0] sm:$0xff]
        %v1964 = vld [vmem:[%s1936 + $0xd8] sm:$0xff]
        %v1965 = vld [vmem:[%s1936 + $0xe0] sm:$0xff]
        %v1966 = vld [vmem:[%s1936 + $0xe8] sm:$0xff]
        %v1967 = vld [vmem:[%s1936 + $0xf0] sm:$0xff]
        %v1968 = vld [vmem:[%s1936 + $0xf8] sm:$0xff]
        %v2001 = vunpack.c.l.b16 %v1937
        %v2002 = vunpack.c.h.b16 %v1937
        %v2003 = vunpack.c.l.b16 %v1938
        %v2004 = vunpack.c.h.b16 %v1938
        %v2005 = vunpack.c.l.b16 %v1939
        %v2006 = vunpack.c.h.b16 %v1939
        %v2007 = vunpack.c.l.b16 %v1940
        %v2008 = vunpack.c.h.b16 %v1940
        %v2009 = vunpack.c.l.b16 %v1941
        %v2010 = vunpack.c.h.b16 %v1941
        %v2011 = vunpack.c.l.b16 %v1942
        %v2012 = vunpack.c.h.b16 %v1942
        %v2013 = vunpack.c.l.b16 %v1943
        %v2014 = vunpack.c.h.b16 %v1943
        %v2015 = vunpack.c.l.b16 %v1944
        %v2016 = vunpack.c.h.b16 %v1944
        %v2017 = vunpack.c.l.b16 %v1945
        %v2018 = vunpack.c.h.b16 %v1945
        %v2019 = vunpack.c.l.b16 %v1946
        %v2020 = vunpack.c.h.b16 %v1946
        %v2021 = vunpack.c.l.b16 %v1947
        %v2022 = vunpack.c.h.b16 %v1947
        %v2023 = vunpack.c.l.b16 %v1948
        %v2024 = vunpack.c.h.b16 %v1948
        %v2025 = vunpack.c.l.b16 %v1949
        %v2026 = vunpack.c.h.b16 %v1949
        %v2027 = vunpack.c.l.b16 %v1950
        %v2028 = vunpack.c.h.b16 %v1950
        %v2029 = vunpack.c.l.b16 %v1951
        %v2030 = vunpack.c.h.b16 %v1951
        %v2031 = vunpack.c.l.b16 %v1952
        %v2032 = vunpack.c.h.b16 %v1952
        %v2033 = vunpack.c.l.b16 %v1953
        %v2034 = vunpack.c.h.b16 %v1953
        %v2035 = vunpack.c.l.b16 %v1954
        %v2036 = vunpack.c.h.b16 %v1954
        %v2037 = vunpack.c.l.b16 %v1955
        %v2038 = vunpack.c.h.b16 %v1955
        %v2039 = vunpack.c.l.b16 %v1956
        %v2040 = vunpack.c.h.b16 %v1956
        %v2041 = vunpack.c.l.b16 %v1957
        %v2042 = vunpack.c.h.b16 %v1957
        %v2043 = vunpack.c.l.b16 %v1958
        %v2044 = vunpack.c.h.b16 %v1958
        %v2045 = vunpack.c.l.b16 %v1959
        %v2046 = vunpack.c.h.b16 %v1959
        %v2047 = vunpack.c.l.b16 %v1960
        %v2048 = vunpack.c.h.b16 %v1960
        %v2049 = vunpack.c.l.b16 %v1961
        %v2050 = vunpack.c.h.b16 %v1961
        %v2051 = vunpack.c.l.b16 %v1962
        %v2052 = vunpack.c.h.b16 %v1962
        %v2053 = vunpack.c.l.b16 %v1963
        %v2054 = vunpack.c.h.b16 %v1963
        %v2055 = vunpack.c.l.b16 %v1964
        %v2056 = vunpack.c.h.b16 %v1964
        %v2057 = vunpack.c.l.b16 %v1965
        %v2058 = vunpack.c.h.b16 %v1965
        %v2059 = vunpack.c.l.b16 %v1966
        %v2060 = vunpack.c.h.b16 %v1966
        %v2061 = vunpack.c.l.b16 %v1967
        %v2062 = vunpack.c.h.b16 %v1967
        %v2063 = vunpack.c.l.b16 %v1968
        %v2064 = vunpack.c.h.b16 %v1968
        %v2065 = vpack.c.b16 %v2003, %v2001
        %v2066 = vpack.c.b16 %v2004, %v2002
        %v2067 = vpack.c.b16 %v2007, %v2005
        %v2068 = vpack.c.b16 %v2008, %v2006
        %v2069 = vpack.c.b16 %v2011, %v2009
        %v2070 = vpack.c.b16 %v2012, %v2010
        %v2071 = vpack.c.b16 %v2015, %v2013
        %v2072 = vpack.c.b16 %v2016, %v2014
        %v2073 = vpack.c.b16 %v2019, %v2017
        %v2074 = vpack.c.b16 %v2020, %v2018
        %v2075 = vpack.c.b16 %v2023, %v2021
        %v2076 = vpack.c.b16 %v2024, %v2022
        %v2077 = vpack.c.b16 %v2027, %v2025
        %v2078 = vpack.c.b16 %v2028, %v2026
        %v2079 = vpack.c.b16 %v2031, %v2029
        %v2080 = vpack.c.b16 %v2032, %v2030
        %v2081 = vpack.c.b16 %v2035, %v2033
        %v2082 = vpack.c.b16 %v2036, %v2034
        %v2083 = vpack.c.b16 %v2039, %v2037
        %v2084 = vpack.c.b16 %v2040, %v2038
        %v2085 = vpack.c.b16 %v2043, %v2041
        %v2086 = vpack.c.b16 %v2044, %v2042
        %v2087 = vpack.c.b16 %v2047, %v2045
        %v2088 = vpack.c.b16 %v2048, %v2046
        %v2089 = vpack.c.b16 %v2051, %v2049
        %v2090 = vpack.c.b16 %v2052, %v2050
        %v2091 = vpack.c.b16 %v2055, %v2053
        %v2092 = vpack.c.b16 %v2056, %v2054
        %v2093 = vpack.c.b16 %v2059, %v2057
        %v2094 = vpack.c.b16 %v2060, %v2058
        %v2095 = vpack.c.b16 %v2063, %v2061
        %v2096 = vpack.c.b16 %v2064, %v2062
        %2129 = vmatprep.subr.bf16.mxu0 %v2066
        %2130 = vmatpush1.bf16.msra.mxu0 %v2065
        %2131 = vmatprep.subr.bf16.mxu0 %v2068
        %2132 = vmatpush1.bf16.msra.mxu0 %v2067
        %2133 = vmatprep.subr.bf16.mxu0 %v2070
        %2134 = vmatpush1.bf16.msra.mxu0 %v2069
        %2135 = vmatprep.subr.bf16.mxu0 %v2072
        %2136 = vmatpush1.bf16.msra.mxu0 %v2071
        %2137 = vmatprep.subr.bf16.mxu0 %v2074
        %2138 = vmatpush1.bf16.msra.mxu0 %v2073
        %2139 = vmatprep.subr.bf16.mxu0 %v2076
        %2140 = vmatpush1.bf16.msra.mxu0 %v2075
        %2141 = vmatprep.subr.bf16.mxu0 %v2078
        %2142 = vmatpush1.bf16.msra.mxu0 %v2077
        %2143 = vmatprep.subr.bf16.mxu0 %v2080
        %2144 = vmatpush1.bf16.msra.mxu0 %v2079
        %2145 = vmatprep.subr.bf16.mxu0 %v2082
        %2146 = vmatpush1.bf16.msra.mxu0 %v2081
        %2147 = vmatprep.subr.bf16.mxu0 %v2084
        %2148 = vmatpush1.bf16.msra.mxu0 %v2083
        %2149 = vmatprep.subr.bf16.mxu0 %v2086
        %2150 = vmatpush1.bf16.msra.mxu0 %v2085
        %2151 = vmatprep.subr.bf16.mxu0 %v2088
        %2152 = vmatpush1.bf16.msra.mxu0 %v2087
        %2153 = vmatprep.subr.bf16.mxu0 %v2090
        %2154 = vmatpush1.bf16.msra.mxu0 %v2089
        %2155 = vmatprep.subr.bf16.mxu0 %v2092
        %2156 = vmatpush1.bf16.msra.mxu0 %v2091
        %2157 = vmatprep.subr.bf16.mxu0 %v2094
        %2158 = vmatpush1.bf16.msra.mxu0 %v2093
        %2159 = vmatprep.subr.bf16.mxu0 %v2096
        %2160 = vmatpush1.bf16.msra.mxu0 %v2095
        %2161 = vmatprep.mubr.bf16.mxu0 %v1927
        %2162 = vmatmul.mubr.bf16.gmra.mrb[0].mxu0 %v1926
        %v2163 = vpop.f32.mrb[0].mxu0
        %v2164 = vadd.f32 0.0, %v2163
        %v2165 = vpop.f32.mrb[0].mxu0
        %v2166 = vadd.f32 0.0, %v2165
        %v2167 = vpop.f32.mrb[0].mxu0
        %v2168 = vadd.f32 0.0, %v2167
        %v2169 = vpop.f32.mrb[0].mxu0
        %v2170 = vadd.f32 0.0, %v2169
        %2171 = vmatprep.mubr.bf16.mxu0 %v1929
        %2172 = vmatmul.mubr.bf16.gmra.mrb[0].mxu0 %v1928
        %v2173 = vpop.f32.mrb[0].mxu0
        %v2174 = vadd.f32 0.0, %v2173
        %v2175 = vpop.f32.mrb[0].mxu0
        %v2176 = vadd.f32 0.0, %v2175
        %v2177 = vpop.f32.mrb[0].mxu0
        %v2178 = vadd.f32 0.0, %v2177
        %v2179 = vpop.f32.mrb[0].mxu0
        %v2180 = vadd.f32 0.0, %v2179
        %2181 = vmatprep.mubr.bf16.mxu0 %v1931
        %2182 = vmatmul.mubr.bf16.gmra.mrb[0].mxu0 %v1930
        %v2183 = vpop.f32.mrb[0].mxu0
        %v2184 = vadd.f32 0.0, %v2183
        %v2185 = vpop.f32.mrb[0].mxu0
        %v2186 = vadd.f32 0.0, %v2185
        %v2187 = vpop.f32.mrb[0].mxu0
        %v2188 = vadd.f32 0.0, %v2187
        %v2189 = vpop.f32.mrb[0].mxu0
        %v2190 = vadd.f32 0.0, %v2189
        %2191 = vmatprep.mubr.bf16.mxu0 %v1933
        %2192 = vmatmul.mubr.bf16.gmra.mrb[0].mxu0 %v1932
        %v2193 = vpop.f32.mrb[0].mxu0
        %v2194 = vadd.f32 0.0, %v2193
        %v2195 = vpop.f32.mrb[0].mxu0
        %v2196 = vadd.f32 0.0, %v2195
        %v2197 = vpop.f32.mrb[0].mxu0
        %v2198 = vadd.f32 0.0, %v2197
        %v2199 = vpop.f32.mrb[0].mxu0
        %v2200 = vadd.f32 0.0, %v2199
        %2201 = vmatprep.mubr.bf16.mxu0 %v1935
        %2202 = vmatmul.mubr.bf16.gmra.mrb[0].mxu0 %v1934
        %v2203 = vpop.f32.mrb[0].mxu0
        %v2204 = vadd.f32 0.0, %v2203
        %v2205 = vpop.f32.mrb[0].mxu0
        %v2206 = vadd.f32 0.0, %v2205
        %v2207 = vpop.f32.mrb[0].mxu0
        %v2208 = vadd.f32 0.0, %v2207
        %v2209 = vpop.f32.mrb[0].mxu0
        %v2210 = vadd.f32 0.0, %v2209
        %2211 = vdwg.mxu0
        %v2212 = vadd.f32 %v1714, %v2164
        %v2213 = vadd.f32 %v1716, %v2166
        %v2214 = vadd.f32 %v1718, %v2168
        %v2215 = vadd.f32 %v1720, %v2170
        %v2216 = vadd.f32 %v1724, %v2174
        %v2217 = vadd.f32 %v1726, %v2176
        %v2218 = vadd.f32 %v1728, %v2178
        %v2219 = vadd.f32 %v1730, %v2180
        %v2220 = vadd.f32 %v1734, %v2184
        %v2221 = vadd.f32 %v1736, %v2186
        %v2222 = vadd.f32 %v1738, %v2188
        %v2223 = vadd.f32 %v1740, %v2190
        %v2224 = vadd.f32 %v1744, %v2194
        %v2225 = vadd.f32 %v1746, %v2196
        %v2226 = vadd.f32 %v1748, %v2198
        %v2227 = vadd.f32 %v1750, %v2200
        %v2228 = vadd.f32 %v1754, %v2204
        %v2229 = vadd.f32 %v1756, %v2206
        %v2230 = vadd.f32 %v1758, %v2208
        %v2231 = vadd.f32 %v1760, %v2210
        %v2232 = vld [vmem:[%s914 + $0x8] sm:$0xc]
        %v2233 = vld [vmem:[%s914 + $0xc] sm:$0xf]
        %v2234 = vld [vmem:[%s914 + $0x10] sm:$0xf]
        %v2235 = vld [vmem:[%s914 + $0x14] sm:$0xf]
        %v2236 = vld [vmem:[%s914 + $0x18] sm:$0xf]
        %v2237 = vld [vmem:[%s914 + $0x1c] sm:$0xf]
        %v2238 = vld [vmem:[%s914 + $0x20] sm:$0xf]
        %v2239 = vld [vmem:[%s914 + $0x24] sm:$0xf]
        %v2240 = vld [vmem:[%s914 + $0x28] sm:$0xf]
        %v2241 = vld [vmem:[%s914 + $0x2c] sm:$0xf]
        %v2242 = vld [vmem:[%s914 + $0x30] sm:$0x3]
        %v2254 = vunpack.c.l.b16 %v2232
        %v2255 = vunpack.c.l.b16 %v2233
        %v2256 = vunpack.c.l.b16 %v2234
        %v2257 = vunpack.c.l.b16 %v2235
        %v2258 = vunpack.c.l.b16 %v2236
        %v2259 = vunpack.c.l.b16 %v2237
        %v2260 = vunpack.c.l.b16 %v2238
        %v2261 = vunpack.c.l.b16 %v2239
        %v2262 = vunpack.c.l.b16 %v2240
        %v2263 = vunpack.c.l.b16 %v2241
        %v2264 = vunpack.c.l.b16 %v2242
        %v2265 = vpack.c.b16 %v2255, %v2254
        %v2266 = vpack.c.b16 %v2257, %v2256
        %v2267 = vpack.c.b16 %v2259, %v2258
        %v2268 = vpack.c.b16 %v2261, %v2260
        %v2269 = vpack.c.b16 %v2263, %v2262
        %v2270 = vpack.c.b16 %v2264, %v2264
        %v2271 = vrot.slane %v2265, 2
        %v2272 = vrot.slane %v2266, 2
        %v2273 = vsel %vm1904, %v2271, %v2272
        %v2274 = vrot.slane %v2267, 2
        %v2275 = vsel %vm1904, %v2272, %v2274
        %v2276 = vrot.slane %v2268, 2
        %v2277 = vsel %vm1904, %v2274, %v2276
        %v2278 = vrot.slane %v2269, 2
        %v2279 = vsel %vm1904, %v2276, %v2278
        %v2280 = vrot.slane %v2270, 2
        %v2281 = vsel %vm1904, %v2278, %v2280
        %2287 = vst [vmem:[#allocation2] sm:$0xff] %v2273
        %2288 = vst [vmem:[#allocation2 + $0x10] sm:$0xff] %v2275
        %2289 = vst [vmem:[#allocation2 + $0x20] sm:$0xff] %v2277
        %2290 = vst [vmem:[#allocation2 + $0x30] sm:$0xff] %v2279
        %2291 = vst [vmem:[#allocation2 + $0x40] sm:$0xff] %v2281
        %v2292 = vld [vmem:[%s914 + $0x8] sm:$0xc]
        %v2293 = vld [vmem:[%s914 + $0xc] sm:$0xf]
        %v2294 = vld [vmem:[%s914 + $0x10] sm:$0xf]
        %v2295 = vld [vmem:[%s914 + $0x14] sm:$0xf]
        %v2296 = vld [vmem:[%s914 + $0x18] sm:$0xf]
        %v2297 = vld [vmem:[%s914 + $0x1c] sm:$0xf]
        %v2298 = vld [vmem:[%s914 + $0x20] sm:$0xf]
        %v2299 = vld [vmem:[%s914 + $0x24] sm:$0xf]
        %v2300 = vld [vmem:[%s914 + $0x28] sm:$0xf]
        %v2301 = vld [vmem:[%s914 + $0x2c] sm:$0xf]
        %v2302 = vld [vmem:[%s914 + $0x30] sm:$0x7]
        %v2314 = vunpack.c.l.b16 %v2292
        %v2315 = vunpack.c.l.b16 %v2293
        %v2316 = vunpack.c.l.b16 %v2294
        %v2317 = vunpack.c.l.b16 %v2295
        %v2318 = vunpack.c.l.b16 %v2296
        %v2319 = vunpack.c.l.b16 %v2297
        %v2320 = vunpack.c.l.b16 %v2298
        %v2321 = vunpack.c.l.b16 %v2299
        %v2322 = vunpack.c.l.b16 %v2300
        %v2323 = vunpack.c.l.b16 %v2301
        %v2324 = vunpack.c.l.b16 %v2302
        %v2325 = vpack.c.b16 %v2315, %v2314
        %v2326 = vpack.c.b16 %v2317, %v2316
        %v2327 = vpack.c.b16 %v2319, %v2318
        %v2328 = vpack.c.b16 %v2321, %v2320
        %v2329 = vpack.c.b16 %v2323, %v2322
        %v2330 = vpack.c.b16 %v2324, %v2324
        %vm2331 = vsmask.f32 5376
        %v2333 = vshrl.u32 %v2325, 16
        %v2335 = vrot.slane %v2333, 2
        %v2336 = vshll.u32 %v2325, 16
        %v2338 = vrot.slane %v2336, 3
        %v2339 = vor.u32 %v2335, %v2338
        %v2341 = vshrl.u32 %v2326, 16
        %v2343 = vrot.slane %v2341, 2
        %v2344 = vshll.u32 %v2326, 16
        %v2346 = vrot.slane %v2344, 3
        %v2347 = vor.u32 %v2343, %v2346
        %v2348 = vsel %vm2331, %v2339, %v2347
        %v2350 = vshrl.u32 %v2327, 16
        %v2352 = vrot.slane %v2350, 2
        %v2353 = vshll.u32 %v2327, 16
        %v2355 = vrot.slane %v2353, 3
        %v2356 = vor.u32 %v2352, %v2355
        %v2357 = vsel %vm2331, %v2347, %v2356
        %v2359 = vshrl.u32 %v2328, 16
        %v2361 = vrot.slane %v2359, 2
        %v2362 = vshll.u32 %v2328, 16
        %v2364 = vrot.slane %v2362, 3
        %v2365 = vor.u32 %v2361, %v2364
        %v2366 = vsel %vm2331, %v2356, %v2365
        %v2368 = vshrl.u32 %v2329, 16
        %v2370 = vrot.slane %v2368, 2
        %v2371 = vshll.u32 %v2329, 16
        %v2373 = vrot.slane %v2371, 3
        %v2374 = vor.u32 %v2370, %v2373
        %v2375 = vsel %vm2331, %v2365, %v2374
        %v2377 = vshrl.u32 %v2330, 16
        %v2379 = vrot.slane %v2377, 2
        %v2380 = vshll.u32 %v2330, 16
        %v2382 = vrot.slane %v2380, 3
        %v2383 = vor.u32 %v2379, %v2382
        %v2384 = vsel %vm2331, %v2374, %v2383
        %2390 = vst [vmem:[#allocation2 + $0x8] sm:$0xff] %v2348
        %2391 = vst [vmem:[#allocation2 + $0x18] sm:$0xff] %v2357
        %2392 = vst [vmem:[#allocation2 + $0x28] sm:$0xff] %v2366
        %2393 = vst [vmem:[#allocation2 + $0x38] sm:$0xff] %v2375
        %2394 = vst [vmem:[#allocation2 + $0x48] sm:$0xff] %v2384
        %v2395 = vld [vmem:[#allocation2] sm:$0xff]
        %v2396 = vld [vmem:[#allocation2 + $0x8] sm:$0xff]
        %v2397 = vld [vmem:[#allocation2 + $0x10] sm:$0xff]
        %v2398 = vld [vmem:[#allocation2 + $0x18] sm:$0xff]
        %v2399 = vld [vmem:[#allocation2 + $0x20] sm:$0xff]
        %v2400 = vld [vmem:[#allocation2 + $0x28] sm:$0xff]
        %v2401 = vld [vmem:[#allocation2 + $0x30] sm:$0xff]
        %v2402 = vld [vmem:[#allocation2 + $0x38] sm:$0xff]
        %v2403 = vld [vmem:[#allocation2 + $0x40] sm:$0xff]
        %v2404 = vld [vmem:[#allocation2 + $0x48] sm:$0xff]
        %s2405 = scalar_lea.vmem %s875, 768 [#allocation3]
        %v2406 = vld [vmem:[%s2405] sm:$0xff]
        %v2407 = vld [vmem:[%s2405 + $0x8] sm:$0xff]
        %v2408 = vld [vmem:[%s2405 + $0x10] sm:$0xff]
        %v2409 = vld [vmem:[%s2405 + $0x18] sm:$0xff]
        %v2410 = vld [vmem:[%s2405 + $0x20] sm:$0xff]
        %v2411 = vld [vmem:[%s2405 + $0x28] sm:$0xff]
        %v2412 = vld [vmem:[%s2405 + $0x30] sm:$0xff]
        %v2413 = vld [vmem:[%s2405 + $0x38] sm:$0xff]
        %v2414 = vld [vmem:[%s2405 + $0x40] sm:$0xff]
        %v2415 = vld [vmem:[%s2405 + $0x48] sm:$0xff]
        %v2416 = vld [vmem:[%s2405 + $0x50] sm:$0xff]
        %v2417 = vld [vmem:[%s2405 + $0x58] sm:$0xff]
        %v2418 = vld [vmem:[%s2405 + $0x60] sm:$0xff]
        %v2419 = vld [vmem:[%s2405 + $0x68] sm:$0xff]
        %v2420 = vld [vmem:[%s2405 + $0x70] sm:$0xff]
        %v2421 = vld [vmem:[%s2405 + $0x78] sm:$0xff]
        %v2422 = vld [vmem:[%s2405 + $0x80] sm:$0xff]
        %v2423 = vld [vmem:[%s2405 + $0x88] sm:$0xff]
        %v2424 = vld [vmem:[%s2405 + $0x90] sm:$0xff]
        %v2425 = vld [vmem:[%s2405 + $0x98] sm:$0xff]
        %v2426 = vld [vmem:[%s2405 + $0xa0] sm:$0xff]
        %v2427 = vld [vmem:[%s2405 + $0xa8] sm:$0xff]
        %v2428 = vld [vmem:[%s2405 + $0xb0] sm:$0xff]
        %v2429 = vld [vmem:[%s2405 + $0xb8] sm:$0xff]
        %v2430 = vld [vmem:[%s2405 + $0xc0] sm:$0xff]
        %v2431 = vld [vmem:[%s2405 + $0xc8] sm:$0xff]
        %v2432 = vld [vmem:[%s2405 + $0xd0] sm:$0xff]
        %v2433 = vld [vmem:[%s2405 + $0xd8] sm:$0xff]
        %v2434 = vld [vmem:[%s2405 + $0xe0] sm:$0xff]
        %v2435 = vld [vmem:[%s2405 + $0xe8] sm:$0xff]
        %v2436 = vld [vmem:[%s2405 + $0xf0] sm:$0xff]
        %v2437 = vld [vmem:[%s2405 + $0xf8] sm:$0xff]
        %v2470 = vunpack.c.l.b16 %v2406
        %v2471 = vunpack.c.h.b16 %v2406
        %v2472 = vunpack.c.l.b16 %v2407
        %v2473 = vunpack.c.h.b16 %v2407
        %v2474 = vunpack.c.l.b16 %v2408
        %v2475 = vunpack.c.h.b16 %v2408
        %v2476 = vunpack.c.l.b16 %v2409
        %v2477 = vunpack.c.h.b16 %v2409
        %v2478 = vunpack.c.l.b16 %v2410
        %v2479 = vunpack.c.h.b16 %v2410
        %v2480 = vunpack.c.l.b16 %v2411
        %v2481 = vunpack.c.h.b16 %v2411
        %v2482 = vunpack.c.l.b16 %v2412
        %v2483 = vunpack.c.h.b16 %v2412
        %v2484 = vunpack.c.l.b16 %v2413
        %v2485 = vunpack.c.h.b16 %v2413
        %v2486 = vunpack.c.l.b16 %v2414
        %v2487 = vunpack.c.h.b16 %v2414
        %v2488 = vunpack.c.l.b16 %v2415
        %v2489 = vunpack.c.h.b16 %v2415
        %v2490 = vunpack.c.l.b16 %v2416
        %v2491 = vunpack.c.h.b16 %v2416
        %v2492 = vunpack.c.l.b16 %v2417
        %v2493 = vunpack.c.h.b16 %v2417
        %v2494 = vunpack.c.l.b16 %v2418
        %v2495 = vunpack.c.h.b16 %v2418
        %v2496 = vunpack.c.l.b16 %v2419
        %v2497 = vunpack.c.h.b16 %v2419
        %v2498 = vunpack.c.l.b16 %v2420
        %v2499 = vunpack.c.h.b16 %v2420
        %v2500 = vunpack.c.l.b16 %v2421
        %v2501 = vunpack.c.h.b16 %v2421
        %v2502 = vunpack.c.l.b16 %v2422
        %v2503 = vunpack.c.h.b16 %v2422
        %v2504 = vunpack.c.l.b16 %v2423
        %v2505 = vunpack.c.h.b16 %v2423
        %v2506 = vunpack.c.l.b16 %v2424
        %v2507 = vunpack.c.h.b16 %v2424
        %v2508 = vunpack.c.l.b16 %v2425
        %v2509 = vunpack.c.h.b16 %v2425
        %v2510 = vunpack.c.l.b16 %v2426
        %v2511 = vunpack.c.h.b16 %v2426
        %v2512 = vunpack.c.l.b16 %v2427
        %v2513 = vunpack.c.h.b16 %v2427
        %v2514 = vunpack.c.l.b16 %v2428
        %v2515 = vunpack.c.h.b16 %v2428
        %v2516 = vunpack.c.l.b16 %v2429
        %v2517 = vunpack.c.h.b16 %v2429
        %v2518 = vunpack.c.l.b16 %v2430
        %v2519 = vunpack.c.h.b16 %v2430
        %v2520 = vunpack.c.l.b16 %v2431
        %v2521 = vunpack.c.h.b16 %v2431
        %v2522 = vunpack.c.l.b16 %v2432
        %v2523 = vunpack.c.h.b16 %v2432
        %v2524 = vunpack.c.l.b16 %v2433
        %v2525 = vunpack.c.h.b16 %v2433
        %v2526 = vunpack.c.l.b16 %v2434
        %v2527 = vunpack.c.h.b16 %v2434
        %v2528 = vunpack.c.l.b16 %v2435
        %v2529 = vunpack.c.h.b16 %v2435
        %v2530 = vunpack.c.l.b16 %v2436
        %v2531 = vunpack.c.h.b16 %v2436
        %v2532 = vunpack.c.l.b16 %v2437
        %v2533 = vunpack.c.h.b16 %v2437
        %v2534 = vpack.c.b16 %v2472, %v2470
        %v2535 = vpack.c.b16 %v2473, %v2471
        %v2536 = vpack.c.b16 %v2476, %v2474
        %v2537 = vpack.c.b16 %v2477, %v2475
        %v2538 = vpack.c.b16 %v2480, %v2478
        %v2539 = vpack.c.b16 %v2481, %v2479
        %v2540 = vpack.c.b16 %v2484, %v2482
        %v2541 = vpack.c.b16 %v2485, %v2483
        %v2542 = vpack.c.b16 %v2488, %v2486
        %v2543 = vpack.c.b16 %v2489, %v2487
        %v2544 = vpack.c.b16 %v2492, %v2490
        %v2545 = vpack.c.b16 %v2493, %v2491
        %v2546 = vpack.c.b16 %v2496, %v2494
        %v2547 = vpack.c.b16 %v2497, %v2495
        %v2548 = vpack.c.b16 %v2500, %v2498
        %v2549 = vpack.c.b16 %v2501, %v2499
        %v2550 = vpack.c.b16 %v2504, %v2502
        %v2551 = vpack.c.b16 %v2505, %v2503
        %v2552 = vpack.c.b16 %v2508, %v2506
        %v2553 = vpack.c.b16 %v2509, %v2507
        %v2554 = vpack.c.b16 %v2512, %v2510
        %v2555 = vpack.c.b16 %v2513, %v2511
        %v2556 = vpack.c.b16 %v2516, %v2514
        %v2557 = vpack.c.b16 %v2517, %v2515
        %v2558 = vpack.c.b16 %v2520, %v2518
        %v2559 = vpack.c.b16 %v2521, %v2519
        %v2560 = vpack.c.b16 %v2524, %v2522
        %v2561 = vpack.c.b16 %v2525, %v2523
        %v2562 = vpack.c.b16 %v2528, %v2526
        %v2563 = vpack.c.b16 %v2529, %v2527
        %v2564 = vpack.c.b16 %v2532, %v2530
        %v2565 = vpack.c.b16 %v2533, %v2531
        %2598 = vmatprep.subr.bf16.mxu0 %v2535
        %2599 = vmatpush1.bf16.msra.mxu0 %v2534
        %2600 = vmatprep.subr.bf16.mxu0 %v2537
        %2601 = vmatpush1.bf16.msra.mxu0 %v2536
        %2602 = vmatprep.subr.bf16.mxu0 %v2539
        %2603 = vmatpush1.bf16.msra.mxu0 %v2538
        %2604 = vmatprep.subr.bf16.mxu0 %v2541
        %2605 = vmatpush1.bf16.msra.mxu0 %v2540
        %2606 = vmatprep.subr.bf16.mxu0 %v2543
        %2607 = vmatpush1.bf16.msra.mxu0 %v2542
        %2608 = vmatprep.subr.bf16.mxu0 %v2545
        %2609 = vmatpush1.bf16.msra.mxu0 %v2544
        %2610 = vmatprep.subr.bf16.mxu0 %v2547
        %2611 = vmatpush1.bf16.msra.mxu0 %v2546
        %2612 = vmatprep.subr.bf16.mxu0 %v2549
        %2613 = vmatpush1.bf16.msra.mxu0 %v2548
        %2614 = vmatprep.subr.bf16.mxu0 %v2551
        %2615 = vmatpush1.bf16.msra.mxu0 %v2550
        %2616 = vmatprep.subr.bf16.mxu0 %v2553
        %2617 = vmatpush1.bf16.msra.mxu0 %v2552
        %2618 = vmatprep.subr.bf16.mxu0 %v2555
        %2619 = vmatpush1.bf16.msra.mxu0 %v2554
        %2620 = vmatprep.subr.bf16.mxu0 %v2557
        %2621 = vmatpush1.bf16.msra.mxu0 %v2556
        %2622 = vmatprep.subr.bf16.mxu0 %v2559
        %2623 = vmatpush1.bf16.msra.mxu0 %v2558
        %2624 = vmatprep.subr.bf16.mxu0 %v2561
        %2625 = vmatpush1.bf16.msra.mxu0 %v2560
        %2626 = vmatprep.subr.bf16.mxu0 %v2563
        %2627 = vmatpush1.bf16.msra.mxu0 %v2562
        %2628 = vmatprep.subr.bf16.mxu0 %v2565
        %2629 = vmatpush1.bf16.msra.mxu0 %v2564
        %2630 = vmatprep.mubr.bf16.mxu0 %v2396
        %2631 = vmatmul.mubr.bf16.gmra.mrb[0].mxu0 %v2395
        %v2632 = vpop.f32.mrb[0].mxu0
        %v2633 = vadd.f32 0.0, %v2632
        %v2634 = vpop.f32.mrb[0].mxu0
        %v2635 = vadd.f32 0.0, %v2634
        %v2636 = vpop.f32.mrb[0].mxu0
        %v2637 = vadd.f32 0.0, %v2636
        %v2638 = vpop.f32.mrb[0].mxu0
        %v2639 = vadd.f32 0.0, %v2638
        %2640 = vmatprep.mubr.bf16.mxu0 %v2398
        %2641 = vmatmul.mubr.bf16.gmra.mrb[0].mxu0 %v2397
        %v2642 = vpop.f32.mrb[0].mxu0
        %v2643 = vadd.f32 0.0, %v2642
        %v2644 = vpop.f32.mrb[0].mxu0
        %v2645 = vadd.f32 0.0, %v2644
        %v2646 = vpop.f32.mrb[0].mxu0
        %v2647 = vadd.f32 0.0, %v2646
        %v2648 = vpop.f32.mrb[0].mxu0
        %v2649 = vadd.f32 0.0, %v2648
        %2650 = vmatprep.mubr.bf16.mxu0 %v2400
        %2651 = vmatmul.mubr.bf16.gmra.mrb[0].mxu0 %v2399
        %v2652 = vpop.f32.mrb[0].mxu0
        %v2653 = vadd.f32 0.0, %v2652
        %v2654 = vpop.f32.mrb[0].mxu0
        %v2655 = vadd.f32 0.0, %v2654
        %v2656 = vpop.f32.mrb[0].mxu0
        %v2657 = vadd.f32 0.0, %v2656
        %v2658 = vpop.f32.mrb[0].mxu0
        %v2659 = vadd.f32 0.0, %v2658
        %2660 = vmatprep.mubr.bf16.mxu0 %v2402
        %2661 = vmatmul.mubr.bf16.gmra.mrb[0].mxu0 %v2401
        %v2662 = vpop.f32.mrb[0].mxu0
        %v2663 = vadd.f32 0.0, %v2662
        %v2664 = vpop.f32.mrb[0].mxu0
        %v2665 = vadd.f32 0.0, %v2664
        %v2666 = vpop.f32.mrb[0].mxu0
        %v2667 = vadd.f32 0.0, %v2666
        %v2668 = vpop.f32.mrb[0].mxu0
        %v2669 = vadd.f32 0.0, %v2668
        %2670 = vmatprep.mubr.bf16.mxu0 %v2404
        %2671 = vmatmul.mubr.bf16.gmra.mrb[0].mxu0 %v2403
        %v2672 = vpop.f32.mrb[0].mxu0
        %v2673 = vadd.f32 0.0, %v2672
        %v2674 = vpop.f32.mrb[0].mxu0
        %v2675 = vadd.f32 0.0, %v2674
        %v2676 = vpop.f32.mrb[0].mxu0
        %v2677 = vadd.f32 0.0, %v2676
        %v2678 = vpop.f32.mrb[0].mxu0
        %v2679 = vadd.f32 0.0, %v2678
        %2680 = vdwg.mxu0
        %v2681 = vadd.f32 %v2212, %v2633
        %v2682 = vadd.f32 %v2213, %v2635
        %v2683 = vadd.f32 %v2214, %v2637
        %v2684 = vadd.f32 %v2215, %v2639
        %v2685 = vadd.f32 %v2216, %v2643
        %v2686 = vadd.f32 %v2217, %v2645
        %v2687 = vadd.f32 %v2218, %v2647
        %v2688 = vadd.f32 %v2219, %v2649
        %v2689 = vadd.f32 %v2220, %v2653
        %v2690 = vadd.f32 %v2221, %v2655
        %v2691 = vadd.f32 %v2222, %v2657
        %v2692 = vadd.f32 %v2223, %v2659
        %v2693 = vadd.f32 %v2224, %v2663
        %v2694 = vadd.f32 %v2225, %v2665
        %v2695 = vadd.f32 %v2226, %v2667
        %v2696 = vadd.f32 %v2227, %v2669
        %v2697 = vadd.f32 %v2228, %v2673
        %v2698 = vadd.f32 %v2229, %v2675
        %v2699 = vadd.f32 %v2230, %v2677
        %v2700 = vadd.f32 %v2231, %v2679
        %v2701 = vld [vmem:[%s914 + $0x8] sm:$0x8]
        %v2702 = vld [vmem:[%s914 + $0xc] sm:$0xf]
        %v2703 = vld [vmem:[%s914 + $0x10] sm:$0xf]
        %v2704 = vld [vmem:[%s914 + $0x14] sm:$0xf]
        %v2705 = vld [vmem:[%s914 + $0x18] sm:$0xf]
        %v2706 = vld [vmem:[%s914 + $0x1c] sm:$0xf]
        %v2707 = vld [vmem:[%s914 + $0x20] sm:$0xf]
        %v2708 = vld [vmem:[%s914 + $0x24] sm:$0xf]
        %v2709 = vld [vmem:[%s914 + $0x28] sm:$0xf]
        %v2710 = vld [vmem:[%s914 + $0x2c] sm:$0xf]
        %v2711 = vld [vmem:[%s914 + $0x30] sm:$0x7]
        %v2723 = vunpack.c.l.b16 %v2701
        %v2724 = vunpack.c.l.b16 %v2702
        %v2725 = vunpack.c.l.b16 %v2703
        %v2726 = vunpack.c.l.b16 %v2704
        %v2727 = vunpack.c.l.b16 %v2705
        %v2728 = vunpack.c.l.b16 %v2706
        %v2729 = vunpack.c.l.b16 %v2707
        %v2730 = vunpack.c.l.b16 %v2708
        %v2731 = vunpack.c.l.b16 %v2709
        %v2732 = vunpack.c.l.b16 %v2710
        %v2733 = vunpack.c.l.b16 %v2711
        %v2734 = vpack.c.b16 %v2724, %v2723
        %v2735 = vpack.c.b16 %v2726, %v2725
        %v2736 = vpack.c.b16 %v2728, %v2727
        %v2737 = vpack.c.b16 %v2730, %v2729
        %v2738 = vpack.c.b16 %v2732, %v2731
        %v2739 = vpack.c.b16 %v2733, %v2733
        %vm2740 = vcmask 1044480
        %v2741 = vrot.slane %v2734, 3
        %v2742 = vrot.slane %v2735, 3
        %v2743 = vsel %vm2740, %v2741, %v2742
        %v2744 = vrot.slane %v2736, 3
        %v2745 = vsel %vm2740, %v2742, %v2744
        %v2746 = vrot.slane %v2737, 3
        %v2747 = vsel %vm2740, %v2744, %v2746
        %v2748 = vrot.slane %v2738, 3
        %v2749 = vsel %vm2740, %v2746, %v2748
        %v2750 = vrot.slane %v2739, 3
        %v2751 = vsel %vm2740, %v2748, %v2750
        %2757 = vst [vmem:[#allocation2] sm:$0xff] %v2743
        %2758 = vst [vmem:[#allocation2 + $0x10] sm:$0xff] %v2745
        %2759 = vst [vmem:[#allocation2 + $0x20] sm:$0xff] %v2747
        %2760 = vst [vmem:[#allocation2 + $0x30] sm:$0xff] %v2749
        %2761 = vst [vmem:[#allocation2 + $0x40] sm:$0xff] %v2751
        %2762 = vst [vmem:[#allocation2 + $0x8] sm:$0xff] 0
        %2763 = vst [vmem:[#allocation2 + $0x18] sm:$0xff] 0
        %2764 = vst [vmem:[#allocation2 + $0x28] sm:$0xff] 0
        %2765 = vst [vmem:[#allocation2 + $0x38] sm:$0xff] 0
        %2766 = vst [vmem:[#allocation2 + $0x48] sm:$0xff] 0
        %v2767 = vld [vmem:[#allocation2] sm:$0xff]
        %v2768 = vld [vmem:[#allocation2 + $0x8] sm:$0xff]
        %v2769 = vld [vmem:[#allocation2 + $0x10] sm:$0xff]
        %v2770 = vld [vmem:[#allocation2 + $0x18] sm:$0xff]
        %v2771 = vld [vmem:[#allocation2 + $0x20] sm:$0xff]
        %v2772 = vld [vmem:[#allocation2 + $0x28] sm:$0xff]
        %v2773 = vld [vmem:[#allocation2 + $0x30] sm:$0xff]
        %v2774 = vld [vmem:[#allocation2 + $0x38] sm:$0xff]
        %v2775 = vld [vmem:[#allocation2 + $0x40] sm:$0xff]
        %v2776 = vld [vmem:[#allocation2 + $0x48] sm:$0xff]
        %s2777 = scalar_lea.vmem %s875, 1024 [#allocation3]
        %v2778 = vld [vmem:[%s2777] sm:$0xff]
        %v2779 = vld [vmem:[%s2777 + $0x8] sm:$0xff]
        %v2780 = vld [vmem:[%s2777 + $0x10] sm:$0xff]
        %v2781 = vld [vmem:[%s2777 + $0x18] sm:$0xff]
        %v2782 = vld [vmem:[%s2777 + $0x20] sm:$0xff]
        %v2783 = vld [vmem:[%s2777 + $0x28] sm:$0xff]
        %v2784 = vld [vmem:[%s2777 + $0x30] sm:$0xff]
        %v2785 = vld [vmem:[%s2777 + $0x38] sm:$0xff]
        %v2786 = vld [vmem:[%s2777 + $0x40] sm:$0xff]
        %v2787 = vld [vmem:[%s2777 + $0x48] sm:$0xff]
        %v2788 = vld [vmem:[%s2777 + $0x50] sm:$0xff]
        %v2789 = vld [vmem:[%s2777 + $0x58] sm:$0xff]
        %v2790 = vld [vmem:[%s2777 + $0x60] sm:$0xff]
        %v2791 = vld [vmem:[%s2777 + $0x68] sm:$0xff]
        %v2792 = vld [vmem:[%s2777 + $0x70] sm:$0xff]
        %v2793 = vld [vmem:[%s2777 + $0x78] sm:$0xff]
        %v2794 = vld [vmem:[%s2777 + $0x80] sm:$0xff]
        %v2795 = vld [vmem:[%s2777 + $0x88] sm:$0xff]
        %v2796 = vld [vmem:[%s2777 + $0x90] sm:$0xff]
        %v2797 = vld [vmem:[%s2777 + $0x98] sm:$0xff]
        %v2798 = vld [vmem:[%s2777 + $0xa0] sm:$0xff]
        %v2799 = vld [vmem:[%s2777 + $0xa8] sm:$0xff]
        %v2800 = vld [vmem:[%s2777 + $0xb0] sm:$0xff]
        %v2801 = vld [vmem:[%s2777 + $0xb8] sm:$0xff]
        %v2802 = vld [vmem:[%s2777 + $0xc0] sm:$0xff]
        %v2803 = vld [vmem:[%s2777 + $0xc8] sm:$0xff]
        %v2804 = vld [vmem:[%s2777 + $0xd0] sm:$0xff]
        %v2805 = vld [vmem:[%s2777 + $0xd8] sm:$0xff]
        %v2806 = vld [vmem:[%s2777 + $0xe0] sm:$0xff]
        %v2807 = vld [vmem:[%s2777 + $0xe8] sm:$0xff]
        %v2808 = vld [vmem:[%s2777 + $0xf0] sm:$0xff]
        %v2809 = vld [vmem:[%s2777 + $0xf8] sm:$0xff]
        %v2842 = vunpack.c.l.b16 %v2778
        %v2843 = vunpack.c.h.b16 %v2778
        %v2844 = vunpack.c.l.b16 %v2779
        %v2845 = vunpack.c.h.b16 %v2779
        %v2846 = vunpack.c.l.b16 %v2780
        %v2847 = vunpack.c.h.b16 %v2780
        %v2848 = vunpack.c.l.b16 %v2781
        %v2849 = vunpack.c.h.b16 %v2781
        %v2850 = vunpack.c.l.b16 %v2782
        %v2851 = vunpack.c.h.b16 %v2782
        %v2852 = vunpack.c.l.b16 %v2783
        %v2853 = vunpack.c.h.b16 %v2783
        %v2854 = vunpack.c.l.b16 %v2784
        %v2855 = vunpack.c.h.b16 %v2784
        %v2856 = vunpack.c.l.b16 %v2785
        %v2857 = vunpack.c.h.b16 %v2785
        %v2858 = vunpack.c.l.b16 %v2786
        %v2859 = vunpack.c.h.b16 %v2786
        %v2860 = vunpack.c.l.b16 %v2787
        %v2861 = vunpack.c.h.b16 %v2787
        %v2862 = vunpack.c.l.b16 %v2788
        %v2863 = vunpack.c.h.b16 %v2788
        %v2864 = vunpack.c.l.b16 %v2789
        %v2865 = vunpack.c.h.b16 %v2789
        %v2866 = vunpack.c.l.b16 %v2790
        %v2867 = vunpack.c.h.b16 %v2790
        %v2868 = vunpack.c.l.b16 %v2791
        %v2869 = vunpack.c.h.b16 %v2791
        %v2870 = vunpack.c.l.b16 %v2792
        %v2871 = vunpack.c.h.b16 %v2792
        %v2872 = vunpack.c.l.b16 %v2793
        %v2873 = vunpack.c.h.b16 %v2793
        %v2874 = vunpack.c.l.b16 %v2794
        %v2875 = vunpack.c.h.b16 %v2794
        %v2876 = vunpack.c.l.b16 %v2795
        %v2877 = vunpack.c.h.b16 %v2795
        %v2878 = vunpack.c.l.b16 %v2796
        %v2879 = vunpack.c.h.b16 %v2796
        %v2880 = vunpack.c.l.b16 %v2797
        %v2881 = vunpack.c.h.b16 %v2797
        %v2882 = vunpack.c.l.b16 %v2798
        %v2883 = vunpack.c.h.b16 %v2798
        %v2884 = vunpack.c.l.b16 %v2799
        %v2885 = vunpack.c.h.b16 %v2799
        %v2886 = vunpack.c.l.b16 %v2800
        %v2887 = vunpack.c.h.b16 %v2800
        %v2888 = vunpack.c.l.b16 %v2801
        %v2889 = vunpack.c.h.b16 %v2801
        %v2890 = vunpack.c.l.b16 %v2802
        %v2891 = vunpack.c.h.b16 %v2802
        %v2892 = vunpack.c.l.b16 %v2803
        %v2893 = vunpack.c.h.b16 %v2803
        %v2894 = vunpack.c.l.b16 %v2804
        %v2895 = vunpack.c.h.b16 %v2804
        %v2896 = vunpack.c.l.b16 %v2805
        %v2897 = vunpack.c.h.b16 %v2805
        %v2898 = vunpack.c.l.b16 %v2806
        %v2899 = vunpack.c.h.b16 %v2806
        %v2900 = vunpack.c.l.b16 %v2807
        %v2901 = vunpack.c.h.b16 %v2807
        %v2902 = vunpack.c.l.b16 %v2808
        %v2903 = vunpack.c.h.b16 %v2808
        %v2904 = vunpack.c.l.b16 %v2809
        %v2905 = vunpack.c.h.b16 %v2809
        %v2906 = vpack.c.b16 %v2844, %v2842
        %v2907 = vpack.c.b16 %v2845, %v2843
        %v2908 = vpack.c.b16 %v2848, %v2846
        %v2909 = vpack.c.b16 %v2849, %v2847
        %v2910 = vpack.c.b16 %v2852, %v2850
        %v2911 = vpack.c.b16 %v2853, %v2851
        %v2912 = vpack.c.b16 %v2856, %v2854
        %v2913 = vpack.c.b16 %v2857, %v2855
        %v2914 = vpack.c.b16 %v2860, %v2858
        %v2915 = vpack.c.b16 %v2861, %v2859
        %v2916 = vpack.c.b16 %v2864, %v2862
        %v2917 = vpack.c.b16 %v2865, %v2863
        %v2918 = vpack.c.b16 %v2868, %v2866
        %v2919 = vpack.c.b16 %v2869, %v2867
        %v2920 = vpack.c.b16 %v2872, %v2870
        %v2921 = vpack.c.b16 %v2873, %v2871
        %v2922 = vpack.c.b16 %v2876, %v2874
        %v2923 = vpack.c.b16 %v2877, %v2875
        %v2924 = vpack.c.b16 %v2880, %v2878
        %v2925 = vpack.c.b16 %v2881, %v2879
        %v2926 = vpack.c.b16 %v2884, %v2882
        %v2927 = vpack.c.b16 %v2885, %v2883
        %v2928 = vpack.c.b16 %v2888, %v2886
        %v2929 = vpack.c.b16 %v2889, %v2887
        %v2930 = vpack.c.b16 %v2892, %v2890
        %v2931 = vpack.c.b16 %v2893, %v2891
        %v2932 = vpack.c.b16 %v2896, %v2894
        %v2933 = vpack.c.b16 %v2897, %v2895
        %v2934 = vpack.c.b16 %v2900, %v2898
        %v2935 = vpack.c.b16 %v2901, %v2899
        %v2936 = vpack.c.b16 %v2904, %v2902
        %v2937 = vpack.c.b16 %v2905, %v2903
        %2970 = vmatprep.subr.bf16.mxu0 %v2907
        %2971 = vmatpush1.bf16.msra.mxu0 %v2906
        %2972 = vmatprep.subr.bf16.mxu0 %v2909
        %2973 = vmatpush1.bf16.msra.mxu0 %v2908
        %2974 = vmatprep.subr.bf16.mxu0 %v2911
        %2975 = vmatpush1.bf16.msra.mxu0 %v2910
        %2976 = vmatprep.subr.bf16.mxu0 %v2913
        %2977 = vmatpush1.bf16.msra.mxu0 %v2912
        %2978 = vmatprep.subr.bf16.mxu0 %v2915
        %2979 = vmatpush1.bf16.msra.mxu0 %v2914
        %2980 = vmatprep.subr.bf16.mxu0 %v2917
        %2981 = vmatpush1.bf16.msra.mxu0 %v2916
        %2982 = vmatprep.subr.bf16.mxu0 %v2919
        %2983 = vmatpush1.bf16.msra.mxu0 %v2918
        %2984 = vmatprep.subr.bf16.mxu0 %v2921
        %2985 = vmatpush1.bf16.msra.mxu0 %v2920
        %2986 = vmatprep.subr.bf16.mxu0 %v2923
        %2987 = vmatpush1.bf16.msra.mxu0 %v2922
        %2988 = vmatprep.subr.bf16.mxu0 %v2925
        %2989 = vmatpush1.bf16.msra.mxu0 %v2924
        %2990 = vmatprep.subr.bf16.mxu0 %v2927
        %2991 = vmatpush1.bf16.msra.mxu0 %v2926
        %2992 = vmatprep.subr.bf16.mxu0 %v2929
        %2993 = vmatpush1.bf16.msra.mxu0 %v2928
        %2994 = vmatprep.subr.bf16.mxu0 %v2931
        %2995 = vmatpush1.bf16.msra.mxu0 %v2930
        %2996 = vmatprep.subr.bf16.mxu0 %v2933
        %2997 = vmatpush1.bf16.msra.mxu0 %v2932
        %2998 = vmatprep.subr.bf16.mxu0 %v2935
        %2999 = vmatpush1.bf16.msra.mxu0 %v2934
        %3000 = vmatprep.subr.bf16.mxu0 %v2937
        %3001 = vmatpush1.bf16.msra.mxu0 %v2936
        %3002 = vmatprep.mubr.bf16.mxu0 %v2768
        %3003 = vmatmul.mubr.bf16.gmra.mrb[0].mxu0 %v2767
        %v3004 = vpop.f32.mrb[0].mxu0
        %v3005 = vadd.f32 0.0, %v3004
        %v3006 = vpop.f32.mrb[0].mxu0
        %v3007 = vadd.f32 0.0, %v3006
        %v3008 = vpop.f32.mrb[0].mxu0
        %v3009 = vadd.f32 0.0, %v3008
        %v3010 = vpop.f32.mrb[0].mxu0
        %v3011 = vadd.f32 0.0, %v3010
        %3012 = vmatprep.mubr.bf16.mxu0 %v2770
        %3013 = vmatmul.mubr.bf16.gmra.mrb[0].mxu0 %v2769
        %v3014 = vpop.f32.mrb[0].mxu0
        %v3015 = vadd.f32 0.0, %v3014
        %v3016 = vpop.f32.mrb[0].mxu0
        %v3017 = vadd.f32 0.0, %v3016
        %v3018 = vpop.f32.mrb[0].mxu0
        %v3019 = vadd.f32 0.0, %v3018
        %v3020 = vpop.f32.mrb[0].mxu0
        %v3021 = vadd.f32 0.0, %v3020
        %3022 = vmatprep.mubr.bf16.mxu0 %v2772
        %3023 = vmatmul.mubr.bf16.gmra.mrb[0].mxu0 %v2771
        %v3024 = vpop.f32.mrb[0].mxu0
        %v3025 = vadd.f32 0.0, %v3024
        %v3026 = vpop.f32.mrb[0].mxu0
        %v3027 = vadd.f32 0.0, %v3026
        %v3028 = vpop.f32.mrb[0].mxu0
        %v3029 = vadd.f32 0.0, %v3028
        %v3030 = vpop.f32.mrb[0].mxu0
        %v3031 = vadd.f32 0.0, %v3030
        %3032 = vmatprep.mubr.bf16.mxu0 %v2774
        %3033 = vmatmul.mubr.bf16.gmra.mrb[0].mxu0 %v2773
        %v3034 = vpop.f32.mrb[0].mxu0
        %v3035 = vadd.f32 0.0, %v3034
        %v3036 = vpop.f32.mrb[0].mxu0
        %v3037 = vadd.f32 0.0, %v3036
        %v3038 = vpop.f32.mrb[0].mxu0
        %v3039 = vadd.f32 0.0, %v3038
        %v3040 = vpop.f32.mrb[0].mxu0
        %v3041 = vadd.f32 0.0, %v3040
        %3042 = vmatprep.mubr.bf16.mxu0 %v2776
        %3043 = vmatmul.mubr.bf16.gmra.mrb[0].mxu0 %v2775
        %v3044 = vpop.f32.mrb[0].mxu0
        %v3045 = vadd.f32 0.0, %v3044
        %v3046 = vpop.f32.mrb[0].mxu0
        %v3047 = vadd.f32 0.0, %v3046
        %v3048 = vpop.f32.mrb[0].mxu0
        %v3049 = vadd.f32 0.0, %v3048
        %v3050 = vpop.f32.mrb[0].mxu0
        %v3051 = vadd.f32 0.0, %v3050
        %3052 = vdwg.mxu0
        %v3053 = vadd.f32 %v2681, %v3005
        %v3054 = vadd.f32 %v2682, %v3007
        %v3055 = vadd.f32 %v2683, %v3009
        %v3056 = vadd.f32 %v2684, %v3011
        %v3057 = vadd.f32 %v2685, %v3015
        %v3058 = vadd.f32 %v2686, %v3017
        %v3059 = vadd.f32 %v2687, %v3019
        %v3060 = vadd.f32 %v2688, %v3021
        %v3061 = vadd.f32 %v2689, %v3025
        %v3062 = vadd.f32 %v2690, %v3027
        %v3063 = vadd.f32 %v2691, %v3029
        %v3064 = vadd.f32 %v2692, %v3031
        %v3065 = vadd.f32 %v2693, %v3035
        %v3066 = vadd.f32 %v2694, %v3037
        %v3067 = vadd.f32 %v2695, %v3039
        %v3068 = vadd.f32 %v2696, %v3041
        %v3069 = vadd.f32 %v2697, %v3045
        %v3070 = vadd.f32 %v2698, %v3047
        %v3071 = vadd.f32 %v2699, %v3049
        %v3072 = vadd.f32 %v2700, %v3051
        %v3073 = vld [vmem:[%s919] sm:$0x3]
        %v3075 = vlaneseq
        %v3076 = vshrl.u32 %v3075, 7
        %v3077 = vsub.s32 0, %v3076
        %v3078 = vrot.slane %v3073, %v3077
        %v3079 = vlaneseq
        %v3080 = vshrl.u32 %v3079, 7
        %v3081 = vsub.s32 1, %v3080
        %v3082 = vrot.slane %v3073, %v3081
        %v3085 = vadd.f32 %v3053, %v3078
        %v3086 = vadd.f32 %v3054, %v3082
        %v3087 = vadd.f32 %v3055, %v3078
        %v3088 = vadd.f32 %v3056, %v3082
        %v3089 = vadd.f32 %v3057, %v3078
        %v3090 = vadd.f32 %v3058, %v3082
        %v3091 = vadd.f32 %v3059, %v3078
        %v3092 = vadd.f32 %v3060, %v3082
        %v3093 = vadd.f32 %v3061, %v3078
        %v3094 = vadd.f32 %v3062, %v3082
        %v3095 = vadd.f32 %v3063, %v3078
        %v3096 = vadd.f32 %v3064, %v3082
        %v3097 = vadd.f32 %v3065, %v3078
        %v3098 = vadd.f32 %v3066, %v3082
        %v3099 = vadd.f32 %v3067, %v3078
        %v3100 = vadd.f32 %v3068, %v3082
        %v3101 = vadd.f32 %v3069, %v3078
        %v3102 = vadd.f32 %v3070, %v3082
        %v3103 = vadd.f32 %v3071, %v3078
        %v3104 = vadd.f32 %v3072, %v3082
        %v3105 = vmax.f32 %v3085, 0.0
        %v3106 = vmax.f32 %v3086, 0.0
        %v3107 = vmax.f32 %v3087, 0.0
        %v3108 = vmax.f32 %v3088, 0.0
        %v3109 = vmax.f32 %v3089, 0.0
        %v3110 = vmax.f32 %v3090, 0.0
        %v3111 = vmax.f32 %v3091, 0.0
        %v3112 = vmax.f32 %v3092, 0.0
        %v3113 = vmax.f32 %v3093, 0.0
        %v3114 = vmax.f32 %v3094, 0.0
        %v3115 = vmax.f32 %v3095, 0.0
        %v3116 = vmax.f32 %v3096, 0.0
        %v3117 = vmax.f32 %v3097, 0.0
        %v3118 = vmax.f32 %v3098, 0.0
        %v3119 = vmax.f32 %v3099, 0.0
        %v3120 = vmax.f32 %v3100, 0.0
        %v3121 = vmax.f32 %v3101, 0.0
        %v3122 = vmax.f32 %v3102, 0.0
        %v3123 = vmax.f32 %v3103, 0.0
        %v3124 = vmax.f32 %v3104, 0.0
        %v3125 = vld [vmem:[%s3] sm:$0xff]
        %v3126 = vld [vmem:[%s3 + $0x8] sm:$0xff]
        %v3127 = vld [vmem:[%s3 + $0x10] sm:$0xff]
        %v3128 = vld [vmem:[%s3 + $0x18] sm:$0xff]
        %v3129 = vld [vmem:[%s3 + $0x20] sm:$0xff]
        %v3130 = vld [vmem:[%s3 + $0x28] sm:$0xff]
        %v3131 = vld [vmem:[%s3 + $0x30] sm:$0xff]
        %v3132 = vld [vmem:[%s3 + $0x38] sm:$0xff]
        %v3133 = vld [vmem:[%s3 + $0x40] sm:$0xff]
        %v3134 = vld [vmem:[%s3 + $0x48] sm:$0xff]
        %3136 = vset.pattern.permute.xlu0 0
        %3137 = vperm.xlu0 %3136, %v3125
        %v3138 = vpop.permute.xlu0 %3137
        %3141 = vset.pattern.permute.xlu0 0
        %3142 = vperm.xlu0 %3141, %v3126
        %v3143 = vpop.permute.xlu0 %3142
        %3146 = vset.pattern.permute.xlu0 0
        %3147 = vperm.xlu0 %3146, %v3127
        %v3148 = vpop.permute.xlu0 %3147
        %3151 = vset.pattern.permute.xlu0 0
        %3152 = vperm.xlu0 %3151, %v3128
        %v3153 = vpop.permute.xlu0 %3152
        %3156 = vset.pattern.permute.xlu0 0
        %3157 = vperm.xlu0 %3156, %v3129
        %v3158 = vpop.permute.xlu0 %3157
        %3161 = vset.pattern.permute.xlu0 0
        %3162 = vperm.xlu0 %3161, %v3130
        %v3163 = vpop.permute.xlu0 %3162
        %3166 = vset.pattern.permute.xlu0 0
        %3167 = vperm.xlu0 %3166, %v3131
        %v3168 = vpop.permute.xlu0 %3167
        %3171 = vset.pattern.permute.xlu0 0
        %3172 = vperm.xlu0 %3171, %v3132
        %v3173 = vpop.permute.xlu0 %3172
        %3176 = vset.pattern.permute.xlu0 0
        %3177 = vperm.xlu0 %3176, %v3133
        %v3178 = vpop.permute.xlu0 %3177
        %3181 = vset.pattern.permute.xlu0 0
        %3182 = vperm.xlu0 %3181, %v3134
        %v3183 = vpop.permute.xlu0 %3182
        %v3185 = vmul.f32 %v3105, %v3138
        %v3186 = vmul.f32 %v3106, %v3138
        %v3187 = vmul.f32 %v3107, %v3143
        %v3188 = vmul.f32 %v3108, %v3143
        %v3189 = vmul.f32 %v3109, %v3148
        %v3190 = vmul.f32 %v3110, %v3148
        %v3191 = vmul.f32 %v3111, %v3153
        %v3192 = vmul.f32 %v3112, %v3153
        %v3193 = vmul.f32 %v3113, %v3158
        %v3194 = vmul.f32 %v3114, %v3158
        %v3195 = vmul.f32 %v3115, %v3163
        %v3196 = vmul.f32 %v3116, %v3163
        %v3197 = vmul.f32 %v3117, %v3168
        %v3198 = vmul.f32 %v3118, %v3168
        %v3199 = vmul.f32 %v3119, %v3173
        %v3200 = vmul.f32 %v3120, %v3173
        %v3201 = vmul.f32 %v3121, %v3178
        %v3202 = vmul.f32 %v3122, %v3178
        %v3203 = vmul.f32 %v3123, %v3183
        %v3204 = vmul.f32 %v3124, %v3183
        %v3205 = vadd.f32 %v3185, %v3187
        %v3206 = vadd.f32 %v3205, %v3189
        %v3207 = vadd.f32 %v3206, %v3191
        %v3208 = vadd.f32 %v3207, %v3193
        %v3209 = vadd.f32 %v3208, %v3195
        %v3210 = vadd.f32 %v3209, %v3197
        %v3211 = vadd.f32 %v3210, %v3199
        %v3212 = vadd.f32 %v3211, %v3201
        %v3213 = vadd.f32 %v3212, %v3203
        %v3214 = vrot.slane %v3213, 4
        %v3215 = vadd.f32 %v3213, %v3214
        %v3216 = vrot.slane %v3215, 2
        %v3217 = vadd.f32 %v3215, %v3216
        %v3218 = vrot.slane %v3217, 1
        %v3219 = vadd.f32 %v3217, %v3218
        %v3220 = vadd.f32 %v3186, %v3188
        %v3221 = vadd.f32 %v3220, %v3190
        %v3222 = vadd.f32 %v3221, %v3192
        %v3223 = vadd.f32 %v3222, %v3194
        %v3224 = vadd.f32 %v3223, %v3196
        %v3225 = vadd.f32 %v3224, %v3198
        %v3226 = vadd.f32 %v3225, %v3200
        %v3227 = vadd.f32 %v3226, %v3202
        %v3228 = vadd.f32 %v3227, %v3204
        %v3229 = vrot.slane %v3228, 4
        %v3230 = vadd.f32 %v3228, %v3229
        %v3231 = vrot.slane %v3230, 2
        %v3232 = vadd.f32 %v3230, %v3231
        %v3233 = vrot.slane %v3232, 1
        %v3234 = vadd.f32 %v3232, %v3233
        %v3237 = vcombine.low %v3219, %v3234
        %v3239 = vunpack.c.l.s4 1966171168
        %v3240 = vunpack.c.0.s8 %v3239
        %v3241 = vlaneseq
        %v3242 = vshrl.u32 %v3241, 7
        %v3243 = vsub.s32 %v3240, %v3242
        %v3244 = vrot.slane %v3237, %v3243
        %v3246 = vunpack.c.l.s4 1966171168
        %v3247 = vunpack.c.0.s8 %v3246
        %v3248 = vlaneseq
        %v3249 = vshrl.u32 %v3248, 7
        %v3250 = vsub.s32 %v3247, %v3249
        %v3251 = vrot.slane %v3244, %v3250
        %v3253 = vlaneseq
        %vm3254 = vcmp.ge.s32.totalorder %v3253, 0
        %vm3255 = vcmp.lt.s32.totalorder %v3253, 256
        %vm3256 = vmand %vm3254, %vm3255
        %3257 = vst.msk [vmem:[%s928] sm:$0x3] %vm3256, %v3251
        %s3258 = smul.u32 2, %s19
        %p3259 = scmp.lt.s32.totalorder %s20, 7
        %s3260 = scalar_select %p3259, %s20, 7
        %p3261 = scmp.lt.s32.totalorder %s3258, 3
        %s3262 = scalar_select %p3261, %s3258, 3
        %s3263 = smul.addr %s3260, 4
        %s3264 = sadd.s32 %s3262, %s3263
        %s3265 = scalar_lea.vmem %s4, %s3264
        // Predicated region
        $region75: #{avmodel_forward.12} parent=69 // pred_check
          %p3266 = pneg %p146
        $region76: #{avmodel_forward.12} parent=69 // pred_check_branch
          %3268 = sbr.rel (%p3266) target = $region78
        $region77: #{avmodel_forward.12} parent=69 // pred_region
          %s3269 = smul.u32 2, %s19
        $region78: #{avmodel_forward.12} parent=69 // pred_fallthru
          _
      $region70: #{avmodel_forward.12} parent=5 // pred_fallthru
        _
      %p3270 = scmp.le.s32.totalorder 2, %s10
      // Predicated region
      $region79: #{avmodel_forward.12} parent=5 // pred_check
        %p3271 = pneg %p3270
      $region80: #{avmodel_forward.12} parent=5 // pred_check_branch
        %3273 = sbr.rel (%p3271) target = $region82
      $region81: #{avmodel_forward.12} parent=5 // pred_region
        %s3274 = ssub.s32 %s10, 2
        // Predicated region
        $region83: #{avmodel_forward.12} parent=81 // pred_check
          %p3275 = pneg %p152
        $region84: #{avmodel_forward.12} parent=81 // pred_check_branch
          %3277 = sbr.rel (%p3275) target = $region86
        $region85: #{avmodel_forward.12} parent=81 // pred_region
          %s3278 = smul.u32 2, %s21
          %p3279 = scmp.lt.s32.totalorder %s22, 7
          %s3280 = scalar_select %p3279, %s22, 7
          %p3281 = scmp.lt.s32.totalorder %s3278, 3
          %s3282 = scalar_select %p3281, %s3278, 3
          %s3283 = smul.addr %s3280, 4
          %s3284 = sadd.s32 %s3282, %s3283
          %s3285 = scalar_lea.vmem %s4, %s3284
        $region86: #{avmodel_forward.12} parent=81 // pred_fallthru
          _
      $region82: #{avmodel_forward.12} parent=5 // pred_fallthru
        _
    $region6: #{avmodel_forward.12} parent=1 // loop_footer
      %s14 = sadd.s32 1, %s10
    $region7: #{avmodel_forward.12} parent=1 // loop_footer_branch
      %9 = sbr.rel target = $region3
    $region8: #{avmodel_forward.12} parent=1 // loop_exit
      _

// kernel: avmodel_forward.7
$region0: #{avmodel_forward.7}
  #allocation0 [shape = 'u32[]', space=smem, size = 0x4, offset = 0x4, fixed_abs, tag = 'smem constant byte address 0x4 - core index']
  #allocation1 [shape = 'u32[144,128]{1,0:T(1,128)}', space=vmem, size = 0x12000, scoped, tag = 'internal scratch']
  %s0 = inlined_call_operand.vmem [shape: bf16[2,288,32], index: 0, kind: input, shape index: {}]
  %s1 = inlined_call_operand.vmem [shape: bf16[32,128], index: 1, kind: input, shape index: {}]
  %s2 = inlined_call_operand.vmem [shape: f32[1,128], index: 2, kind: input, shape index: {}]
  %s3 = inlined_call_operand.vmem [shape: bf16[2,288,128], index: 3, kind: output, shape index: {}]
  %s4 = sld [smem:[#allocation0]]
  $region45: #{avmodel_forward.7} parent=0
    _
  %s6 = ssub.s32 1, %s4
  %s7 = scalar_select 0, %s6, %s4
  loop: start=0, step=1, limit=4
  $region2: #{avmodel_forward.7} parent=0 // loop_pre_header
    _
  $region3: #{avmodel_forward.7} parent=0 // loop_header
    %s9 = sphi 0, %s13
    %p10 = scmp.ge.s32.totalorder %s9, 4
    %s16 = sphi 0, %s28
    %s17 = sphi 0, %s24
    %s18 = sphi 0, %s16
    %s19 = sphi 0, %s17
    %s20 = sphi 0, %s18
    %s21 = sphi 0, %s19
    %s31 = sphi 0, %s33
    %s34 = sphi 0, %s31
    %s35 = sphi 0, %s34
    %s51 = sphi 0, %s35
    %s57 = sphi 0, %s59
    %s60 = sphi 0, %s57
    %s61 = sphi 0, %s60
    %s77 = sphi 0, %s61
    %s83 = sphi 0, %s85
    %s86 = sphi 0, %s83
    %s87 = sphi 0, %s86
    %s103 = sphi 0, %s87
    %s111 = sphi 0, %s113
    %s114 = sphi 0, %s111
    %s115 = sphi 0, %s114
    %s131 = sphi 0, %s115
  $region4: #{avmodel_forward.7} parent=0 // loop_header_branch
    %12 = sbr.rel (%p10) target = $region8
  $region5: #{avmodel_forward.7} parent=0 // loop_body
    %s14 = ssub.s32 %s9, 1
    %s15 = ssub.s32 %s9, 2
    %s22 = sadd.s32 1, %s17
    %p23 = scmp.ge.s32.totalorder %s22, 2
    %s24 = scalar_select %p23, 0, %s22
    %s25 = sadd.s32 1, %s16
    %s26 = scalar_select %p23, %s25, %s16
    %p27 = scmp.ge.s32.totalorder %s26, 1
    %s28 = scalar_select %p27, 0, %s26
    %s29 = ssub.s32 %s17, %s24
    %p30 = scmp.eq.s32.totalorder %s29, 0
    %s32 = sadd.s32 %s31, 1
    %s33 = scalar_select %p30, %s31, %s32
    %p36 = pneg %p30
    %p37 = scmp.eq.s32.totalorder %s9, 1
    %p38 = por %p36, %p37
    %p39 = scmp.ne.s32.totalorder %s31, %s34
    %p40 = scmp.eq.s32.totalorder %s9, 0
    %p41 = por %p39, %p40
    %p42 = scmp.ne.s32.totalorder %s31, %s34
    %p43 = scmp.eq.s32.totalorder %s14, 1
    %p44 = por %p42, %p43
    %p45 = scmp.ne.s32.totalorder %s34, %s35
    %p46 = scmp.eq.s32.totalorder %s14, 0
    %p47 = por %p45, %p46
    %p48 = scmp.ne.s32.totalorder %s34, %s35
    %p49 = scmp.eq.s32.totalorder %s15, 1
    %p50 = por %p48, %p49
    %p52 = scmp.ne.s32.totalorder %s35, %s51
    %p53 = scmp.eq.s32.totalorder %s15, 0
    %p54 = por %p52, %p53
    %s55 = ssub.s32 %s16, %s28
    %p56 = scmp.eq.s32.totalorder %s55, 0
    %s58 = sadd.s32 %s57, 1
    %s59 = scalar_select %p56, %s57, %s58
    %p62 = pneg %p56
    %p63 = scmp.eq.s32.totalorder %s9, 1
    %p64 = por %p62, %p63
    %p65 = scmp.ne.s32.totalorder %s57, %s60
    %p66 = scmp.eq.s32.totalorder %s9, 0
    %p67 = por %p65, %p66
    %p68 = scmp.ne.s32.totalorder %s57, %s60
    %p69 = scmp.eq.s32.totalorder %s14, 1
    %p70 = por %p68, %p69
    %p71 = scmp.ne.s32.totalorder %s60, %s61
    %p72 = scmp.eq.s32.totalorder %s14, 0
    %p73 = por %p71, %p72
    %p74 = scmp.ne.s32.totalorder %s60, %s61
    %p75 = scmp.eq.s32.totalorder %s15, 1
    %p76 = por %p74, %p75
    %p78 = scmp.ne.s32.totalorder %s61, %s77
    %p79 = scmp.eq.s32.totalorder %s15, 0
    %p80 = por %p78, %p79
    %s81 = ssub.s32 %s16, %s28
    %p82 = scmp.eq.s32.totalorder %s81, 0
    %s84 = sadd.s32 %s83, 1
    %s85 = scalar_select %p82, %s83, %s84
    %p88 = pneg %p82
    %p89 = scmp.eq.s32.totalorder %s9, 1
    %p90 = por %p88, %p89
    %p91 = scmp.ne.s32.totalorder %s83, %s86
    %p92 = scmp.eq.s32.totalorder %s9, 0
    %p93 = por %p91, %p92
    %p94 = scmp.ne.s32.totalorder %s83, %s86
    %p95 = scmp.eq.s32.totalorder %s14, 1
    %p96 = por %p94, %p95
    %p97 = scmp.ne.s32.totalorder %s86, %s87
    %p98 = scmp.eq.s32.totalorder %s14, 0
    %p99 = por %p97, %p98
    %p100 = scmp.ne.s32.totalorder %s86, %s87
    %p101 = scmp.eq.s32.totalorder %s15, 1
    %p102 = por %p100, %p101
    %p104 = scmp.ne.s32.totalorder %s87, %s103
    %p105 = scmp.eq.s32.totalorder %s15, 0
    %p106 = por %p104, %p105
    %s107 = ssub.s32 %s17, %s24
    %s108 = ssub.s32 %s16, %s28
    %s109 = sor.u32 %s107, %s108
    %p110 = scmp.eq.s32.totalorder %s109, 0
    %s112 = sadd.s32 %s111, 1
    %s113 = scalar_select %p110, %s111, %s112
    %p116 = pneg %p110
    %p117 = scmp.eq.s32.totalorder %s9, 1
    %p118 = por %p116, %p117
    %p119 = scmp.ne.s32.totalorder %s111, %s114
    %p120 = scmp.eq.s32.totalorder %s9, 0
    %p121 = por %p119, %p120
    %p122 = scmp.ne.s32.totalorder %s111, %s114
    %p123 = scmp.eq.s32.totalorder %s14, 1
    %p124 = por %p122, %p123
    %p125 = scmp.ne.s32.totalorder %s114, %s115
    %p126 = scmp.eq.s32.totalorder %s14, 0
    %p127 = por %p125, %p126
    %p128 = scmp.ne.s32.totalorder %s114, %s115
    %p129 = scmp.eq.s32.totalorder %s15, 1
    %p130 = por %p128, %p129
    %p132 = scmp.ne.s32.totalorder %s115, %s131
    %p133 = scmp.eq.s32.totalorder %s15, 0
    %p134 = por %p132, %p133
    %p135 = scmp.le.s32.totalorder 1, %s9
    %p136 = scmp.lt.s32.totalorder %s9, 3
    %p137 = pnand %p135, %p136
    %p138 = pneg %p137
    // Predicated region
    $region9: #{avmodel_forward.7} parent=5 // pred_check
      _
    $region10: #{avmodel_forward.7} parent=5 // pred_check_branch
      %140 = sbr.rel (%p137) target = $region12
    $region11: #{avmodel_forward.7} parent=5 // pred_region
      %s141 = ssub.s32 %s9, 1
      // Predicated region
      $region13: #{avmodel_forward.7} parent=11 // pred_check
        %p142 = pneg %p73
      $region14: #{avmodel_forward.7} parent=11 // pred_check_branch
        %144 = sbr.rel (%p142) target = $region16
      $region15: #{avmodel_forward.7} parent=11 // pred_region
        %p145 = scmp.lt.s32.totalorder %s18, 0
        %s146 = scalar_select %p145, %s18, 0
        %s147 = smul.addr %s146, 4
        %s148 = scalar_lea.vmem %s1, %s147
      $region16: #{avmodel_forward.7} parent=11 // pred_fallthru
        _
      // Predicated region
      $region17: #{avmodel_forward.7} parent=11 // pred_check
        %p149 = pneg %p99
      $region18: #{avmodel_forward.7} parent=11 // pred_check_branch
        %151 = sbr.rel (%p149) target = $region20
      $region19: #{avmodel_forward.7} parent=11 // pred_region
        %p152 = scmp.lt.s32.totalorder %s18, 0
        %s153 = scalar_select %p152, %s18, 0
        %s154 = scalar_lea.vmem %s2, %s153
      $region20: #{avmodel_forward.7} parent=11 // pred_fallthru
        _
    $region12: #{avmodel_forward.7} parent=5 // pred_fallthru
      _
    %p155 = scmp.lt.s32.totalorder %s9, 2
    // Predicated region
    $region21: #{avmodel_forward.7} parent=5 // pred_check
      %p156 = pneg %p155
    $region22: #{avmodel_forward.7} parent=5 // pred_check_branch
      %158 = sbr.rel (%p156) target = $region24
    $region23: #{avmodel_forward.7} parent=5 // pred_region
      // Predicated region
      $region25: #{avmodel_forward.7} parent=23 // pred_check
        %p159 = pneg %p41
      $region26: #{avmodel_forward.7} parent=23 // pred_check_branch
        %161 = sbr.rel (%p159) target = $region28
      $region27: #{avmodel_forward.7} parent=23 // pred_region
        %p162 = scmp.lt.s32.totalorder %s17, 1
        %s163 = scalar_select %p162, %s17, 1
        %s164 = smul.addr %s163, 36
        %s165 = smul.addr %s164, 4
        %s166 = scalar_lea.vmem %s0, %s165
      $region28: #{avmodel_forward.7} parent=23 // pred_fallthru
        _
    $region24: #{avmodel_forward.7} parent=5 // pred_fallthru
      _
    %p167 = scmp.le.s32.totalorder 1, %s9
    %p168 = scmp.lt.s32.totalorder %s9, 3
    %p169 = pnand %p167, %p168
    %p170 = pneg %p169
    // Predicated region
    $region29: #{avmodel_forward.7} parent=5 // pred_check
      _
    $region30: #{avmodel_forward.7} parent=5 // pred_check_branch
      %172 = sbr.rel (%p169) target = $region32
    $region31: #{avmodel_forward.7} parent=5 // pred_region
      %s173 = ssub.s32 %s9, 1
      %p174 = scmp.lt.s32.totalorder %s19, 1
      %s175 = scalar_select %p174, %s19, 1
      %s176 = smul.addr %s175, 36
      %s177 = smul.addr %s176, 4
      %s178 = scalar_lea.vmem %s0, %s177
      %p179 = pneg %p47
      %p180 = pneg %p44
      %p181 = scmp.lt.s32.totalorder %s18, 0
      %s182 = scalar_select %p181, %s18, 0
      %s183 = smul.addr %s182, 4
      %s184 = scalar_lea.vmem %s1, %s183
      %p185 = pneg %p73
      %p186 = pneg %p70
      %p187 = scmp.lt.s32.totalorder %s18, 0
      %s188 = scalar_select %p187, %s18, 0
      %s189 = scalar_lea.vmem %s2, %s188
      %p190 = pneg %p99
      %p191 = pneg %p96
      %p192 = pneg %p127
      %p193 = pneg %p124
      %p194 = scmp.lt.s32.totalorder %s19, 1
      %s195 = scalar_select %p194, %s19, 1
      %p196 = scmp.lt.s32.totalorder %s18, 0
      %s197 = scalar_select %p196, %s18, 0
      %s198 = smul.addr %s195, 36
      %s199 = sadd.s32 %s197, %s198
      %s200 = smul.addr %s199, 4
      %s201 = scalar_lea.vmem %s3, %s200
      %p202 = scmp.lt.s32.totalorder %s19, 1
      %s203 = scalar_select %p202, %s19, 1
      %s204 = smul.addr %s203, 36
      %s205 = smul.addr %s204, 4
      %s206 = scalar_lea.vmem %s0, %s205
      %p207 = scmp.lt.s32.totalorder %s18, 0
      %s208 = scalar_select %p207, %s18, 0
      %s209 = smul.addr %s208, 4
      %s210 = scalar_lea.vmem %s1, %s209
      %p211 = scmp.lt.s32.totalorder %s18, 0
      %s212 = scalar_select %p211, %s18, 0
      %s213 = scalar_lea.vmem %s2, %s212
      %p214 = scmp.lt.s32.totalorder %s19, 1
      %s215 = scalar_select %p214, %s19, 1
      %p216 = scmp.lt.s32.totalorder %s18, 0
      %s217 = scalar_select %p216, %s18, 0
      %s218 = smul.addr %s215, 36
      %s219 = sadd.s32 %s217, %s218
      %s220 = smul.addr %s219, 4
      %s221 = scalar_lea.vmem %s3, %s220
      %v223 = vld [vmem:[%s206] sm:$0xf]
      %v224 = vld [vmem:[%s206 + $0x4] sm:$0xf]
      %v225 = vld [vmem:[%s206 + $0x8] sm:$0xf]
      %v226 = vld [vmem:[%s206 + $0xc] sm:$0xf]
      %v227 = vld [vmem:[%s206 + $0x10] sm:$0xf]
      %v228 = vld [vmem:[%s206 + $0x14] sm:$0xf]
      %v229 = vld [vmem:[%s206 + $0x18] sm:$0xf]
      %v230 = vld [vmem:[%s206 + $0x1c] sm:$0xf]
      %v231 = vld [vmem:[%s206 + $0x20] sm:$0xf]
      %v232 = vld [vmem:[%s206 + $0x24] sm:$0xf]
      %v233 = vld [vmem:[%s206 + $0x28] sm:$0xf]
      %v234 = vld [vmem:[%s206 + $0x2c] sm:$0xf]
      %v235 = vld [vmem:[%s206 + $0x30] sm:$0xf]
      %v236 = vld [vmem:[%s206 + $0x34] sm:$0xf]
      %v237 = vld [vmem:[%s206 + $0x38] sm:$0xf]
      %v238 = vld [vmem:[%s206 + $0x3c] sm:$0xf]
      %v239 = vld [vmem:[%s206 + $0x40] sm:$0xf]
      %v240 = vld [vmem:[%s206 + $0x44] sm:$0xf]
      %v241 = vld [vmem:[%s206 + $0x48] sm:$0xf]
      %v242 = vld [vmem:[%s206 + $0x4c] sm:$0xf]
      %v243 = vld [vmem:[%s206 + $0x50] sm:$0xf]
      %v244 = vld [vmem:[%s206 + $0x54] sm:$0xf]
      %v245 = vld [vmem:[%s206 + $0x58] sm:$0xf]
      %v246 = vld [vmem:[%s206 + $0x5c] sm:$0xf]
      %v247 = vld [vmem:[%s206 + $0x60] sm:$0xf]
      %v248 = vld [vmem:[%s206 + $0x64] sm:$0xf]
      %v249 = vld [vmem:[%s206 + $0x68] sm:$0xf]
      %v250 = vld [vmem:[%s206 + $0x6c] sm:$0xf]
      %v251 = vld [vmem:[%s206 + $0x70] sm:$0xf]
      %v252 = vld [vmem:[%s206 + $0x74] sm:$0xf]
      %v253 = vld [vmem:[%s206 + $0x78] sm:$0xf]
      %v254 = vld [vmem:[%s206 + $0x7c] sm:$0xf]
      %v255 = vld [vmem:[%s206 + $0x80] sm:$0xf]
      %v256 = vld [vmem:[%s206 + $0x84] sm:$0xf]
      %v257 = vld [vmem:[%s206 + $0x88] sm:$0xf]
      %v258 = vld [vmem:[%s206 + $0x8c] sm:$0xf]
      %v259 = vld [vmem:[%s210] sm:$0xf]
      %v260 = vld [vmem:[%s210 + $0x4] sm:$0xf]
      %v261 = vld [vmem:[%s210 + $0x8] sm:$0xf]
      %v262 = vld [vmem:[%s210 + $0xc] sm:$0xf]
      %v263 = vld [vmem:[%s213] sm:$0x1]
      %v265 = vlaneseq
      %v266 = vshrl.u32 %v265, 7
      %v267 = vsub.s32 0, %v266
      %v268 = vrot.slane %v263, %v267
      %v306 = vunpack.c.l.b16 %v223
      %v307 = vunpack.c.l.b16 %v224
      %v308 = vunpack.c.l.b16 %v225
      %v309 = vunpack.c.l.b16 %v226
      %v310 = vunpack.c.l.b16 %v227
      %v311 = vunpack.c.l.b16 %v228
      %v312 = vunpack.c.l.b16 %v229
      %v313 = vunpack.c.l.b16 %v230
      %v314 = vunpack.c.l.b16 %v231
      %v315 = vunpack.c.l.b16 %v232
      %v316 = vunpack.c.l.b16 %v233
      %v317 = vunpack.c.l.b16 %v234
      %v318 = vunpack.c.l.b16 %v235
      %v319 = vunpack.c.l.b16 %v236
      %v320 = vunpack.c.l.b16 %v237
      %v321 = vunpack.c.l.b16 %v238
      %v322 = vunpack.c.l.b16 %v239
      %v323 = vunpack.c.l.b16 %v240
      %v324 = vunpack.c.l.b16 %v241
      %v325 = vunpack.c.l.b16 %v242
      %v326 = vunpack.c.l.b16 %v243
      %v327 = vunpack.c.l.b16 %v244
      %v328 = vunpack.c.l.b16 %v245
      %v329 = vunpack.c.l.b16 %v246
      %v330 = vunpack.c.l.b16 %v247
      %v331 = vunpack.c.l.b16 %v248
      %v332 = vunpack.c.l.b16 %v249
      %v333 = vunpack.c.l.b16 %v250
      %v334 = vunpack.c.l.b16 %v251
      %v335 = vunpack.c.l.b16 %v252
      %v336 = vunpack.c.l.b16 %v253
      %v337 = vunpack.c.l.b16 %v254
      %v338 = vunpack.c.l.b16 %v255
      %v339 = vunpack.c.l.b16 %v256
      %v340 = vunpack.c.l.b16 %v257
      %v341 = vunpack.c.l.b16 %v258
      %v342 = vpack.c.b16 %v307, %v306
      %v343 = vpack.c.b16 %v309, %v308
      %v344 = vpack.c.b16 %v311, %v310
      %v345 = vpack.c.b16 %v313, %v312
      %v346 = vpack.c.b16 %v315, %v314
      %v347 = vpack.c.b16 %v317, %v316
      %v348 = vpack.c.b16 %v319, %v318
      %v349 = vpack.c.b16 %v321, %v320
      %v350 = vpack.c.b16 %v323, %v322
      %v351 = vpack.c.b16 %v325, %v324
      %v352 = vpack.c.b16 %v327, %v326
      %v353 = vpack.c.b16 %v329, %v328
      %v354 = vpack.c.b16 %v331, %v330
      %v355 = vpack.c.b16 %v333, %v332
      %v356 = vpack.c.b16 %v335, %v334
      %v357 = vpack.c.b16 %v337, %v336
      %v358 = vpack.c.b16 %v339, %v338
      %v359 = vpack.c.b16 %v341, %v340
      %v364 = vunpack.c.l.b16 %v259
      %v365 = vunpack.c.l.b16 %v260
      %v366 = vunpack.c.l.b16 %v261
      %v367 = vunpack.c.l.b16 %v262
      %v368 = vpack.c.b16 %v365, %v364
      %v369 = vpack.c.b16 %v367, %v366
      %vm372 = vcmask 261120
      %v374 = vsel %vm372, %v342, 0
      %v377 = vsel %vm372, %v343, 0
      %v380 = vsel %vm372, %v344, 0
      %v383 = vsel %vm372, %v345, 0
      %v386 = vsel %vm372, %v346, 0
      %v389 = vsel %vm372, %v347, 0
      %v392 = vsel %vm372, %v348, 0
      %v395 = vsel %vm372, %v349, 0
      %v398 = vsel %vm372, %v350, 0
      %v401 = vsel %vm372, %v351, 0
      %v404 = vsel %vm372, %v352, 0
      %v407 = vsel %vm372, %v353, 0
      %v410 = vsel %vm372, %v354, 0
      %v413 = vsel %vm372, %v355, 0
      %v416 = vsel %vm372, %v356, 0
      %v419 = vsel %vm372, %v357, 0
      %v422 = vsel %vm372, %v358, 0
      %v425 = vsel %vm372, %v359, 0
      %427 = vmatprep.subr.bf16.mxu0 0
      %428 = vmatpush1.bf16.msra.mxu0 %v368
      %429 = vmatprep.subr.bf16.mxu0 0
      %430 = vmatpush1.bf16.msra.mxu0 %v369
      %431 = vmatprep.subr.bf16.mxu0 0
      %432 = vmatpush1.bf16.msra.mxu0 0
      %433 = vmatprep.subr.bf16.mxu0 0
      %434 = vmatpush1.bf16.msra.mxu0 0
      %435 = vmatprep.subr.bf16.mxu0 0
      %436 = vmatpush1.bf16.msra.mxu0 0
      %437 = vmatprep.subr.bf16.mxu0 0
      %438 = vmatpush1.bf16.msra.mxu0 0
      %439 = vmatprep.subr.bf16.mxu0 0
      %440 = vmatpush1.bf16.msra.mxu0 0
      %441 = vmatprep.subr.bf16.mxu0 0
      %442 = vmatpush1.bf16.msra.mxu0 0
      %443 = vmatprep.subr.bf16.mxu0 0
      %444 = vmatpush1.bf16.msra.mxu0 0
      %445 = vmatprep.subr.bf16.mxu0 0
      %446 = vmatpush1.bf16.msra.mxu0 0
      %447 = vmatprep.subr.bf16.mxu0 0
      %448 = vmatpush1.bf16.msra.mxu0 0
      %449 = vmatprep.subr.bf16.mxu0 0
      %450 = vmatpush1.bf16.msra.mxu0 0
      %451 = vmatprep.subr.bf16.mxu0 0
      %452 = vmatpush1.bf16.msra.mxu0 0
      %453 = vmatprep.subr.bf16.mxu0 0
      %454 = vmatpush1.bf16.msra.mxu0 0
      %455 = vmatprep.subr.bf16.mxu0 0
      %456 = vmatpush1.bf16.msra.mxu0 0
      %457 = vmatprep.subr.bf16.mxu0 0
      %458 = vmatpush1.bf16.msra.mxu0 0
      %459 = vmatprep.mubr.bf16.mxu0 0
      %460 = vmatmul.mubr.bf16.gmra.mrb[0].mxu0 %v374
      %v461 = vpop.f32.mrb[0].mxu0
      %v462 = vadd.f32 %v268, %v461
      %v463 = vpop.f32.mrb[0].mxu0
      %v464 = vpop.f32.mrb[0].mxu0
      %v465 = vadd.f32 %v268, %v464
      %v466 = vpop.f32.mrb[0].mxu0
      %467 = vmatprep.mubr.bf16.mxu0 0
      %468 = vmatmul.mubr.bf16.gmra.mrb[0].mxu0 %v377
      %v469 = vpop.f32.mrb[0].mxu0
      %v470 = vadd.f32 %v268, %v469
      %v471 = vpop.f32.mrb[0].mxu0
      %v472 = vpop.f32.mrb[0].mxu0
      %v473 = vadd.f32 %v268, %v472
      %v474 = vpop.f32.mrb[0].mxu0
      %475 = vmatprep.mubr.bf16.mxu0 0
      %476 = vmatmul.mubr.bf16.gmra.mrb[0].mxu0 %v380
      %v477 = vpop.f32.mrb[0].mxu0
      %v478 = vadd.f32 %v268, %v477
      %v479 = vpop.f32.mrb[0].mxu0
      %v480 = vpop.f32.mrb[0].mxu0
      %v481 = vadd.f32 %v268, %v480
      %v482 = vpop.f32.mrb[0].mxu0
      %483 = vmatprep.mubr.bf16.mxu0 0
      %484 = vmatmul.mubr.bf16.gmra.mrb[0].mxu0 %v383
      %v485 = vpop.f32.mrb[0].mxu0
      %v486 = vadd.f32 %v268, %v485
      %v487 = vpop.f32.mrb[0].mxu0
      %v488 = vpop.f32.mrb[0].mxu0
      %v489 = vadd.f32 %v268, %v488
      %v490 = vpop.f32.mrb[0].mxu0
      %491 = vmatprep.mubr.bf16.mxu0 0
      %492 = vmatmul.mubr.bf16.gmra.mrb[0].mxu0 %v386
      %v493 = vpop.f32.mrb[0].mxu0
      %v494 = vadd.f32 %v268, %v493
      %v495 = vpop.f32.mrb[0].mxu0
      %v496 = vpop.f32.mrb[0].mxu0
      %v497 = vadd.f32 %v268, %v496
      %v498 = vpop.f32.mrb[0].mxu0
      %499 = vmatprep.mubr.bf16.mxu0 0
      %500 = vmatmul.mubr.bf16.gmra.mrb[0].mxu0 %v389
      %v501 = vpop.f32.mrb[0].mxu0
      %v502 = vadd.f32 %v268, %v501
      %v503 = vpop.f32.mrb[0].mxu0
      %v504 = vpop.f32.mrb[0].mxu0
      %v505 = vadd.f32 %v268, %v504
      %v506 = vpop.f32.mrb[0].mxu0
      %507 = vmatprep.mubr.bf16.mxu0 0
      %508 = vmatmul.mubr.bf16.gmra.mrb[0].mxu0 %v392
      %v509 = vpop.f32.mrb[0].mxu0
      %v510 = vadd.f32 %v268, %v509
      %v511 = vpop.f32.mrb[0].mxu0
      %v512 = vpop.f32.mrb[0].mxu0
      %v513 = vadd.f32 %v268, %v512
      %v514 = vpop.f32.mrb[0].mxu0
      %515 = vmatprep.mubr.bf16.mxu0 0
      %516 = vmatmul.mubr.bf16.gmra.mrb[0].mxu0 %v395
      %v517 = vpop.f32.mrb[0].mxu0
      %v518 = vadd.f32 %v268, %v517
      %v519 = vpop.f32.mrb[0].mxu0
      %v520 = vpop.f32.mrb[0].mxu0
      %v521 = vadd.f32 %v268, %v520
      %v522 = vpop.f32.mrb[0].mxu0
      %523 = vmatprep.mubr.bf16.mxu0 0
      %524 = vmatmul.mubr.bf16.gmra.mrb[0].mxu0 %v398
      %v525 = vpop.f32.mrb[0].mxu0
      %v526 = vadd.f32 %v268, %v525
      %v527 = vpop.f32.mrb[0].mxu0
      %v528 = vpop.f32.mrb[0].mxu0
      %v529 = vadd.f32 %v268, %v528
      %v530 = vpop.f32.mrb[0].mxu0
      %531 = vmatprep.mubr.bf16.mxu0 0
      %532 = vmatmul.mubr.bf16.gmra.mrb[0].mxu0 %v401
      %v533 = vpop.f32.mrb[0].mxu0
      %v534 = vadd.f32 %v268, %v533
      %v535 = vpop.f32.mrb[0].mxu0
      %v536 = vpop.f32.mrb[0].mxu0
      %v537 = vadd.f32 %v268, %v536
      %v538 = vpop.f32.mrb[0].mxu0
      %539 = vmatprep.mubr.bf16.mxu0 0
      %540 = vmatmul.mubr.bf16.gmra.mrb[0].mxu0 %v404
      %v541 = vpop.f32.mrb[0].mxu0
      %v542 = vadd.f32 %v268, %v541
      %v543 = vpop.f32.mrb[0].mxu0
      %v544 = vpop.f32.mrb[0].mxu0
      %v545 = vadd.f32 %v268, %v544
      %v546 = vpop.f32.mrb[0].mxu0
      %547 = vmatprep.mubr.bf16.mxu0 0
      %548 = vmatmul.mubr.bf16.gmra.mrb[0].mxu0 %v407
      %v549 = vpop.f32.mrb[0].mxu0
      %v550 = vadd.f32 %v268, %v549
      %v551 = vpop.f32.mrb[0].mxu0
      %v552 = vpop.f32.mrb[0].mxu0
      %v553 = vadd.f32 %v268, %v552
      %v554 = vpop.f32.mrb[0].mxu0
      %555 = vmatprep.mubr.bf16.mxu0 0
      %556 = vmatmul.mubr.bf16.gmra.mrb[0].mxu0 %v410
      %v557 = vpop.f32.mrb[0].mxu0
      %v558 = vadd.f32 %v268, %v557
      %v559 = vpop.f32.mrb[0].mxu0
      %v560 = vpop.f32.mrb[0].mxu0
      %v561 = vadd.f32 %v268, %v560
      %v562 = vpop.f32.mrb[0].mxu0
      %563 = vmatprep.mubr.bf16.mxu0 0
      %564 = vmatmul.mubr.bf16.gmra.mrb[0].mxu0 %v413
      %v565 = vpop.f32.mrb[0].mxu0
      %v566 = vadd.f32 %v268, %v565
      %v567 = vpop.f32.mrb[0].mxu0
      %v568 = vpop.f32.mrb[0].mxu0
      %v569 = vadd.f32 %v268, %v568
      %v570 = vpop.f32.mrb[0].mxu0
      %571 = vmatprep.mubr.bf16.mxu0 0
      %572 = vmatmul.mubr.bf16.gmra.mrb[0].mxu0 %v416
      %v573 = vpop.f32.mrb[0].mxu0
      %v574 = vadd.f32 %v268, %v573
      %v575 = vpop.f32.mrb[0].mxu0
      %v576 = vpop.f32.mrb[0].mxu0
      %v577 = vadd.f32 %v268, %v576
      %v578 = vpop.f32.mrb[0].mxu0
      %579 = vmatprep.mubr.bf16.mxu0 0
      %580 = vmatmul.mubr.bf16.gmra.mrb[0].mxu0 %v419
      %v581 = vpop.f32.mrb[0].mxu0
      %v582 = vadd.f32 %v268, %v581
      %v583 = vpop.f32.mrb[0].mxu0
      %v584 = vpop.f32.mrb[0].mxu0
      %v585 = vadd.f32 %v268, %v584
      %v586 = vpop.f32.mrb[0].mxu0
      %587 = vmatprep.mubr.bf16.mxu0 0
      %588 = vmatmul.mubr.bf16.gmra.mrb[0].mxu0 %v422
      %v589 = vpop.f32.mrb[0].mxu0
      %v590 = vadd.f32 %v268, %v589
      %v591 = vpop.f32.mrb[0].mxu0
      %v592 = vpop.f32.mrb[0].mxu0
      %v593 = vadd.f32 %v268, %v592
      %v594 = vpop.f32.mrb[0].mxu0
      %595 = vmatprep.mubr.bf16.mxu0 0
      %596 = vmatmul.mubr.bf16.gmra.mrb[0].mxu0 %v425
      %v597 = vpop.f32.mrb[0].mxu0
      %v598 = vadd.f32 %v268, %v597
      %v599 = vpop.f32.mrb[0].mxu0
      %v600 = vpop.f32.mrb[0].mxu0
      %v601 = vadd.f32 %v268, %v600
      %v602 = vpop.f32.mrb[0].mxu0
      %603 = vdwg.mxu0
      %v604 = vmax.f32 %v462, 0.0
      %v605 = vmax.f32 %v465, 0.0
      %v606 = vmax.f32 %v470, 0.0
      %v607 = vmax.f32 %v473, 0.0
      %v608 = vmax.f32 %v478, 0.0
      %v609 = vmax.f32 %v481, 0.0
      %v610 = vmax.f32 %v486, 0.0
      %v611 = vmax.f32 %v489, 0.0
      %v612 = vmax.f32 %v494, 0.0
      %v613 = vmax.f32 %v497, 0.0
      %v614 = vmax.f32 %v502, 0.0
      %v615 = vmax.f32 %v505, 0.0
      %v616 = vmax.f32 %v510, 0.0
      %v617 = vmax.f32 %v513, 0.0
      %v618 = vmax.f32 %v518, 0.0
      %v619 = vmax.f32 %v521, 0.0
      %v620 = vmax.f32 %v526, 0.0
      %v621 = vmax.f32 %v529, 0.0
      %v622 = vmax.f32 %v534, 0.0
      %v623 = vmax.f32 %v537, 0.0
      %v624 = vmax.f32 %v542, 0.0
      %v625 = vmax.f32 %v545, 0.0
      %v626 = vmax.f32 %v550, 0.0
      %v627 = vmax.f32 %v553, 0.0
      %v628 = vmax.f32 %v558, 0.0
      %v629 = vmax.f32 %v561, 0.0
      %v630 = vmax.f32 %v566, 0.0
      %v631 = vmax.f32 %v569, 0.0
      %v632 = vmax.f32 %v574, 0.0
      %v633 = vmax.f32 %v577, 0.0
      %v634 = vmax.f32 %v582, 0.0
      %v635 = vmax.f32 %v585, 0.0
      %v636 = vmax.f32 %v590, 0.0
      %v637 = vmax.f32 %v593, 0.0
      %v638 = vmax.f32 %v598, 0.0
      %v639 = vmax.f32 %v601, 0.0
      %v640 = vpack.c.bf16 %v605, %v604
      %v641 = vpack.c.bf16 %v607, %v606
      %v642 = vpack.c.bf16 %v609, %v608
      %v643 = vpack.c.bf16 %v611, %v610
      %v644 = vpack.c.bf16 %v613, %v612
      %v645 = vpack.c.bf16 %v615, %v614
      %v646 = vpack.c.bf16 %v617, %v616
      %v647 = vpack.c.bf16 %v619, %v618
      %v648 = vpack.c.bf16 %v621, %v620
      %v649 = vpack.c.bf16 %v623, %v622
      %v650 = vpack.c.bf16 %v625, %v624
      %v651 = vpack.c.bf16 %v627, %v626
      %v652 = vpack.c.bf16 %v629, %v628
      %v653 = vpack.c.bf16 %v631, %v630
      %v654 = vpack.c.bf16 %v633, %v632
      %v655 = vpack.c.bf16 %v635, %v634
      %v656 = vpack.c.bf16 %v637, %v636
      %v657 = vpack.c.bf16 %v639, %v638
      %v676 = vunpack.c.l.b16 %v640
      %v677 = vunpack.c.h.b16 %v640
      %v678 = vunpack.c.l.b16 %v641
      %v679 = vunpack.c.h.b16 %v641
      %v680 = vunpack.c.l.b16 %v642
      %v681 = vunpack.c.h.b16 %v642
      %v682 = vunpack.c.l.b16 %v643
      %v683 = vunpack.c.h.b16 %v643
      %v684 = vunpack.c.l.b16 %v644
      %v685 = vunpack.c.h.b16 %v644
      %v686 = vunpack.c.l.b16 %v645
      %v687 = vunpack.c.h.b16 %v645
      %v688 = vunpack.c.l.b16 %v646
      %v689 = vunpack.c.h.b16 %v646
      %v690 = vunpack.c.l.b16 %v647
      %v691 = vunpack.c.h.b16 %v647
      %v692 = vunpack.c.l.b16 %v648
      %v693 = vunpack.c.h.b16 %v648
      %v694 = vunpack.c.l.b16 %v649
      %v695 = vunpack.c.h.b16 %v649
      %v696 = vunpack.c.l.b16 %v650
      %v697 = vunpack.c.h.b16 %v650
      %v698 = vunpack.c.l.b16 %v651
      %v699 = vunpack.c.h.b16 %v651
      %v700 = vunpack.c.l.b16 %v652
      %v701 = vunpack.c.h.b16 %v652
      %v702 = vunpack.c.l.b16 %v653
      %v703 = vunpack.c.h.b16 %v653
      %v704 = vunpack.c.l.b16 %v654
      %v705 = vunpack.c.h.b16 %v654
      %v706 = vunpack.c.l.b16 %v655
      %v707 = vunpack.c.h.b16 %v655
      %v708 = vunpack.c.l.b16 %v656
      %v709 = vunpack.c.h.b16 %v656
      %v710 = vunpack.c.l.b16 %v657
      %v711 = vunpack.c.h.b16 %v657
      %v712 = vpack.c.b16 %v676, %v676
      %v713 = vpack.c.b16 %v677, %v677
      %v714 = vpack.c.b16 %v678, %v678
      %v715 = vpack.c.b16 %v679, %v679
      %v716 = vpack.c.b16 %v680, %v680
      %v717 = vpack.c.b16 %v681, %v681
      %v718 = vpack.c.b16 %v682, %v682
      %v719 = vpack.c.b16 %v683, %v683
      %v720 = vpack.c.b16 %v684, %v684
      %v721 = vpack.c.b16 %v685, %v685
      %v722 = vpack.c.b16 %v686, %v686
      %v723 = vpack.c.b16 %v687, %v687
      %v724 = vpack.c.b16 %v688, %v688
      %v725 = vpack.c.b16 %v689, %v689
      %v726 = vpack.c.b16 %v690, %v690
      %v727 = vpack.c.b16 %v691, %v691
      %v728 = vpack.c.b16 %v692, %v692
      %v729 = vpack.c.b16 %v693, %v693
      %v730 = vpack.c.b16 %v694, %v694
      %v731 = vpack.c.b16 %v695, %v695
      %v732 = vpack.c.b16 %v696, %v696
      %v733 = vpack.c.b16 %v697, %v697
      %v734 = vpack.c.b16 %v698, %v698
      %v735 = vpack.c.b16 %v699, %v699
      %v736 = vpack.c.b16 %v700, %v700
      %v737 = vpack.c.b16 %v701, %v701
      %v738 = vpack.c.b16 %v702, %v702
      %v739 = vpack.c.b16 %v703, %v703
      %v740 = vpack.c.b16 %v704, %v704
      %v741 = vpack.c.b16 %v705, %v705
      %v742 = vpack.c.b16 %v706, %v706
      %v743 = vpack.c.b16 %v707, %v707
      %v744 = vpack.c.b16 %v708, %v708
      %v745 = vpack.c.b16 %v709, %v709
      %v746 = vpack.c.b16 %v710, %v710
      %v747 = vpack.c.b16 %v711, %v711
      %784 = vst [vmem:[%s221] sm:$0xf] %v712
      %785 = vst [vmem:[%s221 + $0x4] sm:$0xf] %v713
      %786 = vst [vmem:[%s221 + $0x8] sm:$0xf] %v714
      %787 = vst [vmem:[%s221 + $0xc] sm:$0xf] %v715
      %788 = vst [vmem:[%s221 + $0x10] sm:$0xf] %v716
      %789 = vst [vmem:[%s221 + $0x14] sm:$0xf] %v717
      %790 = vst [vmem:[%s221 + $0x18] sm:$0xf] %v718
      %791 = vst [vmem:[%s221 + $0x1c] sm:$0xf] %v719
      %792 = vst [vmem:[%s221 + $0x20] sm:$0xf] %v720
      %793 = vst [vmem:[%s221 + $0x24] sm:$0xf] %v721
      %794 = vst [vmem:[%s221 + $0x28] sm:$0xf] %v722
      %795 = vst [vmem:[%s221 + $0x2c] sm:$0xf] %v723
      %796 = vst [vmem:[%s221 + $0x30] sm:$0xf] %v724
      %797 = vst [vmem:[%s221 + $0x34] sm:$0xf] %v725
      %798 = vst [vmem:[%s221 + $0x38] sm:$0xf] %v726
      %799 = vst [vmem:[%s221 + $0x3c] sm:$0xf] %v727
      %800 = vst [vmem:[%s221 + $0x40] sm:$0xf] %v728
      %801 = vst [vmem:[%s221 + $0x44] sm:$0xf] %v729
      %802 = vst [vmem:[%s221 + $0x48] sm:$0xf] %v730
      %803 = vst [vmem:[%s221 + $0x4c] sm:$0xf] %v731
      %804 = vst [vmem:[%s221 + $0x50] sm:$0xf] %v732
      %805 = vst [vmem:[%s221 + $0x54] sm:$0xf] %v733
      %806 = vst [vmem:[%s221 + $0x58] sm:$0xf] %v734
      %807 = vst [vmem:[%s221 + $0x5c] sm:$0xf] %v735
      %808 = vst [vmem:[%s221 + $0x60] sm:$0xf] %v736
      %809 = vst [vmem:[%s221 + $0x64] sm:$0xf] %v737
      %810 = vst [vmem:[%s221 + $0x68] sm:$0xf] %v738
      %811 = vst [vmem:[%s221 + $0x6c] sm:$0xf] %v739
      %812 = vst [vmem:[%s221 + $0x70] sm:$0xf] %v740
      %813 = vst [vmem:[%s221 + $0x74] sm:$0xf] %v741
      %814 = vst [vmem:[%s221 + $0x78] sm:$0xf] %v742
      %815 = vst [vmem:[%s221 + $0x7c] sm:$0xf] %v743
      %816 = vst [vmem:[%s221 + $0x80] sm:$0xf] %v744
      %817 = vst [vmem:[%s221 + $0x84] sm:$0xf] %v745
      %818 = vst [vmem:[%s221 + $0x88] sm:$0xf] %v746
      %819 = vst [vmem:[%s221 + $0x8c] sm:$0xf] %v747
      %p820 = scmp.lt.s32.totalorder %s19, 1
      %s821 = scalar_select %p820, %s19, 1
      %p822 = scmp.lt.s32.totalorder %s18, 0
      %s823 = scalar_select %p822, %s18, 0
      %s824 = smul.addr %s821, 36
      %s825 = sadd.s32 %s823, %s824
      %s826 = smul.addr %s825, 4
      %s827 = scalar_lea.vmem %s3, %s826
      // Predicated region
      $region33: #{avmodel_forward.7} parent=31 // pred_check
        %p828 = pneg %p124
      $region34: #{avmodel_forward.7} parent=31 // pred_check_branch
        %830 = sbr.rel (%p828) target = $region36
      $region35: #{avmodel_forward.7} parent=31 // pred_region
        _
      $region36: #{avmodel_forward.7} parent=31 // pred_fallthru
        _
    $region32: #{avmodel_forward.7} parent=5 // pred_fallthru
      _
    %p831 = scmp.le.s32.totalorder 2, %s9
    // Predicated region
    $region37: #{avmodel_forward.7} parent=5 // pred_check
      %p832 = pneg %p831
    $region38: #{avmodel_forward.7} parent=5 // pred_check_branch
      %834 = sbr.rel (%p832) target = $region40
    $region39: #{avmodel_forward.7} parent=5 // pred_region
      %s835 = ssub.s32 %s9, 2
      // Predicated region
      $region41: #{avmodel_forward.7} parent=39 // pred_check
        %p836 = pneg %p130
      $region42: #{avmodel_forward.7} parent=39 // pred_check_branch
        %838 = sbr.rel (%p836) target = $region44
      $region43: #{avmodel_forward.7} parent=39 // pred_region
        %p839 = scmp.lt.s32.totalorder %s21, 1
        %s840 = scalar_select %p839, %s21, 1
        %p841 = scmp.lt.s32.totalorder %s20, 0
        %s842 = scalar_select %p841, %s20, 0
        %s843 = smul.addr %s840, 36
        %s844 = sadd.s32 %s842, %s843
        %s845 = smul.addr %s844, 4
        %s846 = scalar_lea.vmem %s3, %s845
      $region44: #{avmodel_forward.7} parent=39 // pred_fallthru
        _
    $region40: #{avmodel_forward.7} parent=5 // pred_fallthru
      _
  $region6: #{avmodel_forward.7} parent=0 // loop_footer
    %s13 = sadd.s32 1, %s9
  $region7: #{avmodel_forward.7} parent=0 // loop_footer_branch
    %8 = sbr.rel target = $region3
  $region8: #{avmodel_forward.7} parent=0 // loop_exit
    _

// kernel: avmodel_forward.8
$region0: #{avmodel_forward.8}
  #allocation0 [shape = 'u32[]', space=smem, size = 0x4, offset = 0x4, fixed_abs, tag = 'smem constant byte address 0x4 - core index']
  #allocation1 [shape = 'u32[144,128]{1,0:T(1,128)}', space=vmem, size = 0x12000, scoped, tag = 'internal scratch']
  %s0 = inlined_call_operand.vmem [shape: bf16[16,2,9,256], index: 0, kind: input, shape index: {}]
  %s1 = inlined_call_operand.vmem [shape: bf16[2,11,10,128], index: 1, kind: output, shape index: {}]
  %s2 = sld [smem:[#allocation0]]
  $region37: #{avmodel_forward.8} parent=0
    _
  %s4 = ssub.s32 1, %s2
  %s5 = scalar_select 0, %s4, %s2
  loop: start=0, step=1, limit=4
  $region2: #{avmodel_forward.8} parent=0 // loop_pre_header
    _
  $region3: #{avmodel_forward.8} parent=0 // loop_header
    %s7 = sphi 0, %s11
    %p8 = scmp.ge.s32.totalorder %s7, 4
    %s17 = sphi 0, %s19
    %s20 = sphi 0, %s17
    %s21 = sphi 0, %s20
    %s37 = sphi 0, %s21
    %s43 = sphi 0, %s45
    %s46 = sphi 0, %s43
    %s47 = sphi 0, %s46
    %s63 = sphi 0, %s47
  $region4: #{avmodel_forward.8} parent=0 // loop_header_branch
    %10 = sbr.rel (%p8) target = $region8
  $region5: #{avmodel_forward.8} parent=0 // loop_body
    %s12 = ssub.s32 %s7, 1
    %s13 = ssub.s32 %s7, 2
    %s14 = sadd.s32 %s7, 1
    %s15 = ssub.s32 %s7, %s14
    %p16 = scmp.eq.s32.totalorder %s15, 0
    %s18 = sadd.s32 %s17, 1
    %s19 = scalar_select %p16, %s17, %s18
    %p22 = pneg %p16
    %p23 = scmp.eq.s32.totalorder %s7, 1
    %p24 = por %p22, %p23
    %p25 = scmp.ne.s32.totalorder %s17, %s20
    %p26 = scmp.eq.s32.totalorder %s7, 0
    %p27 = por %p25, %p26
    %p28 = scmp.ne.s32.totalorder %s17, %s20
    %p29 = scmp.eq.s32.totalorder %s12, 1
    %p30 = por %p28, %p29
    %p31 = scmp.ne.s32.totalorder %s20, %s21
    %p32 = scmp.eq.s32.totalorder %s12, 0
    %p33 = por %p31, %p32
    %p34 = scmp.ne.s32.totalorder %s20, %s21
    %p35 = scmp.eq.s32.totalorder %s13, 1
    %p36 = por %p34, %p35
    %p38 = scmp.ne.s32.totalorder %s21, %s37
    %p39 = scmp.eq.s32.totalorder %s13, 0
    %p40 = por %p38, %p39
    %s41 = ssub.s32 %s7, %s14
    %p42 = scmp.eq.s32.totalorder %s41, 0
    %s44 = sadd.s32 %s43, 1
    %s45 = scalar_select %p42, %s43, %s44
    %p48 = pneg %p42
    %p49 = scmp.eq.s32.totalorder %s7, 1
    %p50 = por %p48, %p49
    %p51 = scmp.ne.s32.totalorder %s43, %s46
    %p52 = scmp.eq.s32.totalorder %s7, 0
    %p53 = por %p51, %p52
    %p54 = scmp.ne.s32.totalorder %s43, %s46
    %p55 = scmp.eq.s32.totalorder %s12, 1
    %p56 = por %p54, %p55
    %p57 = scmp.ne.s32.totalorder %s46, %s47
    %p58 = scmp.eq.s32.totalorder %s12, 0
    %p59 = por %p57, %p58
    %p60 = scmp.ne.s32.totalorder %s46, %s47
    %p61 = scmp.eq.s32.totalorder %s13, 1
    %p62 = por %p60, %p61
    %p64 = scmp.ne.s32.totalorder %s47, %s63
    %p65 = scmp.eq.s32.totalorder %s13, 0
    %p66 = por %p64, %p65
    %p67 = scmp.le.s32.totalorder 1, %s7
    %p68 = scmp.lt.s32.totalorder %s7, 3
    %p69 = pnand %p67, %p68
    %p70 = pneg %p69
    // Predicated region
    $region9: #{avmodel_forward.8} parent=5 // pred_check
      _
    $region10: #{avmodel_forward.8} parent=5 // pred_check_branch
      %72 = sbr.rel (%p69) target = $region12
    $region11: #{avmodel_forward.8} parent=5 // pred_region
      %s73 = ssub.s32 %s7, 1
    $region12: #{avmodel_forward.8} parent=5 // pred_fallthru
      _
    %p74 = scmp.lt.s32.totalorder %s7, 2
    // Predicated region
    $region13: #{avmodel_forward.8} parent=5 // pred_check
      %p75 = pneg %p74
    $region14: #{avmodel_forward.8} parent=5 // pred_check_branch
      %77 = sbr.rel (%p75) target = $region16
    $region15: #{avmodel_forward.8} parent=5 // pred_region
      // Predicated region
      $region17: #{avmodel_forward.8} parent=15 // pred_check
        %p78 = pneg %p27
      $region18: #{avmodel_forward.8} parent=15 // pred_check_branch
        %80 = sbr.rel (%p78) target = $region20
      $region19: #{avmodel_forward.8} parent=15 // pred_region
        %s81 = smul.u32 8, %s7
        %p82 = scmp.lt.s32.totalorder %s81, 15
        %s83 = scalar_select %p82, %s81, 15
        %s84 = smul.addr %s83, 8
        %s85 = smul.addr %s84, 4
        %s86 = scalar_lea.vmem %s0, %s85
        %s87 = smul.u32 8, %s7
      $region20: #{avmodel_forward.8} parent=15 // pred_fallthru
        _
    $region16: #{avmodel_forward.8} parent=5 // pred_fallthru
      _
    %p88 = scmp.le.s32.totalorder 1, %s7
    %p89 = scmp.lt.s32.totalorder %s7, 3
    %p90 = pnand %p88, %p89
    %p91 = pneg %p90
    // Predicated region
    $region21: #{avmodel_forward.8} parent=5 // pred_check
      _
    $region22: #{avmodel_forward.8} parent=5 // pred_check_branch
      %93 = sbr.rel (%p90) target = $region24
    $region23: #{avmodel_forward.8} parent=5 // pred_region
      %s94 = ssub.s32 %s7, 1
      %s95 = smul.u32 8, %s12
      %p96 = scmp.lt.s32.totalorder %s95, 15
      %s97 = scalar_select %p96, %s95, 15
      %s98 = smul.addr %s97, 8
      %s99 = smul.addr %s98, 4
      %s100 = scalar_lea.vmem %s0, %s99
      %p101 = pneg %p33
      %p102 = pneg %p30
      %p103 = pneg %p59
      %p104 = pneg %p56
      %p105 = scmp.lt.s32.totalorder %s12, 1
      %s106 = scalar_select %p105, %s12, 1
      %s107 = smul.addr %s106, 22
      %s108 = smul.addr %s107, 4
      %s109 = scalar_lea.vmem %s1, %s108
      %s110 = smul.u32 8, %s12
      %p111 = scmp.lt.s32.totalorder %s110, 15
      %s112 = scalar_select %p111, %s110, 15
      %s113 = smul.addr %s112, 8
      %s114 = smul.addr %s113, 4
      %s115 = scalar_lea.vmem %s0, %s114
      %s116 = smul.u32 8, %s12
      %p117 = scmp.lt.s32.totalorder %s12, 1
      %s118 = scalar_select %p117, %s12, 1
      %s119 = smul.addr %s118, 22
      %s120 = smul.addr %s119, 4
      %s121 = scalar_lea.vmem %s1, %s120
      %123 = vst [vmem:[%s121] sm:$0xf] 0
      %124 = vst [vmem:[%s121 + $0x4] sm:$0x1] 0
      %125 = vst [vmem:[%s121 + $0x8] sm:$0xf] 0
      %126 = vst [vmem:[%s121 + $0xc] sm:$0x1] 0
      %127 = vst [vmem:[%s121 + $0x10] sm:$0xf] 0
      %128 = vst [vmem:[%s121 + $0x14] sm:$0x1] 0
      %129 = vst [vmem:[%s121 + $0x18] sm:$0xf] 0
      %130 = vst [vmem:[%s121 + $0x1c] sm:$0x1] 0
      %131 = vst [vmem:[%s121 + $0x20] sm:$0xf] 0
      %132 = vst [vmem:[%s121 + $0x24] sm:$0x1] 0
      %133 = vst [vmem:[%s121 + $0x28] sm:$0xf] 0
      %134 = vst [vmem:[%s121 + $0x2c] sm:$0x1] 0
      %135 = vst [vmem:[%s121 + $0x30] sm:$0xf] 0
      %136 = vst [vmem:[%s121 + $0x34] sm:$0x1] 0
      %137 = vst [vmem:[%s121 + $0x38] sm:$0xf] 0
      %138 = vst [vmem:[%s121 + $0x3c] sm:$0x1] 0
      %139 = vst [vmem:[%s121 + $0x40] sm:$0xf] 0
      %140 = vst [vmem:[%s121 + $0x44] sm:$0x1] 0
      %141 = vst [vmem:[%s121 + $0x48] sm:$0xf] 0
      %142 = vst [vmem:[%s121 + $0x4c] sm:$0x1] 0
      %143 = vst [vmem:[%s121 + $0x50] sm:$0xf] 0
      %144 = vst [vmem:[%s121 + $0x54] sm:$0x1] 0
      %v145 = vld [vmem:[%s115] sm:$0xff]
      %v146 = vld [vmem:[%s115 + $0x20] sm:$0xff]
      %v147 = vld [vmem:[%s115 + $0x40] sm:$0xff]
      %v148 = vld [vmem:[%s115 + $0x60] sm:$0xff]
      %v149 = vld [vmem:[%s115 + $0x80] sm:$0xff]
      %v150 = vld [vmem:[%s115 + $0xa0] sm:$0xff]
      %v151 = vld [vmem:[%s115 + $0xc0] sm:$0xff]
      %v152 = vld [vmem:[%s115 + $0xe0] sm:$0xff]
      %s153 = scalar_lea.vmem %s115, 16
      %v154 = vld [vmem:[%s153] sm:$0xff]
      %v155 = vld [vmem:[%s153 + $0x20] sm:$0xff]
      %v156 = vld [vmem:[%s153 + $0x40] sm:$0xff]
      %v157 = vld [vmem:[%s153 + $0x60] sm:$0xff]
      %v158 = vld [vmem:[%s153 + $0x80] sm:$0xff]
      %v159 = vld [vmem:[%s153 + $0xa0] sm:$0xff]
      %v160 = vld [vmem:[%s153 + $0xc0] sm:$0xff]
      %v161 = vld [vmem:[%s153 + $0xe0] sm:$0xff]
      %v162 = vmax.bf16 %v145, %v154
      %v163 = vmax.bf16 %v146, %v155
      %v164 = vmax.bf16 %v147, %v156
      %v165 = vmax.bf16 %v148, %v157
      %v166 = vmax.bf16 %v149, %v158
      %v167 = vmax.bf16 %v150, %v159
      %v168 = vmax.bf16 %v151, %v160
      %v169 = vmax.bf16 %v152, %v161
      %v178 = vrot.slane %v162, 4
      %v179 = vrot.slane %v163, 4
      %v180 = vrot.slane %v164, 4
      %v181 = vrot.slane %v165, 4
      %v182 = vrot.slane %v166, 4
      %v183 = vrot.slane %v167, 4
      %v184 = vrot.slane %v168, 4
      %v185 = vrot.slane %v169, 4
      %v194 = vmax.bf16 %v162, %v178
      %v195 = vmax.bf16 %v163, %v179
      %v196 = vmax.bf16 %v164, %v180
      %v197 = vmax.bf16 %v165, %v181
      %v198 = vmax.bf16 %v166, %v182
      %v199 = vmax.bf16 %v167, %v183
      %v200 = vmax.bf16 %v168, %v184
      %v201 = vmax.bf16 %v169, %v185
      %v203 = vshrl.u32 %v194, 16
      %v205 = vrot.slane %v203, 7
      %v206 = vshll.u32 %v194, 16
      %v208 = vor.u32 %v205, %v206
      %v209 = vrot.slane %v205, 4
      %v211 = vshrl.u32 %v195, 16
      %v213 = vrot.slane %v211, 7
      %v214 = vshll.u32 %v195, 16
      %v216 = vor.u32 %v213, %v214
      %v217 = vrot.slane %v213, 4
      %v219 = vshrl.u32 %v196, 16
      %v221 = vrot.slane %v219, 7
      %v222 = vshll.u32 %v196, 16
      %v224 = vor.u32 %v221, %v222
      %v225 = vrot.slane %v221, 4
      %v227 = vshrl.u32 %v197, 16
      %v229 = vrot.slane %v227, 7
      %v230 = vshll.u32 %v197, 16
      %v232 = vor.u32 %v229, %v230
      %v233 = vrot.slane %v229, 4
      %v235 = vshrl.u32 %v198, 16
      %v237 = vrot.slane %v235, 7
      %v238 = vshll.u32 %v198, 16
      %v240 = vor.u32 %v237, %v238
      %v241 = vrot.slane %v237, 4
      %v243 = vshrl.u32 %v199, 16
      %v245 = vrot.slane %v243, 7
      %v246 = vshll.u32 %v199, 16
      %v248 = vor.u32 %v245, %v246
      %v249 = vrot.slane %v245, 4
      %v251 = vshrl.u32 %v200, 16
      %v253 = vrot.slane %v251, 7
      %v254 = vshll.u32 %v200, 16
      %v256 = vor.u32 %v253, %v254
      %v257 = vrot.slane %v253, 4
      %v259 = vshrl.u32 %v201, 16
      %v261 = vrot.slane %v259, 7
      %v262 = vshll.u32 %v201, 16
      %v264 = vor.u32 %v261, %v262
      %v265 = vrot.slane %v261, 4
      %s282 = scalar_lea.vmem %s121, 8
      %vm283 = vcmask 1043456
      %vm284 = vsmask.f32 7938
      %vm285 = vmand %vm283, %vm284
      %v286 = vld [vmem:[%s282] sm:$0xf]
      %v287 = vsel %vm285, %v208, %v286
      %288 = vst [vmem:[%s282] sm:$0xf] %v287
      %vm289 = vcmask 1040384
      %vm290 = vsmask.f32 256
      %vm291 = vmand %vm289, %vm290
      %v292 = vld [vmem:[%s282 + $0x4] sm:$0x1]
      %v293 = vsel %vm291, %v209, %v292
      %294 = vst [vmem:[%s282 + $0x4] sm:$0x1] %v293
      %v295 = vld [vmem:[%s282 + $0x8] sm:$0xf]
      %v296 = vsel %vm285, %v216, %v295
      %297 = vst [vmem:[%s282 + $0x8] sm:$0xf] %v296
      %v298 = vld [vmem:[%s282 + $0xc] sm:$0x1]
      %v299 = vsel %vm291, %v217, %v298
      %300 = vst [vmem:[%s282 + $0xc] sm:$0x1] %v299
      %v301 = vld [vmem:[%s282 + $0x10] sm:$0xf]
      %v302 = vsel %vm285, %v224, %v301
      %303 = vst [vmem:[%s282 + $0x10] sm:$0xf] %v302
      %v304 = vld [vmem:[%s282 + $0x14] sm:$0x1]
      %v305 = vsel %vm291, %v225, %v304
      %306 = vst [vmem:[%s282 + $0x14] sm:$0x1] %v305
      %v307 = vld [vmem:[%s282 + $0x18] sm:$0xf]
      %v308 = vsel %vm285, %v232, %v307
      %309 = vst [vmem:[%s282 + $0x18] sm:$0xf] %v308
      %v310 = vld [vmem:[%s282 + $0x1c] sm:$0x1]
      %v311 = vsel %vm291, %v233, %v310
      %312 = vst [vmem:[%s282 + $0x1c] sm:$0x1] %v311
      %v313 = vld [vmem:[%s282 + $0x20] sm:$0xf]
      %v314 = vsel %vm285, %v240, %v313
      %315 = vst [vmem:[%s282 + $0x20] sm:$0xf] %v314
      %v316 = vld [vmem:[%s282 + $0x24] sm:$0x1]
      %v317 = vsel %vm291, %v241, %v316
      %318 = vst [vmem:[%s282 + $0x24] sm:$0x1] %v317
      %v319 = vld [vmem:[%s282 + $0x28] sm:$0xf]
      %v320 = vsel %vm285, %v248, %v319
      %321 = vst [vmem:[%s282 + $0x28] sm:$0xf] %v320
      %v322 = vld [vmem:[%s282 + $0x2c] sm:$0x1]
      %v323 = vsel %vm291, %v249, %v322
      %324 = vst [vmem:[%s282 + $0x2c] sm:$0x1] %v323
      %v325 = vld [vmem:[%s282 + $0x30] sm:$0xf]
      %v326 = vsel %vm285, %v256, %v325
      %327 = vst [vmem:[%s282 + $0x30] sm:$0xf] %v326
      %v328 = vld [vmem:[%s282 + $0x34] sm:$0x1]
      %v329 = vsel %vm291, %v257, %v328
      %330 = vst [vmem:[%s282 + $0x34] sm:$0x1] %v329
      %v331 = vld [vmem:[%s282 + $0x38] sm:$0xf]
      %v332 = vsel %vm285, %v264, %v331
      %333 = vst [vmem:[%s282 + $0x38] sm:$0xf] %v332
      %v334 = vld [vmem:[%s282 + $0x3c] sm:$0x1]
      %v335 = vsel %vm291, %v265, %v334
      %336 = vst [vmem:[%s282 + $0x3c] sm:$0x1] %v335
      %p337 = scmp.lt.s32.totalorder %s12, 1
      %s338 = scalar_select %p337, %s12, 1
      %s339 = smul.addr %s338, 22
      %s340 = smul.addr %s339, 4
      %s341 = scalar_lea.vmem %s1, %s340
      // Predicated region
      $region25: #{avmodel_forward.8} parent=23 // pred_check
        %p342 = pneg %p56
      $region26: #{avmodel_forward.8} parent=23 // pred_check_branch
        %344 = sbr.rel (%p342) target = $region28
      $region27: #{avmodel_forward.8} parent=23 // pred_region
        _
      $region28: #{avmodel_forward.8} parent=23 // pred_fallthru
        _
    $region24: #{avmodel_forward.8} parent=5 // pred_fallthru
      _
    %p345 = scmp.le.s32.totalorder 2, %s7
    // Predicated region
    $region29: #{avmodel_forward.8} parent=5 // pred_check
      %p346 = pneg %p345
    $region30: #{avmodel_forward.8} parent=5 // pred_check_branch
      %348 = sbr.rel (%p346) target = $region32
    $region31: #{avmodel_forward.8} parent=5 // pred_region
      %s349 = ssub.s32 %s7, 2
      // Predicated region
      $region33: #{avmodel_forward.8} parent=31 // pred_check
        %p350 = pneg %p62
      $region34: #{avmodel_forward.8} parent=31 // pred_check_branch
        %352 = sbr.rel (%p350) target = $region36
      $region35: #{avmodel_forward.8} parent=31 // pred_region
        %p353 = scmp.lt.s32.totalorder %s13, 1
        %s354 = scalar_select %p353, %s13, 1
        %s355 = smul.addr %s354, 22
        %s356 = smul.addr %s355, 4
        %s357 = scalar_lea.vmem %s1, %s356
      $region36: #{avmodel_forward.8} parent=31 // pred_fallthru
        _
    $region32: #{avmodel_forward.8} parent=5 // pred_fallthru
      _
  $region6: #{avmodel_forward.8} parent=0 // loop_footer
    %s11 = sadd.s32 1, %s7
  $region7: #{avmodel_forward.8} parent=0 // loop_footer_branch
    %6 = sbr.rel target = $region3
  $region8: #{avmodel_forward.8} parent=0 // loop_exit
    _

// kernel: avmodel_forward.13
$region0: #{avmodel_forward.13}
  #allocation0 [shape = 'u32[]', space=smem, size = 0x4, offset = 0x4, fixed_abs, tag = 'smem constant byte address 0x4 - core index']
  #allocation1 [shape = 'u32[144,128]{1,0:T(1,128)}', space=vmem, size = 0x12000, scoped, tag = 'internal scratch']
  %s0 = inlined_call_operand.vmem [shape: bf16[2,512], index: 0, kind: input, shape index: {}]
  %s1 = inlined_call_operand.vmem [shape: bf16[2,512], index: 1, kind: input, shape index: {}]
  %s2 = inlined_call_operand.vmem [shape: bf16[1024,384], index: 2, kind: input, shape index: {}]
  %s3 = inlined_call_operand.vmem [shape: f32[1,384], index: 3, kind: input, shape index: {}]
  %s4 = inlined_call_operand.hbm [shape: f32[2,384], index: 4, kind: output, shape index: {}]
  %s5 = sld [smem:[#allocation0]]
  $region26: #{avmodel_forward.13} parent=0
    _
  %s7 = ssub.s32 1, %s5
  %s8 = scalar_select 0, %s7, %s5
  $region1: #{avmodel_forward.13} parent=0
    #allocation2 [shape = 'u8[3072]{0}', space=vmem, size = 0xc00, scoped, tag = 'output window, operand 0, single buffered']
    #allocation3 [shape = 's32[1]{0}', space=sflag, size = 0x4, scoped, tag = 'scoped memory for avmodel_forward.13']
    %9 = vsyncpa [#allocation3], 0
    // Predicated region
    $region2: #{avmodel_forward.13} parent=1 // pred_check
      _
    $region3: #{avmodel_forward.13} parent=1 // pred_check_branch
      %11 = sbr.rel (0) target = $region5
    $region4: #{avmodel_forward.13} parent=1 // pred_region
      _
    $region5: #{avmodel_forward.13} parent=1 // pred_fallthru
      _
    // Predicated region
    $region6: #{avmodel_forward.13} parent=1 // pred_check
      _
    $region7: #{avmodel_forward.13} parent=1 // pred_check_branch
      %13 = sbr.rel (0) target = $region9
    $region8: #{avmodel_forward.13} parent=1 // pred_region
      _
    $region9: #{avmodel_forward.13} parent=1 // pred_fallthru
      _
    // Predicated region
    $region10: #{avmodel_forward.13} parent=1 // pred_check
      _
    $region11: #{avmodel_forward.13} parent=1 // pred_check_branch
      %15 = sbr.rel (0) target = $region13
    $region12: #{avmodel_forward.13} parent=1 // pred_region
      _
    $region13: #{avmodel_forward.13} parent=1 // pred_fallthru
      _
    // Predicated region
    $region14: #{avmodel_forward.13} parent=1 // pred_check
      _
    $region15: #{avmodel_forward.13} parent=1 // pred_check_branch
      %17 = sbr.rel (0) target = $region17
    $region16: #{avmodel_forward.13} parent=1 // pred_region
      _
    $region17: #{avmodel_forward.13} parent=1 // pred_fallthru
      _
    %v19 = vld [vmem:[%s0] sm:$0xf]
    %v20 = vld [vmem:[%s2] sm:$0xff]
    %v21 = vld [vmem:[%s2 + $0x8] sm:$0xf]
    %v22 = vld [vmem:[%s2 + $0xc] sm:$0xff]
    %v23 = vld [vmem:[%s2 + $0x14] sm:$0xf]
    %v24 = vld [vmem:[%s2 + $0x18] sm:$0xff]
    %v25 = vld [vmem:[%s2 + $0x20] sm:$0xf]
    %v26 = vld [vmem:[%s2 + $0x24] sm:$0xff]
    %v27 = vld [vmem:[%s2 + $0x2c] sm:$0xf]
    %v28 = vld [vmem:[%s2 + $0x30] sm:$0xff]
    %v29 = vld [vmem:[%s2 + $0x38] sm:$0xf]
    %v30 = vld [vmem:[%s2 + $0x3c] sm:$0xff]
    %v31 = vld [vmem:[%s2 + $0x44] sm:$0xf]
    %v32 = vld [vmem:[%s2 + $0x48] sm:$0xff]
    %v33 = vld [vmem:[%s2 + $0x50] sm:$0xf]
    %v34 = vld [vmem:[%s2 + $0x54] sm:$0xff]
    %v35 = vld [vmem:[%s2 + $0x5c] sm:$0xf]
    %v36 = vld [vmem:[%s2 + $0x60] sm:$0xff]
    %v37 = vld [vmem:[%s2 + $0x68] sm:$0xf]
    %v38 = vld [vmem:[%s2 + $0x6c] sm:$0xff]
    %v39 = vld [vmem:[%s2 + $0x74] sm:$0xf]
    %v40 = vld [vmem:[%s2 + $0x78] sm:$0xff]
    %v41 = vld [vmem:[%s2 + $0x80] sm:$0xf]
    %v42 = vld [vmem:[%s2 + $0x84] sm:$0xff]
    %v43 = vld [vmem:[%s2 + $0x8c] sm:$0xf]
    %v44 = vld [vmem:[%s2 + $0x90] sm:$0xff]
    %v45 = vld [vmem:[%s2 + $0x98] sm:$0xf]
    %v46 = vld [vmem:[%s2 + $0x9c] sm:$0xff]
    %v47 = vld [vmem:[%s2 + $0xa4] sm:$0xf]
    %v48 = vld [vmem:[%s2 + $0xa8] sm:$0xff]
    %v49 = vld [vmem:[%s2 + $0xb0] sm:$0xf]
    %v50 = vld [vmem:[%s2 + $0xb4] sm:$0xff]
    %v51 = vld [vmem:[%s2 + $0xbc] sm:$0xf]
    %v52 = vld [vmem:[%s2 + $0xc0] sm:$0xff]
    %v53 = vld [vmem:[%s2 + $0xc8] sm:$0xf]
    %v54 = vld [vmem:[%s2 + $0xcc] sm:$0xff]
    %v55 = vld [vmem:[%s2 + $0xd4] sm:$0xf]
    %v56 = vld [vmem:[%s2 + $0xd8] sm:$0xff]
    %v57 = vld [vmem:[%s2 + $0xe0] sm:$0xf]
    %v58 = vld [vmem:[%s2 + $0xe4] sm:$0xff]
    %v59 = vld [vmem:[%s2 + $0xec] sm:$0xf]
    %v60 = vld [vmem:[%s2 + $0xf0] sm:$0xff]
    %v61 = vld [vmem:[%s2 + $0xf8] sm:$0xf]
    %v62 = vld [vmem:[%s2 + $0xfc] sm:$0xff]
    %v63 = vld [vmem:[%s2 + $0x104] sm:$0xf]
    %v64 = vld [vmem:[%s2 + $0x108] sm:$0xff]
    %v65 = vld [vmem:[%s2 + $0x110] sm:$0xf]
    %v66 = vld [vmem:[%s2 + $0x114] sm:$0xff]
    %v67 = vld [vmem:[%s2 + $0x11c] sm:$0xf]
    %v68 = vld [vmem:[%s2 + $0x120] sm:$0xff]
    %v69 = vld [vmem:[%s2 + $0x128] sm:$0xf]
    %v70 = vld [vmem:[%s2 + $0x12c] sm:$0xff]
    %v71 = vld [vmem:[%s2 + $0x134] sm:$0xf]
    %v72 = vld [vmem:[%s2 + $0x138] sm:$0xff]
    %v73 = vld [vmem:[%s2 + $0x140] sm:$0xf]
    %v74 = vld [vmem:[%s2 + $0x144] sm:$0xff]
    %v75 = vld [vmem:[%s2 + $0x14c] sm:$0xf]
    %v76 = vld [vmem:[%s2 + $0x150] sm:$0xff]
    %v77 = vld [vmem:[%s2 + $0x158] sm:$0xf]
    %v78 = vld [vmem:[%s2 + $0x15c] sm:$0xff]
    %v79 = vld [vmem:[%s2 + $0x164] sm:$0xf]
    %v80 = vld [vmem:[%s2 + $0x168] sm:$0xff]
    %v81 = vld [vmem:[%s2 + $0x170] sm:$0xf]
    %v82 = vld [vmem:[%s2 + $0x174] sm:$0xff]
    %v83 = vld [vmem:[%s2 + $0x17c] sm:$0xf]
    %v84 = vld [vmem:[%s2 + $0x180] sm:$0xff]
    %v85 = vld [vmem:[%s2 + $0x188] sm:$0xf]
    %v86 = vld [vmem:[%s2 + $0x18c] sm:$0xff]
    %v87 = vld [vmem:[%s2 + $0x194] sm:$0xf]
    %v88 = vld [vmem:[%s2 + $0x198] sm:$0xff]
    %v89 = vld [vmem:[%s2 + $0x1a0] sm:$0xf]
    %v90 = vld [vmem:[%s2 + $0x1a4] sm:$0xff]
    %v91 = vld [vmem:[%s2 + $0x1ac] sm:$0xf]
    %v92 = vld [vmem:[%s2 + $0x1b0] sm:$0xff]
    %v93 = vld [vmem:[%s2 + $0x1b8] sm:$0xf]
    %v94 = vld [vmem:[%s2 + $0x1bc] sm:$0xff]
    %v95 = vld [vmem:[%s2 + $0x1c4] sm:$0xf]
    %v96 = vld [vmem:[%s2 + $0x1c8] sm:$0xff]
    %v97 = vld [vmem:[%s2 + $0x1d0] sm:$0xf]
    %v98 = vld [vmem:[%s2 + $0x1d4] sm:$0xff]
    %v99 = vld [vmem:[%s2 + $0x1dc] sm:$0xf]
    %v100 = vld [vmem:[%s2 + $0x1e0] sm:$0xff]
    %v101 = vld [vmem:[%s2 + $0x1e8] sm:$0xf]
    %v102 = vld [vmem:[%s2 + $0x1ec] sm:$0xff]
    %v103 = vld [vmem:[%s2 + $0x1f4] sm:$0xf]
    %v104 = vld [vmem:[%s2 + $0x1f8] sm:$0xff]
    %v105 = vld [vmem:[%s2 + $0x200] sm:$0xf]
    %v106 = vld [vmem:[%s2 + $0x204] sm:$0xff]
    %v107 = vld [vmem:[%s2 + $0x20c] sm:$0xf]
    %v108 = vld [vmem:[%s2 + $0x210] sm:$0xff]
    %v109 = vld [vmem:[%s2 + $0x218] sm:$0xf]
    %v110 = vld [vmem:[%s2 + $0x21c] sm:$0xff]
    %v111 = vld [vmem:[%s2 + $0x224] sm:$0xf]
    %v112 = vld [vmem:[%s2 + $0x228] sm:$0xff]
    %v113 = vld [vmem:[%s2 + $0x230] sm:$0xf]
    %v114 = vld [vmem:[%s2 + $0x234] sm:$0xff]
    %v115 = vld [vmem:[%s2 + $0x23c] sm:$0xf]
    %v116 = vld [vmem:[%s2 + $0x240] sm:$0xff]
    %v117 = vld [vmem:[%s2 + $0x248] sm:$0xf]
    %v118 = vld [vmem:[%s2 + $0x24c] sm:$0xff]
    %v119 = vld [vmem:[%s2 + $0x254] sm:$0xf]
    %v120 = vld [vmem:[%s2 + $0x258] sm:$0xff]
    %v121 = vld [vmem:[%s2 + $0x260] sm:$0xf]
    %v122 = vld [vmem:[%s2 + $0x264] sm:$0xff]
    %v123 = vld [vmem:[%s2 + $0x26c] sm:$0xf]
    %v124 = vld [vmem:[%s2 + $0x270] sm:$0xff]
    %v125 = vld [vmem:[%s2 + $0x278] sm:$0xf]
    %v126 = vld [vmem:[%s2 + $0x27c] sm:$0xff]
    %v127 = vld [vmem:[%s2 + $0x284] sm:$0xf]
    %v128 = vld [vmem:[%s2 + $0x288] sm:$0xff]
    %v129 = vld [vmem:[%s2 + $0x290] sm:$0xf]
    %v130 = vld [vmem:[%s2 + $0x294] sm:$0xff]
    %v131 = vld [vmem:[%s2 + $0x29c] sm:$0xf]
    %v132 = vld [vmem:[%s2 + $0x2a0] sm:$0xff]
    %v133 = vld [vmem:[%s2 + $0x2a8] sm:$0xf]
    %v134 = vld [vmem:[%s2 + $0x2ac] sm:$0xff]
    %v135 = vld [vmem:[%s2 + $0x2b4] sm:$0xf]
    %v136 = vld [vmem:[%s2 + $0x2b8] sm:$0xff]
    %v137 = vld [vmem:[%s2 + $0x2c0] sm:$0xf]
    %v138 = vld [vmem:[%s2 + $0x2c4] sm:$0xff]
    %v139 = vld [vmem:[%s2 + $0x2cc] sm:$0xf]
    %v140 = vld [vmem:[%s2 + $0x2d0] sm:$0xff]
    %v141 = vld [vmem:[%s2 + $0x2d8] sm:$0xf]
    %v142 = vld [vmem:[%s2 + $0x2dc] sm:$0xff]
    %v143 = vld [vmem:[%s2 + $0x2e4] sm:$0xf]
    %v144 = vld [vmem:[%s2 + $0x2e8] sm:$0xff]
    %v145 = vld [vmem:[%s2 + $0x2f0] sm:$0xf]
    %v146 = vld [vmem:[%s2 + $0x2f4] sm:$0xff]
    %v147 = vld [vmem:[%s2 + $0x2fc] sm:$0xf]
    %v148 = vld [vmem:[%s1] sm:$0xf]
    %v149 = vld [vmem:[%s2 + $0x300] sm:$0xff]
    %v150 = vld [vmem:[%s2 + $0x308] sm:$0xf]
    %v151 = vld [vmem:[%s2 + $0x30c] sm:$0xff]
    %v152 = vld [vmem:[%s2 + $0x314] sm:$0xf]
    %v153 = vld [vmem:[%s2 + $0x318] sm:$0xff]
    %v154 = vld [vmem:[%s2 + $0x320] sm:$0xf]
    %v155 = vld [vmem:[%s2 + $0x324] sm:$0xff]
    %v156 = vld [vmem:[%s2 + $0x32c] sm:$0xf]
    %v157 = vld [vmem:[%s2 + $0x330] sm:$0xff]
    %v158 = vld [vmem:[%s2 + $0x338] sm:$0xf]
    %v159 = vld [vmem:[%s2 + $0x33c] sm:$0xff]
    %v160 = vld [vmem:[%s2 + $0x344] sm:$0xf]
    %v161 = vld [vmem:[%s2 + $0x348] sm:$0xff]
    %v162 = vld [vmem:[%s2 + $0x350] sm:$0xf]
    %v163 = vld [vmem:[%s2 + $0x354] sm:$0xff]
    %v164 = vld [vmem:[%s2 + $0x35c] sm:$0xf]
    %v165 = vld [vmem:[%s2 + $0x360] sm:$0xff]
    %v166 = vld [vmem:[%s2 + $0x368] sm:$0xf]
    %v167 = vld [vmem:[%s2 + $0x36c] sm:$0xff]
    %v168 = vld [vmem:[%s2 + $0x374] sm:$0xf]
    %v169 = vld [vmem:[%s2 + $0x378] sm:$0xff]
    %v170 = vld [vmem:[%s2 + $0x380] sm:$0xf]
    %v171 = vld [vmem:[%s2 + $0x384] sm:$0xff]
    %v172 = vld [vmem:[%s2 + $0x38c] sm:$0xf]
    %v173 = vld [vmem:[%s2 + $0x390] sm:$0xff]
    %v174 = vld [vmem:[%s2 + $0x398] sm:$0xf]
    %v175 = vld [vmem:[%s2 + $0x39c] sm:$0xff]
    %v176 = vld [vmem:[%s2 + $0x3a4] sm:$0xf]
    %v177 = vld [vmem:[%s2 + $0x3a8] sm:$0xff]
    %v178 = vld [vmem:[%s2 + $0x3b0] sm:$0xf]
    %v179 = vld [vmem:[%s2 + $0x3b4] sm:$0xff]
    %v180 = vld [vmem:[%s2 + $0x3bc] sm:$0xf]
    %v181 = vld [vmem:[%s2 + $0x3c0] sm:$0xff]
    %v182 = vld [vmem:[%s2 + $0x3c8] sm:$0xf]
    %v183 = vld [vmem:[%s2 + $0x3cc] sm:$0xff]
    %v184 = vld [vmem:[%s2 + $0x3d4] sm:$0xf]
    %v185 = vld [vmem:[%s2 + $0x3d8] sm:$0xff]
    %v186 = vld [vmem:[%s2 + $0x3e0] sm:$0xf]
    %v187 = vld [vmem:[%s2 + $0x3e4] sm:$0xff]
    %v188 = vld [vmem:[%s2 + $0x3ec] sm:$0xf]
    %v189 = vld [vmem:[%s2 + $0x3f0] sm:$0xff]
    %v190 = vld [vmem:[%s2 + $0x3f8] sm:$0xf]
    %v191 = vld [vmem:[%s2 + $0x3fc] sm:$0xff]
    %v192 = vld [vmem:[%s2 + $0x404] sm:$0xf]
    %v193 = vld [vmem:[%s2 + $0x408] sm:$0xff]
    %v194 = vld [vmem:[%s2 + $0x410] sm:$0xf]
    %v195 = vld [vmem:[%s2 + $0x414] sm:$0xff]
    %v196 = vld [vmem:[%s2 + $0x41c] sm:$0xf]
    %v197 = vld [vmem:[%s2 + $0x420] sm:$0xff]
    %v198 = vld [vmem:[%s2 + $0x428] sm:$0xf]
    %v199 = vld [vmem:[%s2 + $0x42c] sm:$0xff]
    %v200 = vld [vmem:[%s2 + $0x434] sm:$0xf]
    %v201 = vld [vmem:[%s2 + $0x438] sm:$0xff]
    %v202 = vld [vmem:[%s2 + $0x440] sm:$0xf]
    %v203 = vld [vmem:[%s2 + $0x444] sm:$0xff]
    %v204 = vld [vmem:[%s2 + $0x44c] sm:$0xf]
    %v205 = vld [vmem:[%s2 + $0x450] sm:$0xff]
    %v206 = vld [vmem:[%s2 + $0x458] sm:$0xf]
    %v207 = vld [vmem:[%s2 + $0x45c] sm:$0xff]
    %v208 = vld [vmem:[%s2 + $0x464] sm:$0xf]
    %v209 = vld [vmem:[%s2 + $0x468] sm:$0xff]
    %v210 = vld [vmem:[%s2 + $0x470] sm:$0xf]
    %v211 = vld [vmem:[%s2 + $0x474] sm:$0xff]
    %v212 = vld [vmem:[%s2 + $0x47c] sm:$0xf]
    %v213 = vld [vmem:[%s2 + $0x480] sm:$0xff]
    %v214 = vld [vmem:[%s2 + $0x488] sm:$0xf]
    %v215 = vld [vmem:[%s2 + $0x48c] sm:$0xff]
    %v216 = vld [vmem:[%s2 + $0x494] sm:$0xf]
    %v217 = vld [vmem:[%s2 + $0x498] sm:$0xff]
    %v218 = vld [vmem:[%s2 + $0x4a0] sm:$0xf]
    %v219 = vld [vmem:[%s2 + $0x4a4] sm:$0xff]
    %v220 = vld [vmem:[%s2 + $0x4ac] sm:$0xf]
    %v221 = vld [vmem:[%s2 + $0x4b0] sm:$0xff]
    %v222 = vld [vmem:[%s2 + $0x4b8] sm:$0xf]
    %v223 = vld [vmem:[%s2 + $0x4bc] sm:$0xff]
    %v224 = vld [vmem:[%s2 + $0x4c4] sm:$0xf]
    %v225 = vld [vmem:[%s2 + $0x4c8] sm:$0xff]
    %v226 = vld [vmem:[%s2 + $0x4d0] sm:$0xf]
    %v227 = vld [vmem:[%s2 + $0x4d4] sm:$0xff]
    %v228 = vld [vmem:[%s2 + $0x4dc] sm:$0xf]
    %v229 = vld [vmem:[%s2 + $0x4e0] sm:$0xff]
    %v230 = vld [vmem:[%s2 + $0x4e8] sm:$0xf]
    %v231 = vld [vmem:[%s2 + $0x4ec] sm:$0xff]
    %v232 = vld [vmem:[%s2 + $0x4f4] sm:$0xf]
    %v233 = vld [vmem:[%s2 + $0x4f8] sm:$0xff]
    %v234 = vld [vmem:[%s2 + $0x500] sm:$0xf]
    %v235 = vld [vmem:[%s2 + $0x504] sm:$0xff]
    %v236 = vld [vmem:[%s2 + $0x50c] sm:$0xf]
    %v237 = vld [vmem:[%s2 + $0x510] sm:$0xff]
    %v238 = vld [vmem:[%s2 + $0x518] sm:$0xf]
    %v239 = vld [vmem:[%s2 + $0x51c] sm:$0xff]
    %v240 = vld [vmem:[%s2 + $0x524] sm:$0xf]
    %v241 = vld [vmem:[%s2 + $0x528] sm:$0xff]
    %v242 = vld [vmem:[%s2 + $0x530] sm:$0xf]
    %v243 = vld [vmem:[%s2 + $0x534] sm:$0xff]
    %v244 = vld [vmem:[%s2 + $0x53c] sm:$0xf]
    %v245 = vld [vmem:[%s2 + $0x540] sm:$0xff]
    %v246 = vld [vmem:[%s2 + $0x548] sm:$0xf]
    %v247 = vld [vmem:[%s2 + $0x54c] sm:$0xff]
    %v248 = vld [vmem:[%s2 + $0x554] sm:$0xf]
    %v249 = vld [vmem:[%s2 + $0x558] sm:$0xff]
    %v250 = vld [vmem:[%s2 + $0x560] sm:$0xf]
    %v251 = vld [vmem:[%s2 + $0x564] sm:$0xff]
    %v252 = vld [vmem:[%s2 + $0x56c] sm:$0xf]
    %v253 = vld [vmem:[%s2 + $0x570] sm:$0xff]
    %v254 = vld [vmem:[%s2 + $0x578] sm:$0xf]
    %v255 = vld [vmem:[%s2 + $0x57c] sm:$0xff]
    %v256 = vld [vmem:[%s2 + $0x584] sm:$0xf]
    %v257 = vld [vmem:[%s2 + $0x588] sm:$0xff]
    %v258 = vld [vmem:[%s2 + $0x590] sm:$0xf]
    %v259 = vld [vmem:[%s2 + $0x594] sm:$0xff]
    %v260 = vld [vmem:[%s2 + $0x59c] sm:$0xf]
    %v261 = vld [vmem:[%s2 + $0x5a0] sm:$0xff]
    %v262 = vld [vmem:[%s2 + $0x5a8] sm:$0xf]
    %v263 = vld [vmem:[%s2 + $0x5ac] sm:$0xff]
    %v264 = vld [vmem:[%s2 + $0x5b4] sm:$0xf]
    %v265 = vld [vmem:[%s2 + $0x5b8] sm:$0xff]
    %v266 = vld [vmem:[%s2 + $0x5c0] sm:$0xf]
    %v267 = vld [vmem:[%s2 + $0x5c4] sm:$0xff]
    %v268 = vld [vmem:[%s2 + $0x5cc] sm:$0xf]
    %v269 = vld [vmem:[%s2 + $0x5d0] sm:$0xff]
    %v270 = vld [vmem:[%s2 + $0x5d8] sm:$0xf]
    %v271 = vld [vmem:[%s2 + $0x5dc] sm:$0xff]
    %v272 = vld [vmem:[%s2 + $0x5e4] sm:$0xf]
    %v273 = vld [vmem:[%s2 + $0x5e8] sm:$0xff]
    %v274 = vld [vmem:[%s2 + $0x5f0] sm:$0xf]
    %v275 = vld [vmem:[%s2 + $0x5f4] sm:$0xff]
    %v276 = vld [vmem:[%s2 + $0x5fc] sm:$0xf]
    %v279 = vunpack.c.l.s4 1966171168
    %v280 = vunpack.c.0.s8 %v279
    %v281 = vlaneseq
    %v282 = vshrl.u32 %v281, 7
    %v283 = vsub.s32 %v280, %v282
    %v284 = vrot.slane %v148, %v283
    %v285 = vcombine.high %v284, %v284
    %v287 = vunpack.c.l.s4 1966171168
    %v288 = vunpack.c.0.s8 %v287
    %v289 = vlaneseq
    %v290 = vshrl.u32 %v289, 7
    %v291 = vsub.s32 %v288, %v290
    %v292 = vrot.slane %v284, %v291
    %v294 = vunpack.c.l.s4 1966171168
    %v295 = vunpack.c.0.s8 %v294
    %v296 = vlaneseq
    %v297 = vshrl.u32 %v296, 7
    %v298 = vsub.s32 %v295, %v297
    %v299 = vrot.slane %v285, %v298
    %v300 = vcombine.high %v292, %v292
    %v301 = vcombine.high %v299, %v299
    %v434 = vunpack.c.l.b16 %v149
    %v435 = vunpack.c.h.b16 %v149
    %v436 = vunpack.c.l.b16 %v150
    %v437 = vunpack.c.l.b16 %v151
    %v438 = vunpack.c.h.b16 %v151
    %v439 = vunpack.c.l.b16 %v152
    %v440 = vunpack.c.l.b16 %v153
    %v441 = vunpack.c.h.b16 %v153
    %v442 = vunpack.c.l.b16 %v154
    %v443 = vunpack.c.l.b16 %v155
    %v444 = vunpack.c.h.b16 %v155
    %v445 = vunpack.c.l.b16 %v156
    %v446 = vunpack.c.l.b16 %v157
    %v447 = vunpack.c.h.b16 %v157
    %v448 = vunpack.c.l.b16 %v158
    %v449 = vunpack.c.l.b16 %v159
    %v450 = vunpack.c.h.b16 %v159
    %v451 = vunpack.c.l.b16 %v160
    %v452 = vunpack.c.l.b16 %v161
    %v453 = vunpack.c.h.b16 %v161
    %v454 = vunpack.c.l.b16 %v162
    %v455 = vunpack.c.l.b16 %v163
    %v456 = vunpack.c.h.b16 %v163
    %v457 = vunpack.c.l.b16 %v164
    %v458 = vunpack.c.l.b16 %v165
    %v459 = vunpack.c.h.b16 %v165
    %v460 = vunpack.c.l.b16 %v166
    %v461 = vunpack.c.l.b16 %v167
    %v462 = vunpack.c.h.b16 %v167
    %v463 = vunpack.c.l.b16 %v168
    %v464 = vunpack.c.l.b16 %v169
    %v465 = vunpack.c.h.b16 %v169
    %v466 = vunpack.c.l.b16 %v170
    %v467 = vunpack.c.l.b16 %v171
    %v468 = vunpack.c.h.b16 %v171
    %v469 = vunpack.c.l.b16 %v172
    %v470 = vunpack.c.l.b16 %v173
    %v471 = vunpack.c.h.b16 %v173
    %v472 = vunpack.c.l.b16 %v174
    %v473 = vunpack.c.l.b16 %v175
    %v474 = vunpack.c.h.b16 %v175
    %v475 = vunpack.c.l.b16 %v176
    %v476 = vunpack.c.l.b16 %v177
    %v477 = vunpack.c.h.b16 %v177
    %v478 = vunpack.c.l.b16 %v178
    %v479 = vunpack.c.l.b16 %v179
    %v480 = vunpack.c.h.b16 %v179
    %v481 = vunpack.c.l.b16 %v180
    %v482 = vunpack.c.l.b16 %v181
    %v483 = vunpack.c.h.b16 %v181
    %v484 = vunpack.c.l.b16 %v182
    %v485 = vunpack.c.l.b16 %v183
    %v486 = vunpack.c.h.b16 %v183
    %v487 = vunpack.c.l.b16 %v184
    %v488 = vunpack.c.l.b16 %v185
    %v489 = vunpack.c.h.b16 %v185
    %v490 = vunpack.c.l.b16 %v186
    %v491 = vunpack.c.l.b16 %v187
    %v492 = vunpack.c.h.b16 %v187
    %v493 = vunpack.c.l.b16 %v188
    %v494 = vunpack.c.l.b16 %v189
    %v495 = vunpack.c.h.b16 %v189
    %v496 = vunpack.c.l.b16 %v190
    %v497 = vunpack.c.l.b16 %v191
    %v498 = vunpack.c.h.b16 %v191
    %v499 = vunpack.c.l.b16 %v192
    %v500 = vunpack.c.l.b16 %v193
    %v501 = vunpack.c.h.b16 %v193
    %v502 = vunpack.c.l.b16 %v194
    %v503 = vunpack.c.l.b16 %v195
    %v504 = vunpack.c.h.b16 %v195
    %v505 = vunpack.c.l.b16 %v196
    %v506 = vunpack.c.l.b16 %v197
    %v507 = vunpack.c.h.b16 %v197
    %v508 = vunpack.c.l.b16 %v198
    %v509 = vunpack.c.l.b16 %v199
    %v510 = vunpack.c.h.b16 %v199
    %v511 = vunpack.c.l.b16 %v200
    %v512 = vunpack.c.l.b16 %v201
    %v513 = vunpack.c.h.b16 %v201
    %v514 = vunpack.c.l.b16 %v202
    %v515 = vunpack.c.l.b16 %v203
    %v516 = vunpack.c.h.b16 %v203
    %v517 = vunpack.c.l.b16 %v204
    %v518 = vunpack.c.l.b16 %v205
    %v519 = vunpack.c.h.b16 %v205
    %v520 = vunpack.c.l.b16 %v206
    %v521 = vunpack.c.l.b16 %v207
    %v522 = vunpack.c.h.b16 %v207
    %v523 = vunpack.c.l.b16 %v208
    %v524 = vunpack.c.l.b16 %v209
    %v525 = vunpack.c.h.b16 %v209
    %v526 = vunpack.c.l.b16 %v210
    %v527 = vunpack.c.l.b16 %v211
    %v528 = vunpack.c.h.b16 %v211
    %v529 = vunpack.c.l.b16 %v212
    %v530 = vunpack.c.l.b16 %v213
    %v531 = vunpack.c.h.b16 %v213
    %v532 = vunpack.c.l.b16 %v214
    %v533 = vunpack.c.l.b16 %v215
    %v534 = vunpack.c.h.b16 %v215
    %v535 = vunpack.c.l.b16 %v216
    %v536 = vunpack.c.l.b16 %v217
    %v537 = vunpack.c.h.b16 %v217
    %v538 = vunpack.c.l.b16 %v218
    %v539 = vunpack.c.l.b16 %v219
    %v540 = vunpack.c.h.b16 %v219
    %v541 = vunpack.c.l.b16 %v220
    %v542 = vunpack.c.l.b16 %v221
    %v543 = vunpack.c.h.b16 %v221
    %v544 = vunpack.c.l.b16 %v222
    %v545 = vunpack.c.l.b16 %v223
    %v546 = vunpack.c.h.b16 %v223
    %v547 = vunpack.c.l.b16 %v224
    %v548 = vunpack.c.l.b16 %v225
    %v549 = vunpack.c.h.b16 %v225
    %v550 = vunpack.c.l.b16 %v226
    %v551 = vunpack.c.l.b16 %v227
    %v552 = vunpack.c.h.b16 %v227
    %v553 = vunpack.c.l.b16 %v228
    %v554 = vunpack.c.l.b16 %v229
    %v555 = vunpack.c.h.b16 %v229
    %v556 = vunpack.c.l.b16 %v230
    %v557 = vunpack.c.l.b16 %v231
    %v558 = vunpack.c.h.b16 %v231
    %v559 = vunpack.c.l.b16 %v232
    %v560 = vunpack.c.l.b16 %v233
    %v561 = vunpack.c.h.b16 %v233
    %v562 = vunpack.c.l.b16 %v234
    %v563 = vunpack.c.l.b16 %v235
    %v564 = vunpack.c.h.b16 %v235
    %v565 = vunpack.c.l.b16 %v236
    %v566 = vunpack.c.l.b16 %v237
    %v567 = vunpack.c.h.b16 %v237
    %v568 = vunpack.c.l.b16 %v238
    %v569 = vunpack.c.l.b16 %v239
    %v570 = vunpack.c.h.b16 %v239
    %v571 = vunpack.c.l.b16 %v240
    %v572 = vunpack.c.l.b16 %v241
    %v573 = vunpack.c.h.b16 %v241
    %v574 = vunpack.c.l.b16 %v242
    %v575 = vunpack.c.l.b16 %v243
    %v576 = vunpack.c.h.b16 %v243
    %v577 = vunpack.c.l.b16 %v244
    %v578 = vunpack.c.l.b16 %v245
    %v579 = vunpack.c.h.b16 %v245
    %v580 = vunpack.c.l.b16 %v246
    %v581 = vunpack.c.l.b16 %v247
    %v582 = vunpack.c.h.b16 %v247
    %v583 = vunpack.c.l.b16 %v248
    %v584 = vunpack.c.l.b16 %v249
    %v585 = vunpack.c.h.b16 %v249
    %v586 = vunpack.c.l.b16 %v250
    %v587 = vunpack.c.l.b16 %v251
    %v588 = vunpack.c.h.b16 %v251
    %v589 = vunpack.c.l.b16 %v252
    %v590 = vunpack.c.l.b16 %v253
    %v591 = vunpack.c.h.b16 %v253
    %v592 = vunpack.c.l.b16 %v254
    %v593 = vunpack.c.l.b16 %v255
    %v594 = vunpack.c.h.b16 %v255
    %v595 = vunpack.c.l.b16 %v256
    %v596 = vunpack.c.l.b16 %v257
    %v597 = vunpack.c.h.b16 %v257
    %v598 = vunpack.c.l.b16 %v258
    %v599 = vunpack.c.l.b16 %v259
    %v600 = vunpack.c.h.b16 %v259
    %v601 = vunpack.c.l.b16 %v260
    %v602 = vunpack.c.l.b16 %v261
    %v603 = vunpack.c.h.b16 %v261
    %v604 = vunpack.c.l.b16 %v262
    %v605 = vunpack.c.l.b16 %v263
    %v606 = vunpack.c.h.b16 %v263
    %v607 = vunpack.c.l.b16 %v264
    %v608 = vunpack.c.l.b16 %v265
    %v609 = vunpack.c.h.b16 %v265
    %v610 = vunpack.c.l.b16 %v266
    %v611 = vunpack.c.l.b16 %v267
    %v612 = vunpack.c.h.b16 %v267
    %v613 = vunpack.c.l.b16 %v268
    %v614 = vunpack.c.l.b16 %v269
    %v615 = vunpack.c.h.b16 %v269
    %v616 = vunpack.c.l.b16 %v270
    %v617 = vunpack.c.l.b16 %v271
    %v618 = vunpack.c.h.b16 %v271
    %v619 = vunpack.c.l.b16 %v272
    %v620 = vunpack.c.l.b16 %v273
    %v621 = vunpack.c.h.b16 %v273
    %v622 = vunpack.c.l.b16 %v274
    %v623 = vunpack.c.l.b16 %v275
    %v624 = vunpack.c.h.b16 %v275
    %v625 = vunpack.c.l.b16 %v276
    %v626 = vpack.c.b16 %v437, %v434
    %v627 = vpack.c.b16 %v438, %v435
    %v628 = vpack.c.b16 %v439, %v436
    %v629 = vpack.c.b16 %v443, %v440
    %v630 = vpack.c.b16 %v444, %v441
    %v631 = vpack.c.b16 %v445, %v442
    %v632 = vpack.c.b16 %v449, %v446
    %v633 = vpack.c.b16 %v450, %v447
    %v634 = vpack.c.b16 %v451, %v448
    %v635 = vpack.c.b16 %v455, %v452
    %v636 = vpack.c.b16 %v456, %v453
    %v637 = vpack.c.b16 %v457, %v454
    %v638 = vpack.c.b16 %v461, %v458
    %v639 = vpack.c.b16 %v462, %v459
    %v640 = vpack.c.b16 %v463, %v460
    %v641 = vpack.c.b16 %v467, %v464
    %v642 = vpack.c.b16 %v468, %v465
    %v643 = vpack.c.b16 %v469, %v466
    %v644 = vpack.c.b16 %v473, %v470
    %v645 = vpack.c.b16 %v474, %v471
    %v646 = vpack.c.b16 %v475, %v472
    %v647 = vpack.c.b16 %v479, %v476
    %v648 = vpack.c.b16 %v480, %v477
    %v649 = vpack.c.b16 %v481, %v478
    %v650 = vpack.c.b16 %v485, %v482
    %v651 = vpack.c.b16 %v486, %v483
    %v652 = vpack.c.b16 %v487, %v484
    %v653 = vpack.c.b16 %v491, %v488
    %v654 = vpack.c.b16 %v492, %v489
    %v655 = vpack.c.b16 %v493, %v490
    %v656 = vpack.c.b16 %v497, %v494
    %v657 = vpack.c.b16 %v498, %v495
    %v658 = vpack.c.b16 %v499, %v496
    %v659 = vpack.c.b16 %v503, %v500
    %v660 = vpack.c.b16 %v504, %v501
    %v661 = vpack.c.b16 %v505, %v502
    %v662 = vpack.c.b16 %v509, %v506
    %v663 = vpack.c.b16 %v510, %v507
    %v664 = vpack.c.b16 %v511, %v508
    %v665 = vpack.c.b16 %v515, %v512
    %v666 = vpack.c.b16 %v516, %v513
    %v667 = vpack.c.b16 %v517, %v514
    %v668 = vpack.c.b16 %v521, %v518
    %v669 = vpack.c.b16 %v522, %v519
    %v670 = vpack.c.b16 %v523, %v520
    %v671 = vpack.c.b16 %v527, %v524
    %v672 = vpack.c.b16 %v528, %v525
    %v673 = vpack.c.b16 %v529, %v526
    %v674 = vpack.c.b16 %v533, %v530
    %v675 = vpack.c.b16 %v534, %v531
    %v676 = vpack.c.b16 %v535, %v532
    %v677 = vpack.c.b16 %v539, %v536
    %v678 = vpack.c.b16 %v540, %v537
    %v679 = vpack.c.b16 %v541, %v538
    %v680 = vpack.c.b16 %v545, %v542
    %v681 = vpack.c.b16 %v546, %v543
    %v682 = vpack.c.b16 %v547, %v544
    %v683 = vpack.c.b16 %v551, %v548
    %v684 = vpack.c.b16 %v552, %v549
    %v685 = vpack.c.b16 %v553, %v550
    %v686 = vpack.c.b16 %v557, %v554
    %v687 = vpack.c.b16 %v558, %v555
    %v688 = vpack.c.b16 %v559, %v556
    %v689 = vpack.c.b16 %v563, %v560
    %v690 = vpack.c.b16 %v564, %v561
    %v691 = vpack.c.b16 %v565, %v562
    %v692 = vpack.c.b16 %v569, %v566
    %v693 = vpack.c.b16 %v570, %v567
    %v694 = vpack.c.b16 %v571, %v568
    %v695 = vpack.c.b16 %v575, %v572
    %v696 = vpack.c.b16 %v576, %v573
    %v697 = vpack.c.b16 %v577, %v574
    %v698 = vpack.c.b16 %v581, %v578
    %v699 = vpack.c.b16 %v582, %v579
    %v700 = vpack.c.b16 %v583, %v580
    %v701 = vpack.c.b16 %v587, %v584
    %v702 = vpack.c.b16 %v588, %v585
    %v703 = vpack.c.b16 %v589, %v586
    %v704 = vpack.c.b16 %v593, %v590
    %v705 = vpack.c.b16 %v594, %v591
    %v706 = vpack.c.b16 %v595, %v592
    %v707 = vpack.c.b16 %v599, %v596
    %v708 = vpack.c.b16 %v600, %v597
    %v709 = vpack.c.b16 %v601, %v598
    %v710 = vpack.c.b16 %v605, %v602
    %v711 = vpack.c.b16 %v606, %v603
    %v712 = vpack.c.b16 %v607, %v604
    %v713 = vpack.c.b16 %v611, %v608
    %v714 = vpack.c.b16 %v612, %v609
    %v715 = vpack.c.b16 %v613, %v610
    %v716 = vpack.c.b16 %v617, %v614
    %v717 = vpack.c.b16 %v618, %v615
    %v718 = vpack.c.b16 %v619, %v616
    %v719 = vpack.c.b16 %v623, %v620
    %v720 = vpack.c.b16 %v624, %v621
    %v721 = vpack.c.b16 %v625, %v622
    %818 = vmatprep.subr.bf16.mxu0 %v627
    %819 = vmatpush1.bf16.msra.mxu0 %v626
    %820 = vmatprep.subr.bf16.mxu0 %v630
    %821 = vmatpush1.bf16.msra.mxu0 %v629
    %822 = vmatprep.subr.bf16.mxu0 %v633
    %823 = vmatpush1.bf16.msra.mxu0 %v632
    %824 = vmatprep.subr.bf16.mxu0 %v636
    %825 = vmatpush1.bf16.msra.mxu0 %v635
    %826 = vmatprep.subr.bf16.mxu0 %v639
    %827 = vmatpush1.bf16.msra.mxu0 %v638
    %828 = vmatprep.subr.bf16.mxu0 %v642
    %829 = vmatpush1.bf16.msra.mxu0 %v641
    %830 = vmatprep.subr.bf16.mxu0 %v645
    %831 = vmatpush1.bf16.msra.mxu0 %v644
    %832 = vmatprep.subr.bf16.mxu0 %v648
    %833 = vmatpush1.bf16.msra.mxu0 %v647
    %834 = vmatprep.subr.bf16.mxu0 %v651
    %835 = vmatpush1.bf16.msra.mxu0 %v650
    %836 = vmatprep.subr.bf16.mxu0 %v654
    %837 = vmatpush1.bf16.msra.mxu0 %v653
    %838 = vmatprep.subr.bf16.mxu0 %v657
    %839 = vmatpush1.bf16.msra.mxu0 %v656
    %840 = vmatprep.subr.bf16.mxu0 %v660
    %841 = vmatpush1.bf16.msra.mxu0 %v659
    %842 = vmatprep.subr.bf16.mxu0 %v663
    %843 = vmatpush1.bf16.msra.mxu0 %v662
    %844 = vmatprep.subr.bf16.mxu0 %v666
    %845 = vmatpush1.bf16.msra.mxu0 %v665
    %846 = vmatprep.subr.bf16.mxu0 %v669
    %847 = vmatpush1.bf16.msra.mxu0 %v668
    %848 = vmatprep.subr.bf16.mxu0 %v672
    %849 = vmatpush1.bf16.msra.mxu0 %v671
    %850 = vmatprep.mubr.bf16.mxu0 %v299
    %851 = vmatmul.mubr.bf16.gmra.mrb[0].mxu0 %v292
    %v852 = vpop.f32.mrb[0].mxu0
    %v853 = vadd.f32 0.0, %v852
    %v854 = vpop.f32.mrb[0].mxu0
    %v855 = vadd.f32 0.0, %v854
    %v856 = vpop.f32.mrb[0].mxu0
    %v857 = vpop.f32.mrb[0].mxu0
    %858 = vdwg.mxu0
    %859 = vmatprep.subr.bf16.mxu0 %v675
    %860 = vmatpush1.bf16.msra.mxu0 %v674
    %861 = vmatprep.subr.bf16.mxu0 %v678
    %862 = vmatpush1.bf16.msra.mxu0 %v677
    %863 = vmatprep.subr.bf16.mxu0 %v681
    %864 = vmatpush1.bf16.msra.mxu0 %v680
    %865 = vmatprep.subr.bf16.mxu0 %v684
    %866 = vmatpush1.bf16.msra.mxu0 %v683
    %867 = vmatprep.subr.bf16.mxu0 %v687
    %868 = vmatpush1.bf16.msra.mxu0 %v686
    %869 = vmatprep.subr.bf16.mxu0 %v690
    %870 = vmatpush1.bf16.msra.mxu0 %v689
    %871 = vmatprep.subr.bf16.mxu0 %v693
    %872 = vmatpush1.bf16.msra.mxu0 %v692
    %873 = vmatprep.subr.bf16.mxu0 %v696
    %874 = vmatpush1.bf16.msra.mxu0 %v695
    %875 = vmatprep.subr.bf16.mxu0 %v699
    %876 = vmatpush1.bf16.msra.mxu0 %v698
    %877 = vmatprep.subr.bf16.mxu0 %v702
    %878 = vmatpush1.bf16.msra.mxu0 %v701
    %879 = vmatprep.subr.bf16.mxu0 %v705
    %880 = vmatpush1.bf16.msra.mxu0 %v704
    %881 = vmatprep.subr.bf16.mxu0 %v708
    %882 = vmatpush1.bf16.msra.mxu0 %v707
    %883 = vmatprep.subr.bf16.mxu0 %v711
    %884 = vmatpush1.bf16.msra.mxu0 %v710
    %885 = vmatprep.subr.bf16.mxu0 %v714
    %886 = vmatpush1.bf16.msra.mxu0 %v713
    %887 = vmatprep.subr.bf16.mxu0 %v717
    %888 = vmatpush1.bf16.msra.mxu0 %v716
    %889 = vmatprep.subr.bf16.mxu0 %v720
    %890 = vmatpush1.bf16.msra.mxu0 %v719
    %891 = vmatprep.mubr.bf16.mxu0 %v301
    %892 = vmatmul.mubr.bf16.gmra.mrb[0].mxu0 %v300
    %v893 = vpop.f32.mrb[0].mxu0
    %v894 = vadd.f32 %v853, %v893
    %v895 = vpop.f32.mrb[0].mxu0
    %v896 = vadd.f32 %v855, %v895
    %v897 = vpop.f32.mrb[0].mxu0
    %v898 = vpop.f32.mrb[0].mxu0
    %899 = vdwg.mxu0
    %900 = vmatprep.subr.bf16.mxu0 0
    %901 = vmatpush1.bf16.msra.mxu0 %v628
    %902 = vmatprep.subr.bf16.mxu0 0
    %903 = vmatpush1.bf16.msra.mxu0 %v631
    %904 = vmatprep.subr.bf16.mxu0 0
    %905 = vmatpush1.bf16.msra.mxu0 %v634
    %906 = vmatprep.subr.bf16.mxu0 0
    %907 = vmatpush1.bf16.msra.mxu0 %v637
    %908 = vmatprep.subr.bf16.mxu0 0
    %909 = vmatpush1.bf16.msra.mxu0 %v640
    %910 = vmatprep.subr.bf16.mxu0 0
    %911 = vmatpush1.bf16.msra.mxu0 %v643
    %912 = vmatprep.subr.bf16.mxu0 0
    %913 = vmatpush1.bf16.msra.mxu0 %v646
    %914 = vmatprep.subr.bf16.mxu0 0
    %915 = vmatpush1.bf16.msra.mxu0 %v649
    %916 = vmatprep.subr.bf16.mxu0 0
    %917 = vmatpush1.bf16.msra.mxu0 %v652
    %918 = vmatprep.subr.bf16.mxu0 0
    %919 = vmatpush1.bf16.msra.mxu0 %v655
    %920 = vmatprep.subr.bf16.mxu0 0
    %921 = vmatpush1.bf16.msra.mxu0 %v658
    %922 = vmatprep.subr.bf16.mxu0 0
    %923 = vmatpush1.bf16.msra.mxu0 %v661
    %924 = vmatprep.subr.bf16.mxu0 0
    %925 = vmatpush1.bf16.msra.mxu0 %v664
    %926 = vmatprep.subr.bf16.mxu0 0
    %927 = vmatpush1.bf16.msra.mxu0 %v667
    %928 = vmatprep.subr.bf16.mxu0 0
    %929 = vmatpush1.bf16.msra.mxu0 %v670
    %930 = vmatprep.subr.bf16.mxu0 0
    %931 = vmatpush1.bf16.msra.mxu0 %v673
    %932 = vmatprep.mubr.bf16.mxu0 %v299
    %933 = vmatmul.mubr.bf16.gmra.mrb[0].mxu0 %v292
    %v934 = vpop.f32.mrb[0].mxu0
    %v935 = vadd.f32 0.0, %v934
    %v936 = vpop.f32.mrb[0].mxu0
    %v937 = vpop.f32.mrb[0].mxu0
    %v938 = vpop.f32.mrb[0].mxu0
    %939 = vdwg.mxu0
    %940 = vmatprep.subr.bf16.mxu0 0
    %941 = vmatpush1.bf16.msra.mxu0 %v676
    %942 = vmatprep.subr.bf16.mxu0 0
    %943 = vmatpush1.bf16.msra.mxu0 %v679
    %944 = vmatprep.subr.bf16.mxu0 0
    %945 = vmatpush1.bf16.msra.mxu0 %v682
    %946 = vmatprep.subr.bf16.mxu0 0
    %947 = vmatpush1.bf16.msra.mxu0 %v685
    %948 = vmatprep.subr.bf16.mxu0 0
    %949 = vmatpush1.bf16.msra.mxu0 %v688
    %950 = vmatprep.subr.bf16.mxu0 0
    %951 = vmatpush1.bf16.msra.mxu0 %v691
    %952 = vmatprep.subr.bf16.mxu0 0
    %953 = vmatpush1.bf16.msra.mxu0 %v694
    %954 = vmatprep.subr.bf16.mxu0 0
    %955 = vmatpush1.bf16.msra.mxu0 %v697
    %956 = vmatprep.subr.bf16.mxu0 0
    %957 = vmatpush1.bf16.msra.mxu0 %v700
    %958 = vmatprep.subr.bf16.mxu0 0
    %959 = vmatpush1.bf16.msra.mxu0 %v703
    %960 = vmatprep.subr.bf16.mxu0 0
    %961 = vmatpush1.bf16.msra.mxu0 %v706
    %962 = vmatprep.subr.bf16.mxu0 0
    %963 = vmatpush1.bf16.msra.mxu0 %v709
    %964 = vmatprep.subr.bf16.mxu0 0
    %965 = vmatpush1.bf16.msra.mxu0 %v712
    %966 = vmatprep.subr.bf16.mxu0 0
    %967 = vmatpush1.bf16.msra.mxu0 %v715
    %968 = vmatprep.subr.bf16.mxu0 0
    %969 = vmatpush1.bf16.msra.mxu0 %v718
    %970 = vmatprep.subr.bf16.mxu0 0
    %971 = vmatpush1.bf16.msra.mxu0 %v721
    %972 = vmatprep.mubr.bf16.mxu0 %v301
    %973 = vmatmul.mubr.bf16.gmra.mrb[0].mxu0 %v300
    %v974 = vpop.f32.mrb[0].mxu0
    %v975 = vadd.f32 %v935, %v974
    %v976 = vpop.f32.mrb[0].mxu0
    %v977 = vpop.f32.mrb[0].mxu0
    %v978 = vpop.f32.mrb[0].mxu0
    %979 = vdwg.mxu0
    %v982 = vunpack.c.l.s4 1966171168
    %v983 = vunpack.c.0.s8 %v982
    %v984 = vlaneseq
    %v985 = vshrl.u32 %v984, 7
    %v986 = vsub.s32 %v983, %v985
    %v987 = vrot.slane %v19, %v986
    %v988 = vcombine.high %v987, %v987
    %v990 = vunpack.c.l.s4 1966171168
    %v991 = vunpack.c.0.s8 %v990
    %v992 = vlaneseq
    %v993 = vshrl.u32 %v992, 7
    %v994 = vsub.s32 %v991, %v993
    %v995 = vrot.slane %v987, %v994
    %v997 = vunpack.c.l.s4 1966171168
    %v998 = vunpack.c.0.s8 %v997
    %v999 = vlaneseq
    %v1000 = vshrl.u32 %v999, 7
    %v1001 = vsub.s32 %v998, %v1000
    %v1002 = vrot.slane %v988, %v1001
    %v1003 = vcombine.high %v995, %v995
    %v1004 = vcombine.high %v1002, %v1002
    %v1137 = vunpack.c.l.b16 %v20
    %v1138 = vunpack.c.h.b16 %v20
    %v1139 = vunpack.c.l.b16 %v21
    %v1140 = vunpack.c.l.b16 %v22
    %v1141 = vunpack.c.h.b16 %v22
    %v1142 = vunpack.c.l.b16 %v23
    %v1143 = vunpack.c.l.b16 %v24
    %v1144 = vunpack.c.h.b16 %v24
    %v1145 = vunpack.c.l.b16 %v25
    %v1146 = vunpack.c.l.b16 %v26
    %v1147 = vunpack.c.h.b16 %v26
    %v1148 = vunpack.c.l.b16 %v27
    %v1149 = vunpack.c.l.b16 %v28
    %v1150 = vunpack.c.h.b16 %v28
    %v1151 = vunpack.c.l.b16 %v29
    %v1152 = vunpack.c.l.b16 %v30
    %v1153 = vunpack.c.h.b16 %v30
    %v1154 = vunpack.c.l.b16 %v31
    %v1155 = vunpack.c.l.b16 %v32
    %v1156 = vunpack.c.h.b16 %v32
    %v1157 = vunpack.c.l.b16 %v33
    %v1158 = vunpack.c.l.b16 %v34
    %v1159 = vunpack.c.h.b16 %v34
    %v1160 = vunpack.c.l.b16 %v35
    %v1161 = vunpack.c.l.b16 %v36
    %v1162 = vunpack.c.h.b16 %v36
    %v1163 = vunpack.c.l.b16 %v37
    %v1164 = vunpack.c.l.b16 %v38
    %v1165 = vunpack.c.h.b16 %v38
    %v1166 = vunpack.c.l.b16 %v39
    %v1167 = vunpack.c.l.b16 %v40
    %v1168 = vunpack.c.h.b16 %v40
    %v1169 = vunpack.c.l.b16 %v41
    %v1170 = vunpack.c.l.b16 %v42
    %v1171 = vunpack.c.h.b16 %v42
    %v1172 = vunpack.c.l.b16 %v43
    %v1173 = vunpack.c.l.b16 %v44
    %v1174 = vunpack.c.h.b16 %v44
    %v1175 = vunpack.c.l.b16 %v45
    %v1176 = vunpack.c.l.b16 %v46
    %v1177 = vunpack.c.h.b16 %v46
    %v1178 = vunpack.c.l.b16 %v47
    %v1179 = vunpack.c.l.b16 %v48
    %v1180 = vunpack.c.h.b16 %v48
    %v1181 = vunpack.c.l.b16 %v49
    %v1182 = vunpack.c.l.b16 %v50
    %v1183 = vunpack.c.h.b16 %v50
    %v1184 = vunpack.c.l.b16 %v51
    %v1185 = vunpack.c.l.b16 %v52
    %v1186 = vunpack.c.h.b16 %v52
    %v1187 = vunpack.c.l.b16 %v53
    %v1188 = vunpack.c.l.b16 %v54
    %v1189 = vunpack.c.h.b16 %v54
    %v1190 = vunpack.c.l.b16 %v55
    %v1191 = vunpack.c.l.b16 %v56
    %v1192 = vunpack.c.h.b16 %v56
    %v1193 = vunpack.c.l.b16 %v57
    %v1194 = vunpack.c.l.b16 %v58
    %v1195 = vunpack.c.h.b16 %v58
    %v1196 = vunpack.c.l.b16 %v59
    %v1197 = vunpack.c.l.b16 %v60
    %v1198 = vunpack.c.h.b16 %v60
    %v1199 = vunpack.c.l.b16 %v61
    %v1200 = vunpack.c.l.b16 %v62
    %v1201 = vunpack.c.h.b16 %v62
    %v1202 = vunpack.c.l.b16 %v63
    %v1203 = vunpack.c.l.b16 %v64
    %v1204 = vunpack.c.h.b16 %v64
    %v1205 = vunpack.c.l.b16 %v65
    %v1206 = vunpack.c.l.b16 %v66
    %v1207 = vunpack.c.h.b16 %v66
    %v1208 = vunpack.c.l.b16 %v67
    %v1209 = vunpack.c.l.b16 %v68
    %v1210 = vunpack.c.h.b16 %v68
    %v1211 = vunpack.c.l.b16 %v69
    %v1212 = vunpack.c.l.b16 %v70
    %v1213 = vunpack.c.h.b16 %v70
    %v1214 = vunpack.c.l.b16 %v71
    %v1215 = vunpack.c.l.b16 %v72
    %v1216 = vunpack.c.h.b16 %v72
    %v1217 = vunpack.c.l.b16 %v73
    %v1218 = vunpack.c.l.b16 %v74
    %v1219 = vunpack.c.h.b16 %v74
    %v1220 = vunpack.c.l.b16 %v75
    %v1221 = vunpack.c.l.b16 %v76
    %v1222 = vunpack.c.h.b16 %v76
    %v1223 = vunpack.c.l.b16 %v77
    %v1224 = vunpack.c.l.b16 %v78
    %v1225 = vunpack.c.h.b16 %v78
    %v1226 = vunpack.c.l.b16 %v79
    %v1227 = vunpack.c.l.b16 %v80
    %v1228 = vunpack.c.h.b16 %v80
    %v1229 = vunpack.c.l.b16 %v81
    %v1230 = vunpack.c.l.b16 %v82
    %v1231 = vunpack.c.h.b16 %v82
    %v1232 = vunpack.c.l.b16 %v83
    %v1233 = vunpack.c.l.b16 %v84
    %v1234 = vunpack.c.h.b16 %v84
    %v1235 = vunpack.c.l.b16 %v85
    %v1236 = vunpack.c.l.b16 %v86
    %v1237 = vunpack.c.h.b16 %v86
    %v1238 = vunpack.c.l.b16 %v87
    %v1239 = vunpack.c.l.b16 %v88
    %v1240 = vunpack.c.h.b16 %v88
    %v1241 = vunpack.c.l.b16 %v89
    %v1242 = vunpack.c.l.b16 %v90
    %v1243 = vunpack.c.h.b16 %v90
    %v1244 = vunpack.c.l.b16 %v91
    %v1245 = vunpack.c.l.b16 %v92
    %v1246 = vunpack.c.h.b16 %v92
    %v1247 = vunpack.c.l.b16 %v93
    %v1248 = vunpack.c.l.b16 %v94
    %v1249 = vunpack.c.h.b16 %v94
    %v1250 = vunpack.c.l.b16 %v95
    %v1251 = vunpack.c.l.b16 %v96
    %v1252 = vunpack.c.h.b16 %v96
    %v1253 = vunpack.c.l.b16 %v97
    %v1254 = vunpack.c.l.b16 %v98
    %v1255 = vunpack.c.h.b16 %v98
    %v1256 = vunpack.c.l.b16 %v99
    %v1257 = vunpack.c.l.b16 %v100
    %v1258 = vunpack.c.h.b16 %v100
    %v1259 = vunpack.c.l.b16 %v101
    %v1260 = vunpack.c.l.b16 %v102
    %v1261 = vunpack.c.h.b16 %v102
    %v1262 = vunpack.c.l.b16 %v103
    %v1263 = vunpack.c.l.b16 %v104
    %v1264 = vunpack.c.h.b16 %v104
    %v1265 = vunpack.c.l.b16 %v105
    %v1266 = vunpack.c.l.b16 %v106
    %v1267 = vunpack.c.h.b16 %v106
    %v1268 = vunpack.c.l.b16 %v107
    %v1269 = vunpack.c.l.b16 %v108
    %v1270 = vunpack.c.h.b16 %v108
    %v1271 = vunpack.c.l.b16 %v109
    %v1272 = vunpack.c.l.b16 %v110
    %v1273 = vunpack.c.h.b16 %v110
    %v1274 = vunpack.c.l.b16 %v111
    %v1275 = vunpack.c.l.b16 %v112
    %v1276 = vunpack.c.h.b16 %v112
    %v1277 = vunpack.c.l.b16 %v113
    %v1278 = vunpack.c.l.b16 %v114
    %v1279 = vunpack.c.h.b16 %v114
    %v1280 = vunpack.c.l.b16 %v115
    %v1281 = vunpack.c.l.b16 %v116
    %v1282 = vunpack.c.h.b16 %v116
    %v1283 = vunpack.c.l.b16 %v117
    %v1284 = vunpack.c.l.b16 %v118
    %v1285 = vunpack.c.h.b16 %v118
    %v1286 = vunpack.c.l.b16 %v119
    %v1287 = vunpack.c.l.b16 %v120
    %v1288 = vunpack.c.h.b16 %v120
    %v1289 = vunpack.c.l.b16 %v121
    %v1290 = vunpack.c.l.b16 %v122
    %v1291 = vunpack.c.h.b16 %v122
    %v1292 = vunpack.c.l.b16 %v123
    %v1293 = vunpack.c.l.b16 %v124
    %v1294 = vunpack.c.h.b16 %v124
    %v1295 = vunpack.c.l.b16 %v125
    %v1296 = vunpack.c.l.b16 %v126
    %v1297 = vunpack.c.h.b16 %v126
    %v1298 = vunpack.c.l.b16 %v127
    %v1299 = vunpack.c.l.b16 %v128
    %v1300 = vunpack.c.h.b16 %v128
    %v1301 = vunpack.c.l.b16 %v129
    %v1302 = vunpack.c.l.b16 %v130
    %v1303 = vunpack.c.h.b16 %v130
    %v1304 = vunpack.c.l.b16 %v131
    %v1305 = vunpack.c.l.b16 %v132
    %v1306 = vunpack.c.h.b16 %v132
    %v1307 = vunpack.c.l.b16 %v133
    %v1308 = vunpack.c.l.b16 %v134
    %v1309 = vunpack.c.h.b16 %v134
    %v1310 = vunpack.c.l.b16 %v135
    %v1311 = vunpack.c.l.b16 %v136
    %v1312 = vunpack.c.h.b16 %v136
    %v1313 = vunpack.c.l.b16 %v137
    %v1314 = vunpack.c.l.b16 %v138
    %v1315 = vunpack.c.h.b16 %v138
    %v1316 = vunpack.c.l.b16 %v139
    %v1317 = vunpack.c.l.b16 %v140
    %v1318 = vunpack.c.h.b16 %v140
    %v1319 = vunpack.c.l.b16 %v141
    %v1320 = vunpack.c.l.b16 %v142
    %v1321 = vunpack.c.h.b16 %v142
    %v1322 = vunpack.c.l.b16 %v143
    %v1323 = vunpack.c.l.b16 %v144
    %v1324 = vunpack.c.h.b16 %v144
    %v1325 = vunpack.c.l.b16 %v145
    %v1326 = vunpack.c.l.b16 %v146
    %v1327 = vunpack.c.h.b16 %v146
    %v1328 = vunpack.c.l.b16 %v147
    %v1329 = vpack.c.b16 %v1140, %v1137
    %v1330 = vpack.c.b16 %v1141, %v1138
    %v1331 = vpack.c.b16 %v1142, %v1139
    %v1332 = vpack.c.b16 %v1146, %v1143
    %v1333 = vpack.c.b16 %v1147, %v1144
    %v1334 = vpack.c.b16 %v1148, %v1145
    %v1335 = vpack.c.b16 %v1152, %v1149
    %v1336 = vpack.c.b16 %v1153, %v1150
    %v1337 = vpack.c.b16 %v1154, %v1151
    %v1338 = vpack.c.b16 %v1158, %v1155
    %v1339 = vpack.c.b16 %v1159, %v1156
    %v1340 = vpack.c.b16 %v1160, %v1157
    %v1341 = vpack.c.b16 %v1164, %v1161
    %v1342 = vpack.c.b16 %v1165, %v1162
    %v1343 = vpack.c.b16 %v1166, %v1163
    %v1344 = vpack.c.b16 %v1170, %v1167
    %v1345 = vpack.c.b16 %v1171, %v1168
    %v1346 = vpack.c.b16 %v1172, %v1169
    %v1347 = vpack.c.b16 %v1176, %v1173
    %v1348 = vpack.c.b16 %v1177, %v1174
    %v1349 = vpack.c.b16 %v1178, %v1175
    %v1350 = vpack.c.b16 %v1182, %v1179
    %v1351 = vpack.c.b16 %v1183, %v1180
    %v1352 = vpack.c.b16 %v1184, %v1181
    %v1353 = vpack.c.b16 %v1188, %v1185
    %v1354 = vpack.c.b16 %v1189, %v1186
    %v1355 = vpack.c.b16 %v1190, %v1187
    %v1356 = vpack.c.b16 %v1194, %v1191
    %v1357 = vpack.c.b16 %v1195, %v1192
    %v1358 = vpack.c.b16 %v1196, %v1193
    %v1359 = vpack.c.b16 %v1200, %v1197
    %v1360 = vpack.c.b16 %v1201, %v1198
    %v1361 = vpack.c.b16 %v1202, %v1199
    %v1362 = vpack.c.b16 %v1206, %v1203
    %v1363 = vpack.c.b16 %v1207, %v1204
    %v1364 = vpack.c.b16 %v1208, %v1205
    %v1365 = vpack.c.b16 %v1212, %v1209
    %v1366 = vpack.c.b16 %v1213, %v1210
    %v1367 = vpack.c.b16 %v1214, %v1211
    %v1368 = vpack.c.b16 %v1218, %v1215
    %v1369 = vpack.c.b16 %v1219, %v1216
    %v1370 = vpack.c.b16 %v1220, %v1217
    %v1371 = vpack.c.b16 %v1224, %v1221
    %v1372 = vpack.c.b16 %v1225, %v1222
    %v1373 = vpack.c.b16 %v1226, %v1223
    %v1374 = vpack.c.b16 %v1230, %v1227
    %v1375 = vpack.c.b16 %v1231, %v1228
    %v1376 = vpack.c.b16 %v1232, %v1229
    %v1377 = vpack.c.b16 %v1236, %v1233
    %v1378 = vpack.c.b16 %v1237, %v1234
    %v1379 = vpack.c.b16 %v1238, %v1235
    %v1380 = vpack.c.b16 %v1242, %v1239
    %v1381 = vpack.c.b16 %v1243, %v1240
    %v1382 = vpack.c.b16 %v1244, %v1241
    %v1383 = vpack.c.b16 %v1248, %v1245
    %v1384 = vpack.c.b16 %v1249, %v1246
    %v1385 = vpack.c.b16 %v1250, %v1247
    %v1386 = vpack.c.b16 %v1254, %v1251
    %v1387 = vpack.c.b16 %v1255, %v1252
    %v1388 = vpack.c.b16 %v1256, %v1253
    %v1389 = vpack.c.b16 %v1260, %v1257
    %v1390 = vpack.c.b16 %v1261, %v1258
    %v1391 = vpack.c.b16 %v1262, %v1259
    %v1392 = vpack.c.b16 %v1266, %v1263
    %v1393 = vpack.c.b16 %v1267, %v1264
    %v1394 = vpack.c.b16 %v1268, %v1265
    %v1395 = vpack.c.b16 %v1272, %v1269
    %v1396 = vpack.c.b16 %v1273, %v1270
    %v1397 = vpack.c.b16 %v1274, %v1271
    %v1398 = vpack.c.b16 %v1278, %v1275
    %v1399 = vpack.c.b16 %v1279, %v1276
    %v1400 = vpack.c.b16 %v1280, %v1277
    %v1401 = vpack.c.b16 %v1284, %v1281
    %v1402 = vpack.c.b16 %v1285, %v1282
    %v1403 = vpack.c.b16 %v1286, %v1283
    %v1404 = vpack.c.b16 %v1290, %v1287
    %v1405 = vpack.c.b16 %v1291, %v1288
    %v1406 = vpack.c.b16 %v1292, %v1289
    %v1407 = vpack.c.b16 %v1296, %v1293
    %v1408 = vpack.c.b16 %v1297, %v1294
    %v1409 = vpack.c.b16 %v1298, %v1295
    %v1410 = vpack.c.b16 %v1302, %v1299
    %v1411 = vpack.c.b16 %v1303, %v1300
    %v1412 = vpack.c.b16 %v1304, %v1301
    %v1413 = vpack.c.b16 %v1308, %v1305
    %v1414 = vpack.c.b16 %v1309, %v1306
    %v1415 = vpack.c.b16 %v1310, %v1307
    %v1416 = vpack.c.b16 %v1314, %v1311
    %v1417 = vpack.c.b16 %v1315, %v1312
    %v1418 = vpack.c.b16 %v1316, %v1313
    %v1419 = vpack.c.b16 %v1320, %v1317
    %v1420 = vpack.c.b16 %v1321, %v1318
    %v1421 = vpack.c.b16 %v1322, %v1319
    %v1422 = vpack.c.b16 %v1326, %v1323
    %v1423 = vpack.c.b16 %v1327, %v1324
    %v1424 = vpack.c.b16 %v1328, %v1325
    %1521 = vmatprep.subr.bf16.mxu0 %v1330
    %1522 = vmatpush1.bf16.msra.mxu0 %v1329
    %1523 = vmatprep.subr.bf16.mxu0 %v1333
    %1524 = vmatpush1.bf16.msra.mxu0 %v1332
    %1525 = vmatprep.subr.bf16.mxu0 %v1336
    %1526 = vmatpush1.bf16.msra.mxu0 %v1335
    %1527 = vmatprep.subr.bf16.mxu0 %v1339
    %1528 = vmatpush1.bf16.msra.mxu0 %v1338
    %1529 = vmatprep.subr.bf16.mxu0 %v1342
    %1530 = vmatpush1.bf16.msra.mxu0 %v1341
    %1531 = vmatprep.subr.bf16.mxu0 %v1345
    %1532 = vmatpush1.bf16.msra.mxu0 %v1344
    %1533 = vmatprep.subr.bf16.mxu0 %v1348
    %1534 = vmatpush1.bf16.msra.mxu0 %v1347
    %1535 = vmatprep.subr.bf16.mxu0 %v1351
    %1536 = vmatpush1.bf16.msra.mxu0 %v1350
    %1537 = vmatprep.subr.bf16.mxu0 %v1354
    %1538 = vmatpush1.bf16.msra.mxu0 %v1353
    %1539 = vmatprep.subr.bf16.mxu0 %v1357
    %1540 = vmatpush1.bf16.msra.mxu0 %v1356
    %1541 = vmatprep.subr.bf16.mxu0 %v1360
    %1542 = vmatpush1.bf16.msra.mxu0 %v1359
    %1543 = vmatprep.subr.bf16.mxu0 %v1363
    %1544 = vmatpush1.bf16.msra.mxu0 %v1362
    %1545 = vmatprep.subr.bf16.mxu0 %v1366
    %1546 = vmatpush1.bf16.msra.mxu0 %v1365
    %1547 = vmatprep.subr.bf16.mxu0 %v1369
    %1548 = vmatpush1.bf16.msra.mxu0 %v1368
    %1549 = vmatprep.subr.bf16.mxu0 %v1372
    %1550 = vmatpush1.bf16.msra.mxu0 %v1371
    %1551 = vmatprep.subr.bf16.mxu0 %v1375
    %1552 = vmatpush1.bf16.msra.mxu0 %v1374
    %1553 = vmatprep.mubr.bf16.mxu0 %v1002
    %1554 = vmatmul.mubr.bf16.gmra.mrb[0].mxu0 %v995
    %v1555 = vpop.f32.mrb[0].mxu0
    %v1556 = vadd.f32 %v894, %v1555
    %v1557 = vpop.f32.mrb[0].mxu0
    %v1558 = vadd.f32 %v896, %v1557
    %v1559 = vpop.f32.mrb[0].mxu0
    %v1560 = vpop.f32.mrb[0].mxu0
    %1561 = vdwg.mxu0
    %1562 = vmatprep.subr.bf16.mxu0 %v1378
    %1563 = vmatpush1.bf16.msra.mxu0 %v1377
    %1564 = vmatprep.subr.bf16.mxu0 %v1381
    %1565 = vmatpush1.bf16.msra.mxu0 %v1380
    %1566 = vmatprep.subr.bf16.mxu0 %v1384
    %1567 = vmatpush1.bf16.msra.mxu0 %v1383
    %1568 = vmatprep.subr.bf16.mxu0 %v1387
    %1569 = vmatpush1.bf16.msra.mxu0 %v1386
    %1570 = vmatprep.subr.bf16.mxu0 %v1390
    %1571 = vmatpush1.bf16.msra.mxu0 %v1389
    %1572 = vmatprep.subr.bf16.mxu0 %v1393
    %1573 = vmatpush1.bf16.msra.mxu0 %v1392
    %1574 = vmatprep.subr.bf16.mxu0 %v1396
    %1575 = vmatpush1.bf16.msra.mxu0 %v1395
    %1576 = vmatprep.subr.bf16.mxu0 %v1399
    %1577 = vmatpush1.bf16.msra.mxu0 %v1398
    %1578 = vmatprep.subr.bf16.mxu0 %v1402
    %1579 = vmatpush1.bf16.msra.mxu0 %v1401
    %1580 = vmatprep.subr.bf16.mxu0 %v1405
    %1581 = vmatpush1.bf16.msra.mxu0 %v1404
    %1582 = vmatprep.subr.bf16.mxu0 %v1408
    %1583 = vmatpush1.bf16.msra.mxu0 %v1407
    %1584 = vmatprep.subr.bf16.mxu0 %v1411
    %1585 = vmatpush1.bf16.msra.mxu0 %v1410
    %1586 = vmatprep.subr.bf16.mxu0 %v1414
    %1587 = vmatpush1.bf16.msra.mxu0 %v1413
    %1588 = vmatprep.subr.bf16.mxu0 %v1417
    %1589 = vmatpush1.bf16.msra.mxu0 %v1416
    %1590 = vmatprep.subr.bf16.mxu0 %v1420
    %1591 = vmatpush1.bf16.msra.mxu0 %v1419
    %1592 = vmatprep.subr.bf16.mxu0 %v1423
    %1593 = vmatpush1.bf16.msra.mxu0 %v1422
    %1594 = vmatprep.mubr.bf16.mxu0 %v1004
    %1595 = vmatmul.mubr.bf16.gmra.mrb[0].mxu0 %v1003
    %v1596 = vpop.f32.mrb[0].mxu0
    %v1597 = vadd.f32 %v1556, %v1596
    %v1598 = vpop.f32.mrb[0].mxu0
    %v1599 = vadd.f32 %v1558, %v1598
    %v1600 = vpop.f32.mrb[0].mxu0
    %v1601 = vpop.f32.mrb[0].mxu0
    %1602 = vdwg.mxu0
    %1603 = vmatprep.subr.bf16.mxu0 0
    %1604 = vmatpush1.bf16.msra.mxu0 %v1331
    %1605 = vmatprep.subr.bf16.mxu0 0
    %1606 = vmatpush1.bf16.msra.mxu0 %v1334
    %1607 = vmatprep.subr.bf16.mxu0 0
    %1608 = vmatpush1.bf16.msra.mxu0 %v1337
    %1609 = vmatprep.subr.bf16.mxu0 0
    %1610 = vmatpush1.bf16.msra.mxu0 %v1340
    %1611 = vmatprep.subr.bf16.mxu0 0
    %1612 = vmatpush1.bf16.msra.mxu0 %v1343
    %1613 = vmatprep.subr.bf16.mxu0 0
    %1614 = vmatpush1.bf16.msra.mxu0 %v1346
    %1615 = vmatprep.subr.bf16.mxu0 0
    %1616 = vmatpush1.bf16.msra.mxu0 %v1349
    %1617 = vmatprep.subr.bf16.mxu0 0
    %1618 = vmatpush1.bf16.msra.mxu0 %v1352
    %1619 = vmatprep.subr.bf16.mxu0 0
    %1620 = vmatpush1.bf16.msra.mxu0 %v1355
    %1621 = vmatprep.subr.bf16.mxu0 0
    %1622 = vmatpush1.bf16.msra.mxu0 %v1358
    %1623 = vmatprep.subr.bf16.mxu0 0
    %1624 = vmatpush1.bf16.msra.mxu0 %v1361
    %1625 = vmatprep.subr.bf16.mxu0 0
    %1626 = vmatpush1.bf16.msra.mxu0 %v1364
    %1627 = vmatprep.subr.bf16.mxu0 0
    %1628 = vmatpush1.bf16.msra.mxu0 %v1367
    %1629 = vmatprep.subr.bf16.mxu0 0
    %1630 = vmatpush1.bf16.msra.mxu0 %v1370
    %1631 = vmatprep.subr.bf16.mxu0 0
    %1632 = vmatpush1.bf16.msra.mxu0 %v1373
    %1633 = vmatprep.subr.bf16.mxu0 0
    %1634 = vmatpush1.bf16.msra.mxu0 %v1376
    %1635 = vmatprep.mubr.bf16.mxu0 %v1002
    %1636 = vmatmul.mubr.bf16.gmra.mrb[0].mxu0 %v995
    %v1637 = vpop.f32.mrb[0].mxu0
    %v1638 = vadd.f32 %v975, %v1637
    %v1639 = vpop.f32.mrb[0].mxu0
    %v1640 = vpop.f32.mrb[0].mxu0
    %v1641 = vpop.f32.mrb[0].mxu0
    %1642 = vdwg.mxu0
    %1643 = vmatprep.subr.bf16.mxu0 0
    %1644 = vmatpush1.bf16.msra.mxu0 %v1379
    %1645 = vmatprep.subr.bf16.mxu0 0
    %1646 = vmatpush1.bf16.msra.mxu0 %v1382
    %1647 = vmatprep.subr.bf16.mxu0 0
    %1648 = vmatpush1.bf16.msra.mxu0 %v1385
    %1649 = vmatprep.subr.bf16.mxu0 0
    %1650 = vmatpush1.bf16.msra.mxu0 %v1388
    %1651 = vmatprep.subr.bf16.mxu0 0
    %1652 = vmatpush1.bf16.msra.mxu0 %v1391
    %1653 = vmatprep.subr.bf16.mxu0 0
    %1654 = vmatpush1.bf16.msra.mxu0 %v1394
    %1655 = vmatprep.subr.bf16.mxu0 0
    %1656 = vmatpush1.bf16.msra.mxu0 %v1397
    %1657 = vmatprep.subr.bf16.mxu0 0
    %1658 = vmatpush1.bf16.msra.mxu0 %v1400
    %1659 = vmatprep.subr.bf16.mxu0 0
    %1660 = vmatpush1.bf16.msra.mxu0 %v1403
    %1661 = vmatprep.subr.bf16.mxu0 0
    %1662 = vmatpush1.bf16.msra.mxu0 %v1406
    %1663 = vmatprep.subr.bf16.mxu0 0
    %1664 = vmatpush1.bf16.msra.mxu0 %v1409
    %1665 = vmatprep.subr.bf16.mxu0 0
    %1666 = vmatpush1.bf16.msra.mxu0 %v1412
    %1667 = vmatprep.subr.bf16.mxu0 0
    %1668 = vmatpush1.bf16.msra.mxu0 %v1415
    %1669 = vmatprep.subr.bf16.mxu0 0
    %1670 = vmatpush1.bf16.msra.mxu0 %v1418
    %1671 = vmatprep.subr.bf16.mxu0 0
    %1672 = vmatpush1.bf16.msra.mxu0 %v1421
    %1673 = vmatprep.subr.bf16.mxu0 0
    %1674 = vmatpush1.bf16.msra.mxu0 %v1424
    %1675 = vmatprep.mubr.bf16.mxu0 %v1004
    %1676 = vmatmul.mubr.bf16.gmra.mrb[0].mxu0 %v1003
    %v1677 = vpop.f32.mrb[0].mxu0
    %v1678 = vadd.f32 %v1638, %v1677
    %v1679 = vpop.f32.mrb[0].mxu0
    %v1680 = vpop.f32.mrb[0].mxu0
    %v1681 = vpop.f32.mrb[0].mxu0
    %1682 = vdwg.mxu0
    %v1683 = vld [vmem:[%s3] sm:$0x7]
    %v1685 = vlaneseq
    %v1686 = vshrl.u32 %v1685, 7
    %v1687 = vsub.s32 0, %v1686
    %v1688 = vrot.slane %v1683, %v1687
    %v1689 = vlaneseq
    %v1690 = vshrl.u32 %v1689, 7
    %v1691 = vsub.s32 1, %v1690
    %v1692 = vrot.slane %v1683, %v1691
    %v1693 = vlaneseq
    %v1694 = vshrl.u32 %v1693, 7
    %v1695 = vsub.s32 2, %v1694
    %v1696 = vrot.slane %v1683, %v1695
    %v1700 = vadd.f32 %v1597, %v1688
    %v1701 = vadd.f32 %v1599, %v1692
    %v1702 = vadd.f32 %v1678, %v1696
    %v1706 = vcombine.low %v1700, %v1701
    %v1708 = vunpack.c.l.s4 1983009808
    %v1709 = vunpack.c.0.s8 %v1708
    %v1710 = vlaneseq
    %v1711 = vshrl.u32 %v1710, 7
    %v1712 = vsub.s32 %v1709, %v1711
    %v1713 = vrot.slane %v1706, %v1712
    %v1715 = vunpack.c.l.s4 1983009808
    %v1716 = vunpack.c.0.s8 %v1715
    %v1717 = vlaneseq
    %v1718 = vshrl.u32 %v1717, 7
    %v1719 = vsub.s32 %v1716, %v1718
    %v1720 = vrot.slane %v1702, %v1719
    %v1721 = vcombine.low %v1713, %v1720
    %1723 = vst [vmem:[#allocation2] sm:$0x3f] %v1721
    // Predicated region
    $region18: #{avmodel_forward.13} parent=1 // pred_check
      _
    $region19: #{avmodel_forward.13} parent=1 // pred_check_branch
      %1725 = sbr.rel (0) target = $region21
    $region20: #{avmodel_forward.13} parent=1 // pred_region
      %s1727 = ssub.s32 96, 96
      %1728 = vsyncadd [#allocation3], %s1727
      %s1730 = sshll.u32 [#allocation2], 4
      %s1731 = int_to_ptr.vmem [resolvable:$true] %s1730
      %1733 = dma.vmem_to_hbm [thread:$0]  %s1731, 96, %s4, [#allocation3]
    $region21: #{avmodel_forward.13} parent=1 // pred_fallthru
      _
    // Predicated region
    $region22: #{avmodel_forward.13} parent=1 // pred_check
      _
    $region23: #{avmodel_forward.13} parent=1 // pred_check_branch
      %1735 = sbr.rel (0) target = $region25
    $region24: #{avmodel_forward.13} parent=1 // pred_region
      %1736 = dma.done [#allocation3], 96
    $region25: #{avmodel_forward.13} parent=1 // pred_fallthru
      _
    %1737 = vsyncpa [#allocation3], 1

// kernel: avmodel_forward.9
$region0: #{avmodel_forward.9}
  #allocation0 [shape = 'u32[]', space=smem, size = 0x4, offset = 0x4, fixed_abs, tag = 'smem constant byte address 0x4 - core index']
  #allocation1 [shape = 'u32[144,128]{1,0:T(1,128)}', space=vmem, size = 0x12000, scoped, tag = 'internal scratch']
  #allocation2 [shape = 'bf16[80,256]{1,0:T(16,128)(2,1)}', space=vmem, size = 0xa000, scoped, tag = 'scratch operand']
  %s0 = inlined_call_operand.vmem [shape: bf16[2,110,128], index: 0, kind: input, shape index: {}]
  %s1 = inlined_call_operand.vmem [shape: bf16[5,256,512], index: 1, kind: input, shape index: {}]
  %s2 = inlined_call_operand.vmem [shape: f32[1,512], index: 2, kind: input, shape index: {}]
  %s3 = inlined_call_operand.vmem [shape: f32[80,1], index: 3, kind: input, shape index: {}]
  %s4 = inlined_call_operand.vmem [shape: f32[2,1,512], index: 4, kind: output, shape index: {}]
  %s5 = sld [smem:[#allocation0]]
  $region87: #{avmodel_forward.9} parent=0
    _
  %s7 = ssub.s32 1, %s5
  %s8 = scalar_select 0, %s7, %s5
  $region1: #{avmodel_forward.9} parent=0
    #allocation3 [shape = 'u8[1310720]{0}', space=vmem, size = 0x140000, scoped, tag = 'input window, operand 1']
    loop: start=0, step=1, limit=6
    $region2: #{avmodel_forward.9} parent=1 // loop_pre_header
      _
    $region3: #{avmodel_forward.9} parent=1 // loop_header
      %s10 = sphi 0, %s14
      %p11 = scmp.ge.s32.totalorder %s10, 6
      %s17 = sphi 0, %s29
      %s18 = sphi 0, %s25
      %s19 = sphi 0, %s17
      %s20 = sphi 0, %s18
      %s21 = sphi 0, %s19
      %s22 = sphi 0, %s20
      %s32 = sphi 0, %s34
      %s35 = sphi 0, %s32
      %s36 = sphi 0, %s35
      %s52 = sphi 0, %s36
      %s58 = sphi 0, %s60
      %s61 = sphi 0, %s58
      %s62 = sphi 0, %s61
      %s78 = sphi 0, %s62
      %s84 = sphi 0, %s86
      %s87 = sphi 0, %s84
      %s88 = sphi 0, %s87
      %s104 = sphi 0, %s88
      %s108 = sphi 0, %s108
      %s110 = sphi 0, %s108
      %s111 = sphi 0, %s110
      %s125 = sphi 0, %s111
      %s133 = sphi 0, %s135
      %s136 = sphi 0, %s133
      %s137 = sphi 0, %s136
      %s153 = sphi 0, %s137
    $region4: #{avmodel_forward.9} parent=1 // loop_header_branch
      %13 = sbr.rel (%p11) target = $region8
    $region5: #{avmodel_forward.9} parent=1 // loop_body
      %s15 = ssub.s32 %s10, 1
      %s16 = ssub.s32 %s10, 2
      %s23 = sadd.s32 1, %s18
      %p24 = scmp.ge.s32.totalorder %s23, 2
      %s25 = scalar_select %p24, 0, %s23
      %s26 = sadd.s32 1, %s17
      %s27 = scalar_select %p24, %s26, %s17
      %p28 = scmp.ge.s32.totalorder %s27, 2
      %s29 = scalar_select %p28, 0, %s27
      %s30 = ssub.s32 %s18, %s25
      %p31 = scmp.eq.s32.totalorder %s30, 0
      %s33 = sadd.s32 %s32, 1
      %s34 = scalar_select %p31, %s32, %s33
      %p37 = pneg %p31
      %p38 = scmp.eq.s32.totalorder %s10, 3
      %p39 = por %p37, %p38
      %p40 = scmp.ne.s32.totalorder %s32, %s35
      %p41 = scmp.eq.s32.totalorder %s10, 0
      %p42 = por %p40, %p41
      %p43 = scmp.ne.s32.totalorder %s32, %s35
      %p44 = scmp.eq.s32.totalorder %s15, 3
      %p45 = por %p43, %p44
      %p46 = scmp.ne.s32.totalorder %s35, %s36
      %p47 = scmp.eq.s32.totalorder %s15, 0
      %p48 = por %p46, %p47
      %p49 = scmp.ne.s32.totalorder %s35, %s36
      %p50 = scmp.eq.s32.totalorder %s16, 3
      %p51 = por %p49, %p50
      %p53 = scmp.ne.s32.totalorder %s36, %s52
      %p54 = scmp.eq.s32.totalorder %s16, 0
      %p55 = por %p53, %p54
      %s56 = ssub.s32 %s17, %s29
      %p57 = scmp.eq.s32.totalorder %s56, 0
      %s59 = sadd.s32 %s58, 1
      %s60 = scalar_select %p57, %s58, %s59
      %p63 = pneg %p57
      %p64 = scmp.eq.s32.totalorder %s10, 3
      %p65 = por %p63, %p64
      %p66 = scmp.ne.s32.totalorder %s58, %s61
      %p67 = scmp.eq.s32.totalorder %s10, 0
      %p68 = por %p66, %p67
      %p69 = scmp.ne.s32.totalorder %s58, %s61
      %p70 = scmp.eq.s32.totalorder %s15, 3
      %p71 = por %p69, %p70
      %p72 = scmp.ne.s32.totalorder %s61, %s62
      %p73 = scmp.eq.s32.totalorder %s15, 0
      %p74 = por %p72, %p73
      %p75 = scmp.ne.s32.totalorder %s61, %s62
      %p76 = scmp.eq.s32.totalorder %s16, 3
      %p77 = por %p75, %p76
      %p79 = scmp.ne.s32.totalorder %s62, %s78
      %p80 = scmp.eq.s32.totalorder %s16, 0
      %p81 = por %p79, %p80
      %s82 = ssub.s32 %s17, %s29
      %p83 = scmp.eq.s32.totalorder %s82, 0
      %s85 = sadd.s32 %s84, 1
      %s86 = scalar_select %p83, %s84, %s85
      %p89 = pneg %p83
      %p90 = scmp.eq.s32.totalorder %s10, 3
      %p91 = por %p89, %p90
      %p92 = scmp.ne.s32.totalorder %s84, %s87
      %p93 = scmp.eq.s32.totalorder %s10, 0
      %p94 = por %p92, %p93
      %p95 = scmp.ne.s32.totalorder %s84, %s87
      %p96 = scmp.eq.s32.totalorder %s15, 3
      %p97 = por %p95, %p96
      %p98 = scmp.ne.s32.totalorder %s87, %s88
      %p99 = scmp.eq.s32.totalorder %s15, 0
      %p100 = por %p98, %p99
      %p101 = scmp.ne.s32.totalorder %s87, %s88
      %p102 = scmp.eq.s32.totalorder %s16, 3
      %p103 = por %p101, %p102
      %p105 = scmp.ne.s32.totalorder %s88, %s104
      %p106 = scmp.eq.s32.totalorder %s16, 0
      %p107 = por %p105, %p106
      %s109 = sadd.s32 %s108, 1
      %p112 = scmp.eq.s32.totalorder %s10, 3
      %p113 = scmp.ne.s32.totalorder %s108, %s110
      %p114 = scmp.eq.s32.totalorder %s10, 0
      %p115 = por %p113, %p114
      %p116 = scmp.ne.s32.totalorder %s108, %s110
      %p117 = scmp.eq.s32.totalorder %s15, 3
      %p118 = por %p116, %p117
      %p119 = scmp.ne.s32.totalorder %s110, %s111
      %p120 = scmp.eq.s32.totalorder %s15, 0
      %p121 = por %p119, %p120
      %p122 = scmp.ne.s32.totalorder %s110, %s111
      %p123 = scmp.eq.s32.totalorder %s16, 3
      %p124 = por %p122, %p123
      %p126 = scmp.ne.s32.totalorder %s111, %s125
      %p127 = scmp.eq.s32.totalorder %s16, 0
      %p128 = por %p126, %p127
      %s129 = ssub.s32 %s18, %s25
      %s130 = ssub.s32 %s17, %s29
      %s131 = sor.u32 %s129, %s130
      %p132 = scmp.eq.s32.totalorder %s131, 0
      %s134 = sadd.s32 %s133, 1
      %s135 = scalar_select %p132, %s133, %s134
      %p138 = pneg %p132
      %p139 = scmp.eq.s32.totalorder %s10, 3
      %p140 = por %p138, %p139
      %p141 = scmp.ne.s32.totalorder %s133, %s136
      %p142 = scmp.eq.s32.totalorder %s10, 0
      %p143 = por %p141, %p142
      %p144 = scmp.ne.s32.totalorder %s133, %s136
      %p145 = scmp.eq.s32.totalorder %s15, 3
      %p146 = por %p144, %p145
      %p147 = scmp.ne.s32.totalorder %s136, %s137
      %p148 = scmp.eq.s32.totalorder %s15, 0
      %p149 = por %p147, %p148
      %p150 = scmp.ne.s32.totalorder %s136, %s137
      %p151 = scmp.eq.s32.totalorder %s16, 3
      %p152 = por %p150, %p151
      %p154 = scmp.ne.s32.totalorder %s137, %s153
      %p155 = scmp.eq.s32.totalorder %s16, 0
      %p156 = por %p154, %p155
      %p157 = scmp.le.s32.totalorder 1, %s10
      %p158 = scmp.lt.s32.totalorder %s10, 5
      %p159 = pnand %p157, %p158
      %p160 = pneg %p159
      // Predicated region
      $region9: #{avmodel_forward.9} parent=5 // pred_check
        _
      $region10: #{avmodel_forward.9} parent=5 // pred_check_branch
        %162 = sbr.rel (%p159) target = $region12
      $region11: #{avmodel_forward.9} parent=5 // pred_region
        %s163 = ssub.s32 %s10, 1
        // Predicated region
        $region13: #{avmodel_forward.9} parent=11 // pred_check
          %p164 = pneg %p121
        $region14: #{avmodel_forward.9} parent=11 // pred_check_branch
          %166 = sbr.rel (%p164) target = $region16
        $region15: #{avmodel_forward.9} parent=11 // pred_region
          _
        $region16: #{avmodel_forward.9} parent=11 // pred_fallthru
          _
      $region12: #{avmodel_forward.9} parent=5 // pred_fallthru
        _
      %p167 = scmp.lt.s32.totalorder %s10, 4
      // Predicated region
      $region17: #{avmodel_forward.9} parent=5 // pred_check
        %p168 = pneg %p167
      $region18: #{avmodel_forward.9} parent=5 // pred_check_branch
        %170 = sbr.rel (%p168) target = $region20
      $region19: #{avmodel_forward.9} parent=5 // pred_region
        // Predicated region
        $region21: #{avmodel_forward.9} parent=19 // pred_check
          %p171 = pneg %p42
        $region22: #{avmodel_forward.9} parent=19 // pred_check_branch
          %173 = sbr.rel (%p171) target = $region24
        $region23: #{avmodel_forward.9} parent=19 // pred_region
          %p174 = scmp.lt.s32.totalorder %s18, 1
          %s175 = scalar_select %p174, %s18, 1
          %s176 = smul.addr %s175, 14
          %s177 = smul.addr %s176, 4
          %s178 = scalar_lea.vmem %s0, %s177
        $region24: #{avmodel_forward.9} parent=19 // pred_fallthru
          _
        // Predicated region
        $region25: #{avmodel_forward.9} parent=19 // pred_check
          %p179 = pneg %p68
        $region26: #{avmodel_forward.9} parent=19 // pred_check_branch
          %181 = sbr.rel (%p179) target = $region28
        $region27: #{avmodel_forward.9} parent=19 // pred_region
          %s182 = sand.u32 %s58, 1
          %s183 = sand.u32 %s58, 1
          %s184 = smul.addr %s183, 1280
          %s185 = scalar_lea.vmem [#allocation3], %s184
          %s186 = smul.u32 2, %s17
          %s187 = smul.addr %s186, 4
          %s188 = scalar_lea.vmem %s1, %s187
          // Predicated region
          $region29: #{avmodel_forward.9} parent=27 // pred_check
            _
          $region30: #{avmodel_forward.9} parent=27 // pred_check_branch
            %190 = sbr.rel (0) target = $region32
          $region31: #{avmodel_forward.9} parent=27 // pred_region
            // Predicated region
            $region33: #{avmodel_forward.9} parent=31 // pred_check
              _
            $region34: #{avmodel_forward.9} parent=31 // pred_check_branch
              %192 = sbr.rel (0) target = $region36
            $region35: #{avmodel_forward.9} parent=31 // pred_region
              // Predicated region
              $region48: #{avmodel_forward.9} parent=35 // pred_check
                _
              $region49: #{avmodel_forward.9} parent=35 // pred_check_branch
                %525 = sbr.rel (0) target = $region51
              $region50: #{avmodel_forward.9} parent=35 // pred_region
                loop: start=0, step=1, limit=1
                $region52: #{avmodel_forward.9} parent=50 // loop_pre_header
                  _
                $region53: #{avmodel_forward.9} parent=50 // loop_header
                  %s527 = sphi 0, %s531
                  %p528 = scmp.ge.s32.totalorder %s527, 1
                  %s532 = sphi %s188, %s188
                  %s533 = sphi %s185, %s185
                $region54: #{avmodel_forward.9} parent=50 // loop_header_branch
                  %530 = sbr.rel (%p528) target = $region58
                $region55: #{avmodel_forward.9} parent=50 // loop_body
                  %v534 = vld [vmem:[%s532] sm:$0xff]
                  %535 = vst [vmem:[%s533] sm:$0xff] %v534
                  %v536 = vld [vmem:[%s532 + $0x10] sm:$0xff]
                  %537 = vst [vmem:[%s533 + $0x8] sm:$0xff] %v536
                  %v538 = vld [vmem:[%s532 + $0x20] sm:$0xff]
                  %539 = vst [vmem:[%s533 + $0x10] sm:$0xff] %v538
                  %v540 = vld [vmem:[%s532 + $0x30] sm:$0xff]
                  %541 = vst [vmem:[%s533 + $0x18] sm:$0xff] %v540
                  %v542 = vld [vmem:[%s532 + $0x40] sm:$0xff]
                  %543 = vst [vmem:[%s533 + $0x20] sm:$0xff] %v542
                  %v544 = vld [vmem:[%s532 + $0x50] sm:$0xff]
                  %545 = vst [vmem:[%s533 + $0x28] sm:$0xff] %v544
                  %v546 = vld [vmem:[%s532 + $0x60] sm:$0xff]
                  %547 = vst [vmem:[%s533 + $0x30] sm:$0xff] %v546
                  %v548 = vld [vmem:[%s532 + $0x70] sm:$0xff]
                  %549 = vst [vmem:[%s533 + $0x38] sm:$0xff] %v548
                  %v550 = vld [vmem:[%s532 + $0x80] sm:$0xff]
                  %551 = vst [vmem:[%s533 + $0x40] sm:$0xff] %v550
                  %v552 = vld [vmem:[%s532 + $0x90] sm:$0xff]
                  %553 = vst [vmem:[%s533 + $0x48] sm:$0xff] %v552
                  %v554 = vld [vmem:[%s532 + $0xa0] sm:$0xff]
                  %555 = vst [vmem:[%s533 + $0x50] sm:$0xff] %v554
                  %v556 = vld [vmem:[%s532 + $0xb0] sm:$0xff]
                  %557 = vst [vmem:[%s533 + $0x58] sm:$0xff] %v556
                  %v558 = vld [vmem:[%s532 + $0xc0] sm:$0xff]
                  %559 = vst [vmem:[%s533 + $0x60] sm:$0xff] %v558
                  %v560 = vld [vmem:[%s532 + $0xd0] sm:$0xff]
                  %561 = vst [vmem:[%s533 + $0x68] sm:$0xff] %v560
                  %v562 = vld [vmem:[%s532 + $0xe0] sm:$0xff]
                  %563 = vst [vmem:[%s533 + $0x70] sm:$0xff] %v562
                  %v564 = vld [vmem:[%s532 + $0xf0] sm:$0xff]
                  %565 = vst [vmem:[%s533 + $0x78] sm:$0xff] %v564
                  %v566 = vld [vmem:[%s532 + $0x100] sm:$0xff]
                  %567 = vst [vmem:[%s533 + $0x80] sm:$0xff] %v566
                  %v568 = vld [vmem:[%s532 + $0x110] sm:$0xff]
                  %569 = vst [vmem:[%s533 + $0x88] sm:$0xff] %v568
                  %v570 = vld [vmem:[%s532 + $0x120] sm:$0xff]
                  %571 = vst [vmem:[%s533 + $0x90] sm:$0xff] %v570
                  %v572 = vld [vmem:[%s532 + $0x130] sm:$0xff]
                  %573 = vst [vmem:[%s533 + $0x98] sm:$0xff] %v572
                  %v574 = vld [vmem:[%s532 + $0x140] sm:$0xff]
                  %575 = vst [vmem:[%s533 + $0xa0] sm:$0xff] %v574
                  %v576 = vld [vmem:[%s532 + $0x150] sm:$0xff]
                  %577 = vst [vmem:[%s533 + $0xa8] sm:$0xff] %v576
                  %v578 = vld [vmem:[%s532 + $0x160] sm:$0xff]
                  %579 = vst [vmem:[%s533 + $0xb0] sm:$0xff] %v578
                  %v580 = vld [vmem:[%s532 + $0x170] sm:$0xff]
                  %581 = vst [vmem:[%s533 + $0xb8] sm:$0xff] %v580
                  %v582 = vld [vmem:[%s532 + $0x180] sm:$0xff]
                  %583 = vst [vmem:[%s533 + $0xc0] sm:$0xff] %v582
                  %v584 = vld [vmem:[%s532 + $0x190] sm:$0xff]
                  %585 = vst [vmem:[%s533 + $0xc8] sm:$0xff] %v584
                  %v586 = vld [vmem:[%s532 + $0x1a0] sm:$0xff]
                  %587 = vst [vmem:[%s533 + $0xd0] sm:$0xff] %v586
                  %v588 = vld [vmem:[%s532 + $0x1b0] sm:$0xff]
                  %589 = vst [vmem:[%s533 + $0xd8] sm:$0xff] %v588
                  %v590 = vld [vmem:[%s532 + $0x1c0] sm:$0xff]
                  %591 = vst [vmem:[%s533 + $0xe0] sm:$0xff] %v590
                  %v592 = vld [vmem:[%s532 + $0x1d0] sm:$0xff]
                  %593 = vst [vmem:[%s533 + $0xe8] sm:$0xff] %v592
                  %v594 = vld [vmem:[%s532 + $0x1e0] sm:$0xff]
                  %595 = vst [vmem:[%s533 + $0xf0] sm:$0xff] %v594
                  %v596 = vld [vmem:[%s532 + $0x1f0] sm:$0xff]
                  %597 = vst [vmem:[%s533 + $0xf8] sm:$0xff] %v596
                  %v598 = vld [vmem:[%s532 + $0x200] sm:$0xff]
                  %599 = vst [vmem:[%s533 + $0x100] sm:$0xff] %v598
                  %v600 = vld [vmem:[%s532 + $0x210] sm:$0xff]
                  %601 = vst [vmem:[%s533 + $0x108] sm:$0xff] %v600
                  %v602 = vld [vmem:[%s532 + $0x220] sm:$0xff]
                  %603 = vst [vmem:[%s533 + $0x110] sm:$0xff] %v602
                  %v604 = vld [vmem:[%s532 + $0x230] sm:$0xff]
                  %605 = vst [vmem:[%s533 + $0x118] sm:$0xff] %v604
                  %v606 = vld [vmem:[%s532 + $0x240] sm:$0xff]
                  %607 = vst [vmem:[%s533 + $0x120] sm:$0xff] %v606
                  %v608 = vld [vmem:[%s532 + $0x250] sm:$0xff]
                  %609 = vst [vmem:[%s533 + $0x128] sm:$0xff] %v608
                  %v610 = vld [vmem:[%s532 + $0x260] sm:$0xff]
                  %611 = vst [vmem:[%s533 + $0x130] sm:$0xff] %v610
                  %v612 = vld [vmem:[%s532 + $0x270] sm:$0xff]
                  %613 = vst [vmem:[%s533 + $0x138] sm:$0xff] %v612
                  %v614 = vld [vmem:[%s532 + $0x280] sm:$0xff]
                  %615 = vst [vmem:[%s533 + $0x140] sm:$0xff] %v614
                  %v616 = vld [vmem:[%s532 + $0x290] sm:$0xff]
                  %617 = vst [vmem:[%s533 + $0x148] sm:$0xff] %v616
                  %v618 = vld [vmem:[%s532 + $0x2a0] sm:$0xff]
                  %619 = vst [vmem:[%s533 + $0x150] sm:$0xff] %v618
                  %v620 = vld [vmem:[%s532 + $0x2b0] sm:$0xff]
                  %621 = vst [vmem:[%s533 + $0x158] sm:$0xff] %v620
                  %v622 = vld [vmem:[%s532 + $0x2c0] sm:$0xff]
                  %623 = vst [vmem:[%s533 + $0x160] sm:$0xff] %v622
                  %v624 = vld [vmem:[%s532 + $0x2d0] sm:$0xff]
                  %625 = vst [vmem:[%s533 + $0x168] sm:$0xff] %v624
                  %v626 = vld [vmem:[%s532 + $0x2e0] sm:$0xff]
                  %627 = vst [vmem:[%s533 + $0x170] sm:$0xff] %v626
                  %v628 = vld [vmem:[%s532 + $0x2f0] sm:$0xff]
                  %629 = vst [vmem:[%s533 + $0x178] sm:$0xff] %v628
                  %v630 = vld [vmem:[%s532 + $0x300] sm:$0xff]
                  %631 = vst [vmem:[%s533 + $0x180] sm:$0xff] %v630
                  %v632 = vld [vmem:[%s532 + $0x310] sm:$0xff]
                  %633 = vst [vmem:[%s533 + $0x188] sm:$0xff] %v632
                  %v634 = vld [vmem:[%s532 + $0x320] sm:$0xff]
                  %635 = vst [vmem:[%s533 + $0x190] sm:$0xff] %v634
                  %v636 = vld [vmem:[%s532 + $0x330] sm:$0xff]
                  %637 = vst [vmem:[%s533 + $0x198] sm:$0xff] %v636
                  %v638 = vld [vmem:[%s532 + $0x340] sm:$0xff]
                  %639 = vst [vmem:[%s533 + $0x1a0] sm:$0xff] %v638
                  %v640 = vld [vmem:[%s532 + $0x350] sm:$0xff]
                  %641 = vst [vmem:[%s533 + $0x1a8] sm:$0xff] %v640
                  %v642 = vld [vmem:[%s532 + $0x360] sm:$0xff]
                  %643 = vst [vmem:[%s533 + $0x1b0] sm:$0xff] %v642
                  %v644 = vld [vmem:[%s532 + $0x370] sm:$0xff]
                  %645 = vst [vmem:[%s533 + $0x1b8] sm:$0xff] %v644
                  %v646 = vld [vmem:[%s532 + $0x380] sm:$0xff]
                  %647 = vst [vmem:[%s533 + $0x1c0] sm:$0xff] %v646
                  %v648 = vld [vmem:[%s532 + $0x390] sm:$0xff]
                  %649 = vst [vmem:[%s533 + $0x1c8] sm:$0xff] %v648
                  %v650 = vld [vmem:[%s532 + $0x3a0] sm:$0xff]
                  %651 = vst [vmem:[%s533 + $0x1d0] sm:$0xff] %v650
                  %v652 = vld [vmem:[%s532 + $0x3b0] sm:$0xff]
                  %653 = vst [vmem:[%s533 + $0x1d8] sm:$0xff] %v652
                  %v654 = vld [vmem:[%s532 + $0x3c0] sm:$0xff]
                  %655 = vst [vmem:[%s533 + $0x1e0] sm:$0xff] %v654
                  %v656 = vld [vmem:[%s532 + $0x3d0] sm:$0xff]
                  %657 = vst [vmem:[%s533 + $0x1e8] sm:$0xff] %v656
                  %v658 = vld [vmem:[%s532 + $0x3e0] sm:$0xff]
                  %659 = vst [vmem:[%s533 + $0x1f0] sm:$0xff] %v658
                  %v660 = vld [vmem:[%s532 + $0x3f0] sm:$0xff]
                  %661 = vst [vmem:[%s533 + $0x1f8] sm:$0xff] %v660
                  %v662 = vld [vmem:[%s532 + $0x400] sm:$0xff]
                  %663 = vst [vmem:[%s533 + $0x200] sm:$0xff] %v662
                  %v664 = vld [vmem:[%s532 + $0x410] sm:$0xff]
                  %665 = vst [vmem:[%s533 + $0x208] sm:$0xff] %v664
                  %v666 = vld [vmem:[%s532 + $0x420] sm:$0xff]
                  %667 = vst [vmem:[%s533 + $0x210] sm:$0xff] %v666
                  %v668 = vld [vmem:[%s532 + $0x430] sm:$0xff]
                  %669 = vst [vmem:[%s533 + $0x218] sm:$0xff] %v668
                  %v670 = vld [vmem:[%s532 + $0x440] sm:$0xff]
                  %671 = vst [vmem:[%s533 + $0x220] sm:$0xff] %v670
                  %v672 = vld [vmem:[%s532 + $0x450] sm:$0xff]
                  %673 = vst [vmem:[%s533 + $0x228] sm:$0xff] %v672
                  %v674 = vld [vmem:[%s532 + $0x460] sm:$0xff]
                  %675 = vst [vmem:[%s533 + $0x230] sm:$0xff] %v674
                  %v676 = vld [vmem:[%s532 + $0x470] sm:$0xff]
                  %677 = vst [vmem:[%s533 + $0x238] sm:$0xff] %v676
                  %v678 = vld [vmem:[%s532 + $0x480] sm:$0xff]
                  %679 = vst [vmem:[%s533 + $0x240] sm:$0xff] %v678
                  %v680 = vld [vmem:[%s532 + $0x490] sm:$0xff]
                  %681 = vst [vmem:[%s533 + $0x248] sm:$0xff] %v680
                  %v682 = vld [vmem:[%s532 + $0x4a0] sm:$0xff]
                  %683 = vst [vmem:[%s533 + $0x250] sm:$0xff] %v682
                  %v684 = vld [vmem:[%s532 + $0x4b0] sm:$0xff]
                  %685 = vst [vmem:[%s533 + $0x258] sm:$0xff] %v684
                  %v686 = vld [vmem:[%s532 + $0x4c0] sm:$0xff]
                  %687 = vst [vmem:[%s533 + $0x260] sm:$0xff] %v686
                  %v688 = vld [vmem:[%s532 + $0x4d0] sm:$0xff]
                  %689 = vst [vmem:[%s533 + $0x268] sm:$0xff] %v688
                  %v690 = vld [vmem:[%s532 + $0x4e0] sm:$0xff]
                  %691 = vst [vmem:[%s533 + $0x270] sm:$0xff] %v690
                  %v692 = vld [vmem:[%s532 + $0x4f0] sm:$0xff]
                  %693 = vst [vmem:[%s533 + $0x278] sm:$0xff] %v692
                  %v694 = vld [vmem:[%s532 + $0x500] sm:$0xff]
                  %695 = vst [vmem:[%s533 + $0x280] sm:$0xff] %v694
                  %v696 = vld [vmem:[%s532 + $0x510] sm:$0xff]
                  %697 = vst [vmem:[%s533 + $0x288] sm:$0xff] %v696
                  %v698 = vld [vmem:[%s532 + $0x520] sm:$0xff]
                  %699 = vst [vmem:[%s533 + $0x290] sm:$0xff] %v698
                  %v700 = vld [vmem:[%s532 + $0x530] sm:$0xff]
                  %701 = vst [vmem:[%s533 + $0x298] sm:$0xff] %v700
                  %v702 = vld [vmem:[%s532 + $0x540] sm:$0xff]
                  %703 = vst [vmem:[%s533 + $0x2a0] sm:$0xff] %v702
                  %v704 = vld [vmem:[%s532 + $0x550] sm:$0xff]
                  %705 = vst [vmem:[%s533 + $0x2a8] sm:$0xff] %v704
                  %v706 = vld [vmem:[%s532 + $0x560] sm:$0xff]
                  %707 = vst [vmem:[%s533 + $0x2b0] sm:$0xff] %v706
                  %v708 = vld [vmem:[%s532 + $0x570] sm:$0xff]
                  %709 = vst [vmem:[%s533 + $0x2b8] sm:$0xff] %v708
                  %v710 = vld [vmem:[%s532 + $0x580] sm:$0xff]
                  %711 = vst [vmem:[%s533 + $0x2c0] sm:$0xff] %v710
                  %v712 = vld [vmem:[%s532 + $0x590] sm:$0xff]
                  %713 = vst [vmem:[%s533 + $0x2c8] sm:$0xff] %v712
                  %v714 = vld [vmem:[%s532 + $0x5a0] sm:$0xff]
                  %715 = vst [vmem:[%s533 + $0x2d0] sm:$0xff] %v714
                  %v716 = vld [vmem:[%s532 + $0x5b0] sm:$0xff]
                  %717 = vst [vmem:[%s533 + $0x2d8] sm:$0xff] %v716
                  %v718 = vld [vmem:[%s532 + $0x5c0] sm:$0xff]
                  %719 = vst [vmem:[%s533 + $0x2e0] sm:$0xff] %v718
                  %v720 = vld [vmem:[%s532 + $0x5d0] sm:$0xff]
                  %721 = vst [vmem:[%s533 + $0x2e8] sm:$0xff] %v720
                  %v722 = vld [vmem:[%s532 + $0x5e0] sm:$0xff]
                  %723 = vst [vmem:[%s533 + $0x2f0] sm:$0xff] %v722
                  %v724 = vld [vmem:[%s532 + $0x5f0] sm:$0xff]
                  %725 = vst [vmem:[%s533 + $0x2f8] sm:$0xff] %v724
                  %v726 = vld [vmem:[%s532 + $0x600] sm:$0xff]
                  %727 = vst [vmem:[%s533 + $0x300] sm:$0xff] %v726
                  %v728 = vld [vmem:[%s532 + $0x610] sm:$0xff]
                  %729 = vst [vmem:[%s533 + $0x308] sm:$0xff] %v728
                  %v730 = vld [vmem:[%s532 + $0x620] sm:$0xff]
                  %731 = vst [vmem:[%s533 + $0x310] sm:$0xff] %v730
                  %v732 = vld [vmem:[%s532 + $0x630] sm:$0xff]
                  %733 = vst [vmem:[%s533 + $0x318] sm:$0xff] %v732
                  %v734 = vld [vmem:[%s532 + $0x640] sm:$0xff]
                  %735 = vst [vmem:[%s533 + $0x320] sm:$0xff] %v734
                  %v736 = vld [vmem:[%s532 + $0x650] sm:$0xff]
                  %737 = vst [vmem:[%s533 + $0x328] sm:$0xff] %v736
                  %v738 = vld [vmem:[%s532 + $0x660] sm:$0xff]
                  %739 = vst [vmem:[%s533 + $0x330] sm:$0xff] %v738
                  %v740 = vld [vmem:[%s532 + $0x670] sm:$0xff]
                  %741 = vst [vmem:[%s533 + $0x338] sm:$0xff] %v740
                  %v742 = vld [vmem:[%s532 + $0x680] sm:$0xff]
                  %743 = vst [vmem:[%s533 + $0x340] sm:$0xff] %v742
                  %v744 = vld [vmem:[%s532 + $0x690] sm:$0xff]
                  %745 = vst [vmem:[%s533 + $0x348] sm:$0xff] %v744
                  %v746 = vld [vmem:[%s532 + $0x6a0] sm:$0xff]
                  %747 = vst [vmem:[%s533 + $0x350] sm:$0xff] %v746
                  %v748 = vld [vmem:[%s532 + $0x6b0] sm:$0xff]
                  %749 = vst [vmem:[%s533 + $0x358] sm:$0xff] %v748
                  %v750 = vld [vmem:[%s532 + $0x6c0] sm:$0xff]
                  %751 = vst [vmem:[%s533 + $0x360] sm:$0xff] %v750
                  %v752 = vld [vmem:[%s532 + $0x6d0] sm:$0xff]
                  %753 = vst [vmem:[%s533 + $0x368] sm:$0xff] %v752
                  %v754 = vld [vmem:[%s532 + $0x6e0] sm:$0xff]
                  %755 = vst [vmem:[%s533 + $0x370] sm:$0xff] %v754
                  %v756 = vld [vmem:[%s532 + $0x6f0] sm:$0xff]
                  %757 = vst [vmem:[%s533 + $0x378] sm:$0xff] %v756
                  %v758 = vld [vmem:[%s532 + $0x700] sm:$0xff]
                  %759 = vst [vmem:[%s533 + $0x380] sm:$0xff] %v758
                  %v760 = vld [vmem:[%s532 + $0x710] sm:$0xff]
                  %761 = vst [vmem:[%s533 + $0x388] sm:$0xff] %v760
                  %v762 = vld [vmem:[%s532 + $0x720] sm:$0xff]
                  %763 = vst [vmem:[%s533 + $0x390] sm:$0xff] %v762
                  %v764 = vld [vmem:[%s532 + $0x730] sm:$0xff]
                  %765 = vst [vmem:[%s533 + $0x398] sm:$0xff] %v764
                  %v766 = vld [vmem:[%s532 + $0x740] sm:$0xff]
                  %767 = vst [vmem:[%s533 + $0x3a0] sm:$0xff] %v766
                  %v768 = vld [vmem:[%s532 + $0x750] sm:$0xff]
                  %769 = vst [vmem:[%s533 + $0x3a8] sm:$0xff] %v768
                  %v770 = vld [vmem:[%s532 + $0x760] sm:$0xff]
                  %771 = vst [vmem:[%s533 + $0x3b0] sm:$0xff] %v770
                  %v772 = vld [vmem:[%s532 + $0x770] sm:$0xff]
                  %773 = vst [vmem:[%s533 + $0x3b8] sm:$0xff] %v772
                  %v774 = vld [vmem:[%s532 + $0x780] sm:$0xff]
                  %775 = vst [vmem:[%s533 + $0x3c0] sm:$0xff] %v774
                  %v776 = vld [vmem:[%s532 + $0x790] sm:$0xff]
                  %777 = vst [vmem:[%s533 + $0x3c8] sm:$0xff] %v776
                  %v778 = vld [vmem:[%s532 + $0x7a0] sm:$0xff]
                  %779 = vst [vmem:[%s533 + $0x3d0] sm:$0xff] %v778
                  %v780 = vld [vmem:[%s532 + $0x7b0] sm:$0xff]
                  %781 = vst [vmem:[%s533 + $0x3d8] sm:$0xff] %v780
                  %v782 = vld [vmem:[%s532 + $0x7c0] sm:$0xff]
                  %783 = vst [vmem:[%s533 + $0x3e0] sm:$0xff] %v782
                  %v784 = vld [vmem:[%s532 + $0x7d0] sm:$0xff]
                  %785 = vst [vmem:[%s533 + $0x3e8] sm:$0xff] %v784
                  %v786 = vld [vmem:[%s532 + $0x7e0] sm:$0xff]
                  %787 = vst [vmem:[%s533 + $0x3f0] sm:$0xff] %v786
                  %v788 = vld [vmem:[%s532 + $0x7f0] sm:$0xff]
                  %789 = vst [vmem:[%s533 + $0x3f8] sm:$0xff] %v788
                  %v790 = vld [vmem:[%s532 + $0x800] sm:$0xff]
                  %791 = vst [vmem:[%s533 + $0x400] sm:$0xff] %v790
                  %v792 = vld [vmem:[%s532 + $0x810] sm:$0xff]
                  %793 = vst [vmem:[%s533 + $0x408] sm:$0xff] %v792
                  %v794 = vld [vmem:[%s532 + $0x820] sm:$0xff]
                  %795 = vst [vmem:[%s533 + $0x410] sm:$0xff] %v794
                  %v796 = vld [vmem:[%s532 + $0x830] sm:$0xff]
                  %797 = vst [vmem:[%s533 + $0x418] sm:$0xff] %v796
                  %v798 = vld [vmem:[%s532 + $0x840] sm:$0xff]
                  %799 = vst [vmem:[%s533 + $0x420] sm:$0xff] %v798
                  %v800 = vld [vmem:[%s532 + $0x850] sm:$0xff]
                  %801 = vst [vmem:[%s533 + $0x428] sm:$0xff] %v800
                  %v802 = vld [vmem:[%s532 + $0x860] sm:$0xff]
                  %803 = vst [vmem:[%s533 + $0x430] sm:$0xff] %v802
                  %v804 = vld [vmem:[%s532 + $0x870] sm:$0xff]
                  %805 = vst [vmem:[%s533 + $0x438] sm:$0xff] %v804
                  %v806 = vld [vmem:[%s532 + $0x880] sm:$0xff]
                  %807 = vst [vmem:[%s533 + $0x440] sm:$0xff] %v806
                  %v808 = vld [vmem:[%s532 + $0x890] sm:$0xff]
                  %809 = vst [vmem:[%s533 + $0x448] sm:$0xff] %v808
                  %v810 = vld [vmem:[%s532 + $0x8a0] sm:$0xff]
                  %811 = vst [vmem:[%s533 + $0x450] sm:$0xff] %v810
                  %v812 = vld [vmem:[%s532 + $0x8b0] sm:$0xff]
                  %813 = vst [vmem:[%s533 + $0x458] sm:$0xff] %v812
                  %v814 = vld [vmem:[%s532 + $0x8c0] sm:$0xff]
                  %815 = vst [vmem:[%s533 + $0x460] sm:$0xff] %v814
                  %v816 = vld [vmem:[%s532 + $0x8d0] sm:$0xff]
                  %817 = vst [vmem:[%s533 + $0x468] sm:$0xff] %v816
                  %v818 = vld [vmem:[%s532 + $0x8e0] sm:$0xff]
                  %819 = vst [vmem:[%s533 + $0x470] sm:$0xff] %v818
                  %v820 = vld [vmem:[%s532 + $0x8f0] sm:$0xff]
                  %821 = vst [vmem:[%s533 + $0x478] sm:$0xff] %v820
                  %v822 = vld [vmem:[%s532 + $0x900] sm:$0xff]
                  %823 = vst [vmem:[%s533 + $0x480] sm:$0xff] %v822
                  %v824 = vld [vmem:[%s532 + $0x910] sm:$0xff]
                  %825 = vst [vmem:[%s533 + $0x488] sm:$0xff] %v824
                  %v826 = vld [vmem:[%s532 + $0x920] sm:$0xff]
                  %827 = vst [vmem:[%s533 + $0x490] sm:$0xff] %v826
                  %v828 = vld [vmem:[%s532 + $0x930] sm:$0xff]
                  %829 = vst [vmem:[%s533 + $0x498] sm:$0xff] %v828
                  %v830 = vld [vmem:[%s532 + $0x940] sm:$0xff]
                  %831 = vst [vmem:[%s533 + $0x4a0] sm:$0xff] %v830
                  %v832 = vld [vmem:[%s532 + $0x950] sm:$0xff]
                  %833 = vst [vmem:[%s533 + $0x4a8] sm:$0xff] %v832
                  %v834 = vld [vmem:[%s532 + $0x960] sm:$0xff]
                  %835 = vst [vmem:[%s533 + $0x4b0] sm:$0xff] %v834
                  %v836 = vld [vmem:[%s532 + $0x970] sm:$0xff]
                  %837 = vst [vmem:[%s533 + $0x4b8] sm:$0xff] %v836
                  %v838 = vld [vmem:[%s532 + $0x980] sm:$0xff]
                  %839 = vst [vmem:[%s533 + $0x4c0] sm:$0xff] %v838
                  %v840 = vld [vmem:[%s532 + $0x990] sm:$0xff]
                  %841 = vst [vmem:[%s533 + $0x4c8] sm:$0xff] %v840
                  %v842 = vld [vmem:[%s532 + $0x9a0] sm:$0xff]
                  %843 = vst [vmem:[%s533 + $0x4d0] sm:$0xff] %v842
                  %v844 = vld [vmem:[%s532 + $0x9b0] sm:$0xff]
                  %845 = vst [vmem:[%s533 + $0x4d8] sm:$0xff] %v844
                  %v846 = vld [vmem:[%s532 + $0x9c0] sm:$0xff]
                  %847 = vst [vmem:[%s533 + $0x4e0] sm:$0xff] %v846
                  %v848 = vld [vmem:[%s532 + $0x9d0] sm:$0xff]
                  %849 = vst [vmem:[%s533 + $0x4e8] sm:$0xff] %v848
                  %v850 = vld [vmem:[%s532 + $0x9e0] sm:$0xff]
                  %851 = vst [vmem:[%s533 + $0x4f0] sm:$0xff] %v850
                  %v852 = vld [vmem:[%s532 + $0x9f0] sm:$0xff]
                  %853 = vst [vmem:[%s533 + $0x4f8] sm:$0xff] %v852
                $region56: #{avmodel_forward.9} parent=50 // loop_footer
                  %s531 = sadd.s32 1, %s527
                $region57: #{avmodel_forward.9} parent=50 // loop_footer_branch
                  %526 = sbr.rel target = $region53
                $region58: #{avmodel_forward.9} parent=50 // loop_exit
                  _
              $region51: #{avmodel_forward.9} parent=35 // pred_fallthru
                _
              // Predicated region
              $region59: #{avmodel_forward.9} parent=35 // pred_check
                _
              $region60: #{avmodel_forward.9} parent=35 // pred_check_branch
                %855 = sbr.rel target = $region62
              $region61: #{avmodel_forward.9} parent=35 // pred_region
                _
              $region62: #{avmodel_forward.9} parent=35 // pred_fallthru
                _
            $region36: #{avmodel_forward.9} parent=31 // pred_fallthru
              _
            // Predicated region
            $region37: #{avmodel_forward.9} parent=31 // pred_check
              _
            $region38: #{avmodel_forward.9} parent=31 // pred_check_branch
              %194 = sbr.rel target = $region40
            $region39: #{avmodel_forward.9} parent=31 // pred_region
              loop: start=0, step=1, limit=1
              $region41: #{avmodel_forward.9} parent=39 // loop_pre_header
                _
              $region42: #{avmodel_forward.9} parent=39 // loop_header
                %s197 = sphi 0, %s201
                %p198 = scmp.ge.s32.totalorder %s197, 1
                %s202 = sphi %s188, %s188
                %s203 = sphi %s185, %s185
              $region43: #{avmodel_forward.9} parent=39 // loop_header_branch
                %200 = sbr.rel (%p198) target = $region47
              $region44: #{avmodel_forward.9} parent=39 // loop_body
                %v204 = vld [vmem:[%s202] sm:$0xff]
                %205 = vst [vmem:[%s203] sm:$0xff] %v204
                %v206 = vld [vmem:[%s202 + $0x10] sm:$0xff]
                %207 = vst [vmem:[%s203 + $0x8] sm:$0xff] %v206
                %v208 = vld [vmem:[%s202 + $0x20] sm:$0xff]
                %209 = vst [vmem:[%s203 + $0x10] sm:$0xff] %v208
                %v210 = vld [vmem:[%s202 + $0x30] sm:$0xff]
                %211 = vst [vmem:[%s203 + $0x18] sm:$0xff] %v210
                %v212 = vld [vmem:[%s202 + $0x40] sm:$0xff]
                %213 = vst [vmem:[%s203 + $0x20] sm:$0xff] %v212
                %v214 = vld [vmem:[%s202 + $0x50] sm:$0xff]
                %215 = vst [vmem:[%s203 + $0x28] sm:$0xff] %v214
                %v216 = vld [vmem:[%s202 + $0x60] sm:$0xff]
                %217 = vst [vmem:[%s203 + $0x30] sm:$0xff] %v216
                %v218 = vld [vmem:[%s202 + $0x70] sm:$0xff]
                %219 = vst [vmem:[%s203 + $0x38] sm:$0xff] %v218
                %v220 = vld [vmem:[%s202 + $0x80] sm:$0xff]
                %221 = vst [vmem:[%s203 + $0x40] sm:$0xff] %v220
                %v222 = vld [vmem:[%s202 + $0x90] sm:$0xff]
                %223 = vst [vmem:[%s203 + $0x48] sm:$0xff] %v222
                %v224 = vld [vmem:[%s202 + $0xa0] sm:$0xff]
                %225 = vst [vmem:[%s203 + $0x50] sm:$0xff] %v224
                %v226 = vld [vmem:[%s202 + $0xb0] sm:$0xff]
                %227 = vst [vmem:[%s203 + $0x58] sm:$0xff] %v226
                %v228 = vld [vmem:[%s202 + $0xc0] sm:$0xff]
                %229 = vst [vmem:[%s203 + $0x60] sm:$0xff] %v228
                %v230 = vld [vmem:[%s202 + $0xd0] sm:$0xff]
                %231 = vst [vmem:[%s203 + $0x68] sm:$0xff] %v230
                %v232 = vld [vmem:[%s202 + $0xe0] sm:$0xff]
                %233 = vst [vmem:[%s203 + $0x70] sm:$0xff] %v232
                %v234 = vld [vmem:[%s202 + $0xf0] sm:$0xff]
                %235 = vst [vmem:[%s203 + $0x78] sm:$0xff] %v234
                %v236 = vld [vmem:[%s202 + $0x100] sm:$0xff]
                %237 = vst [vmem:[%s203 + $0x80] sm:$0xff] %v236
                %v238 = vld [vmem:[%s202 + $0x110] sm:$0xff]
                %239 = vst [vmem:[%s203 + $0x88] sm:$0xff] %v238
                %v240 = vld [vmem:[%s202 + $0x120] sm:$0xff]
                %241 = vst [vmem:[%s203 + $0x90] sm:$0xff] %v240
                %v242 = vld [vmem:[%s202 + $0x130] sm:$0xff]
                %243 = vst [vmem:[%s203 + $0x98] sm:$0xff] %v242
                %v244 = vld [vmem:[%s202 + $0x140] sm:$0xff]
                %245 = vst [vmem:[%s203 + $0xa0] sm:$0xff] %v244
                %v246 = vld [vmem:[%s202 + $0x150] sm:$0xff]
                %247 = vst [vmem:[%s203 + $0xa8] sm:$0xff] %v246
                %v248 = vld [vmem:[%s202 + $0x160] sm:$0xff]
                %249 = vst [vmem:[%s203 + $0xb0] sm:$0xff] %v248
                %v250 = vld [vmem:[%s202 + $0x170] sm:$0xff]
                %251 = vst [vmem:[%s203 + $0xb8] sm:$0xff] %v250
                %v252 = vld [vmem:[%s202 + $0x180] sm:$0xff]
                %253 = vst [vmem:[%s203 + $0xc0] sm:$0xff] %v252
                %v254 = vld [vmem:[%s202 + $0x190] sm:$0xff]
                %255 = vst [vmem:[%s203 + $0xc8] sm:$0xff] %v254
                %v256 = vld [vmem:[%s202 + $0x1a0] sm:$0xff]
                %257 = vst [vmem:[%s203 + $0xd0] sm:$0xff] %v256
                %v258 = vld [vmem:[%s202 + $0x1b0] sm:$0xff]
                %259 = vst [vmem:[%s203 + $0xd8] sm:$0xff] %v258
                %v260 = vld [vmem:[%s202 + $0x1c0] sm:$0xff]
                %261 = vst [vmem:[%s203 + $0xe0] sm:$0xff] %v260
                %v262 = vld [vmem:[%s202 + $0x1d0] sm:$0xff]
                %263 = vst [vmem:[%s203 + $0xe8] sm:$0xff] %v262
                %v264 = vld [vmem:[%s202 + $0x1e0] sm:$0xff]
                %265 = vst [vmem:[%s203 + $0xf0] sm:$0xff] %v264
                %v266 = vld [vmem:[%s202 + $0x1f0] sm:$0xff]
                %267 = vst [vmem:[%s203 + $0xf8] sm:$0xff] %v266
                %v268 = vld [vmem:[%s202 + $0x200] sm:$0xff]
                %269 = vst [vmem:[%s203 + $0x100] sm:$0xff] %v268
                %v270 = vld [vmem:[%s202 + $0x210] sm:$0xff]
                %271 = vst [vmem:[%s203 + $0x108] sm:$0xff] %v270
                %v272 = vld [vmem:[%s202 + $0x220] sm:$0xff]
                %273 = vst [vmem:[%s203 + $0x110] sm:$0xff] %v272
                %v274 = vld [vmem:[%s202 + $0x230] sm:$0xff]
                %275 = vst [vmem:[%s203 + $0x118] sm:$0xff] %v274
                %v276 = vld [vmem:[%s202 + $0x240] sm:$0xff]
                %277 = vst [vmem:[%s203 + $0x120] sm:$0xff] %v276
                %v278 = vld [vmem:[%s202 + $0x250] sm:$0xff]
                %279 = vst [vmem:[%s203 + $0x128] sm:$0xff] %v278
                %v280 = vld [vmem:[%s202 + $0x260] sm:$0xff]
                %281 = vst [vmem:[%s203 + $0x130] sm:$0xff] %v280
                %v282 = vld [vmem:[%s202 + $0x270] sm:$0xff]
                %283 = vst [vmem:[%s203 + $0x138] sm:$0xff] %v282
                %v284 = vld [vmem:[%s202 + $0x280] sm:$0xff]
                %285 = vst [vmem:[%s203 + $0x140] sm:$0xff] %v284
                %v286 = vld [vmem:[%s202 + $0x290] sm:$0xff]
                %287 = vst [vmem:[%s203 + $0x148] sm:$0xff] %v286
                %v288 = vld [vmem:[%s202 + $0x2a0] sm:$0xff]
                %289 = vst [vmem:[%s203 + $0x150] sm:$0xff] %v288
                %v290 = vld [vmem:[%s202 + $0x2b0] sm:$0xff]
                %291 = vst [vmem:[%s203 + $0x158] sm:$0xff] %v290
                %v292 = vld [vmem:[%s202 + $0x2c0] sm:$0xff]
                %293 = vst [vmem:[%s203 + $0x160] sm:$0xff] %v292
                %v294 = vld [vmem:[%s202 + $0x2d0] sm:$0xff]
                %295 = vst [vmem:[%s203 + $0x168] sm:$0xff] %v294
                %v296 = vld [vmem:[%s202 + $0x2e0] sm:$0xff]
                %297 = vst [vmem:[%s203 + $0x170] sm:$0xff] %v296
                %v298 = vld [vmem:[%s202 + $0x2f0] sm:$0xff]
                %299 = vst [vmem:[%s203 + $0x178] sm:$0xff] %v298
                %v300 = vld [vmem:[%s202 + $0x300] sm:$0xff]
                %301 = vst [vmem:[%s203 + $0x180] sm:$0xff] %v300
                %v302 = vld [vmem:[%s202 + $0x310] sm:$0xff]
                %303 = vst [vmem:[%s203 + $0x188] sm:$0xff] %v302
                %v304 = vld [vmem:[%s202 + $0x320] sm:$0xff]
                %305 = vst [vmem:[%s203 + $0x190] sm:$0xff] %v304
                %v306 = vld [vmem:[%s202 + $0x330] sm:$0xff]
                %307 = vst [vmem:[%s203 + $0x198] sm:$0xff] %v306
                %v308 = vld [vmem:[%s202 + $0x340] sm:$0xff]
                %309 = vst [vmem:[%s203 + $0x1a0] sm:$0xff] %v308
                %v310 = vld [vmem:[%s202 + $0x350] sm:$0xff]
                %311 = vst [vmem:[%s203 + $0x1a8] sm:$0xff] %v310
                %v312 = vld [vmem:[%s202 + $0x360] sm:$0xff]
                %313 = vst [vmem:[%s203 + $0x1b0] sm:$0xff] %v312
                %v314 = vld [vmem:[%s202 + $0x370] sm:$0xff]
                %315 = vst [vmem:[%s203 + $0x1b8] sm:$0xff] %v314
                %v316 = vld [vmem:[%s202 + $0x380] sm:$0xff]
                %317 = vst [vmem:[%s203 + $0x1c0] sm:$0xff] %v316
                %v318 = vld [vmem:[%s202 + $0x390] sm:$0xff]
                %319 = vst [vmem:[%s203 + $0x1c8] sm:$0xff] %v318
                %v320 = vld [vmem:[%s202 + $0x3a0] sm:$0xff]
                %321 = vst [vmem:[%s203 + $0x1d0] sm:$0xff] %v320
                %v322 = vld [vmem:[%s202 + $0x3b0] sm:$0xff]
                %323 = vst [vmem:[%s203 + $0x1d8] sm:$0xff] %v322
                %v324 = vld [vmem:[%s202 + $0x3c0] sm:$0xff]
                %325 = vst [vmem:[%s203 + $0x1e0] sm:$0xff] %v324
                %v326 = vld [vmem:[%s202 + $0x3d0] sm:$0xff]
                %327 = vst [vmem:[%s203 + $0x1e8] sm:$0xff] %v326
                %v328 = vld [vmem:[%s202 + $0x3e0] sm:$0xff]
                %329 = vst [vmem:[%s203 + $0x1f0] sm:$0xff] %v328
                %v330 = vld [vmem:[%s202 + $0x3f0] sm:$0xff]
                %331 = vst [vmem:[%s203 + $0x1f8] sm:$0xff] %v330
                %v332 = vld [vmem:[%s202 + $0x400] sm:$0xff]
                %333 = vst [vmem:[%s203 + $0x200] sm:$0xff] %v332
                %v334 = vld [vmem:[%s202 + $0x410] sm:$0xff]
                %335 = vst [vmem:[%s203 + $0x208] sm:$0xff] %v334
                %v336 = vld [vmem:[%s202 + $0x420] sm:$0xff]
                %337 = vst [vmem:[%s203 + $0x210] sm:$0xff] %v336
                %v338 = vld [vmem:[%s202 + $0x430] sm:$0xff]
                %339 = vst [vmem:[%s203 + $0x218] sm:$0xff] %v338
                %v340 = vld [vmem:[%s202 + $0x440] sm:$0xff]
                %341 = vst [vmem:[%s203 + $0x220] sm:$0xff] %v340
                %v342 = vld [vmem:[%s202 + $0x450] sm:$0xff]
                %343 = vst [vmem:[%s203 + $0x228] sm:$0xff] %v342
                %v344 = vld [vmem:[%s202 + $0x460] sm:$0xff]
                %345 = vst [vmem:[%s203 + $0x230] sm:$0xff] %v344
                %v346 = vld [vmem:[%s202 + $0x470] sm:$0xff]
                %347 = vst [vmem:[%s203 + $0x238] sm:$0xff] %v346
                %v348 = vld [vmem:[%s202 + $0x480] sm:$0xff]
                %349 = vst [vmem:[%s203 + $0x240] sm:$0xff] %v348
                %v350 = vld [vmem:[%s202 + $0x490] sm:$0xff]
                %351 = vst [vmem:[%s203 + $0x248] sm:$0xff] %v350
                %v352 = vld [vmem:[%s202 + $0x4a0] sm:$0xff]
                %353 = vst [vmem:[%s203 + $0x250] sm:$0xff] %v352
                %v354 = vld [vmem:[%s202 + $0x4b0] sm:$0xff]
                %355 = vst [vmem:[%s203 + $0x258] sm:$0xff] %v354
                %v356 = vld [vmem:[%s202 + $0x4c0] sm:$0xff]
                %357 = vst [vmem:[%s203 + $0x260] sm:$0xff] %v356
                %v358 = vld [vmem:[%s202 + $0x4d0] sm:$0xff]
                %359 = vst [vmem:[%s203 + $0x268] sm:$0xff] %v358
                %v360 = vld [vmem:[%s202 + $0x4e0] sm:$0xff]
                %361 = vst [vmem:[%s203 + $0x270] sm:$0xff] %v360
                %v362 = vld [vmem:[%s202 + $0x4f0] sm:$0xff]
                %363 = vst [vmem:[%s203 + $0x278] sm:$0xff] %v362
                %v364 = vld [vmem:[%s202 + $0x500] sm:$0xff]
                %365 = vst [vmem:[%s203 + $0x280] sm:$0xff] %v364
                %v366 = vld [vmem:[%s202 + $0x510] sm:$0xff]
                %367 = vst [vmem:[%s203 + $0x288] sm:$0xff] %v366
                %v368 = vld [vmem:[%s202 + $0x520] sm:$0xff]
                %369 = vst [vmem:[%s203 + $0x290] sm:$0xff] %v368
                %v370 = vld [vmem:[%s202 + $0x530] sm:$0xff]
                %371 = vst [vmem:[%s203 + $0x298] sm:$0xff] %v370
                %v372 = vld [vmem:[%s202 + $0x540] sm:$0xff]
                %373 = vst [vmem:[%s203 + $0x2a0] sm:$0xff] %v372
                %v374 = vld [vmem:[%s202 + $0x550] sm:$0xff]
                %375 = vst [vmem:[%s203 + $0x2a8] sm:$0xff] %v374
                %v376 = vld [vmem:[%s202 + $0x560] sm:$0xff]
                %377 = vst [vmem:[%s203 + $0x2b0] sm:$0xff] %v376
                %v378 = vld [vmem:[%s202 + $0x570] sm:$0xff]
                %379 = vst [vmem:[%s203 + $0x2b8] sm:$0xff] %v378
                %v380 = vld [vmem:[%s202 + $0x580] sm:$0xff]
                %381 = vst [vmem:[%s203 + $0x2c0] sm:$0xff] %v380
                %v382 = vld [vmem:[%s202 + $0x590] sm:$0xff]
                %383 = vst [vmem:[%s203 + $0x2c8] sm:$0xff] %v382
                %v384 = vld [vmem:[%s202 + $0x5a0] sm:$0xff]
                %385 = vst [vmem:[%s203 + $0x2d0] sm:$0xff] %v384
                %v386 = vld [vmem:[%s202 + $0x5b0] sm:$0xff]
                %387 = vst [vmem:[%s203 + $0x2d8] sm:$0xff] %v386
                %v388 = vld [vmem:[%s202 + $0x5c0] sm:$0xff]
                %389 = vst [vmem:[%s203 + $0x2e0] sm:$0xff] %v388
                %v390 = vld [vmem:[%s202 + $0x5d0] sm:$0xff]
                %391 = vst [vmem:[%s203 + $0x2e8] sm:$0xff] %v390
                %v392 = vld [vmem:[%s202 + $0x5e0] sm:$0xff]
                %393 = vst [vmem:[%s203 + $0x2f0] sm:$0xff] %v392
                %v394 = vld [vmem:[%s202 + $0x5f0] sm:$0xff]
                %395 = vst [vmem:[%s203 + $0x2f8] sm:$0xff] %v394
                %v396 = vld [vmem:[%s202 + $0x600] sm:$0xff]
                %397 = vst [vmem:[%s203 + $0x300] sm:$0xff] %v396
                %v398 = vld [vmem:[%s202 + $0x610] sm:$0xff]
                %399 = vst [vmem:[%s203 + $0x308] sm:$0xff] %v398
                %v400 = vld [vmem:[%s202 + $0x620] sm:$0xff]
                %401 = vst [vmem:[%s203 + $0x310] sm:$0xff] %v400
                %v402 = vld [vmem:[%s202 + $0x630] sm:$0xff]
                %403 = vst [vmem:[%s203 + $0x318] sm:$0xff] %v402
                %v404 = vld [vmem:[%s202 + $0x640] sm:$0xff]
                %405 = vst [vmem:[%s203 + $0x320] sm:$0xff] %v404
                %v406 = vld [vmem:[%s202 + $0x650] sm:$0xff]
                %407 = vst [vmem:[%s203 + $0x328] sm:$0xff] %v406
                %v408 = vld [vmem:[%s202 + $0x660] sm:$0xff]
                %409 = vst [vmem:[%s203 + $0x330] sm:$0xff] %v408
                %v410 = vld [vmem:[%s202 + $0x670] sm:$0xff]
                %411 = vst [vmem:[%s203 + $0x338] sm:$0xff] %v410
                %v412 = vld [vmem:[%s202 + $0x680] sm:$0xff]
                %413 = vst [vmem:[%s203 + $0x340] sm:$0xff] %v412
                %v414 = vld [vmem:[%s202 + $0x690] sm:$0xff]
                %415 = vst [vmem:[%s203 + $0x348] sm:$0xff] %v414
                %v416 = vld [vmem:[%s202 + $0x6a0] sm:$0xff]
                %417 = vst [vmem:[%s203 + $0x350] sm:$0xff] %v416
                %v418 = vld [vmem:[%s202 + $0x6b0] sm:$0xff]
                %419 = vst [vmem:[%s203 + $0x358] sm:$0xff] %v418
                %v420 = vld [vmem:[%s202 + $0x6c0] sm:$0xff]
                %421 = vst [vmem:[%s203 + $0x360] sm:$0xff] %v420
                %v422 = vld [vmem:[%s202 + $0x6d0] sm:$0xff]
                %423 = vst [vmem:[%s203 + $0x368] sm:$0xff] %v422
                %v424 = vld [vmem:[%s202 + $0x6e0] sm:$0xff]
                %425 = vst [vmem:[%s203 + $0x370] sm:$0xff] %v424
                %v426 = vld [vmem:[%s202 + $0x6f0] sm:$0xff]
                %427 = vst [vmem:[%s203 + $0x378] sm:$0xff] %v426
                %v428 = vld [vmem:[%s202 + $0x700] sm:$0xff]
                %429 = vst [vmem:[%s203 + $0x380] sm:$0xff] %v428
                %v430 = vld [vmem:[%s202 + $0x710] sm:$0xff]
                %431 = vst [vmem:[%s203 + $0x388] sm:$0xff] %v430
                %v432 = vld [vmem:[%s202 + $0x720] sm:$0xff]
                %433 = vst [vmem:[%s203 + $0x390] sm:$0xff] %v432
                %v434 = vld [vmem:[%s202 + $0x730] sm:$0xff]
                %435 = vst [vmem:[%s203 + $0x398] sm:$0xff] %v434
                %v436 = vld [vmem:[%s202 + $0x740] sm:$0xff]
                %437 = vst [vmem:[%s203 + $0x3a0] sm:$0xff] %v436
                %v438 = vld [vmem:[%s202 + $0x750] sm:$0xff]
                %439 = vst [vmem:[%s203 + $0x3a8] sm:$0xff] %v438
                %v440 = vld [vmem:[%s202 + $0x760] sm:$0xff]
                %441 = vst [vmem:[%s203 + $0x3b0] sm:$0xff] %v440
                %v442 = vld [vmem:[%s202 + $0x770] sm:$0xff]
                %443 = vst [vmem:[%s203 + $0x3b8] sm:$0xff] %v442
                %v444 = vld [vmem:[%s202 + $0x780] sm:$0xff]
                %445 = vst [vmem:[%s203 + $0x3c0] sm:$0xff] %v444
                %v446 = vld [vmem:[%s202 + $0x790] sm:$0xff]
                %447 = vst [vmem:[%s203 + $0x3c8] sm:$0xff] %v446
                %v448 = vld [vmem:[%s202 + $0x7a0] sm:$0xff]
                %449 = vst [vmem:[%s203 + $0x3d0] sm:$0xff] %v448
                %v450 = vld [vmem:[%s202 + $0x7b0] sm:$0xff]
                %451 = vst [vmem:[%s203 + $0x3d8] sm:$0xff] %v450
                %v452 = vld [vmem:[%s202 + $0x7c0] sm:$0xff]
                %453 = vst [vmem:[%s203 + $0x3e0] sm:$0xff] %v452
                %v454 = vld [vmem:[%s202 + $0x7d0] sm:$0xff]
                %455 = vst [vmem:[%s203 + $0x3e8] sm:$0xff] %v454
                %v456 = vld [vmem:[%s202 + $0x7e0] sm:$0xff]
                %457 = vst [vmem:[%s203 + $0x3f0] sm:$0xff] %v456
                %v458 = vld [vmem:[%s202 + $0x7f0] sm:$0xff]
                %459 = vst [vmem:[%s203 + $0x3f8] sm:$0xff] %v458
                %v460 = vld [vmem:[%s202 + $0x800] sm:$0xff]
                %461 = vst [vmem:[%s203 + $0x400] sm:$0xff] %v460
                %v462 = vld [vmem:[%s202 + $0x810] sm:$0xff]
                %463 = vst [vmem:[%s203 + $0x408] sm:$0xff] %v462
                %v464 = vld [vmem:[%s202 + $0x820] sm:$0xff]
                %465 = vst [vmem:[%s203 + $0x410] sm:$0xff] %v464
                %v466 = vld [vmem:[%s202 + $0x830] sm:$0xff]
                %467 = vst [vmem:[%s203 + $0x418] sm:$0xff] %v466
                %v468 = vld [vmem:[%s202 + $0x840] sm:$0xff]
                %469 = vst [vmem:[%s203 + $0x420] sm:$0xff] %v468
                %v470 = vld [vmem:[%s202 + $0x850] sm:$0xff]
                %471 = vst [vmem:[%s203 + $0x428] sm:$0xff] %v470
                %v472 = vld [vmem:[%s202 + $0x860] sm:$0xff]
                %473 = vst [vmem:[%s203 + $0x430] sm:$0xff] %v472
                %v474 = vld [vmem:[%s202 + $0x870] sm:$0xff]
                %475 = vst [vmem:[%s203 + $0x438] sm:$0xff] %v474
                %v476 = vld [vmem:[%s202 + $0x880] sm:$0xff]
                %477 = vst [vmem:[%s203 + $0x440] sm:$0xff] %v476
                %v478 = vld [vmem:[%s202 + $0x890] sm:$0xff]
                %479 = vst [vmem:[%s203 + $0x448] sm:$0xff] %v478
                %v480 = vld [vmem:[%s202 + $0x8a0] sm:$0xff]
                %481 = vst [vmem:[%s203 + $0x450] sm:$0xff] %v480
                %v482 = vld [vmem:[%s202 + $0x8b0] sm:$0xff]
                %483 = vst [vmem:[%s203 + $0x458] sm:$0xff] %v482
                %v484 = vld [vmem:[%s202 + $0x8c0] sm:$0xff]
                %485 = vst [vmem:[%s203 + $0x460] sm:$0xff] %v484
                %v486 = vld [vmem:[%s202 + $0x8d0] sm:$0xff]
                %487 = vst [vmem:[%s203 + $0x468] sm:$0xff] %v486
                %v488 = vld [vmem:[%s202 + $0x8e0] sm:$0xff]
                %489 = vst [vmem:[%s203 + $0x470] sm:$0xff] %v488
                %v490 = vld [vmem:[%s202 + $0x8f0] sm:$0xff]
                %491 = vst [vmem:[%s203 + $0x478] sm:$0xff] %v490
                %v492 = vld [vmem:[%s202 + $0x900] sm:$0xff]
                %493 = vst [vmem:[%s203 + $0x480] sm:$0xff] %v492
                %v494 = vld [vmem:[%s202 + $0x910] sm:$0xff]
                %495 = vst [vmem:[%s203 + $0x488] sm:$0xff] %v494
                %v496 = vld [vmem:[%s202 + $0x920] sm:$0xff]
                %497 = vst [vmem:[%s203 + $0x490] sm:$0xff] %v496
                %v498 = vld [vmem:[%s202 + $0x930] sm:$0xff]
                %499 = vst [vmem:[%s203 + $0x498] sm:$0xff] %v498
                %v500 = vld [vmem:[%s202 + $0x940] sm:$0xff]
                %501 = vst [vmem:[%s203 + $0x4a0] sm:$0xff] %v500
                %v502 = vld [vmem:[%s202 + $0x950] sm:$0xff]
                %503 = vst [vmem:[%s203 + $0x4a8] sm:$0xff] %v502
                %v504 = vld [vmem:[%s202 + $0x960] sm:$0xff]
                %505 = vst [vmem:[%s203 + $0x4b0] sm:$0xff] %v504
                %v506 = vld [vmem:[%s202 + $0x970] sm:$0xff]
                %507 = vst [vmem:[%s203 + $0x4b8] sm:$0xff] %v506
                %v508 = vld [vmem:[%s202 + $0x980] sm:$0xff]
                %509 = vst [vmem:[%s203 + $0x4c0] sm:$0xff] %v508
                %v510 = vld [vmem:[%s202 + $0x990] sm:$0xff]
                %511 = vst [vmem:[%s203 + $0x4c8] sm:$0xff] %v510
                %v512 = vld [vmem:[%s202 + $0x9a0] sm:$0xff]
                %513 = vst [vmem:[%s203 + $0x4d0] sm:$0xff] %v512
                %v514 = vld [vmem:[%s202 + $0x9b0] sm:$0xff]
                %515 = vst [vmem:[%s203 + $0x4d8] sm:$0xff] %v514
                %v516 = vld [vmem:[%s202 + $0x9c0] sm:$0xff]
                %517 = vst [vmem:[%s203 + $0x4e0] sm:$0xff] %v516
                %v518 = vld [vmem:[%s202 + $0x9d0] sm:$0xff]
                %519 = vst [vmem:[%s203 + $0x4e8] sm:$0xff] %v518
                %v520 = vld [vmem:[%s202 + $0x9e0] sm:$0xff]
                %521 = vst [vmem:[%s203 + $0x4f0] sm:$0xff] %v520
                %v522 = vld [vmem:[%s202 + $0x9f0] sm:$0xff]
                %523 = vst [vmem:[%s203 + $0x4f8] sm:$0xff] %v522
              $region45: #{avmodel_forward.9} parent=39 // loop_footer
                %s201 = sadd.s32 1, %s197
              $region46: #{avmodel_forward.9} parent=39 // loop_footer_branch
                %196 = sbr.rel target = $region42
              $region47: #{avmodel_forward.9} parent=39 // loop_exit
                _
            $region40: #{avmodel_forward.9} parent=31 // pred_fallthru
              _
          $region32: #{avmodel_forward.9} parent=27 // pred_fallthru
            _
          %856 = vnop
        $region28: #{avmodel_forward.9} parent=19 // pred_fallthru
          _
        // Predicated region
        $region63: #{avmodel_forward.9} parent=19 // pred_check
          %p857 = pneg %p94
        $region64: #{avmodel_forward.9} parent=19 // pred_check_branch
          %859 = sbr.rel (%p857) target = $region66
        $region65: #{avmodel_forward.9} parent=19 // pred_region
          %s860 = smul.u32 2, %s17
          %p861 = scmp.lt.s32.totalorder %s860, 3
          %s862 = scalar_select %p861, %s860, 3
          %s863 = scalar_lea.vmem %s2, %s862
          %s864 = smul.u32 2, %s17
        $region66: #{avmodel_forward.9} parent=19 // pred_fallthru
          _
      $region20: #{avmodel_forward.9} parent=5 // pred_fallthru
        _
      %p865 = scmp.le.s32.totalorder 1, %s10
      %p866 = scmp.lt.s32.totalorder %s10, 5
      %p867 = pnand %p865, %p866
      %p868 = pneg %p867
      // Predicated region
      $region67: #{avmodel_forward.9} parent=5 // pred_check
        _
      $region68: #{avmodel_forward.9} parent=5 // pred_check_branch
        %870 = sbr.rel (%p867) target = $region70
      $region69: #{avmodel_forward.9} parent=5 // pred_region
        %s871 = ssub.s32 %s10, 1
        %s872 = sand.u32 %s61, 1
        %s873 = sand.u32 %s61, 1
        %s874 = smul.addr %s873, 1280
        %s875 = scalar_lea.vmem [#allocation3], %s874
        // Predicated region
        $region71: #{avmodel_forward.9} parent=69 // pred_check
          %p876 = pneg %p74
        $region72: #{avmodel_forward.9} parent=69 // pred_check_branch
          %878 = sbr.rel (%p876) target = $region74
        $region73: #{avmodel_forward.9} parent=69 // pred_region
          _
        $region74: #{avmodel_forward.9} parent=69 // pred_fallthru
          _
        %p879 = scmp.lt.s32.totalorder %s20, 1
        %s880 = scalar_select %p879, %s20, 1
        %s881 = smul.addr %s880, 14
        %s882 = smul.addr %s881, 4
        %s883 = scalar_lea.vmem %s0, %s882
        %p884 = pneg %p48
        %p885 = pneg %p45
        %s886 = sand.u32 %s61, 1
        %s887 = sand.u32 %s61, 1
        %s888 = smul.addr %s887, 1280
        %s889 = scalar_lea.vmem [#allocation3], %s888
        %p890 = pneg %p74
        %p891 = pneg %p71
        %s892 = smul.u32 2, %s19
        %p893 = scmp.lt.s32.totalorder %s892, 3
        %s894 = scalar_select %p893, %s892, 3
        %s895 = scalar_lea.vmem %s2, %s894
        %p896 = pneg %p100
        %p897 = pneg %p97
        %p898 = pneg %p121
        %p899 = pneg %p118
        %p900 = pneg %p149
        %p901 = pneg %p146
        %s902 = smul.u32 2, %s19
        %p903 = scmp.lt.s32.totalorder %s20, 1
        %s904 = scalar_select %p903, %s20, 1
        %p905 = scmp.lt.s32.totalorder %s902, 3
        %s906 = scalar_select %p905, %s902, 3
        %s907 = smul.addr %s904, 4
        %s908 = sadd.s32 %s906, %s907
        %s909 = scalar_lea.vmem %s4, %s908
        %p910 = scmp.lt.s32.totalorder %s20, 1
        %s911 = scalar_select %p910, %s20, 1
        %s912 = smul.addr %s911, 14
        %s913 = smul.addr %s912, 4
        %s914 = scalar_lea.vmem %s0, %s913
        %s915 = smul.u32 2, %s19
        %s916 = smul.u32 2, %s19
        %p917 = scmp.lt.s32.totalorder %s916, 3
        %s918 = scalar_select %p917, %s916, 3
        %s919 = scalar_lea.vmem %s2, %s918
        %s920 = smul.u32 2, %s19
        %s921 = smul.u32 2, %s19
        %p922 = scmp.lt.s32.totalorder %s20, 1
        %s923 = scalar_select %p922, %s20, 1
        %p924 = scmp.lt.s32.totalorder %s921, 3
        %s925 = scalar_select %p924, %s921, 3
        %s926 = smul.addr %s923, 4
        %s927 = sadd.s32 %s925, %s926
        %s928 = scalar_lea.vmem %s4, %s927
        %s929 = smul.u32 2, %s19
        %v931 = vld [vmem:[%s914] sm:$0xf]
        %v932 = vld [vmem:[%s914 + $0x4] sm:$0xf]
        %v933 = vld [vmem:[%s914 + $0x8] sm:$0xf]
        %v934 = vld [vmem:[%s914 + $0xc] sm:$0xf]
        %v935 = vld [vmem:[%s914 + $0x10] sm:$0xf]
        %v936 = vld [vmem:[%s914 + $0x14] sm:$0xf]
        %v937 = vld [vmem:[%s914 + $0x18] sm:$0xf]
        %v938 = vld [vmem:[%s914 + $0x1c] sm:$0xf]
        %v939 = vld [vmem:[%s914 + $0x20] sm:$0xf]
        %v940 = vld [vmem:[%s914 + $0x24] sm:$0xf]
        %v951 = vunpack.c.l.b16 %v931
        %v952 = vunpack.c.l.b16 %v932
        %v953 = vunpack.c.l.b16 %v933
        %v954 = vunpack.c.l.b16 %v934
        %v955 = vunpack.c.l.b16 %v935
        %v956 = vunpack.c.l.b16 %v936
        %v957 = vunpack.c.l.b16 %v937
        %v958 = vunpack.c.l.b16 %v938
        %v959 = vunpack.c.l.b16 %v939
        %v960 = vunpack.c.l.b16 %v940
        %v961 = vpack.c.b16 %v952, %v951
        %v962 = vpack.c.b16 %v954, %v953
        %v963 = vpack.c.b16 %v956, %v955
        %v964 = vpack.c.b16 %v958, %v957
        %v965 = vpack.c.b16 %v960, %v959
        %971 = vst [vmem:[#allocation2] sm:$0xff] %v961
        %972 = vst [vmem:[#allocation2 + $0x10] sm:$0xff] %v962
        %973 = vst [vmem:[#allocation2 + $0x20] sm:$0xff] %v963
        %974 = vst [vmem:[#allocation2 + $0x30] sm:$0xff] %v964
        %975 = vst [vmem:[#allocation2 + $0x40] sm:$0xff] %v965
        %v976 = vld [vmem:[%s914] sm:$0xf]
        %v977 = vld [vmem:[%s914 + $0x4] sm:$0xf]
        %v978 = vld [vmem:[%s914 + $0x8] sm:$0xf]
        %v979 = vld [vmem:[%s914 + $0xc] sm:$0xf]
        %v980 = vld [vmem:[%s914 + $0x10] sm:$0xf]
        %v981 = vld [vmem:[%s914 + $0x14] sm:$0xf]
        %v982 = vld [vmem:[%s914 + $0x18] sm:$0xf]
        %v983 = vld [vmem:[%s914 + $0x1c] sm:$0xf]
        %v984 = vld [vmem:[%s914 + $0x20] sm:$0xf]
        %v985 = vld [vmem:[%s914 + $0x24] sm:$0xf]
        %v986 = vld [vmem:[%s914 + $0x28] sm:$0x1]
        %v998 = vunpack.c.l.b16 %v976
        %v999 = vunpack.c.l.b16 %v977
        %v1000 = vunpack.c.l.b16 %v978
        %v1001 = vunpack.c.l.b16 %v979
        %v1002 = vunpack.c.l.b16 %v980
        %v1003 = vunpack.c.l.b16 %v981
        %v1004 = vunpack.c.l.b16 %v982
        %v1005 = vunpack.c.l.b16 %v983
        %v1006 = vunpack.c.l.b16 %v984
        %v1007 = vunpack.c.l.b16 %v985
        %v1008 = vunpack.c.l.b16 %v986
        %v1009 = vpack.c.b16 %v999, %v998
        %v1010 = vpack.c.b16 %v1001, %v1000
        %v1011 = vpack.c.b16 %v1003, %v1002
        %v1012 = vpack.c.b16 %v1005, %v1004
        %v1013 = vpack.c.b16 %v1007, %v1006
        %v1014 = vpack.c.b16 %v1008, %v1008
        %vm1015 = vsmask.f32 7424
        %v1017 = vshrl.u32 %v1009, 16
        %v1019 = vshll.u32 %v1009, 16
        %v1021 = vrot.slane %v1019, 1
        %v1022 = vor.u32 %v1017, %v1021
        %v1024 = vshll.u32 %v1010, 16
        %v1026 = vrot.slane %v1024, 1
        %v1027 = vsel %vm1015, %v1022, %v1026
        %v1028 = vshrl.u32 %v1010, 16
        %v1030 = vor.u32 %v1028, %v1026
        %v1032 = vshll.u32 %v1011, 16
        %v1034 = vrot.slane %v1032, 1
        %v1035 = vsel %vm1015, %v1030, %v1034
        %v1036 = vshrl.u32 %v1011, 16
        %v1038 = vor.u32 %v1036, %v1034
        %v1040 = vshll.u32 %v1012, 16
        %v1042 = vrot.slane %v1040, 1
        %v1043 = vsel %vm1015, %v1038, %v1042
        %v1044 = vshrl.u32 %v1012, 16
        %v1046 = vor.u32 %v1044, %v1042
        %v1048 = vshll.u32 %v1013, 16
        %v1050 = vrot.slane %v1048, 1
        %v1051 = vsel %vm1015, %v1046, %v1050
        %v1052 = vshrl.u32 %v1013, 16
        %v1054 = vor.u32 %v1052, %v1050
        %v1056 = vshll.u32 %v1014, 16
        %v1058 = vrot.slane %v1056, 1
        %v1059 = vsel %vm1015, %v1054, %v1058
        %1065 = vst [vmem:[#allocation2 + $0x8] sm:$0xff] %v1027
        %1066 = vst [vmem:[#allocation2 + $0x18] sm:$0xff] %v1035
        %1067 = vst [vmem:[#allocation2 + $0x28] sm:$0xff] %v1043
        %1068 = vst [vmem:[#allocation2 + $0x38] sm:$0xff] %v1051
        %1069 = vst [vmem:[#allocation2 + $0x48] sm:$0xff] %v1059
        %v1070 = vld [vmem:[#allocation2] sm:$0xff]
        %v1071 = vld [vmem:[#allocation2 + $0x8] sm:$0xff]
        %v1072 = vld [vmem:[#allocation2 + $0x10] sm:$0xff]
        %v1073 = vld [vmem:[#allocation2 + $0x18] sm:$0xff]
        %v1074 = vld [vmem:[#allocation2 + $0x20] sm:$0xff]
        %v1075 = vld [vmem:[#allocation2 + $0x28] sm:$0xff]
        %v1076 = vld [vmem:[#allocation2 + $0x30] sm:$0xff]
        %v1077 = vld [vmem:[#allocation2 + $0x38] sm:$0xff]
        %v1078 = vld [vmem:[#allocation2 + $0x40] sm:$0xff]
        %v1079 = vld [vmem:[#allocation2 + $0x48] sm:$0xff]
        %v1080 = vld [vmem:[%s875] sm:$0xff]
        %v1081 = vld [vmem:[%s875 + $0x8] sm:$0xff]
        %v1082 = vld [vmem:[%s875 + $0x10] sm:$0xff]
        %v1083 = vld [vmem:[%s875 + $0x18] sm:$0xff]
        %v1084 = vld [vmem:[%s875 + $0x20] sm:$0xff]
        %v1085 = vld [vmem:[%s875 + $0x28] sm:$0xff]
        %v1086 = vld [vmem:[%s875 + $0x30] sm:$0xff]
        %v1087 = vld [vmem:[%s875 + $0x38] sm:$0xff]
        %v1088 = vld [vmem:[%s875 + $0x40] sm:$0xff]
        %v1089 = vld [vmem:[%s875 + $0x48] sm:$0xff]
        %v1090 = vld [vmem:[%s875 + $0x50] sm:$0xff]
        %v1091 = vld [vmem:[%s875 + $0x58] sm:$0xff]
        %v1092 = vld [vmem:[%s875 + $0x60] sm:$0xff]
        %v1093 = vld [vmem:[%s875 + $0x68] sm:$0xff]
        %v1094 = vld [vmem:[%s875 + $0x70] sm:$0xff]
        %v1095 = vld [vmem:[%s875 + $0x78] sm:$0xff]
        %v1096 = vld [vmem:[%s875 + $0x80] sm:$0xff]
        %v1097 = vld [vmem:[%s875 + $0x88] sm:$0xff]
        %v1098 = vld [vmem:[%s875 + $0x90] sm:$0xff]
        %v1099 = vld [vmem:[%s875 + $0x98] sm:$0xff]
        %v1100 = vld [vmem:[%s875 + $0xa0] sm:$0xff]
        %v1101 = vld [vmem:[%s875 + $0xa8] sm:$0xff]
        %v1102 = vld [vmem:[%s875 + $0xb0] sm:$0xff]
        %v1103 = vld [vmem:[%s875 + $0xb8] sm:$0xff]
        %v1104 = vld [vmem:[%s875 + $0xc0] sm:$0xff]
        %v1105 = vld [vmem:[%s875 + $0xc8] sm:$0xff]
        %v1106 = vld [vmem:[%s875 + $0xd0] sm:$0xff]
        %v1107 = vld [vmem:[%s875 + $0xd8] sm:$0xff]
        %v1108 = vld [vmem:[%s875 + $0xe0] sm:$0xff]
        %v1109 = vld [vmem:[%s875 + $0xe8] sm:$0xff]
        %v1110 = vld [vmem:[%s875 + $0xf0] sm:$0xff]
        %v1111 = vld [vmem:[%s875 + $0xf8] sm:$0xff]
        %v1112 = vld [vmem:[%s914] sm:$0xe]
        %v1113 = vld [vmem:[%s914 + $0x4] sm:$0xf]
        %v1114 = vld [vmem:[%s914 + $0x8] sm:$0xf]
        %v1115 = vld [vmem:[%s914 + $0xc] sm:$0xf]
        %v1116 = vld [vmem:[%s914 + $0x10] sm:$0xf]
        %v1117 = vld [vmem:[%s914 + $0x14] sm:$0xf]
        %v1118 = vld [vmem:[%s914 + $0x18] sm:$0xf]
        %v1119 = vld [vmem:[%s914 + $0x1c] sm:$0xf]
        %v1120 = vld [vmem:[%s914 + $0x20] sm:$0xf]
        %v1121 = vld [vmem:[%s914 + $0x24] sm:$0xf]
        %v1122 = vld [vmem:[%s914 + $0x28] sm:$0x1]
        %v1134 = vunpack.c.l.b16 %v1112
        %v1135 = vunpack.c.l.b16 %v1113
        %v1136 = vunpack.c.l.b16 %v1114
        %v1137 = vunpack.c.l.b16 %v1115
        %v1138 = vunpack.c.l.b16 %v1116
        %v1139 = vunpack.c.l.b16 %v1117
        %v1140 = vunpack.c.l.b16 %v1118
        %v1141 = vunpack.c.l.b16 %v1119
        %v1142 = vunpack.c.l.b16 %v1120
        %v1143 = vunpack.c.l.b16 %v1121
        %v1144 = vunpack.c.l.b16 %v1122
        %v1145 = vpack.c.b16 %v1135, %v1134
        %v1146 = vpack.c.b16 %v1137, %v1136
        %v1147 = vpack.c.b16 %v1139, %v1138
        %v1148 = vpack.c.b16 %v1141, %v1140
        %v1149 = vpack.c.b16 %v1143, %v1142
        %v1150 = vpack.c.b16 %v1144, %v1144
        %vm1151 = vcmask 1046528
        %v1152 = vrot.slane %v1145, 1
        %v1153 = vrot.slane %v1146, 1
        %v1154 = vsel %vm1151, %v1152, %v1153
        %v1155 = vrot.slane %v1147, 1
        %v1156 = vsel %vm1151, %v1153, %v1155
        %v1157 = vrot.slane %v1148, 1
        %v1158 = vsel %vm1151, %v1155, %v1157
        %v1159 = vrot.slane %v1149, 1
        %v1160 = vsel %vm1151, %v1157, %v1159
        %v1161 = vrot.slane %v1150, 1
        %v1162 = vsel %vm1151, %v1159, %v1161
        %1168 = vst [vmem:[#allocation2] sm:$0xff] %v1154
        %1169 = vst [vmem:[#allocation2 + $0x10] sm:$0xff] %v1156
        %1170 = vst [vmem:[#allocation2 + $0x20] sm:$0xff] %v1158
        %1171 = vst [vmem:[#allocation2 + $0x30] sm:$0xff] %v1160
        %1172 = vst [vmem:[#allocation2 + $0x40] sm:$0xff] %v1162
        %v1173 = vld [vmem:[%s914 + $0x4] sm:$0xe]
        %v1174 = vld [vmem:[%s914 + $0x8] sm:$0xf]
        %v1175 = vld [vmem:[%s914 + $0xc] sm:$0xf]
        %v1176 = vld [vmem:[%s914 + $0x10] sm:$0xf]
        %v1177 = vld [vmem:[%s914 + $0x14] sm:$0xf]
        %v1178 = vld [vmem:[%s914 + $0x18] sm:$0xf]
        %v1179 = vld [vmem:[%s914 + $0x1c] sm:$0xf]
        %v1180 = vld [vmem:[%s914 + $0x20] sm:$0xf]
        %v1181 = vld [vmem:[%s914 + $0x24] sm:$0xf]
        %v1182 = vld [vmem:[%s914 + $0x28] sm:$0xf]
        %v1183 = vld [vmem:[%s914 + $0x2c] sm:$0x1]
        %v1195 = vunpack.c.l.b16 %v1173
        %v1196 = vunpack.c.l.b16 %v1174
        %v1197 = vunpack.c.l.b16 %v1175
        %v1198 = vunpack.c.l.b16 %v1176
        %v1199 = vunpack.c.l.b16 %v1177
        %v1200 = vunpack.c.l.b16 %v1178
        %v1201 = vunpack.c.l.b16 %v1179
        %v1202 = vunpack.c.l.b16 %v1180
        %v1203 = vunpack.c.l.b16 %v1181
        %v1204 = vunpack.c.l.b16 %v1182
        %v1205 = vunpack.c.l.b16 %v1183
        %v1206 = vpack.c.b16 %v1196, %v1195
        %v1207 = vpack.c.b16 %v1198, %v1197
        %v1208 = vpack.c.b16 %v1200, %v1199
        %v1209 = vpack.c.b16 %v1202, %v1201
        %v1210 = vpack.c.b16 %v1204, %v1203
        %v1211 = vpack.c.b16 %v1205, %v1205
        %v1212 = vrot.slane %v1206, 1
        %v1213 = vrot.slane %v1207, 1
        %v1214 = vsel %vm1151, %v1212, %v1213
        %v1215 = vrot.slane %v1208, 1
        %v1216 = vsel %vm1151, %v1213, %v1215
        %v1217 = vrot.slane %v1209, 1
        %v1218 = vsel %vm1151, %v1215, %v1217
        %v1219 = vrot.slane %v1210, 1
        %v1220 = vsel %vm1151, %v1217, %v1219
        %v1221 = vrot.slane %v1211, 1
        %v1222 = vsel %vm1151, %v1219, %v1221
        %1228 = vst [vmem:[#allocation2 + $0x8] sm:$0xff] %v1214
        %1229 = vst [vmem:[#allocation2 + $0x18] sm:$0xff] %v1216
        %1230 = vst [vmem:[#allocation2 + $0x28] sm:$0xff] %v1218
        %1231 = vst [vmem:[#allocation2 + $0x38] sm:$0xff] %v1220
        %1232 = vst [vmem:[#allocation2 + $0x48] sm:$0xff] %v1222
        %v1233 = vld [vmem:[#allocation2] sm:$0xff]
        %v1234 = vld [vmem:[#allocation2 + $0x8] sm:$0xff]
        %v1235 = vld [vmem:[#allocation2 + $0x10] sm:$0xff]
        %v1236 = vld [vmem:[#allocation2 + $0x18] sm:$0xff]
        %v1237 = vld [vmem:[#allocation2 + $0x20] sm:$0xff]
        %v1238 = vld [vmem:[#allocation2 + $0x28] sm:$0xff]
        %v1239 = vld [vmem:[#allocation2 + $0x30] sm:$0xff]
        %v1240 = vld [vmem:[#allocation2 + $0x38] sm:$0xff]
        %v1241 = vld [vmem:[#allocation2 + $0x40] sm:$0xff]
        %v1242 = vld [vmem:[#allocation2 + $0x48] sm:$0xff]
        %s1243 = scalar_lea.vmem %s875, 256 [#allocation3]
        %v1244 = vld [vmem:[%s1243] sm:$0xff]
        %v1245 = vld [vmem:[%s1243 + $0x8] sm:$0xff]
        %v1246 = vld [vmem:[%s1243 + $0x10] sm:$0xff]
        %v1247 = vld [vmem:[%s1243 + $0x18] sm:$0xff]
        %v1248 = vld [vmem:[%s1243 + $0x20] sm:$0xff]
        %v1249 = vld [vmem:[%s1243 + $0x28] sm:$0xff]
        %v1250 = vld [vmem:[%s1243 + $0x30] sm:$0xff]
        %v1251 = vld [vmem:[%s1243 + $0x38] sm:$0xff]
        %v1252 = vld [vmem:[%s1243 + $0x40] sm:$0xff]
        %v1253 = vld [vmem:[%s1243 + $0x48] sm:$0xff]
        %v1254 = vld [vmem:[%s1243 + $0x50] sm:$0xff]
        %v1255 = vld [vmem:[%s1243 + $0x58] sm:$0xff]
        %v1256 = vld [vmem:[%s1243 + $0x60] sm:$0xff]
        %v1257 = vld [vmem:[%s1243 + $0x68] sm:$0xff]
        %v1258 = vld [vmem:[%s1243 + $0x70] sm:$0xff]
        %v1259 = vld [vmem:[%s1243 + $0x78] sm:$0xff]
        %v1260 = vld [vmem:[%s1243 + $0x80] sm:$0xff]
        %v1261 = vld [vmem:[%s1243 + $0x88] sm:$0xff]
        %v1262 = vld [vmem:[%s1243 + $0x90] sm:$0xff]
        %v1263 = vld [vmem:[%s1243 + $0x98] sm:$0xff]
        %v1264 = vld [vmem:[%s1243 + $0xa0] sm:$0xff]
        %v1265 = vld [vmem:[%s1243 + $0xa8] sm:$0xff]
        %v1266 = vld [vmem:[%s1243 + $0xb0] sm:$0xff]
        %v1267 = vld [vmem:[%s1243 + $0xb8] sm:$0xff]
        %v1268 = vld [vmem:[%s1243 + $0xc0] sm:$0xff]
        %v1269 = vld [vmem:[%s1243 + $0xc8] sm:$0xff]
        %v1270 = vld [vmem:[%s1243 + $0xd0] sm:$0xff]
        %v1271 = vld [vmem:[%s1243 + $0xd8] sm:$0xff]
        %v1272 = vld [vmem:[%s1243 + $0xe0] sm:$0xff]
        %v1273 = vld [vmem:[%s1243 + $0xe8] sm:$0xff]
        %v1274 = vld [vmem:[%s1243 + $0xf0] sm:$0xff]
        %v1275 = vld [vmem:[%s1243 + $0xf8] sm:$0xff]
        %v1308 = vunpack.c.l.b16 %v1244
        %v1309 = vunpack.c.h.b16 %v1244
        %v1310 = vunpack.c.l.b16 %v1245
        %v1311 = vunpack.c.h.b16 %v1245
        %v1312 = vunpack.c.l.b16 %v1246
        %v1313 = vunpack.c.h.b16 %v1246
        %v1314 = vunpack.c.l.b16 %v1247
        %v1315 = vunpack.c.h.b16 %v1247
        %v1316 = vunpack.c.l.b16 %v1248
        %v1317 = vunpack.c.h.b16 %v1248
        %v1318 = vunpack.c.l.b16 %v1249
        %v1319 = vunpack.c.h.b16 %v1249
        %v1320 = vunpack.c.l.b16 %v1250
        %v1321 = vunpack.c.h.b16 %v1250
        %v1322 = vunpack.c.l.b16 %v1251
        %v1323 = vunpack.c.h.b16 %v1251
        %v1324 = vunpack.c.l.b16 %v1252
        %v1325 = vunpack.c.h.b16 %v1252
        %v1326 = vunpack.c.l.b16 %v1253
        %v1327 = vunpack.c.h.b16 %v1253
        %v1328 = vunpack.c.l.b16 %v1254
        %v1329 = vunpack.c.h.b16 %v1254
        %v1330 = vunpack.c.l.b16 %v1255
        %v1331 = vunpack.c.h.b16 %v1255
        %v1332 = vunpack.c.l.b16 %v1256
        %v1333 = vunpack.c.h.b16 %v1256
        %v1334 = vunpack.c.l.b16 %v1257
        %v1335 = vunpack.c.h.b16 %v1257
        %v1336 = vunpack.c.l.b16 %v1258
        %v1337 = vunpack.c.h.b16 %v1258
        %v1338 = vunpack.c.l.b16 %v1259
        %v1339 = vunpack.c.h.b16 %v1259
        %v1340 = vunpack.c.l.b16 %v1260
        %v1341 = vunpack.c.h.b16 %v1260
        %v1342 = vunpack.c.l.b16 %v1261
        %v1343 = vunpack.c.h.b16 %v1261
        %v1344 = vunpack.c.l.b16 %v1262
        %v1345 = vunpack.c.h.b16 %v1262
        %v1346 = vunpack.c.l.b16 %v1263
        %v1347 = vunpack.c.h.b16 %v1263
        %v1348 = vunpack.c.l.b16 %v1264
        %v1349 = vunpack.c.h.b16 %v1264
        %v1350 = vunpack.c.l.b16 %v1265
        %v1351 = vunpack.c.h.b16 %v1265
        %v1352 = vunpack.c.l.b16 %v1266
        %v1353 = vunpack.c.h.b16 %v1266
        %v1354 = vunpack.c.l.b16 %v1267
        %v1355 = vunpack.c.h.b16 %v1267
        %v1356 = vunpack.c.l.b16 %v1268
        %v1357 = vunpack.c.h.b16 %v1268
        %v1358 = vunpack.c.l.b16 %v1269
        %v1359 = vunpack.c.h.b16 %v1269
        %v1360 = vunpack.c.l.b16 %v1270
        %v1361 = vunpack.c.h.b16 %v1270
        %v1362 = vunpack.c.l.b16 %v1271
        %v1363 = vunpack.c.h.b16 %v1271
        %v1364 = vunpack.c.l.b16 %v1272
        %v1365 = vunpack.c.h.b16 %v1272
        %v1366 = vunpack.c.l.b16 %v1273
        %v1367 = vunpack.c.h.b16 %v1273
        %v1368 = vunpack.c.l.b16 %v1274
        %v1369 = vunpack.c.h.b16 %v1274
        %v1370 = vunpack.c.l.b16 %v1275
        %v1371 = vunpack.c.h.b16 %v1275
        %v1372 = vpack.c.b16 %v1310, %v1308
        %v1373 = vpack.c.b16 %v1311, %v1309
        %v1374 = vpack.c.b16 %v1314, %v1312
        %v1375 = vpack.c.b16 %v1315, %v1313
        %v1376 = vpack.c.b16 %v1318, %v1316
        %v1377 = vpack.c.b16 %v1319, %v1317
        %v1378 = vpack.c.b16 %v1322, %v1320
        %v1379 = vpack.c.b16 %v1323, %v1321
        %v1380 = vpack.c.b16 %v1326, %v1324
        %v1381 = vpack.c.b16 %v1327, %v1325
        %v1382 = vpack.c.b16 %v1330, %v1328
        %v1383 = vpack.c.b16 %v1331, %v1329
        %v1384 = vpack.c.b16 %v1334, %v1332
        %v1385 = vpack.c.b16 %v1335, %v1333
        %v1386 = vpack.c.b16 %v1338, %v1336
        %v1387 = vpack.c.b16 %v1339, %v1337
        %v1388 = vpack.c.b16 %v1342, %v1340
        %v1389 = vpack.c.b16 %v1343, %v1341
        %v1390 = vpack.c.b16 %v1346, %v1344
        %v1391 = vpack.c.b16 %v1347, %v1345
        %v1392 = vpack.c.b16 %v1350, %v1348
        %v1393 = vpack.c.b16 %v1351, %v1349
        %v1394 = vpack.c.b16 %v1354, %v1352
        %v1395 = vpack.c.b16 %v1355, %v1353
        %v1396 = vpack.c.b16 %v1358, %v1356
        %v1397 = vpack.c.b16 %v1359, %v1357
        %v1398 = vpack.c.b16 %v1362, %v1360
        %v1399 = vpack.c.b16 %v1363, %v1361
        %v1400 = vpack.c.b16 %v1366, %v1364
        %v1401 = vpack.c.b16 %v1367, %v1365
        %v1402 = vpack.c.b16 %v1370, %v1368
        %v1403 = vpack.c.b16 %v1371, %v1369
        %1436 = vmatprep.subr.bf16.mxu0 %v1373
        %1437 = vmatpush1.bf16.msra.mxu0 %v1372
        %1438 = vmatprep.subr.bf16.mxu0 %v1375
        %1439 = vmatpush1.bf16.msra.mxu0 %v1374
        %1440 = vmatprep.subr.bf16.mxu0 %v1377
        %1441 = vmatpush1.bf16.msra.mxu0 %v1376
        %1442 = vmatprep.subr.bf16.mxu0 %v1379
        %1443 = vmatpush1.bf16.msra.mxu0 %v1378
        %1444 = vmatprep.subr.bf16.mxu0 %v1381
        %1445 = vmatpush1.bf16.msra.mxu0 %v1380
        %1446 = vmatprep.subr.bf16.mxu0 %v1383
        %1447 = vmatpush1.bf16.msra.mxu0 %v1382
        %1448 = vmatprep.subr.bf16.mxu0 %v1385
        %1449 = vmatpush1.bf16.msra.mxu0 %v1384
        %1450 = vmatprep.subr.bf16.mxu0 %v1387
        %1451 = vmatpush1.bf16.msra.mxu0 %v1386
        %1452 = vmatprep.subr.bf16.mxu0 %v1389
        %1453 = vmatpush1.bf16.msra.mxu0 %v1388
        %1454 = vmatprep.subr.bf16.mxu0 %v1391
        %1455 = vmatpush1.bf16.msra.mxu0 %v1390
        %1456 = vmatprep.subr.bf16.mxu0 %v1393
        %1457 = vmatpush1.bf16.msra.mxu0 %v1392
        %1458 = vmatprep.subr.bf16.mxu0 %v1395
        %1459 = vmatpush1.bf16.msra.mxu0 %v1394
        %1460 = vmatprep.subr.bf16.mxu0 %v1397
        %1461 = vmatpush1.bf16.msra.mxu0 %v1396
        %1462 = vmatprep.subr.bf16.mxu0 %v1399
        %1463 = vmatpush1.bf16.msra.mxu0 %v1398
        %1464 = vmatprep.subr.bf16.mxu0 %v1401
        %1465 = vmatpush1.bf16.msra.mxu0 %v1400
        %1466 = vmatprep.subr.bf16.mxu0 %v1403
        %1467 = vmatpush1.bf16.msra.mxu0 %v1402
        %1468 = vmatprep.mubr.bf16.mxu0 %v1234
        %1469 = vmatmul.mubr.bf16.gmra.mrb[0].mxu0 %v1233
        %v1470 = vpop.f32.mrb[0].mxu0
        %v1471 = vadd.f32 0.0, %v1470
        %v1472 = vpop.f32.mrb[0].mxu0
        %v1473 = vadd.f32 0.0, %v1472
        %v1474 = vpop.f32.mrb[0].mxu0
        %v1475 = vadd.f32 0.0, %v1474
        %v1476 = vpop.f32.mrb[0].mxu0
        %v1477 = vadd.f32 0.0, %v1476
        %1478 = vmatprep.mubr.bf16.mxu0 %v1236
        %1479 = vmatmul.mubr.bf16.gmra.mrb[0].mxu0 %v1235
        %v1480 = vpop.f32.mrb[0].mxu0
        %v1481 = vadd.f32 0.0, %v1480
        %v1482 = vpop.f32.mrb[0].mxu0
        %v1483 = vadd.f32 0.0, %v1482
        %v1484 = vpop.f32.mrb[0].mxu0
        %v1485 = vadd.f32 0.0, %v1484
        %v1486 = vpop.f32.mrb[0].mxu0
        %v1487 = vadd.f32 0.0, %v1486
        %1488 = vmatprep.mubr.bf16.mxu0 %v1238
        %1489 = vmatmul.mubr.bf16.gmra.mrb[0].mxu0 %v1237
        %v1490 = vpop.f32.mrb[0].mxu0
        %v1491 = vadd.f32 0.0, %v1490
        %v1492 = vpop.f32.mrb[0].mxu0
        %v1493 = vadd.f32 0.0, %v1492
        %v1494 = vpop.f32.mrb[0].mxu0
        %v1495 = vadd.f32 0.0, %v1494
        %v1496 = vpop.f32.mrb[0].mxu0
        %v1497 = vadd.f32 0.0, %v1496
        %1498 = vmatprep.mubr.bf16.mxu0 %v1240
        %1499 = vmatmul.mubr.bf16.gmra.mrb[0].mxu0 %v1239
        %v1500 = vpop.f32.mrb[0].mxu0
        %v1501 = vadd.f32 0.0, %v1500
        %v1502 = vpop.f32.mrb[0].mxu0
        %v1503 = vadd.f32 0.0, %v1502
        %v1504 = vpop.f32.mrb[0].mxu0
        %v1505 = vadd.f32 0.0, %v1504
        %v1506 = vpop.f32.mrb[0].mxu0
        %v1507 = vadd.f32 0.0, %v1506
        %1508 = vmatprep.mubr.bf16.mxu0 %v1242
        %1509 = vmatmul.mubr.bf16.gmra.mrb[0].mxu0 %v1241
        %v1510 = vpop.f32.mrb[0].mxu0
        %v1511 = vadd.f32 0.0, %v1510
        %v1512 = vpop.f32.mrb[0].mxu0
        %v1513 = vadd.f32 0.0, %v1512
        %v1514 = vpop.f32.mrb[0].mxu0
        %v1515 = vadd.f32 0.0, %v1514
        %v1516 = vpop.f32.mrb[0].mxu0
        %v1517 = vadd.f32 0.0, %v1516
        %1518 = vdwg.mxu0
        %v1551 = vunpack.c.l.b16 %v1080
        %v1552 = vunpack.c.h.b16 %v1080
        %v1553 = vunpack.c.l.b16 %v1081
        %v1554 = vunpack.c.h.b16 %v1081
        %v1555 = vunpack.c.l.b16 %v1082
        %v1556 = vunpack.c.h.b16 %v1082
        %v1557 = vunpack.c.l.b16 %v1083
        %v1558 = vunpack.c.h.b16 %v1083
        %v1559 = vunpack.c.l.b16 %v1084
        %v1560 = vunpack.c.h.b16 %v1084
        %v1561 = vunpack.c.l.b16 %v1085
        %v1562 = vunpack.c.h.b16 %v1085
        %v1563 = vunpack.c.l.b16 %v1086
        %v1564 = vunpack.c.h.b16 %v1086
        %v1565 = vunpack.c.l.b16 %v1087
        %v1566 = vunpack.c.h.b16 %v1087
        %v1567 = vunpack.c.l.b16 %v1088
        %v1568 = vunpack.c.h.b16 %v1088
        %v1569 = vunpack.c.l.b16 %v1089
        %v1570 = vunpack.c.h.b16 %v1089
        %v1571 = vunpack.c.l.b16 %v1090
        %v1572 = vunpack.c.h.b16 %v1090
        %v1573 = vunpack.c.l.b16 %v1091
        %v1574 = vunpack.c.h.b16 %v1091
        %v1575 = vunpack.c.l.b16 %v1092
        %v1576 = vunpack.c.h.b16 %v1092
        %v1577 = vunpack.c.l.b16 %v1093
        %v1578 = vunpack.c.h.b16 %v1093
        %v1579 = vunpack.c.l.b16 %v1094
        %v1580 = vunpack.c.h.b16 %v1094
        %v1581 = vunpack.c.l.b16 %v1095
        %v1582 = vunpack.c.h.b16 %v1095
        %v1583 = vunpack.c.l.b16 %v1096
        %v1584 = vunpack.c.h.b16 %v1096
        %v1585 = vunpack.c.l.b16 %v1097
        %v1586 = vunpack.c.h.b16 %v1097
        %v1587 = vunpack.c.l.b16 %v1098
        %v1588 = vunpack.c.h.b16 %v1098
        %v1589 = vunpack.c.l.b16 %v1099
        %v1590 = vunpack.c.h.b16 %v1099
        %v1591 = vunpack.c.l.b16 %v1100
        %v1592 = vunpack.c.h.b16 %v1100
        %v1593 = vunpack.c.l.b16 %v1101
        %v1594 = vunpack.c.h.b16 %v1101
        %v1595 = vunpack.c.l.b16 %v1102
        %v1596 = vunpack.c.h.b16 %v1102
        %v1597 = vunpack.c.l.b16 %v1103
        %v1598 = vunpack.c.h.b16 %v1103
        %v1599 = vunpack.c.l.b16 %v1104
        %v1600 = vunpack.c.h.b16 %v1104
        %v1601 = vunpack.c.l.b16 %v1105
        %v1602 = vunpack.c.h.b16 %v1105
        %v1603 = vunpack.c.l.b16 %v1106
        %v1604 = vunpack.c.h.b16 %v1106
        %v1605 = vunpack.c.l.b16 %v1107
        %v1606 = vunpack.c.h.b16 %v1107
        %v1607 = vunpack.c.l.b16 %v1108
        %v1608 = vunpack.c.h.b16 %v1108
        %v1609 = vunpack.c.l.b16 %v1109
        %v1610 = vunpack.c.h.b16 %v1109
        %v1611 = vunpack.c.l.b16 %v1110
        %v1612 = vunpack.c.h.b16 %v1110
        %v1613 = vunpack.c.l.b16 %v1111
        %v1614 = vunpack.c.h.b16 %v1111
        %v1615 = vpack.c.b16 %v1553, %v1551
        %v1616 = vpack.c.b16 %v1554, %v1552
        %v1617 = vpack.c.b16 %v1557, %v1555
        %v1618 = vpack.c.b16 %v1558, %v1556
        %v1619 = vpack.c.b16 %v1561, %v1559
        %v1620 = vpack.c.b16 %v1562, %v1560
        %v1621 = vpack.c.b16 %v1565, %v1563
        %v1622 = vpack.c.b16 %v1566, %v1564
        %v1623 = vpack.c.b16 %v1569, %v1567
        %v1624 = vpack.c.b16 %v1570, %v1568
        %v1625 = vpack.c.b16 %v1573, %v1571
        %v1626 = vpack.c.b16 %v1574, %v1572
        %v1627 = vpack.c.b16 %v1577, %v1575
        %v1628 = vpack.c.b16 %v1578, %v1576
        %v1629 = vpack.c.b16 %v1581, %v1579
        %v1630 = vpack.c.b16 %v1582, %v1580
        %v1631 = vpack.c.b16 %v1585, %v1583
        %v1632 = vpack.c.b16 %v1586, %v1584
        %v1633 = vpack.c.b16 %v1589, %v1587
        %v1634 = vpack.c.b16 %v1590, %v1588
        %v1635 = vpack.c.b16 %v1593, %v1591
        %v1636 = vpack.c.b16 %v1594, %v1592
        %v1637 = vpack.c.b16 %v1597, %v1595
        %v1638 = vpack.c.b16 %v1598, %v1596
        %v1639 = vpack.c.b16 %v1601, %v1599
        %v1640 = vpack.c.b16 %v1602, %v1600
        %v1641 = vpack.c.b16 %v1605, %v1603
        %v1642 = vpack.c.b16 %v1606, %v1604
        %v1643 = vpack.c.b16 %v1609, %v1607
        %v1644 = vpack.c.b16 %v1610, %v1608
        %v1645 = vpack.c.b16 %v1613, %v1611
        %v1646 = vpack.c.b16 %v1614, %v1612
        %1679 = vmatprep.subr.bf16.mxu0 %v1616
        %1680 = vmatpush1.bf16.msra.mxu0 %v1615
        %1681 = vmatprep.subr.bf16.mxu0 %v1618
        %1682 = vmatpush1.bf16.msra.mxu0 %v1617
        %1683 = vmatprep.subr.bf16.mxu0 %v1620
        %1684 = vmatpush1.bf16.msra.mxu0 %v1619
        %1685 = vmatprep.subr.bf16.mxu0 %v1622
        %1686 = vmatpush1.bf16.msra.mxu0 %v1621
        %1687 = vmatprep.subr.bf16.mxu0 %v1624
        %1688 = vmatpush1.bf16.msra.mxu0 %v1623
        %1689 = vmatprep.subr.bf16.mxu0 %v1626
        %1690 = vmatpush1.bf16.msra.mxu0 %v1625
        %1691 = vmatprep.subr.bf16.mxu0 %v1628
        %1692 = vmatpush1.bf16.msra.mxu0 %v1627
        %1693 = vmatprep.subr.bf16.mxu0 %v1630
        %1694 = vmatpush1.bf16.msra.mxu0 %v1629
        %1695 = vmatprep.subr.bf16.mxu0 %v1632
        %1696 = vmatpush1.bf16.msra.mxu0 %v1631
        %1697 = vmatprep.subr.bf16.mxu0 %v1634
        %1698 = vmatpush1.bf16.msra.mxu0 %v1633
        %1699 = vmatprep.subr.bf16.mxu0 %v1636
        %1700 = vmatpush1.bf16.msra.mxu0 %v1635
        %1701 = vmatprep.subr.bf16.mxu0 %v1638
        %1702 = vmatpush1.bf16.msra.mxu0 %v1637
        %1703 = vmatprep.subr.bf16.mxu0 %v1640
        %1704 = vmatpush1.bf16.msra.mxu0 %v1639
        %1705 = vmatprep.subr.bf16.mxu0 %v1642
        %1706 = vmatpush1.bf16.msra.mxu0 %v1641
        %1707 = vmatprep.subr.bf16.mxu0 %v1644
        %1708 = vmatpush1.bf16.msra.mxu0 %v1643
        %1709 = vmatprep.subr.bf16.mxu0 %v1646
        %1710 = vmatpush1.bf16.msra.mxu0 %v1645
        %1711 = vmatprep.mubr.bf16.mxu0 %v1071
        %1712 = vmatmul.mubr.bf16.gmra.mrb[0].mxu0 %v1070
        %v1713 = vpop.f32.mrb[0].mxu0
        %v1714 = vadd.f32 %v1471, %v1713
        %v1715 = vpop.f32.mrb[0].mxu0
        %v1716 = vadd.f32 %v1473, %v1715
        %v1717 = vpop.f32.mrb[0].mxu0
        %v1718 = vadd.f32 %v1475, %v1717
        %v1719 = vpop.f32.mrb[0].mxu0
        %v1720 = vadd.f32 %v1477, %v1719
        %1721 = vmatprep.mubr.bf16.mxu0 %v1073
        %1722 = vmatmul.mubr.bf16.gmra.mrb[0].mxu0 %v1072
        %v1723 = vpop.f32.mrb[0].mxu0
        %v1724 = vadd.f32 %v1481, %v1723
        %v1725 = vpop.f32.mrb[0].mxu0
        %v1726 = vadd.f32 %v1483, %v1725
        %v1727 = vpop.f32.mrb[0].mxu0
        %v1728 = vadd.f32 %v1485, %v1727
        %v1729 = vpop.f32.mrb[0].mxu0
        %v1730 = vadd.f32 %v1487, %v1729
        %1731 = vmatprep.mubr.bf16.mxu0 %v1075
        %1732 = vmatmul.mubr.bf16.gmra.mrb[0].mxu0 %v1074
        %v1733 = vpop.f32.mrb[0].mxu0
        %v1734 = vadd.f32 %v1491, %v1733
        %v1735 = vpop.f32.mrb[0].mxu0
        %v1736 = vadd.f32 %v1493, %v1735
        %v1737 = vpop.f32.mrb[0].mxu0
        %v1738 = vadd.f32 %v1495, %v1737
        %v1739 = vpop.f32.mrb[0].mxu0
        %v1740 = vadd.f32 %v1497, %v1739
        %1741 = vmatprep.mubr.bf16.mxu0 %v1077
        %1742 = vmatmul.mubr.bf16.gmra.mrb[0].mxu0 %v1076
        %v1743 = vpop.f32.mrb[0].mxu0
        %v1744 = vadd.f32 %v1501, %v1743
        %v1745 = vpop.f32.mrb[0].mxu0
        %v1746 = vadd.f32 %v1503, %v1745
        %v1747 = vpop.f32.mrb[0].mxu0
        %v1748 = vadd.f32 %v1505, %v1747
        %v1749 = vpop.f32.mrb[0].mxu0
        %v1750 = vadd.f32 %v1507, %v1749
        %1751 = vmatprep.mubr.bf16.mxu0 %v1079
        %1752 = vmatmul.mubr.bf16.gmra.mrb[0].mxu0 %v1078
        %v1753 = vpop.f32.mrb[0].mxu0
        %v1754 = vadd.f32 %v1511, %v1753
        %v1755 = vpop.f32.mrb[0].mxu0
        %v1756 = vadd.f32 %v1513, %v1755
        %v1757 = vpop.f32.mrb[0].mxu0
        %v1758 = vadd.f32 %v1515, %v1757
        %v1759 = vpop.f32.mrb[0].mxu0
        %v1760 = vadd.f32 %v1517, %v1759
        %1761 = vdwg.mxu0
        %v1762 = vld [vmem:[%s914 + $0x4] sm:$0xe]
        %v1763 = vld [vmem:[%s914 + $0x8] sm:$0xf]
        %v1764 = vld [vmem:[%s914 + $0xc] sm:$0xf]
        %v1765 = vld [vmem:[%s914 + $0x10] sm:$0xf]
        %v1766 = vld [vmem:[%s914 + $0x14] sm:$0xf]
        %v1767 = vld [vmem:[%s914 + $0x18] sm:$0xf]
        %v1768 = vld [vmem:[%s914 + $0x1c] sm:$0xf]
        %v1769 = vld [vmem:[%s914 + $0x20] sm:$0xf]
        %v1770 = vld [vmem:[%s914 + $0x24] sm:$0xf]
        %v1771 = vld [vmem:[%s914 + $0x28] sm:$0xf]
        %v1772 = vld [vmem:[%s914 + $0x2c] sm:$0x3]
        %v1784 = vunpack.c.l.b16 %v1762
        %v1785 = vunpack.c.l.b16 %v1763
        %v1786 = vunpack.c.l.b16 %v1764
        %v1787 = vunpack.c.l.b16 %v1765
        %v1788 = vunpack.c.l.b16 %v1766
        %v1789 = vunpack.c.l.b16 %v1767
        %v1790 = vunpack.c.l.b16 %v1768
        %v1791 = vunpack.c.l.b16 %v1769
        %v1792 = vunpack.c.l.b16 %v1770
        %v1793 = vunpack.c.l.b16 %v1771
        %v1794 = vunpack.c.l.b16 %v1772
        %v1795 = vpack.c.b16 %v1785, %v1784
        %v1796 = vpack.c.b16 %v1787, %v1786
        %v1797 = vpack.c.b16 %v1789, %v1788
        %v1798 = vpack.c.b16 %v1791, %v1790
        %v1799 = vpack.c.b16 %v1793, %v1792
        %v1800 = vpack.c.b16 %v1794, %v1794
        %vm1801 = vsmask.f32 6400
        %v1803 = vshrl.u32 %v1795, 16
        %v1805 = vrot.slane %v1803, 1
        %v1806 = vshll.u32 %v1795, 16
        %v1808 = vrot.slane %v1806, 2
        %v1809 = vor.u32 %v1805, %v1808
        %v1811 = vshrl.u32 %v1796, 16
        %v1813 = vrot.slane %v1811, 1
        %v1814 = vshll.u32 %v1796, 16
        %v1816 = vrot.slane %v1814, 2
        %v1817 = vor.u32 %v1813, %v1816
        %v1818 = vsel %vm1801, %v1809, %v1817
        %v1820 = vshrl.u32 %v1797, 16
        %v1822 = vrot.slane %v1820, 1
        %v1823 = vshll.u32 %v1797, 16
        %v1825 = vrot.slane %v1823, 2
        %v1826 = vor.u32 %v1822, %v1825
        %v1827 = vsel %vm1801, %v1817, %v1826
        %v1829 = vshrl.u32 %v1798, 16
        %v1831 = vrot.slane %v1829, 1
        %v1832 = vshll.u32 %v1798, 16
        %v1834 = vrot.slane %v1832, 2
        %v1835 = vor.u32 %v1831, %v1834
        %v1836 = vsel %vm1801, %v1826, %v1835
        %v1838 = vshrl.u32 %v1799, 16
        %v1840 = vrot.slane %v1838, 1
        %v1841 = vshll.u32 %v1799, 16
        %v1843 = vrot.slane %v1841, 2
        %v1844 = vor.u32 %v1840, %v1843
        %v1845 = vsel %vm1801, %v1835, %v1844
        %v1847 = vshrl.u32 %v1800, 16
        %v1849 = vrot.slane %v1847, 1
        %v1850 = vshll.u32 %v1800, 16
        %v1852 = vrot.slane %v1850, 2
        %v1853 = vor.u32 %v1849, %v1852
        %v1854 = vsel %vm1801, %v1844, %v1853
        %1860 = vst [vmem:[#allocation2] sm:$0xff] %v1818
        %1861 = vst [vmem:[#allocation2 + $0x10] sm:$0xff] %v1827
        %1862 = vst [vmem:[#allocation2 + $0x20] sm:$0xff] %v1836
        %1863 = vst [vmem:[#allocation2 + $0x30] sm:$0xff] %v1845
        %1864 = vst [vmem:[#allocation2 + $0x40] sm:$0xff] %v1854
        %v1865 = vld [vmem:[%s914 + $0x4] sm:$0xc]
        %v1866 = vld [vmem:[%s914 + $0x8] sm:$0xf]
        %v1867 = vld [vmem:[%s914 + $0xc] sm:$0xf]
        %v1868 = vld [vmem:[%s914 + $0x10] sm:$0xf]
        %v1869 = vld [vmem:[%s914 + $0x14] sm:$0xf]
        %v1870 = vld [vmem:[%s914 + $0x18] sm:$0xf]
        %v1871 = vld [vmem:[%s914 + $0x1c] sm:$0xf]
        %v1872 = vld [vmem:[%s914 + $0x20] sm:$0xf]
        %v1873 = vld [vmem:[%s914 + $0x24] sm:$0xf]
        %v1874 = vld [vmem:[%s914 + $0x28] sm:$0xf]
        %v1875 = vld [vmem:[%s914 + $0x2c] sm:$0x3]
        %v1887 = vunpack.c.l.b16 %v1865
        %v1888 = vunpack.c.l.b16 %v1866
        %v1889 = vunpack.c.l.b16 %v1867
        %v1890 = vunpack.c.l.b16 %v1868
        %v1891 = vunpack.c.l.b16 %v1869
        %v1892 = vunpack.c.l.b16 %v1870
        %v1893 = vunpack.c.l.b16 %v1871
        %v1894 = vunpack.c.l.b16 %v1872
        %v1895 = vunpack.c.l.b16 %v1873
        %v1896 = vunpack.c.l.b16 %v1874
        %v1897 = vunpack.c.l.b16 %v1875
        %v1898 = vpack.c.b16 %v1888, %v1887
        %v1899 = vpack.c.b16 %v1890, %v1889
        %v1900 = vpack.c.b16 %v1892, %v1891
        %v1901 = vpack.c.b16 %v1894, %v1893
        %v1902 = vpack.c.b16 %v1896, %v1895
        %v1903 = vpack.c.b16 %v1897, %v1897
        %vm1904 = vcmask 1045504
        %v1905 = vrot.slane %v1898, 2
        %v1906 = vrot.slane %v1899, 2
        %v1907 = vsel %vm1904, %v1905, %v1906
        %v1908 = vrot.slane %v1900, 2
        %v1909 = vsel %vm1904, %v1906, %v1908
        %v1910 = vrot.slane %v1901, 2
        %v1911 = vsel %vm1904, %v1908, %v1910
        %v1912 = vrot.slane %v1902, 2
        %v1913 = vsel %vm1904, %v1910, %v1912
        %v1914 = vrot.slane %v1903, 2
        %v1915 = vsel %vm1904, %v1912, %v1914
        %1921 = vst [vmem:[#allocation2 + $0x8] sm:$0xff] %v1907
        %1922 = vst [vmem:[#allocation2 + $0x18] sm:$0xff] %v1909
        %1923 = vst [vmem:[#allocation2 + $0x28] sm:$0xff] %v1911
        %1924 = vst [vmem:[#allocation2 + $0x38] sm:$0xff] %v1913
        %1925 = vst [vmem:[#allocation2 + $0x48] sm:$0xff] %v1915
        %v1926 = vld [vmem:[#allocation2] sm:$0xff]
        %v1927 = vld [vmem:[#allocation2 + $0x8] sm:$0xff]
        %v1928 = vld [vmem:[#allocation2 + $0x10] sm:$0xff]
        %v1929 = vld [vmem:[#allocation2 + $0x18] sm:$0xff]
        %v1930 = vld [vmem:[#allocation2 + $0x20] sm:$0xff]
        %v1931 = vld [vmem:[#allocation2 + $0x28] sm:$0xff]
        %v1932 = vld [vmem:[#allocation2 + $0x30] sm:$0xff]
        %v1933 = vld [vmem:[#allocation2 + $0x38] sm:$0xff]
        %v1934 = vld [vmem:[#allocation2 + $0x40] sm:$0xff]
        %v1935 = vld [vmem:[#allocation2 + $0x48] sm:$0xff]
        %s1936 = scalar_lea.vmem %s875, 512 [#allocation3]
        %v1937 = vld [vmem:[%s1936] sm:$0xff]
        %v1938 = vld [vmem:[%s1936 + $0x8] sm:$0xff]
        %v1939 = vld [vmem:[%s1936 + $0x10] sm:$0xff]
        %v1940 = vld [vmem:[%s1936 + $0x18] sm:$0xff]
        %v1941 = vld [vmem:[%s1936 + $0x20] sm:$0xff]
        %v1942 = vld [vmem:[%s1936 + $0x28] sm:$0xff]
        %v1943 = vld [vmem:[%s1936 + $0x30] sm:$0xff]
        %v1944 = vld [vmem:[%s1936 + $0x38] sm:$0xff]
        %v1945 = vld [vmem:[%s1936 + $0x40] sm:$0xff]
        %v1946 = vld [vmem:[%s1936 + $0x48] sm:$0xff]
        %v1947 = vld [vmem:[%s1936 + $0x50] sm:$0xff]
        %v1948 = vld [vmem:[%s1936 + $0x58] sm:$0xff]
        %v1949 = vld [vmem:[%s1936 + $0x60] sm:$0xff]
        %v1950 = vld [vmem:[%s1936 + $0x68] sm:$0xff]
        %v1951 = vld [vmem:[%s1936 + $0x70] sm:$0xff]
        %v1952 = vld [vmem:[%s1936 + $0x78] sm:$0xff]
        %v1953 = vld [vmem:[%s1936 + $0x80] sm:$0xff]
        %v1954 = vld [vmem:[%s1936 + $0x88] sm:$0xff]
        %v1955 = vld [vmem:[%s1936 + $0x90] sm:$0xff]
        %v1956 = vld [vmem:[%s1936 + $0x98] sm:$0xff]
        %v1957 = vld [vmem:[%s1936 + $0xa0] sm:$0xff]
        %v1958 = vld [vmem:[%s1936 + $0xa8] sm:$0xff]
        %v1959 = vld [vmem:[%s1936 + $0xb0] sm:$0xff]
        %v1960 = vld [vmem:[%s1936 + $0xb8] sm:$0xff]
        %v1961 = vld [vmem:[%s1936 + $0xc0] sm:$0xff]
        %v1962 = vld [vmem:[%s1936 + $0xc8] sm:$0xff]
        %v1963 = vld [vmem:[%s1936 + $0xd0] sm:$0xff]
        %v1964 = vld [vmem:[%s1936 + $0xd8] sm:$0xff]
        %v1965 = vld [vmem:[%s1936 + $0xe0] sm:$0xff]
        %v1966 = vld [vmem:[%s1936 + $0xe8] sm:$0xff]
        %v1967 = vld [vmem:[%s1936 + $0xf0] sm:$0xff]
        %v1968 = vld [vmem:[%s1936 + $0xf8] sm:$0xff]
        %v2001 = vunpack.c.l.b16 %v1937
        %v2002 = vunpack.c.h.b16 %v1937
        %v2003 = vunpack.c.l.b16 %v1938
        %v2004 = vunpack.c.h.b16 %v1938
        %v2005 = vunpack.c.l.b16 %v1939
        %v2006 = vunpack.c.h.b16 %v1939
        %v2007 = vunpack.c.l.b16 %v1940
        %v2008 = vunpack.c.h.b16 %v1940
        %v2009 = vunpack.c.l.b16 %v1941
        %v2010 = vunpack.c.h.b16 %v1941
        %v2011 = vunpack.c.l.b16 %v1942
        %v2012 = vunpack.c.h.b16 %v1942
        %v2013 = vunpack.c.l.b16 %v1943
        %v2014 = vunpack.c.h.b16 %v1943
        %v2015 = vunpack.c.l.b16 %v1944
        %v2016 = vunpack.c.h.b16 %v1944
        %v2017 = vunpack.c.l.b16 %v1945
        %v2018 = vunpack.c.h.b16 %v1945
        %v2019 = vunpack.c.l.b16 %v1946
        %v2020 = vunpack.c.h.b16 %v1946
        %v2021 = vunpack.c.l.b16 %v1947
        %v2022 = vunpack.c.h.b16 %v1947
        %v2023 = vunpack.c.l.b16 %v1948
        %v2024 = vunpack.c.h.b16 %v1948
        %v2025 = vunpack.c.l.b16 %v1949
        %v2026 = vunpack.c.h.b16 %v1949
        %v2027 = vunpack.c.l.b16 %v1950
        %v2028 = vunpack.c.h.b16 %v1950
        %v2029 = vunpack.c.l.b16 %v1951
        %v2030 = vunpack.c.h.b16 %v1951
        %v2031 = vunpack.c.l.b16 %v1952
        %v2032 = vunpack.c.h.b16 %v1952
        %v2033 = vunpack.c.l.b16 %v1953
        %v2034 = vunpack.c.h.b16 %v1953
        %v2035 = vunpack.c.l.b16 %v1954
        %v2036 = vunpack.c.h.b16 %v1954
        %v2037 = vunpack.c.l.b16 %v1955
        %v2038 = vunpack.c.h.b16 %v1955
        %v2039 = vunpack.c.l.b16 %v1956
        %v2040 = vunpack.c.h.b16 %v1956
        %v2041 = vunpack.c.l.b16 %v1957
        %v2042 = vunpack.c.h.b16 %v1957
        %v2043 = vunpack.c.l.b16 %v1958
        %v2044 = vunpack.c.h.b16 %v1958
        %v2045 = vunpack.c.l.b16 %v1959
        %v2046 = vunpack.c.h.b16 %v1959
        %v2047 = vunpack.c.l.b16 %v1960
        %v2048 = vunpack.c.h.b16 %v1960
        %v2049 = vunpack.c.l.b16 %v1961
        %v2050 = vunpack.c.h.b16 %v1961
        %v2051 = vunpack.c.l.b16 %v1962
        %v2052 = vunpack.c.h.b16 %v1962
        %v2053 = vunpack.c.l.b16 %v1963
        %v2054 = vunpack.c.h.b16 %v1963
        %v2055 = vunpack.c.l.b16 %v1964
        %v2056 = vunpack.c.h.b16 %v1964
        %v2057 = vunpack.c.l.b16 %v1965
        %v2058 = vunpack.c.h.b16 %v1965
        %v2059 = vunpack.c.l.b16 %v1966
        %v2060 = vunpack.c.h.b16 %v1966
        %v2061 = vunpack.c.l.b16 %v1967
        %v2062 = vunpack.c.h.b16 %v1967
        %v2063 = vunpack.c.l.b16 %v1968
        %v2064 = vunpack.c.h.b16 %v1968
        %v2065 = vpack.c.b16 %v2003, %v2001
        %v2066 = vpack.c.b16 %v2004, %v2002
        %v2067 = vpack.c.b16 %v2007, %v2005
        %v2068 = vpack.c.b16 %v2008, %v2006
        %v2069 = vpack.c.b16 %v2011, %v2009
        %v2070 = vpack.c.b16 %v2012, %v2010
        %v2071 = vpack.c.b16 %v2015, %v2013
        %v2072 = vpack.c.b16 %v2016, %v2014
        %v2073 = vpack.c.b16 %v2019, %v2017
        %v2074 = vpack.c.b16 %v2020, %v2018
        %v2075 = vpack.c.b16 %v2023, %v2021
        %v2076 = vpack.c.b16 %v2024, %v2022
        %v2077 = vpack.c.b16 %v2027, %v2025
        %v2078 = vpack.c.b16 %v2028, %v2026
        %v2079 = vpack.c.b16 %v2031, %v2029
        %v2080 = vpack.c.b16 %v2032, %v2030
        %v2081 = vpack.c.b16 %v2035, %v2033
        %v2082 = vpack.c.b16 %v2036, %v2034
        %v2083 = vpack.c.b16 %v2039, %v2037
        %v2084 = vpack.c.b16 %v2040, %v2038
        %v2085 = vpack.c.b16 %v2043, %v2041
        %v2086 = vpack.c.b16 %v2044, %v2042
        %v2087 = vpack.c.b16 %v2047, %v2045
        %v2088 = vpack.c.b16 %v2048, %v2046
        %v2089 = vpack.c.b16 %v2051, %v2049
        %v2090 = vpack.c.b16 %v2052, %v2050
        %v2091 = vpack.c.b16 %v2055, %v2053
        %v2092 = vpack.c.b16 %v2056, %v2054
        %v2093 = vpack.c.b16 %v2059, %v2057
        %v2094 = vpack.c.b16 %v2060, %v2058
        %v2095 = vpack.c.b16 %v2063, %v2061
        %v2096 = vpack.c.b16 %v2064, %v2062
        %2129 = vmatprep.subr.bf16.mxu0 %v2066
        %2130 = vmatpush1.bf16.msra.mxu0 %v2065
        %2131 = vmatprep.subr.bf16.mxu0 %v2068
        %2132 = vmatpush1.bf16.msra.mxu0 %v2067
        %2133 = vmatprep.subr.bf16.mxu0 %v2070
        %2134 = vmatpush1.bf16.msra.mxu0 %v2069
        %2135 = vmatprep.subr.bf16.mxu0 %v2072
        %2136 = vmatpush1.bf16.msra.mxu0 %v2071
        %2137 = vmatprep.subr.bf16.mxu0 %v2074
        %2138 = vmatpush1.bf16.msra.mxu0 %v2073
        %2139 = vmatprep.subr.bf16.mxu0 %v2076
        %2140 = vmatpush1.bf16.msra.mxu0 %v2075
        %2141 = vmatprep.subr.bf16.mxu0 %v2078
        %2142 = vmatpush1.bf16.msra.mxu0 %v2077
        %2143 = vmatprep.subr.bf16.mxu0 %v2080
        %2144 = vmatpush1.bf16.msra.mxu0 %v2079
        %2145 = vmatprep.subr.bf16.mxu0 %v2082
        %2146 = vmatpush1.bf16.msra.mxu0 %v2081
        %2147 = vmatprep.subr.bf16.mxu0 %v2084
        %2148 = vmatpush1.bf16.msra.mxu0 %v2083
        %2149 = vmatprep.subr.bf16.mxu0 %v2086
        %2150 = vmatpush1.bf16.msra.mxu0 %v2085
        %2151 = vmatprep.subr.bf16.mxu0 %v2088
        %2152 = vmatpush1.bf16.msra.mxu0 %v2087
        %2153 = vmatprep.subr.bf16.mxu0 %v2090
        %2154 = vmatpush1.bf16.msra.mxu0 %v2089
        %2155 = vmatprep.subr.bf16.mxu0 %v2092
        %2156 = vmatpush1.bf16.msra.mxu0 %v2091
        %2157 = vmatprep.subr.bf16.mxu0 %v2094
        %2158 = vmatpush1.bf16.msra.mxu0 %v2093
        %2159 = vmatprep.subr.bf16.mxu0 %v2096
        %2160 = vmatpush1.bf16.msra.mxu0 %v2095
        %2161 = vmatprep.mubr.bf16.mxu0 %v1927
        %2162 = vmatmul.mubr.bf16.gmra.mrb[0].mxu0 %v1926
        %v2163 = vpop.f32.mrb[0].mxu0
        %v2164 = vadd.f32 0.0, %v2163
        %v2165 = vpop.f32.mrb[0].mxu0
        %v2166 = vadd.f32 0.0, %v2165
        %v2167 = vpop.f32.mrb[0].mxu0
        %v2168 = vadd.f32 0.0, %v2167
        %v2169 = vpop.f32.mrb[0].mxu0
        %v2170 = vadd.f32 0.0, %v2169
        %2171 = vmatprep.mubr.bf16.mxu0 %v1929
        %2172 = vmatmul.mubr.bf16.gmra.mrb[0].mxu0 %v1928
        %v2173 = vpop.f32.mrb[0].mxu0
        %v2174 = vadd.f32 0.0, %v2173
        %v2175 = vpop.f32.mrb[0].mxu0
        %v2176 = vadd.f32 0.0, %v2175
        %v2177 = vpop.f32.mrb[0].mxu0
        %v2178 = vadd.f32 0.0, %v2177
        %v2179 = vpop.f32.mrb[0].mxu0
        %v2180 = vadd.f32 0.0, %v2179
        %2181 = vmatprep.mubr.bf16.mxu0 %v1931
        %2182 = vmatmul.mubr.bf16.gmra.mrb[0].mxu0 %v1930
        %v2183 = vpop.f32.mrb[0].mxu0
        %v2184 = vadd.f32 0.0, %v2183
        %v2185 = vpop.f32.mrb[0].mxu0
        %v2186 = vadd.f32 0.0, %v2185
        %v2187 = vpop.f32.mrb[0].mxu0
        %v2188 = vadd.f32 0.0, %v2187
        %v2189 = vpop.f32.mrb[0].mxu0
        %v2190 = vadd.f32 0.0, %v2189
        %2191 = vmatprep.mubr.bf16.mxu0 %v1933
        %2192 = vmatmul.mubr.bf16.gmra.mrb[0].mxu0 %v1932
        %v2193 = vpop.f32.mrb[0].mxu0
        %v2194 = vadd.f32 0.0, %v2193
        %v2195 = vpop.f32.mrb[0].mxu0
        %v2196 = vadd.f32 0.0, %v2195
        %v2197 = vpop.f32.mrb[0].mxu0
        %v2198 = vadd.f32 0.0, %v2197
        %v2199 = vpop.f32.mrb[0].mxu0
        %v2200 = vadd.f32 0.0, %v2199
        %2201 = vmatprep.mubr.bf16.mxu0 %v1935
        %2202 = vmatmul.mubr.bf16.gmra.mrb[0].mxu0 %v1934
        %v2203 = vpop.f32.mrb[0].mxu0
        %v2204 = vadd.f32 0.0, %v2203
        %v2205 = vpop.f32.mrb[0].mxu0
        %v2206 = vadd.f32 0.0, %v2205
        %v2207 = vpop.f32.mrb[0].mxu0
        %v2208 = vadd.f32 0.0, %v2207
        %v2209 = vpop.f32.mrb[0].mxu0
        %v2210 = vadd.f32 0.0, %v2209
        %2211 = vdwg.mxu0
        %v2212 = vadd.f32 %v1714, %v2164
        %v2213 = vadd.f32 %v1716, %v2166
        %v2214 = vadd.f32 %v1718, %v2168
        %v2215 = vadd.f32 %v1720, %v2170
        %v2216 = vadd.f32 %v1724, %v2174
        %v2217 = vadd.f32 %v1726, %v2176
        %v2218 = vadd.f32 %v1728, %v2178
        %v2219 = vadd.f32 %v1730, %v2180
        %v2220 = vadd.f32 %v1734, %v2184
        %v2221 = vadd.f32 %v1736, %v2186
        %v2222 = vadd.f32 %v1738, %v2188
        %v2223 = vadd.f32 %v1740, %v2190
        %v2224 = vadd.f32 %v1744, %v2194
        %v2225 = vadd.f32 %v1746, %v2196
        %v2226 = vadd.f32 %v1748, %v2198
        %v2227 = vadd.f32 %v1750, %v2200
        %v2228 = vadd.f32 %v1754, %v2204
        %v2229 = vadd.f32 %v1756, %v2206
        %v2230 = vadd.f32 %v1758, %v2208
        %v2231 = vadd.f32 %v1760, %v2210
        %v2232 = vld [vmem:[%s914 + $0x8] sm:$0xc]
        %v2233 = vld [vmem:[%s914 + $0xc] sm:$0xf]
        %v2234 = vld [vmem:[%s914 + $0x10] sm:$0xf]
        %v2235 = vld [vmem:[%s914 + $0x14] sm:$0xf]
        %v2236 = vld [vmem:[%s914 + $0x18] sm:$0xf]
        %v2237 = vld [vmem:[%s914 + $0x1c] sm:$0xf]
        %v2238 = vld [vmem:[%s914 + $0x20] sm:$0xf]
        %v2239 = vld [vmem:[%s914 + $0x24] sm:$0xf]
        %v2240 = vld [vmem:[%s914 + $0x28] sm:$0xf]
        %v2241 = vld [vmem:[%s914 + $0x2c] sm:$0xf]
        %v2242 = vld [vmem:[%s914 + $0x30] sm:$0x3]
        %v2254 = vunpack.c.l.b16 %v2232
        %v2255 = vunpack.c.l.b16 %v2233
        %v2256 = vunpack.c.l.b16 %v2234
        %v2257 = vunpack.c.l.b16 %v2235
        %v2258 = vunpack.c.l.b16 %v2236
        %v2259 = vunpack.c.l.b16 %v2237
        %v2260 = vunpack.c.l.b16 %v2238
        %v2261 = vunpack.c.l.b16 %v2239
        %v2262 = vunpack.c.l.b16 %v2240
        %v2263 = vunpack.c.l.b16 %v2241
        %v2264 = vunpack.c.l.b16 %v2242
        %v2265 = vpack.c.b16 %v2255, %v2254
        %v2266 = vpack.c.b16 %v2257, %v2256
        %v2267 = vpack.c.b16 %v2259, %v2258
        %v2268 = vpack.c.b16 %v2261, %v2260
        %v2269 = vpack.c.b16 %v2263, %v2262
        %v2270 = vpack.c.b16 %v2264, %v2264
        %v2271 = vrot.slane %v2265, 2
        %v2272 = vrot.slane %v2266, 2
        %v2273 = vsel %vm1904, %v2271, %v2272
        %v2274 = vrot.slane %v2267, 2
        %v2275 = vsel %vm1904, %v2272, %v2274
        %v2276 = vrot.slane %v2268, 2
        %v2277 = vsel %vm1904, %v2274, %v2276
        %v2278 = vrot.slane %v2269, 2
        %v2279 = vsel %vm1904, %v2276, %v2278
        %v2280 = vrot.slane %v2270, 2
        %v2281 = vsel %vm1904, %v2278, %v2280
        %2287 = vst [vmem:[#allocation2] sm:$0xff] %v2273
        %2288 = vst [vmem:[#allocation2 + $0x10] sm:$0xff] %v2275
        %2289 = vst [vmem:[#allocation2 + $0x20] sm:$0xff] %v2277
        %2290 = vst [vmem:[#allocation2 + $0x30] sm:$0xff] %v2279
        %2291 = vst [vmem:[#allocation2 + $0x40] sm:$0xff] %v2281
        %v2292 = vld [vmem:[%s914 + $0x8] sm:$0xc]
        %v2293 = vld [vmem:[%s914 + $0xc] sm:$0xf]
        %v2294 = vld [vmem:[%s914 + $0x10] sm:$0xf]
        %v2295 = vld [vmem:[%s914 + $0x14] sm:$0xf]
        %v2296 = vld [vmem:[%s914 + $0x18] sm:$0xf]
        %v2297 = vld [vmem:[%s914 + $0x1c] sm:$0xf]
        %v2298 = vld [vmem:[%s914 + $0x20] sm:$0xf]
        %v2299 = vld [vmem:[%s914 + $0x24] sm:$0xf]
        %v2300 = vld [vmem:[%s914 + $0x28] sm:$0xf]
        %v2301 = vld [vmem:[%s914 + $0x2c] sm:$0xf]
        %v2302 = vld [vmem:[%s914 + $0x30] sm:$0x7]
        %v2314 = vunpack.c.l.b16 %v2292
        %v2315 = vunpack.c.l.b16 %v2293
        %v2316 = vunpack.c.l.b16 %v2294
        %v2317 = vunpack.c.l.b16 %v2295
        %v2318 = vunpack.c.l.b16 %v2296
        %v2319 = vunpack.c.l.b16 %v2297
        %v2320 = vunpack.c.l.b16 %v2298
        %v2321 = vunpack.c.l.b16 %v2299
        %v2322 = vunpack.c.l.b16 %v2300
        %v2323 = vunpack.c.l.b16 %v2301
        %v2324 = vunpack.c.l.b16 %v2302
        %v2325 = vpack.c.b16 %v2315, %v2314
        %v2326 = vpack.c.b16 %v2317, %v2316
        %v2327 = vpack.c.b16 %v2319, %v2318
        %v2328 = vpack.c.b16 %v2321, %v2320
        %v2329 = vpack.c.b16 %v2323, %v2322
        %v2330 = vpack.c.b16 %v2324, %v2324
        %vm2331 = vsmask.f32 5376
        %v2333 = vshrl.u32 %v2325, 16
        %v2335 = vrot.slane %v2333, 2
        %v2336 = vshll.u32 %v2325, 16
        %v2338 = vrot.slane %v2336, 3
        %v2339 = vor.u32 %v2335, %v2338
        %v2341 = vshrl.u32 %v2326, 16
        %v2343 = vrot.slane %v2341, 2
        %v2344 = vshll.u32 %v2326, 16
        %v2346 = vrot.slane %v2344, 3
        %v2347 = vor.u32 %v2343, %v2346
        %v2348 = vsel %vm2331, %v2339, %v2347
        %v2350 = vshrl.u32 %v2327, 16
        %v2352 = vrot.slane %v2350, 2
        %v2353 = vshll.u32 %v2327, 16
        %v2355 = vrot.slane %v2353, 3
        %v2356 = vor.u32 %v2352, %v2355
        %v2357 = vsel %vm2331, %v2347, %v2356
        %v2359 = vshrl.u32 %v2328, 16
        %v2361 = vrot.slane %v2359, 2
        %v2362 = vshll.u32 %v2328, 16
        %v2364 = vrot.slane %v2362, 3
        %v2365 = vor.u32 %v2361, %v2364
        %v2366 = vsel %vm2331, %v2356, %v2365
        %v2368 = vshrl.u32 %v2329, 16
        %v2370 = vrot.slane %v2368, 2
        %v2371 = vshll.u32 %v2329, 16
        %v2373 = vrot.slane %v2371, 3
        %v2374 = vor.u32 %v2370, %v2373
        %v2375 = vsel %vm2331, %v2365, %v2374
        %v2377 = vshrl.u32 %v2330, 16
        %v2379 = vrot.slane %v2377, 2
        %v2380 = vshll.u32 %v2330, 16
        %v2382 = vrot.slane %v2380, 3
        %v2383 = vor.u32 %v2379, %v2382
        %v2384 = vsel %vm2331, %v2374, %v2383
        %2390 = vst [vmem:[#allocation2 + $0x8] sm:$0xff] %v2348
        %2391 = vst [vmem:[#allocation2 + $0x18] sm:$0xff] %v2357
        %2392 = vst [vmem:[#allocation2 + $0x28] sm:$0xff] %v2366
        %2393 = vst [vmem:[#allocation2 + $0x38] sm:$0xff] %v2375
        %2394 = vst [vmem:[#allocation2 + $0x48] sm:$0xff] %v2384
        %v2395 = vld [vmem:[#allocation2] sm:$0xff]
        %v2396 = vld [vmem:[#allocation2 + $0x8] sm:$0xff]
        %v2397 = vld [vmem:[#allocation2 + $0x10] sm:$0xff]
        %v2398 = vld [vmem:[#allocation2 + $0x18] sm:$0xff]
        %v2399 = vld [vmem:[#allocation2 + $0x20] sm:$0xff]
        %v2400 = vld [vmem:[#allocation2 + $0x28] sm:$0xff]
        %v2401 = vld [vmem:[#allocation2 + $0x30] sm:$0xff]
        %v2402 = vld [vmem:[#allocation2 + $0x38] sm:$0xff]
        %v2403 = vld [vmem:[#allocation2 + $0x40] sm:$0xff]
        %v2404 = vld [vmem:[#allocation2 + $0x48] sm:$0xff]
        %s2405 = scalar_lea.vmem %s875, 768 [#allocation3]
        %v2406 = vld [vmem:[%s2405] sm:$0xff]
        %v2407 = vld [vmem:[%s2405 + $0x8] sm:$0xff]
        %v2408 = vld [vmem:[%s2405 + $0x10] sm:$0xff]
        %v2409 = vld [vmem:[%s2405 + $0x18] sm:$0xff]
        %v2410 = vld [vmem:[%s2405 + $0x20] sm:$0xff]
        %v2411 = vld [vmem:[%s2405 + $0x28] sm:$0xff]
        %v2412 = vld [vmem:[%s2405 + $0x30] sm:$0xff]
        %v2413 = vld [vmem:[%s2405 + $0x38] sm:$0xff]
        %v2414 = vld [vmem:[%s2405 + $0x40] sm:$0xff]
        %v2415 = vld [vmem:[%s2405 + $0x48] sm:$0xff]
        %v2416 = vld [vmem:[%s2405 + $0x50] sm:$0xff]
        %v2417 = vld [vmem:[%s2405 + $0x58] sm:$0xff]
        %v2418 = vld [vmem:[%s2405 + $0x60] sm:$0xff]
        %v2419 = vld [vmem:[%s2405 + $0x68] sm:$0xff]
        %v2420 = vld [vmem:[%s2405 + $0x70] sm:$0xff]
        %v2421 = vld [vmem:[%s2405 + $0x78] sm:$0xff]
        %v2422 = vld [vmem:[%s2405 + $0x80] sm:$0xff]
        %v2423 = vld [vmem:[%s2405 + $0x88] sm:$0xff]
        %v2424 = vld [vmem:[%s2405 + $0x90] sm:$0xff]
        %v2425 = vld [vmem:[%s2405 + $0x98] sm:$0xff]
        %v2426 = vld [vmem:[%s2405 + $0xa0] sm:$0xff]
        %v2427 = vld [vmem:[%s2405 + $0xa8] sm:$0xff]
        %v2428 = vld [vmem:[%s2405 + $0xb0] sm:$0xff]
        %v2429 = vld [vmem:[%s2405 + $0xb8] sm:$0xff]
        %v2430 = vld [vmem:[%s2405 + $0xc0] sm:$0xff]
        %v2431 = vld [vmem:[%s2405 + $0xc8] sm:$0xff]
        %v2432 = vld [vmem:[%s2405 + $0xd0] sm:$0xff]
        %v2433 = vld [vmem:[%s2405 + $0xd8] sm:$0xff]
        %v2434 = vld [vmem:[%s2405 + $0xe0] sm:$0xff]
        %v2435 = vld [vmem:[%s2405 + $0xe8] sm:$0xff]
        %v2436 = vld [vmem:[%s2405 + $0xf0] sm:$0xff]
        %v2437 = vld [vmem:[%s2405 + $0xf8] sm:$0xff]
        %v2470 = vunpack.c.l.b16 %v2406
        %v2471 = vunpack.c.h.b16 %v2406
        %v2472 = vunpack.c.l.b16 %v2407
        %v2473 = vunpack.c.h.b16 %v2407
        %v2474 = vunpack.c.l.b16 %v2408
        %v2475 = vunpack.c.h.b16 %v2408
        %v2476 = vunpack.c.l.b16 %v2409
        %v2477 = vunpack.c.h.b16 %v2409
        %v2478 = vunpack.c.l.b16 %v2410
        %v2479 = vunpack.c.h.b16 %v2410
        %v2480 = vunpack.c.l.b16 %v2411
        %v2481 = vunpack.c.h.b16 %v2411
        %v2482 = vunpack.c.l.b16 %v2412
        %v2483 = vunpack.c.h.b16 %v2412
        %v2484 = vunpack.c.l.b16 %v2413
        %v2485 = vunpack.c.h.b16 %v2413
        %v2486 = vunpack.c.l.b16 %v2414
        %v2487 = vunpack.c.h.b16 %v2414
        %v2488 = vunpack.c.l.b16 %v2415
        %v2489 = vunpack.c.h.b16 %v2415
        %v2490 = vunpack.c.l.b16 %v2416
        %v2491 = vunpack.c.h.b16 %v2416
        %v2492 = vunpack.c.l.b16 %v2417
        %v2493 = vunpack.c.h.b16 %v2417
        %v2494 = vunpack.c.l.b16 %v2418
        %v2495 = vunpack.c.h.b16 %v2418
        %v2496 = vunpack.c.l.b16 %v2419
        %v2497 = vunpack.c.h.b16 %v2419
        %v2498 = vunpack.c.l.b16 %v2420
        %v2499 = vunpack.c.h.b16 %v2420
        %v2500 = vunpack.c.l.b16 %v2421
        %v2501 = vunpack.c.h.b16 %v2421
        %v2502 = vunpack.c.l.b16 %v2422
        %v2503 = vunpack.c.h.b16 %v2422
        %v2504 = vunpack.c.l.b16 %v2423
        %v2505 = vunpack.c.h.b16 %v2423
        %v2506 = vunpack.c.l.b16 %v2424
        %v2507 = vunpack.c.h.b16 %v2424
        %v2508 = vunpack.c.l.b16 %v2425
        %v2509 = vunpack.c.h.b16 %v2425
        %v2510 = vunpack.c.l.b16 %v2426
        %v2511 = vunpack.c.h.b16 %v2426
        %v2512 = vunpack.c.l.b16 %v2427
        %v2513 = vunpack.c.h.b16 %v2427
        %v2514 = vunpack.c.l.b16 %v2428
        %v2515 = vunpack.c.h.b16 %v2428
        %v2516 = vunpack.c.l.b16 %v2429
        %v2517 = vunpack.c.h.b16 %v2429
        %v2518 = vunpack.c.l.b16 %v2430
        %v2519 = vunpack.c.h.b16 %v2430
        %v2520 = vunpack.c.l.b16 %v2431
        %v2521 = vunpack.c.h.b16 %v2431
        %v2522 = vunpack.c.l.b16 %v2432
        %v2523 = vunpack.c.h.b16 %v2432
        %v2524 = vunpack.c.l.b16 %v2433
        %v2525 = vunpack.c.h.b16 %v2433
        %v2526 = vunpack.c.l.b16 %v2434
        %v2527 = vunpack.c.h.b16 %v2434
        %v2528 = vunpack.c.l.b16 %v2435
        %v2529 = vunpack.c.h.b16 %v2435
        %v2530 = vunpack.c.l.b16 %v2436
        %v2531 = vunpack.c.h.b16 %v2436
        %v2532 = vunpack.c.l.b16 %v2437
        %v2533 = vunpack.c.h.b16 %v2437
        %v2534 = vpack.c.b16 %v2472, %v2470
        %v2535 = vpack.c.b16 %v2473, %v2471
        %v2536 = vpack.c.b16 %v2476, %v2474
        %v2537 = vpack.c.b16 %v2477, %v2475
        %v2538 = vpack.c.b16 %v2480, %v2478
        %v2539 = vpack.c.b16 %v2481, %v2479
        %v2540 = vpack.c.b16 %v2484, %v2482
        %v2541 = vpack.c.b16 %v2485, %v2483
        %v2542 = vpack.c.b16 %v2488, %v2486
        %v2543 = vpack.c.b16 %v2489, %v2487
        %v2544 = vpack.c.b16 %v2492, %v2490
        %v2545 = vpack.c.b16 %v2493, %v2491
        %v2546 = vpack.c.b16 %v2496, %v2494
        %v2547 = vpack.c.b16 %v2497, %v2495
        %v2548 = vpack.c.b16 %v2500, %v2498
        %v2549 = vpack.c.b16 %v2501, %v2499
        %v2550 = vpack.c.b16 %v2504, %v2502
        %v2551 = vpack.c.b16 %v2505, %v2503
        %v2552 = vpack.c.b16 %v2508, %v2506
        %v2553 = vpack.c.b16 %v2509, %v2507
        %v2554 = vpack.c.b16 %v2512, %v2510
        %v2555 = vpack.c.b16 %v2513, %v2511
        %v2556 = vpack.c.b16 %v2516, %v2514
        %v2557 = vpack.c.b16 %v2517, %v2515
        %v2558 = vpack.c.b16 %v2520, %v2518
        %v2559 = vpack.c.b16 %v2521, %v2519
        %v2560 = vpack.c.b16 %v2524, %v2522
        %v2561 = vpack.c.b16 %v2525, %v2523
        %v2562 = vpack.c.b16 %v2528, %v2526
        %v2563 = vpack.c.b16 %v2529, %v2527
        %v2564 = vpack.c.b16 %v2532, %v2530
        %v2565 = vpack.c.b16 %v2533, %v2531
        %2598 = vmatprep.subr.bf16.mxu0 %v2535
        %2599 = vmatpush1.bf16.msra.mxu0 %v2534
        %2600 = vmatprep.subr.bf16.mxu0 %v2537
        %2601 = vmatpush1.bf16.msra.mxu0 %v2536
        %2602 = vmatprep.subr.bf16.mxu0 %v2539
        %2603 = vmatpush1.bf16.msra.mxu0 %v2538
        %2604 = vmatprep.subr.bf16.mxu0 %v2541
        %2605 = vmatpush1.bf16.msra.mxu0 %v2540
        %2606 = vmatprep.subr.bf16.mxu0 %v2543
        %2607 = vmatpush1.bf16.msra.mxu0 %v2542
        %2608 = vmatprep.subr.bf16.mxu0 %v2545
        %2609 = vmatpush1.bf16.msra.mxu0 %v2544
        %2610 = vmatprep.subr.bf16.mxu0 %v2547
        %2611 = vmatpush1.bf16.msra.mxu0 %v2546
        %2612 = vmatprep.subr.bf16.mxu0 %v2549
        %2613 = vmatpush1.bf16.msra.mxu0 %v2548
        %2614 = vmatprep.subr.bf16.mxu0 %v2551
        %2615 = vmatpush1.bf16.msra.mxu0 %v2550
        %2616 = vmatprep.subr.bf16.mxu0 %v2553
        %2617 = vmatpush1.bf16.msra.mxu0 %v2552
        %2618 = vmatprep.subr.bf16.mxu0 %v2555
        %2619 = vmatpush1.bf16.msra.mxu0 %v2554
        %2620 = vmatprep.subr.bf16.mxu0 %v2557
        %2621 = vmatpush1.bf16.msra.mxu0 %v2556
        %2622 = vmatprep.subr.bf16.mxu0 %v2559
        %2623 = vmatpush1.bf16.msra.mxu0 %v2558
        %2624 = vmatprep.subr.bf16.mxu0 %v2561
        %2625 = vmatpush1.bf16.msra.mxu0 %v2560
        %2626 = vmatprep.subr.bf16.mxu0 %v2563
        %2627 = vmatpush1.bf16.msra.mxu0 %v2562
        %2628 = vmatprep.subr.bf16.mxu0 %v2565
        %2629 = vmatpush1.bf16.msra.mxu0 %v2564
        %2630 = vmatprep.mubr.bf16.mxu0 %v2396
        %2631 = vmatmul.mubr.bf16.gmra.mrb[0].mxu0 %v2395
        %v2632 = vpop.f32.mrb[0].mxu0
        %v2633 = vadd.f32 0.0, %v2632
        %v2634 = vpop.f32.mrb[0].mxu0
        %v2635 = vadd.f32 0.0, %v2634
        %v2636 = vpop.f32.mrb[0].mxu0
        %v2637 = vadd.f32 0.0, %v2636
        %v2638 = vpop.f32.mrb[0].mxu0
        %v2639 = vadd.f32 0.0, %v2638
        %2640 = vmatprep.mubr.bf16.mxu0 %v2398
        %2641 = vmatmul.mubr.bf16.gmra.mrb[0].mxu0 %v2397
        %v2642 = vpop.f32.mrb[0].mxu0
        %v2643 = vadd.f32 0.0, %v2642
        %v2644 = vpop.f32.mrb[0].mxu0
        %v2645 = vadd.f32 0.0, %v2644
        %v2646 = vpop.f32.mrb[0].mxu0
        %v2647 = vadd.f32 0.0, %v2646
        %v2648 = vpop.f32.mrb[0].mxu0
        %v2649 = vadd.f32 0.0, %v2648
        %2650 = vmatprep.mubr.bf16.mxu0 %v2400
        %2651 = vmatmul.mubr.bf16.gmra.mrb[0].mxu0 %v2399
        %v2652 = vpop.f32.mrb[0].mxu0
        %v2653 = vadd.f32 0.0, %v2652
        %v2654 = vpop.f32.mrb[0].mxu0
        %v2655 = vadd.f32 0.0, %v2654
        %v2656 = vpop.f32.mrb[0].mxu0
        %v2657 = vadd.f32 0.0, %v2656
        %v2658 = vpop.f32.mrb[0].mxu0
        %v2659 = vadd.f32 0.0, %v2658
        %2660 = vmatprep.mubr.bf16.mxu0 %v2402
        %2661 = vmatmul.mubr.bf16.gmra.mrb[0].mxu0 %v2401
        %v2662 = vpop.f32.mrb[0].mxu0
        %v2663 = vadd.f32 0.0, %v2662
        %v2664 = vpop.f32.mrb[0].mxu0
        %v2665 = vadd.f32 0.0, %v2664
        %v2666 = vpop.f32.mrb[0].mxu0
        %v2667 = vadd.f32 0.0, %v2666
        %v2668 = vpop.f32.mrb[0].mxu0
        %v2669 = vadd.f32 0.0, %v2668
        %2670 = vmatprep.mubr.bf16.mxu0 %v2404
        %2671 = vmatmul.mubr.bf16.gmra.mrb[0].mxu0 %v2403
        %v2672 = vpop.f32.mrb[0].mxu0
        %v2673 = vadd.f32 0.0, %v2672
        %v2674 = vpop.f32.mrb[0].mxu0
        %v2675 = vadd.f32 0.0, %v2674
        %v2676 = vpop.f32.mrb[0].mxu0
        %v2677 = vadd.f32 0.0, %v2676
        %v2678 = vpop.f32.mrb[0].mxu0
        %v2679 = vadd.f32 0.0, %v2678
        %2680 = vdwg.mxu0
        %v2681 = vadd.f32 %v2212, %v2633
        %v2682 = vadd.f32 %v2213, %v2635
        %v2683 = vadd.f32 %v2214, %v2637
        %v2684 = vadd.f32 %v2215, %v2639
        %v2685 = vadd.f32 %v2216, %v2643
        %v2686 = vadd.f32 %v2217, %v2645
        %v2687 = vadd.f32 %v2218, %v2647
        %v2688 = vadd.f32 %v2219, %v2649
        %v2689 = vadd.f32 %v2220, %v2653
        %v2690 = vadd.f32 %v2221, %v2655
        %v2691 = vadd.f32 %v2222, %v2657
        %v2692 = vadd.f32 %v2223, %v2659
        %v2693 = vadd.f32 %v2224, %v2663
        %v2694 = vadd.f32 %v2225, %v2665
        %v2695 = vadd.f32 %v2226, %v2667
        %v2696 = vadd.f32 %v2227, %v2669
        %v2697 = vadd.f32 %v2228, %v2673
        %v2698 = vadd.f32 %v2229, %v2675
        %v2699 = vadd.f32 %v2230, %v2677
        %v2700 = vadd.f32 %v2231, %v2679
        %v2701 = vld [vmem:[%s914 + $0x8] sm:$0x8]
        %v2702 = vld [vmem:[%s914 + $0xc] sm:$0xf]
        %v2703 = vld [vmem:[%s914 + $0x10] sm:$0xf]
        %v2704 = vld [vmem:[%s914 + $0x14] sm:$0xf]
        %v2705 = vld [vmem:[%s914 + $0x18] sm:$0xf]
        %v2706 = vld [vmem:[%s914 + $0x1c] sm:$0xf]
        %v2707 = vld [vmem:[%s914 + $0x20] sm:$0xf]
        %v2708 = vld [vmem:[%s914 + $0x24] sm:$0xf]
        %v2709 = vld [vmem:[%s914 + $0x28] sm:$0xf]
        %v2710 = vld [vmem:[%s914 + $0x2c] sm:$0xf]
        %v2711 = vld [vmem:[%s914 + $0x30] sm:$0x7]
        %v2723 = vunpack.c.l.b16 %v2701
        %v2724 = vunpack.c.l.b16 %v2702
        %v2725 = vunpack.c.l.b16 %v2703
        %v2726 = vunpack.c.l.b16 %v2704
        %v2727 = vunpack.c.l.b16 %v2705
        %v2728 = vunpack.c.l.b16 %v2706
        %v2729 = vunpack.c.l.b16 %v2707
        %v2730 = vunpack.c.l.b16 %v2708
        %v2731 = vunpack.c.l.b16 %v2709
        %v2732 = vunpack.c.l.b16 %v2710
        %v2733 = vunpack.c.l.b16 %v2711
        %v2734 = vpack.c.b16 %v2724, %v2723
        %v2735 = vpack.c.b16 %v2726, %v2725
        %v2736 = vpack.c.b16 %v2728, %v2727
        %v2737 = vpack.c.b16 %v2730, %v2729
        %v2738 = vpack.c.b16 %v2732, %v2731
        %v2739 = vpack.c.b16 %v2733, %v2733
        %vm2740 = vcmask 1044480
        %v2741 = vrot.slane %v2734, 3
        %v2742 = vrot.slane %v2735, 3
        %v2743 = vsel %vm2740, %v2741, %v2742
        %v2744 = vrot.slane %v2736, 3
        %v2745 = vsel %vm2740, %v2742, %v2744
        %v2746 = vrot.slane %v2737, 3
        %v2747 = vsel %vm2740, %v2744, %v2746
        %v2748 = vrot.slane %v2738, 3
        %v2749 = vsel %vm2740, %v2746, %v2748
        %v2750 = vrot.slane %v2739, 3
        %v2751 = vsel %vm2740, %v2748, %v2750
        %2757 = vst [vmem:[#allocation2] sm:$0xff] %v2743
        %2758 = vst [vmem:[#allocation2 + $0x10] sm:$0xff] %v2745
        %2759 = vst [vmem:[#allocation2 + $0x20] sm:$0xff] %v2747
        %2760 = vst [vmem:[#allocation2 + $0x30] sm:$0xff] %v2749
        %2761 = vst [vmem:[#allocation2 + $0x40] sm:$0xff] %v2751
        %2762 = vst [vmem:[#allocation2 + $0x8] sm:$0xff] 0
        %2763 = vst [vmem:[#allocation2 + $0x18] sm:$0xff] 0
        %2764 = vst [vmem:[#allocation2 + $0x28] sm:$0xff] 0
        %2765 = vst [vmem:[#allocation2 + $0x38] sm:$0xff] 0
        %2766 = vst [vmem:[#allocation2 + $0x48] sm:$0xff] 0
        %v2767 = vld [vmem:[#allocation2] sm:$0xff]
        %v2768 = vld [vmem:[#allocation2 + $0x8] sm:$0xff]
        %v2769 = vld [vmem:[#allocation2 + $0x10] sm:$0xff]
        %v2770 = vld [vmem:[#allocation2 + $0x18] sm:$0xff]
        %v2771 = vld [vmem:[#allocation2 + $0x20] sm:$0xff]
        %v2772 = vld [vmem:[#allocation2 + $0x28] sm:$0xff]
        %v2773 = vld [vmem:[#allocation2 + $0x30] sm:$0xff]
        %v2774 = vld [vmem:[#allocation2 + $0x38] sm:$0xff]
        %v2775 = vld [vmem:[#allocation2 + $0x40] sm:$0xff]
        %v2776 = vld [vmem:[#allocation2 + $0x48] sm:$0xff]
        %s2777 = scalar_lea.vmem %s875, 1024 [#allocation3]
        %v2778 = vld [vmem:[%s2777] sm:$0xff]
        %v2779 = vld [vmem:[%s2777 + $0x8] sm:$0xff]
        %v2780 = vld [vmem:[%s2777 + $0x10] sm:$0xff]
        %v2781 = vld [vmem:[%s2777 + $0x18] sm:$0xff]
        %v2782 = vld [vmem:[%s2777 + $0x20] sm:$0xff]
        %v2783 = vld [vmem:[%s2777 + $0x28] sm:$0xff]
        %v2784 = vld [vmem:[%s2777 + $0x30] sm:$0xff]
        %v2785 = vld [vmem:[%s2777 + $0x38] sm:$0xff]
        %v2786 = vld [vmem:[%s2777 + $0x40] sm:$0xff]
        %v2787 = vld [vmem:[%s2777 + $0x48] sm:$0xff]
        %v2788 = vld [vmem:[%s2777 + $0x50] sm:$0xff]
        %v2789 = vld [vmem:[%s2777 + $0x58] sm:$0xff]
        %v2790 = vld [vmem:[%s2777 + $0x60] sm:$0xff]
        %v2791 = vld [vmem:[%s2777 + $0x68] sm:$0xff]
        %v2792 = vld [vmem:[%s2777 + $0x70] sm:$0xff]
        %v2793 = vld [vmem:[%s2777 + $0x78] sm:$0xff]
        %v2794 = vld [vmem:[%s2777 + $0x80] sm:$0xff]
        %v2795 = vld [vmem:[%s2777 + $0x88] sm:$0xff]
        %v2796 = vld [vmem:[%s2777 + $0x90] sm:$0xff]
        %v2797 = vld [vmem:[%s2777 + $0x98] sm:$0xff]
        %v2798 = vld [vmem:[%s2777 + $0xa0] sm:$0xff]
        %v2799 = vld [vmem:[%s2777 + $0xa8] sm:$0xff]
        %v2800 = vld [vmem:[%s2777 + $0xb0] sm:$0xff]
        %v2801 = vld [vmem:[%s2777 + $0xb8] sm:$0xff]
        %v2802 = vld [vmem:[%s2777 + $0xc0] sm:$0xff]
        %v2803 = vld [vmem:[%s2777 + $0xc8] sm:$0xff]
        %v2804 = vld [vmem:[%s2777 + $0xd0] sm:$0xff]
        %v2805 = vld [vmem:[%s2777 + $0xd8] sm:$0xff]
        %v2806 = vld [vmem:[%s2777 + $0xe0] sm:$0xff]
        %v2807 = vld [vmem:[%s2777 + $0xe8] sm:$0xff]
        %v2808 = vld [vmem:[%s2777 + $0xf0] sm:$0xff]
        %v2809 = vld [vmem:[%s2777 + $0xf8] sm:$0xff]
        %v2842 = vunpack.c.l.b16 %v2778
        %v2843 = vunpack.c.h.b16 %v2778
        %v2844 = vunpack.c.l.b16 %v2779
        %v2845 = vunpack.c.h.b16 %v2779
        %v2846 = vunpack.c.l.b16 %v2780
        %v2847 = vunpack.c.h.b16 %v2780
        %v2848 = vunpack.c.l.b16 %v2781
        %v2849 = vunpack.c.h.b16 %v2781
        %v2850 = vunpack.c.l.b16 %v2782
        %v2851 = vunpack.c.h.b16 %v2782
        %v2852 = vunpack.c.l.b16 %v2783
        %v2853 = vunpack.c.h.b16 %v2783
        %v2854 = vunpack.c.l.b16 %v2784
        %v2855 = vunpack.c.h.b16 %v2784
        %v2856 = vunpack.c.l.b16 %v2785
        %v2857 = vunpack.c.h.b16 %v2785
        %v2858 = vunpack.c.l.b16 %v2786
        %v2859 = vunpack.c.h.b16 %v2786
        %v2860 = vunpack.c.l.b16 %v2787
        %v2861 = vunpack.c.h.b16 %v2787
        %v2862 = vunpack.c.l.b16 %v2788
        %v2863 = vunpack.c.h.b16 %v2788
        %v2864 = vunpack.c.l.b16 %v2789
        %v2865 = vunpack.c.h.b16 %v2789
        %v2866 = vunpack.c.l.b16 %v2790
        %v2867 = vunpack.c.h.b16 %v2790
        %v2868 = vunpack.c.l.b16 %v2791
        %v2869 = vunpack.c.h.b16 %v2791
        %v2870 = vunpack.c.l.b16 %v2792
        %v2871 = vunpack.c.h.b16 %v2792
        %v2872 = vunpack.c.l.b16 %v2793
        %v2873 = vunpack.c.h.b16 %v2793
        %v2874 = vunpack.c.l.b16 %v2794
        %v2875 = vunpack.c.h.b16 %v2794
        %v2876 = vunpack.c.l.b16 %v2795
        %v2877 = vunpack.c.h.b16 %v2795
        %v2878 = vunpack.c.l.b16 %v2796
        %v2879 = vunpack.c.h.b16 %v2796
        %v2880 = vunpack.c.l.b16 %v2797
        %v2881 = vunpack.c.h.b16 %v2797
        %v2882 = vunpack.c.l.b16 %v2798
        %v2883 = vunpack.c.h.b16 %v2798
        %v2884 = vunpack.c.l.b16 %v2799
        %v2885 = vunpack.c.h.b16 %v2799
        %v2886 = vunpack.c.l.b16 %v2800
        %v2887 = vunpack.c.h.b16 %v2800
        %v2888 = vunpack.c.l.b16 %v2801
        %v2889 = vunpack.c.h.b16 %v2801
        %v2890 = vunpack.c.l.b16 %v2802
        %v2891 = vunpack.c.h.b16 %v2802
        %v2892 = vunpack.c.l.b16 %v2803
        %v2893 = vunpack.c.h.b16 %v2803
        %v2894 = vunpack.c.l.b16 %v2804
        %v2895 = vunpack.c.h.b16 %v2804
        %v2896 = vunpack.c.l.b16 %v2805
        %v2897 = vunpack.c.h.b16 %v2805
        %v2898 = vunpack.c.l.b16 %v2806
        %v2899 = vunpack.c.h.b16 %v2806
        %v2900 = vunpack.c.l.b16 %v2807
        %v2901 = vunpack.c.h.b16 %v2807
        %v2902 = vunpack.c.l.b16 %v2808
        %v2903 = vunpack.c.h.b16 %v2808
        %v2904 = vunpack.c.l.b16 %v2809
        %v2905 = vunpack.c.h.b16 %v2809
        %v2906 = vpack.c.b16 %v2844, %v2842
        %v2907 = vpack.c.b16 %v2845, %v2843
        %v2908 = vpack.c.b16 %v2848, %v2846
        %v2909 = vpack.c.b16 %v2849, %v2847
        %v2910 = vpack.c.b16 %v2852, %v2850
        %v2911 = vpack.c.b16 %v2853, %v2851
        %v2912 = vpack.c.b16 %v2856, %v2854
        %v2913 = vpack.c.b16 %v2857, %v2855
        %v2914 = vpack.c.b16 %v2860, %v2858
        %v2915 = vpack.c.b16 %v2861, %v2859
        %v2916 = vpack.c.b16 %v2864, %v2862
        %v2917 = vpack.c.b16 %v2865, %v2863
        %v2918 = vpack.c.b16 %v2868, %v2866
        %v2919 = vpack.c.b16 %v2869, %v2867
        %v2920 = vpack.c.b16 %v2872, %v2870
        %v2921 = vpack.c.b16 %v2873, %v2871
        %v2922 = vpack.c.b16 %v2876, %v2874
        %v2923 = vpack.c.b16 %v2877, %v2875
        %v2924 = vpack.c.b16 %v2880, %v2878
        %v2925 = vpack.c.b16 %v2881, %v2879
        %v2926 = vpack.c.b16 %v2884, %v2882
        %v2927 = vpack.c.b16 %v2885, %v2883
        %v2928 = vpack.c.b16 %v2888, %v2886
        %v2929 = vpack.c.b16 %v2889, %v2887
        %v2930 = vpack.c.b16 %v2892, %v2890
        %v2931 = vpack.c.b16 %v2893, %v2891
        %v2932 = vpack.c.b16 %v2896, %v2894
        %v2933 = vpack.c.b16 %v2897, %v2895
        %v2934 = vpack.c.b16 %v2900, %v2898
        %v2935 = vpack.c.b16 %v2901, %v2899
        %v2936 = vpack.c.b16 %v2904, %v2902
        %v2937 = vpack.c.b16 %v2905, %v2903
        %2970 = vmatprep.subr.bf16.mxu0 %v2907
        %2971 = vmatpush1.bf16.msra.mxu0 %v2906
        %2972 = vmatprep.subr.bf16.mxu0 %v2909
        %2973 = vmatpush1.bf16.msra.mxu0 %v2908
        %2974 = vmatprep.subr.bf16.mxu0 %v2911
        %2975 = vmatpush1.bf16.msra.mxu0 %v2910
        %2976 = vmatprep.subr.bf16.mxu0 %v2913
        %2977 = vmatpush1.bf16.msra.mxu0 %v2912
        %2978 = vmatprep.subr.bf16.mxu0 %v2915
        %2979 = vmatpush1.bf16.msra.mxu0 %v2914
        %2980 = vmatprep.subr.bf16.mxu0 %v2917
        %2981 = vmatpush1.bf16.msra.mxu0 %v2916
        %2982 = vmatprep.subr.bf16.mxu0 %v2919
        %2983 = vmatpush1.bf16.msra.mxu0 %v2918
        %2984 = vmatprep.subr.bf16.mxu0 %v2921
        %2985 = vmatpush1.bf16.msra.mxu0 %v2920
        %2986 = vmatprep.subr.bf16.mxu0 %v2923
        %2987 = vmatpush1.bf16.msra.mxu0 %v2922
        %2988 = vmatprep.subr.bf16.mxu0 %v2925
        %2989 = vmatpush1.bf16.msra.mxu0 %v2924
        %2990 = vmatprep.subr.bf16.mxu0 %v2927
        %2991 = vmatpush1.bf16.msra.mxu0 %v2926
        %2992 = vmatprep.subr.bf16.mxu0 %v2929
        %2993 = vmatpush1.bf16.msra.mxu0 %v2928
        %2994 = vmatprep.subr.bf16.mxu0 %v2931
        %2995 = vmatpush1.bf16.msra.mxu0 %v2930
        %2996 = vmatprep.subr.bf16.mxu0 %v2933
        %2997 = vmatpush1.bf16.msra.mxu0 %v2932
        %2998 = vmatprep.subr.bf16.mxu0 %v2935
        %2999 = vmatpush1.bf16.msra.mxu0 %v2934
        %3000 = vmatprep.subr.bf16.mxu0 %v2937
        %3001 = vmatpush1.bf16.msra.mxu0 %v2936
        %3002 = vmatprep.mubr.bf16.mxu0 %v2768
        %3003 = vmatmul.mubr.bf16.gmra.mrb[0].mxu0 %v2767
        %v3004 = vpop.f32.mrb[0].mxu0
        %v3005 = vadd.f32 0.0, %v3004
        %v3006 = vpop.f32.mrb[0].mxu0
        %v3007 = vadd.f32 0.0, %v3006
        %v3008 = vpop.f32.mrb[0].mxu0
        %v3009 = vadd.f32 0.0, %v3008
        %v3010 = vpop.f32.mrb[0].mxu0
        %v3011 = vadd.f32 0.0, %v3010
        %3012 = vmatprep.mubr.bf16.mxu0 %v2770
        %3013 = vmatmul.mubr.bf16.gmra.mrb[0].mxu0 %v2769
        %v3014 = vpop.f32.mrb[0].mxu0
        %v3015 = vadd.f32 0.0, %v3014
        %v3016 = vpop.f32.mrb[0].mxu0
        %v3017 = vadd.f32 0.0, %v3016
        %v3018 = vpop.f32.mrb[0].mxu0
        %v3019 = vadd.f32 0.0, %v3018
        %v3020 = vpop.f32.mrb[0].mxu0
        %v3021 = vadd.f32 0.0, %v3020
        %3022 = vmatprep.mubr.bf16.mxu0 %v2772
        %3023 = vmatmul.mubr.bf16.gmra.mrb[0].mxu0 %v2771
        %v3024 = vpop.f32.mrb[0].mxu0
        %v3025 = vadd.f32 0.0, %v3024
        %v3026 = vpop.f32.mrb[0].mxu0
        %v3027 = vadd.f32 0.0, %v3026
        %v3028 = vpop.f32.mrb[0].mxu0
        %v3029 = vadd.f32 0.0, %v3028
        %v3030 = vpop.f32.mrb[0].mxu0
        %v3031 = vadd.f32 0.0, %v3030
        %3032 = vmatprep.mubr.bf16.mxu0 %v2774
        %3033 = vmatmul.mubr.bf16.gmra.mrb[0].mxu0 %v2773
        %v3034 = vpop.f32.mrb[0].mxu0
        %v3035 = vadd.f32 0.0, %v3034
        %v3036 = vpop.f32.mrb[0].mxu0
        %v3037 = vadd.f32 0.0, %v3036
        %v3038 = vpop.f32.mrb[0].mxu0
        %v3039 = vadd.f32 0.0, %v3038
        %v3040 = vpop.f32.mrb[0].mxu0
        %v3041 = vadd.f32 0.0, %v3040
        %3042 = vmatprep.mubr.bf16.mxu0 %v2776
        %3043 = vmatmul.mubr.bf16.gmra.mrb[0].mxu0 %v2775
        %v3044 = vpop.f32.mrb[0].mxu0
        %v3045 = vadd.f32 0.0, %v3044
        %v3046 = vpop.f32.mrb[0].mxu0
        %v3047 = vadd.f32 0.0, %v3046
        %v3048 = vpop.f32.mrb[0].mxu0
        %v3049 = vadd.f32 0.0, %v3048
        %v3050 = vpop.f32.mrb[0].mxu0
        %v3051 = vadd.f32 0.0, %v3050
        %3052 = vdwg.mxu0
        %v3053 = vadd.f32 %v2681, %v3005
        %v3054 = vadd.f32 %v2682, %v3007
        %v3055 = vadd.f32 %v2683, %v3009
        %v3056 = vadd.f32 %v2684, %v3011
        %v3057 = vadd.f32 %v2685, %v3015
        %v3058 = vadd.f32 %v2686, %v3017
        %v3059 = vadd.f32 %v2687, %v3019
        %v3060 = vadd.f32 %v2688, %v3021
        %v3061 = vadd.f32 %v2689, %v3025
        %v3062 = vadd.f32 %v2690, %v3027
        %v3063 = vadd.f32 %v2691, %v3029
        %v3064 = vadd.f32 %v2692, %v3031
        %v3065 = vadd.f32 %v2693, %v3035
        %v3066 = vadd.f32 %v2694, %v3037
        %v3067 = vadd.f32 %v2695, %v3039
        %v3068 = vadd.f32 %v2696, %v3041
        %v3069 = vadd.f32 %v2697, %v3045
        %v3070 = vadd.f32 %v2698, %v3047
        %v3071 = vadd.f32 %v2699, %v3049
        %v3072 = vadd.f32 %v2700, %v3051
        %v3073 = vld [vmem:[%s919] sm:$0x3]
        %v3075 = vlaneseq
        %v3076 = vshrl.u32 %v3075, 7
        %v3077 = vsub.s32 0, %v3076
        %v3078 = vrot.slane %v3073, %v3077
        %v3079 = vlaneseq
        %v3080 = vshrl.u32 %v3079, 7
        %v3081 = vsub.s32 1, %v3080
        %v3082 = vrot.slane %v3073, %v3081
        %v3085 = vadd.f32 %v3053, %v3078
        %v3086 = vadd.f32 %v3054, %v3082
        %v3087 = vadd.f32 %v3055, %v3078
        %v3088 = vadd.f32 %v3056, %v3082
        %v3089 = vadd.f32 %v3057, %v3078
        %v3090 = vadd.f32 %v3058, %v3082
        %v3091 = vadd.f32 %v3059, %v3078
        %v3092 = vadd.f32 %v3060, %v3082
        %v3093 = vadd.f32 %v3061, %v3078
        %v3094 = vadd.f32 %v3062, %v3082
        %v3095 = vadd.f32 %v3063, %v3078
        %v3096 = vadd.f32 %v3064, %v3082
        %v3097 = vadd.f32 %v3065, %v3078
        %v3098 = vadd.f32 %v3066, %v3082
        %v3099 = vadd.f32 %v3067, %v3078
        %v3100 = vadd.f32 %v3068, %v3082
        %v3101 = vadd.f32 %v3069, %v3078
        %v3102 = vadd.f32 %v3070, %v3082
        %v3103 = vadd.f32 %v3071, %v3078
        %v3104 = vadd.f32 %v3072, %v3082
        %v3105 = vmax.f32 %v3085, 0.0
        %v3106 = vmax.f32 %v3086, 0.0
        %v3107 = vmax.f32 %v3087, 0.0
        %v3108 = vmax.f32 %v3088, 0.0
        %v3109 = vmax.f32 %v3089, 0.0
        %v3110 = vmax.f32 %v3090, 0.0
        %v3111 = vmax.f32 %v3091, 0.0
        %v3112 = vmax.f32 %v3092, 0.0
        %v3113 = vmax.f32 %v3093, 0.0
        %v3114 = vmax.f32 %v3094, 0.0
        %v3115 = vmax.f32 %v3095, 0.0
        %v3116 = vmax.f32 %v3096, 0.0
        %v3117 = vmax.f32 %v3097, 0.0
        %v3118 = vmax.f32 %v3098, 0.0
        %v3119 = vmax.f32 %v3099, 0.0
        %v3120 = vmax.f32 %v3100, 0.0
        %v3121 = vmax.f32 %v3101, 0.0
        %v3122 = vmax.f32 %v3102, 0.0
        %v3123 = vmax.f32 %v3103, 0.0
        %v3124 = vmax.f32 %v3104, 0.0
        %v3125 = vld [vmem:[%s3] sm:$0xff]
        %v3126 = vld [vmem:[%s3 + $0x8] sm:$0xff]
        %v3127 = vld [vmem:[%s3 + $0x10] sm:$0xff]
        %v3128 = vld [vmem:[%s3 + $0x18] sm:$0xff]
        %v3129 = vld [vmem:[%s3 + $0x20] sm:$0xff]
        %v3130 = vld [vmem:[%s3 + $0x28] sm:$0xff]
        %v3131 = vld [vmem:[%s3 + $0x30] sm:$0xff]
        %v3132 = vld [vmem:[%s3 + $0x38] sm:$0xff]
        %v3133 = vld [vmem:[%s3 + $0x40] sm:$0xff]
        %v3134 = vld [vmem:[%s3 + $0x48] sm:$0xff]
        %3136 = vset.pattern.permute.xlu0 0
        %3137 = vperm.xlu0 %3136, %v3125
        %v3138 = vpop.permute.xlu0 %3137
        %3141 = vset.pattern.permute.xlu0 0
        %3142 = vperm.xlu0 %3141, %v3126
        %v3143 = vpop.permute.xlu0 %3142
        %3146 = vset.pattern.permute.xlu0 0
        %3147 = vperm.xlu0 %3146, %v3127
        %v3148 = vpop.permute.xlu0 %3147
        %3151 = vset.pattern.permute.xlu0 0
        %3152 = vperm.xlu0 %3151, %v3128
        %v3153 = vpop.permute.xlu0 %3152
        %3156 = vset.pattern.permute.xlu0 0
        %3157 = vperm.xlu0 %3156, %v3129
        %v3158 = vpop.permute.xlu0 %3157
        %3161 = vset.pattern.permute.xlu0 0
        %3162 = vperm.xlu0 %3161, %v3130
        %v3163 = vpop.permute.xlu0 %3162
        %3166 = vset.pattern.permute.xlu0 0
        %3167 = vperm.xlu0 %3166, %v3131
        %v3168 = vpop.permute.xlu0 %3167
        %3171 = vset.pattern.permute.xlu0 0
        %3172 = vperm.xlu0 %3171, %v3132
        %v3173 = vpop.permute.xlu0 %3172
        %3176 = vset.pattern.permute.xlu0 0
        %3177 = vperm.xlu0 %3176, %v3133
        %v3178 = vpop.permute.xlu0 %3177
        %3181 = vset.pattern.permute.xlu0 0
        %3182 = vperm.xlu0 %3181, %v3134
        %v3183 = vpop.permute.xlu0 %3182
        %v3185 = vmul.f32 %v3105, %v3138
        %v3186 = vmul.f32 %v3106, %v3138
        %v3187 = vmul.f32 %v3107, %v3143
        %v3188 = vmul.f32 %v3108, %v3143
        %v3189 = vmul.f32 %v3109, %v3148
        %v3190 = vmul.f32 %v3110, %v3148
        %v3191 = vmul.f32 %v3111, %v3153
        %v3192 = vmul.f32 %v3112, %v3153
        %v3193 = vmul.f32 %v3113, %v3158
        %v3194 = vmul.f32 %v3114, %v3158
        %v3195 = vmul.f32 %v3115, %v3163
        %v3196 = vmul.f32 %v3116, %v3163
        %v3197 = vmul.f32 %v3117, %v3168
        %v3198 = vmul.f32 %v3118, %v3168
        %v3199 = vmul.f32 %v3119, %v3173
        %v3200 = vmul.f32 %v3120, %v3173
        %v3201 = vmul.f32 %v3121, %v3178
        %v3202 = vmul.f32 %v3122, %v3178
        %v3203 = vmul.f32 %v3123, %v3183
        %v3204 = vmul.f32 %v3124, %v3183
        %v3205 = vadd.f32 %v3185, %v3187
        %v3206 = vadd.f32 %v3205, %v3189
        %v3207 = vadd.f32 %v3206, %v3191
        %v3208 = vadd.f32 %v3207, %v3193
        %v3209 = vadd.f32 %v3208, %v3195
        %v3210 = vadd.f32 %v3209, %v3197
        %v3211 = vadd.f32 %v3210, %v3199
        %v3212 = vadd.f32 %v3211, %v3201
        %v3213 = vadd.f32 %v3212, %v3203
        %v3214 = vrot.slane %v3213, 4
        %v3215 = vadd.f32 %v3213, %v3214
        %v3216 = vrot.slane %v3215, 2
        %v3217 = vadd.f32 %v3215, %v3216
        %v3218 = vrot.slane %v3217, 1
        %v3219 = vadd.f32 %v3217, %v3218
        %v3220 = vadd.f32 %v3186, %v3188
        %v3221 = vadd.f32 %v3220, %v3190
        %v3222 = vadd.f32 %v3221, %v3192
        %v3223 = vadd.f32 %v3222, %v3194
        %v3224 = vadd.f32 %v3223, %v3196
        %v3225 = vadd.f32 %v3224, %v3198
        %v3226 = vadd.f32 %v3225, %v3200
        %v3227 = vadd.f32 %v3226, %v3202
        %v3228 = vadd.f32 %v3227, %v3204
        %v3229 = vrot.slane %v3228, 4
        %v3230 = vadd.f32 %v3228, %v3229
        %v3231 = vrot.slane %v3230, 2
        %v3232 = vadd.f32 %v3230, %v3231
        %v3233 = vrot.slane %v3232, 1
        %v3234 = vadd.f32 %v3232, %v3233
        %v3237 = vcombine.low %v3219, %v3234
        %v3239 = vunpack.c.l.s4 1966171168
        %v3240 = vunpack.c.0.s8 %v3239
        %v3241 = vlaneseq
        %v3242 = vshrl.u32 %v3241, 7
        %v3243 = vsub.s32 %v3240, %v3242
        %v3244 = vrot.slane %v3237, %v3243
        %v3246 = vunpack.c.l.s4 1966171168
        %v3247 = vunpack.c.0.s8 %v3246
        %v3248 = vlaneseq
        %v3249 = vshrl.u32 %v3248, 7
        %v3250 = vsub.s32 %v3247, %v3249
        %v3251 = vrot.slane %v3244, %v3250
        %v3253 = vlaneseq
        %vm3254 = vcmp.ge.s32.totalorder %v3253, 0
        %vm3255 = vcmp.lt.s32.totalorder %v3253, 256
        %vm3256 = vmand %vm3254, %vm3255
        %3257 = vst.msk [vmem:[%s928] sm:$0x3] %vm3256, %v3251
        %s3258 = smul.u32 2, %s19
        %p3259 = scmp.lt.s32.totalorder %s20, 1
        %s3260 = scalar_select %p3259, %s20, 1
        %p3261 = scmp.lt.s32.totalorder %s3258, 3
        %s3262 = scalar_select %p3261, %s3258, 3
        %s3263 = smul.addr %s3260, 4
        %s3264 = sadd.s32 %s3262, %s3263
        %s3265 = scalar_lea.vmem %s4, %s3264
        // Predicated region
        $region75: #{avmodel_forward.9} parent=69 // pred_check
          %p3266 = pneg %p146
        $region76: #{avmodel_forward.9} parent=69 // pred_check_branch
          %3268 = sbr.rel (%p3266) target = $region78
        $region77: #{avmodel_forward.9} parent=69 // pred_region
          %s3269 = smul.u32 2, %s19
        $region78: #{avmodel_forward.9} parent=69 // pred_fallthru
          _
      $region70: #{avmodel_forward.9} parent=5 // pred_fallthru
        _
      %p3270 = scmp.le.s32.totalorder 2, %s10
      // Predicated region
      $region79: #{avmodel_forward.9} parent=5 // pred_check
        %p3271 = pneg %p3270
      $region80: #{avmodel_forward.9} parent=5 // pred_check_branch
        %3273 = sbr.rel (%p3271) target = $region82
      $region81: #{avmodel_forward.9} parent=5 // pred_region
        %s3274 = ssub.s32 %s10, 2
        // Predicated region
        $region83: #{avmodel_forward.9} parent=81 // pred_check
          %p3275 = pneg %p152
        $region84: #{avmodel_forward.9} parent=81 // pred_check_branch
          %3277 = sbr.rel (%p3275) target = $region86
        $region85: #{avmodel_forward.9} parent=81 // pred_region
          %s3278 = smul.u32 2, %s21
          %p3279 = scmp.lt.s32.totalorder %s22, 1
          %s3280 = scalar_select %p3279, %s22, 1
          %p3281 = scmp.lt.s32.totalorder %s3278, 3
          %s3282 = scalar_select %p3281, %s3278, 3
          %s3283 = smul.addr %s3280, 4
          %s3284 = sadd.s32 %s3282, %s3283
          %s3285 = scalar_lea.vmem %s4, %s3284
        $region86: #{avmodel_forward.9} parent=81 // pred_fallthru
          _
      $region82: #{avmodel_forward.9} parent=5 // pred_fallthru
        _
    $region6: #{avmodel_forward.9} parent=1 // loop_footer
      %s14 = sadd.s32 1, %s10
    $region7: #{avmodel_forward.9} parent=1 // loop_footer_branch
      %9 = sbr.rel target = $region3
    $region8: #{avmodel_forward.9} parent=1 // loop_exit
      _

</llo_original>
